<compile_context>
chip_gen: v7x
topology: tpu7x:2x2x1
jax: 0.10.0
libtpu: 0.0.40
codegen_flags: <defaults>
</compile_context>

<pallas_src>
import functools

import jax
import jax.numpy as jnp
from jax.experimental import pallas as pl
from jax.experimental.pallas import tpu as pltpu

_EPS = 1e-5
_VMEM = pl.BlockSpec(memory_space=pltpu.MemorySpace.VMEM)


def _batchnorm(y):
    """Train-mode BatchNorm (weight=1, bias=0, biased batch variance), per channel.

    y: (M=N*H*W, C) f32.
    """
    mean = jnp.mean(y, axis=0, keepdims=True)
    var = jnp.mean(jnp.square(y - mean), axis=0, keepdims=True)
    return (y - mean) * jax.lax.rsqrt(var + _EPS)


def _bottleneck_kernel(*refs, n, h, w, has_downsample):
    """Fused Bottleneck2 forward on flattened NHWC activations."""
    if has_downsample:
        x_ref, w1_ref, w2_ref, w3_ref, wd_ref, out_ref, h1pad_ref = refs
    else:
        x_ref, w1_ref, w2_ref, w3_ref, out_ref, h1pad_ref = refs
        wd_ref = None

    m = n * h * w
    width = w1_ref.shape[1]

    x = x_ref[...]                               # (M, Cin) f32
    x_bf = x.astype(jnp.bfloat16)                # MXU operand

    # ---- conv1 (1x1) -> bn1 -> relu -------------------------------------
    y1 = jnp.dot(x_bf, w1_ref[...], preferred_element_type=jnp.float32)
    y1 = jnp.maximum(_batchnorm(y1), 0.0)        # (M, width) f32

    # Zero-padded activation kept in VMEM scratch for the 3x3 taps.
    h1pad_ref[...] = jnp.zeros(h1pad_ref.shape, h1pad_ref.dtype)
    h1pad_ref[:, 1:h + 1, 1:w + 1, :] = y1.reshape(n, h, w, width)

    # ---- conv2 (3x3, stride 1, pad 1) as 9 accumulated matmuls ----------
    acc = jnp.zeros((m, width), jnp.float32)
    for i in range(3):
        for j in range(3):
            tap = h1pad_ref[:, i:i + h, j:j + w, :].reshape(m, width)
            acc = acc + jnp.dot(tap.astype(jnp.bfloat16), w2_ref[i * 3 + j],
                                preferred_element_type=jnp.float32)
    y2 = jnp.maximum(_batchnorm(acc), 0.0)       # (M, width) f32

    # ---- conv3 (1x1) -> bn3 ----------------------------------------------
    y3 = jnp.dot(y2.astype(jnp.bfloat16), w3_ref[...],
                 preferred_element_type=jnp.float32)
    y3 = _batchnorm(y3)                          # (M, Cout) f32

    # ---- residual (optional conv1x1 + bn downsample) -> relu -------------
    if has_downsample:
        identity = _batchnorm(
            jnp.dot(x_bf, wd_ref[...], preferred_element_type=jnp.float32))
    else:
        identity = x                             # Cin == Cout
    out_ref[...] = jnp.maximum(y3 + identity, 0.0)


def bottleneck2_forward(x_nchw, params):
    """Bottleneck2 forward. x_nchw: (N, Cin, H, W) f32 -> (N, Cout, H, W) f32.

    params:
      conv1:     (Cin, width)        bf16   (1x1)
      conv2:     (9, width, width)   bf16   (3x3, tap index = ki*3 + kj)
      conv3:     (width, Cout)       bf16   (1x1), Cout = planes * 4
      down_conv: (Cin, Cout)         bf16   (optional 1x1 downsample; its BN is
                                              applied inside the kernel)
    """
    n, cin, h, w = x_nchw.shape
    w1, w2, w3 = params["conv1"], params["conv2"], params["conv3"]
    width, cout = w1.shape[1], w3.shape[1]
    has_down = "down_conv" in params
    if not has_down:
        assert cin == cout, "identity shortcut requires Cin == Cout"

    m = n * h * w
    x = jnp.transpose(x_nchw, (0, 2, 3, 1)).reshape(m, cin).astype(jnp.float32)
    inputs = [x, w1, w2, w3] + ([params["down_conv"]] if has_down else [])

    flops = 2 * m * (cin * width + 9 * width * width + width * cout
                     + (cin * cout if has_down else 0))
    bytes_accessed = 4 * m * (cin + cout) + 2 * sum(int(v.size) for v in inputs[1:])

    out = pl.pallas_call(
        functools.partial(_bottleneck_kernel, n=n, h=h, w=w,
                          has_downsample=has_down),
        out_shape=jax.ShapeDtypeStruct((m, cout), jnp.float32),
        in_specs=[_VMEM] * len(inputs),
        out_specs=_VMEM,
        scratch_shapes=[pltpu.VMEM((n, h + 2, w + 2, width), jnp.float32)],
        cost_estimate=pl.CostEstimate(flops=flops, transcendentals=0,
                                      bytes_accessed=bytes_accessed),
    )(*inputs)
    return jnp.transpose(out.reshape(n, h, w, cout), (0, 3, 1, 2))


if __name__ == "__main__":
    key = jax.random.PRNGKey(0)
    ks = jax.random.split(key, 10)

    def _w(k, shape, fan_in):
        std = (2.0 / fan_in) ** 0.5
        return (std * jax.random.normal(k, shape, jnp.float32)).astype(jnp.bfloat16)

    n, h, w = 2, 16, 16
    fwd = jax.jit(bottleneck2_forward)

    # Case 1: Bottleneck2(inplanes=64, planes=64) with conv1x1+BN downsample
    inplanes, planes = 64, 64
    width, cout = planes, planes * 4
    params1 = {
        "conv1": _w(ks[0], (inplanes, width), inplanes),
        "conv2": _w(ks[1], (9, width, width), 9 * width),
        "conv3": _w(ks[2], (width, cout), width),
        "down_conv": _w(ks[3], (inplanes, cout), inplanes),
    }
    x1 = jax.random.normal(ks[4], (n, inplanes, h, w), jnp.float32)
    y1 = fwd(x1, params1)
    jax.block_until_ready(y1)
    assert y1.shape == (n, cout, h, w) and y1.dtype == jnp.float32
    assert bool(jnp.all(jnp.isfinite(y1))) and bool(jnp.all(y1 >= 0))

    # Case 2: Bottleneck2(inplanes=256, planes=64), identity shortcut
    inplanes, planes = 256, 64
    width, cout = planes, planes * 4
    params2 = {
        "conv1": _w(ks[5], (inplanes, width), inplanes),
        "conv2": _w(ks[6], (9, width, width), 9 * width),
        "conv3": _w(ks[7], (width, cout), width),
    }
    x2 = jax.random.normal(ks[8], (n, inplanes, h, w), jnp.float32)
    y2 = fwd(x2, params2)
    jax.block_until_ready(y2)
    assert y2.shape == (n, cout, h, w) and y2.dtype == jnp.float32
    assert bool(jnp.all(jnp.isfinite(y2))) and bool(jnp.all(y2 >= 0))

    print("KERNEL_OK")
</pallas_src>

<mosaic_0001>
module attributes {stable_mosaic.version = 11 : i64} {
  func.func @_bottleneck_kernel(%arg0: memref<512x64xf32, #tpu.memory_space<vmem>>, %arg1: memref<64x64xbf16, #tpu.memory_space<vmem>>, %arg2: memref<9x64x64xbf16, #tpu.memory_space<vmem>>, %arg3: memref<64x256xbf16, #tpu.memory_space<vmem>>, %arg4: memref<64x256xbf16, #tpu.memory_space<vmem>>, %arg5: memref<512x256xf32, #tpu.memory_space<vmem>>, %arg6: memref<2x18x18x64xf32, #tpu.memory_space<vmem>>) attributes {dimension_semantics = [], scalar_prefetch = 0 : i64, scratch_operands = 1 : i64, tpu.core_type = #tpu.core_type<tc>} {
    %c0 = arith.constant 0 : index
    %c0_0 = arith.constant 0 : index
    %0 = vector.load %arg0[%c0, %c0_0] : memref<512x64xf32, #tpu.memory_space<vmem>>, vector<512x64xf32>
    %1 = arith.truncf %0 : vector<512x64xf32> to vector<512x64xbf16>
    %c0_1 = arith.constant 0 : index
    %c0_2 = arith.constant 0 : index
    %2 = vector.load %arg1[%c0_1, %c0_2] : memref<64x64xbf16, #tpu.memory_space<vmem>>, vector<64x64xbf16>
    %cst = arith.constant dense<0.000000e+00> : vector<512x64xf32>
    %3 = tpu.matmul %1, %2, %cst {dimension_numbers = #tpu.dot_dimension_numbers<[1], [0], [0], [1], [0, 0, 1, 1], [], []>} : vector<512x64xbf16>, vector<64x64xbf16>, vector<512x64xf32> -> vector<512x64xf32>
    %cst_3 = arith.constant dense<0.000000e+00> : vector<64xf32>
    %4 = vector.multi_reduction <add>, %3, %cst_3 [0] : vector<512x64xf32> to vector<64xf32>
    %5 = vector.shape_cast %4 : vector<64xf32> to vector<1x64xf32>
    %cst_4 = arith.constant 5.120000e+02 : f32
    %6 = vector.broadcast %cst_4 : f32 to vector<1x64xf32>
    %7 = arith.divf %5, %6 : vector<1x64xf32>
    %8 = vector.broadcast %7 : vector<1x64xf32> to vector<512x64xf32>
    %9 = arith.subf %3, %8 : vector<512x64xf32>
    %10 = arith.mulf %9, %9 : vector<512x64xf32>
    %cst_5 = arith.constant dense<0.000000e+00> : vector<64xf32>
    %11 = vector.multi_reduction <add>, %10, %cst_5 [0] : vector<512x64xf32> to vector<64xf32>
    %12 = vector.shape_cast %11 : vector<64xf32> to vector<1x64xf32>
    %cst_6 = arith.constant 5.120000e+02 : f32
    %13 = vector.broadcast %cst_6 : f32 to vector<1x64xf32>
    %14 = arith.divf %12, %13 : vector<1x64xf32>
    %15 = vector.broadcast %7 : vector<1x64xf32> to vector<512x64xf32>
    %16 = arith.subf %3, %15 : vector<512x64xf32>
    %cst_7 = arith.constant 9.99999974E-6 : f32
    %17 = vector.broadcast %cst_7 : f32 to vector<1x64xf32>
    %18 = arith.addf %14, %17 : vector<1x64xf32>
    %19 = math.rsqrt %18 : vector<1x64xf32>
    %20 = vector.broadcast %19 : vector<1x64xf32> to vector<512x64xf32>
    %21 = arith.mulf %16, %20 : vector<512x64xf32>
    %cst_8 = arith.constant 0.000000e+00 : f32
    %22 = vector.broadcast %cst_8 : f32 to vector<512x64xf32>
    %23 = arith.maximumf %21, %22 : vector<512x64xf32>
    %cst_9 = arith.constant 0.000000e+00 : f32
    %24 = vector.broadcast %cst_9 : f32 to vector<2x18x18x64xf32>
    %c0_10 = arith.constant 0 : index
    %c0_11 = arith.constant 0 : index
    %c0_12 = arith.constant 0 : index
    %c0_13 = arith.constant 0 : index
    %25 = vector.load %arg6[%c0_10, %c0_11, %c0_12, %c0_13] : memref<2x18x18x64xf32, #tpu.memory_space<vmem>>, vector<2x18x18x64xf32>
    tpu.vector_store %arg6[%c0_10, %c0_11, %c0_12, %c0_13], %24 {strides = array<i32>} : memref<2x18x18x64xf32, #tpu.memory_space<vmem>>, vector<2x18x18x64xf32>,
    %26 = vector.shape_cast %23 : vector<512x64xf32> to vector<2x16x16x64xf32>
    %c0_14 = arith.constant 0 : index
    %c1 = arith.constant 1 : index
    %c1_15 = arith.constant 1 : index
    %c0_16 = arith.constant 0 : index
    %27 = vector.load %arg6[%c0_14, %c1, %c1_15, %c0_16] : memref<2x18x18x64xf32, #tpu.memory_space<vmem>>, vector<2x16x16x64xf32>
    tpu.vector_store %arg6[%c0_14, %c1, %c1_15, %c0_16], %26 {strides = array<i32>} : memref<2x18x18x64xf32, #tpu.memory_space<vmem>>, vector<2x16x16x64xf32>,
    %cst_17 = arith.constant 0.000000e+00 : f32
    %28 = vector.broadcast %cst_17 : f32 to vector<512x64xf32>
    %c0_18 = arith.constant 0 : index
    %c0_19 = arith.constant 0 : index
    %c0_20 = arith.constant 0 : index
    %c0_21 = arith.constant 0 : index
    %29 = vector.load %arg6[%c0_18, %c0_19, %c0_20, %c0_21] : memref<2x18x18x64xf32, #tpu.memory_space<vmem>>, vector<2x16x16x64xf32>
    %30 = vector.shape_cast %29 : vector<2x16x16x64xf32> to vector<512x64xf32>
    %31 = arith.truncf %30 : vector<512x64xf32> to vector<512x64xbf16>
    %c0_22 = arith.constant 0 : index
    %c0_23 = arith.constant 0 : index
    %c0_24 = arith.constant 0 : index
    %32 = vector.load %arg2[%c0_22, %c0_23, %c0_24] : memref<9x64x64xbf16, #tpu.memory_space<vmem>>, vector<1x64x64xbf16>
    %33 = vector.shape_cast %32 : vector<1x64x64xbf16> to vector<64x64xbf16>
    %cst_25 = arith.constant dense<0.000000e+00> : vector<512x64xf32>
    %34 = tpu.matmul %31, %33, %cst_25 {dimension_numbers = #tpu.dot_dimension_numbers<[1], [0], [0], [1], [0, 0, 1, 1], [], []>} : vector<512x64xbf16>, vector<64x64xbf16>, vector<512x64xf32> -> vector<512x64xf32>
    %35 = arith.addf %28, %34 : vector<512x64xf32>
    %c0_26 = arith.constant 0 : index
    %c0_27 = arith.constant 0 : index
    %c1_28 = arith.constant 1 : index
    %c0_29 = arith.constant 0 : index
    %36 = vector.load %arg6[%c0_26, %c0_27, %c1_28, %c0_29] : memref<2x18x18x64xf32, #tpu.memory_space<vmem>>, vector<2x16x16x64xf32>
    %37 = vector.shape_cast %36 : vector<2x16x16x64xf32> to vector<512x64xf32>
    %38 = arith.truncf %37 : vector<512x64xf32> to vector<512x64xbf16>
    %c1_30 = arith.constant 1 : index
    %c0_31 = arith.constant 0 : index
    %c0_32 = arith.constant 0 : index
    %39 = vector.load %arg2[%c1_30, %c0_31, %c0_32] : memref<9x64x64xbf16, #tpu.memory_space<vmem>>, vector<1x64x64xbf16>
    %40 = vector.shape_cast %39 : vector<1x64x64xbf16> to vector<64x64xbf16>
    %cst_33 = arith.constant dense<0.000000e+00> : vector<512x64xf32>
    %41 = tpu.matmul %38, %40, %cst_33 {dimension_numbers = #tpu.dot_dimension_numbers<[1], [0], [0], [1], [0, 0, 1, 1], [], []>} : vector<512x64xbf16>, vector<64x64xbf16>, vector<512x64xf32> -> vector<512x64xf32>
    %42 = arith.addf %35, %41 : vector<512x64xf32>
    %c0_34 = arith.constant 0 : index
    %c0_35 = arith.constant 0 : index
    %c2 = arith.constant 2 : index
    %c0_36 = arith.constant 0 : index
    %43 = vector.load %arg6[%c0_34, %c0_35, %c2, %c0_36] : memref<2x18x18x64xf32, #tpu.memory_space<vmem>>, vector<2x16x16x64xf32>
    %44 = vector.shape_cast %43 : vector<2x16x16x64xf32> to vector<512x64xf32>
    %45 = arith.truncf %44 : vector<512x64xf32> to vector<512x64xbf16>
    %c2_37 = arith.constant 2 : index
    %c0_38 = arith.constant 0 : index
    %c0_39 = arith.constant 0 : index
    %46 = vector.load %arg2[%c2_37, %c0_38, %c0_39] : memref<9x64x64xbf16, #tpu.memory_space<vmem>>, vector<1x64x64xbf16>
    %47 = vector.shape_cast %46 : vector<1x64x64xbf16> to vector<64x64xbf16>
    %cst_40 = arith.constant dense<0.000000e+00> : vector<512x64xf32>
    %48 = tpu.matmul %45, %47, %cst_40 {dimension_numbers = #tpu.dot_dimension_numbers<[1], [0], [0], [1], [0, 0, 1, 1], [], []>} : vector<512x64xbf16>, vector<64x64xbf16>, vector<512x64xf32> -> vector<512x64xf32>
    %49 = arith.addf %42, %48 : vector<512x64xf32>
    %c0_41 = arith.constant 0 : index
    %c1_42 = arith.constant 1 : index
    %c0_43 = arith.constant 0 : index
    %c0_44 = arith.constant 0 : index
    %50 = vector.load %arg6[%c0_41, %c1_42, %c0_43, %c0_44] : memref<2x18x18x64xf32, #tpu.memory_space<vmem>>, vector<2x16x16x64xf32>
    %51 = vector.shape_cast %50 : vector<2x16x16x64xf32> to vector<512x64xf32>
    %52 = arith.truncf %51 : vector<512x64xf32> to vector<512x64xbf16>
    %c3 = arith.constant 3 : index
    %c0_45 = arith.constant 0 : index
    %c0_46 = arith.constant 0 : index
    %53 = vector.load %arg2[%c3, %c0_45, %c0_46] : memref<9x64x64xbf16, #tpu.memory_space<vmem>>, vector<1x64x64xbf16>
    %54 = vector.shape_cast %53 : vector<1x64x64xbf16> to vector<64x64xbf16>
    %cst_47 = arith.constant dense<0.000000e+00> : vector<512x64xf32>
    %55 = tpu.matmul %52, %54, %cst_47 {dimension_numbers = #tpu.dot_dimension_numbers<[1], [0], [0], [1], [0, 0, 1, 1], [], []>} : vector<512x64xbf16>, vector<64x64xbf16>, vector<512x64xf32> -> vector<512x64xf32>
    %56 = arith.addf %49, %55 : vector<512x64xf32>
    %c0_48 = arith.constant 0 : index
    %c1_49 = arith.constant 1 : index
    %c1_50 = arith.constant 1 : index
    %c0_51 = arith.constant 0 : index
    %57 = vector.load %arg6[%c0_48, %c1_49, %c1_50, %c0_51] : memref<2x18x18x64xf32, #tpu.memory_space<vmem>>, vector<2x16x16x64xf32>
    %58 = vector.shape_cast %57 : vector<2x16x16x64xf32> to vector<512x64xf32>
    %59 = arith.truncf %58 : vector<512x64xf32> to vector<512x64xbf16>
    %c4 = arith.constant 4 : index
    %c0_52 = arith.constant 0 : index
    %c0_53 = arith.constant 0 : index
    %60 = vector.load %arg2[%c4, %c0_52, %c0_53] : memref<9x64x64xbf16, #tpu.memory_space<vmem>>, vector<1x64x64xbf16>
    %61 = vector.shape_cast %60 : vector<1x64x64xbf16> to vector<64x64xbf16>
    %cst_54 = arith.constant dense<0.000000e+00> : vector<512x64xf32>
    %62 = tpu.matmul %59, %61, %cst_54 {dimension_numbers = #tpu.dot_dimension_numbers<[1], [0], [0], [1], [0, 0, 1, 1], [], []>} : vector<512x64xbf16>, vector<64x64xbf16>, vector<512x64xf32> -> vector<512x64xf32>
    %63 = arith.addf %56, %62 : vector<512x64xf32>
    %c0_55 = arith.constant 0 : index
    %c1_56 = arith.constant 1 : index
    %c2_57 = arith.constant 2 : index
    %c0_58 = arith.constant 0 : index
    %64 = vector.load %arg6[%c0_55, %c1_56, %c2_57, %c0_58] : memref<2x18x18x64xf32, #tpu.memory_space<vmem>>, vector<2x16x16x64xf32>
    %65 = vector.shape_cast %64 : vector<2x16x16x64xf32> to vector<512x64xf32>
    %66 = arith.truncf %65 : vector<512x64xf32> to vector<512x64xbf16>
    %c5 = arith.constant 5 : index
    %c0_59 = arith.constant 0 : index
    %c0_60 = arith.constant 0 : index
    %67 = vector.load %arg2[%c5, %c0_59, %c0_60] : memref<9x64x64xbf16, #tpu.memory_space<vmem>>, vector<1x64x64xbf16>
    %68 = vector.shape_cast %67 : vector<1x64x64xbf16> to vector<64x64xbf16>
    %cst_61 = arith.constant dense<0.000000e+00> : vector<512x64xf32>
    %69 = tpu.matmul %66, %68, %cst_61 {dimension_numbers = #tpu.dot_dimension_numbers<[1], [0], [0], [1], [0, 0, 1, 1], [], []>} : vector<512x64xbf16>, vector<64x64xbf16>, vector<512x64xf32> -> vector<512x64xf32>
    %70 = arith.addf %63, %69 : vector<512x64xf32>
    %c0_62 = arith.constant 0 : index
    %c2_63 = arith.constant 2 : index
    %c0_64 = arith.constant 0 : index
    %c0_65 = arith.constant 0 : index
    %71 = vector.load %arg6[%c0_62, %c2_63, %c0_64, %c0_65] : memref<2x18x18x64xf32, #tpu.memory_space<vmem>>, vector<2x16x16x64xf32>
    %72 = vector.shape_cast %71 : vector<2x16x16x64xf32> to vector<512x64xf32>
    %73 = arith.truncf %72 : vector<512x64xf32> to vector<512x64xbf16>
    %c6 = arith.constant 6 : index
    %c0_66 = arith.constant 0 : index
    %c0_67 = arith.constant 0 : index
    %74 = vector.load %arg2[%c6, %c0_66, %c0_67] : memref<9x64x64xbf16, #tpu.memory_space<vmem>>, vector<1x64x64xbf16>
    %75 = vector.shape_cast %74 : vector<1x64x64xbf16> to vector<64x64xbf16>
    %cst_68 = arith.constant dense<0.000000e+00> : vector<512x64xf32>
    %76 = tpu.matmul %73, %75, %cst_68 {dimension_numbers = #tpu.dot_dimension_numbers<[1], [0], [0], [1], [0, 0, 1, 1], [], []>} : vector<512x64xbf16>, vector<64x64xbf16>, vector<512x64xf32> -> vector<512x64xf32>
    %77 = arith.addf %70, %76 : vector<512x64xf32>
    %c0_69 = arith.constant 0 : index
    %c2_70 = arith.constant 2 : index
    %c1_71 = arith.constant 1 : index
    %c0_72 = arith.constant 0 : index
    %78 = vector.load %arg6[%c0_69, %c2_70, %c1_71, %c0_72] : memref<2x18x18x64xf32, #tpu.memory_space<vmem>>, vector<2x16x16x64xf32>
    %79 = vector.shape_cast %78 : vector<2x16x16x64xf32> to vector<512x64xf32>
    %80 = arith.truncf %79 : vector<512x64xf32> to vector<512x64xbf16>
    %c7 = arith.constant 7 : index
    %c0_73 = arith.constant 0 : index
    %c0_74 = arith.constant 0 : index
    %81 = vector.load %arg2[%c7, %c0_73, %c0_74] : memref<9x64x64xbf16, #tpu.memory_space<vmem>>, vector<1x64x64xbf16>
    %82 = vector.shape_cast %81 : vector<1x64x64xbf16> to vector<64x64xbf16>
    %cst_75 = arith.constant dense<0.000000e+00> : vector<512x64xf32>
    %83 = tpu.matmul %80, %82, %cst_75 {dimension_numbers = #tpu.dot_dimension_numbers<[1], [0], [0], [1], [0, 0, 1, 1], [], []>} : vector<512x64xbf16>, vector<64x64xbf16>, vector<512x64xf32> -> vector<512x64xf32>
    %84 = arith.addf %77, %83 : vector<512x64xf32>
    %c0_76 = arith.constant 0 : index
    %c2_77 = arith.constant 2 : index
    %c2_78 = arith.constant 2 : index
    %c0_79 = arith.constant 0 : index
    %85 = vector.load %arg6[%c0_76, %c2_77, %c2_78, %c0_79] : memref<2x18x18x64xf32, #tpu.memory_space<vmem>>, vector<2x16x16x64xf32>
    %86 = vector.shape_cast %85 : vector<2x16x16x64xf32> to vector<512x64xf32>
    %87 = arith.truncf %86 : vector<512x64xf32> to vector<512x64xbf16>
    %c8 = arith.constant 8 : index
    %c0_80 = arith.constant 0 : index
    %c0_81 = arith.constant 0 : index
    %88 = vector.load %arg2[%c8, %c0_80, %c0_81] : memref<9x64x64xbf16, #tpu.memory_space<vmem>>, vector<1x64x64xbf16>
    %89 = vector.shape_cast %88 : vector<1x64x64xbf16> to vector<64x64xbf16>
    %cst_82 = arith.constant dense<0.000000e+00> : vector<512x64xf32>
    %90 = tpu.matmul %87, %89, %cst_82 {dimension_numbers = #tpu.dot_dimension_numbers<[1], [0], [0], [1], [0, 0, 1, 1], [], []>} : vector<512x64xbf16>, vector<64x64xbf16>, vector<512x64xf32> -> vector<512x64xf32>
    %91 = arith.addf %84, %90 : vector<512x64xf32>
    %cst_83 = arith.constant dense<0.000000e+00> : vector<64xf32>
    %92 = vector.multi_reduction <add>, %91, %cst_83 [0] : vector<512x64xf32> to vector<64xf32>
    %93 = vector.shape_cast %92 : vector<64xf32> to vector<1x64xf32>
    %cst_84 = arith.constant 5.120000e+02 : f32
    %94 = vector.broadcast %cst_84 : f32 to vector<1x64xf32>
    %95 = arith.divf %93, %94 : vector<1x64xf32>
    %96 = vector.broadcast %95 : vector<1x64xf32> to vector<512x64xf32>
    %97 = arith.subf %91, %96 : vector<512x64xf32>
    %98 = arith.mulf %97, %97 : vector<512x64xf32>
    %cst_85 = arith.constant dense<0.000000e+00> : vector<64xf32>
    %99 = vector.multi_reduction <add>, %98, %cst_85 [0] : vector<512x64xf32> to vector<64xf32>
    %100 = vector.shape_cast %99 : vector<64xf32> to vector<1x64xf32>
    %cst_86 = arith.constant 5.120000e+02 : f32
    %101 = vector.broadcast %cst_86 : f32 to vector<1x64xf32>
    %102 = arith.divf %100, %101 : vector<1x64xf32>
    %103 = vector.broadcast %95 : vector<1x64xf32> to vector<512x64xf32>
    %104 = arith.subf %91, %103 : vector<512x64xf32>
    %cst_87 = arith.constant 9.99999974E-6 : f32
    %105 = vector.broadcast %cst_87 : f32 to vector<1x64xf32>
    %106 = arith.addf %102, %105 : vector<1x64xf32>
    %107 = math.rsqrt %106 : vector<1x64xf32>
    %108 = vector.broadcast %107 : vector<1x64xf32> to vector<512x64xf32>
    %109 = arith.mulf %104, %108 : vector<512x64xf32>
    %cst_88 = arith.constant 0.000000e+00 : f32
    %110 = vector.broadcast %cst_88 : f32 to vector<512x64xf32>
    %111 = arith.maximumf %109, %110 : vector<512x64xf32>
    %112 = arith.truncf %111 : vector<512x64xf32> to vector<512x64xbf16>
    %c0_89 = arith.constant 0 : index
    %c0_90 = arith.constant 0 : index
    %113 = vector.load %arg3[%c0_89, %c0_90] : memref<64x256xbf16, #tpu.memory_space<vmem>>, vector<64x256xbf16>
    %cst_91 = arith.constant dense<0.000000e+00> : vector<512x256xf32>
    %114 = tpu.matmul %112, %113, %cst_91 {dimension_numbers = #tpu.dot_dimension_numbers<[1], [0], [0], [1], [0, 0, 1, 1], [], []>} : vector<512x64xbf16>, vector<64x256xbf16>, vector<512x256xf32> -> vector<512x256xf32>
    %cst_92 = arith.constant dense<0.000000e+00> : vector<256xf32>
    %115 = vector.multi_reduction <add>, %114, %cst_92 [0] : vector<512x256xf32> to vector<256xf32>
    %116 = vector.shape_cast %115 : vector<256xf32> to vector<1x256xf32>
    %cst_93 = arith.constant 5.120000e+02 : f32
    %117 = vector.broadcast %cst_93 : f32 to vector<1x256xf32>
    %118 = arith.divf %116, %117 : vector<1x256xf32>
    %119 = vector.broadcast %118 : vector<1x256xf32> to vector<512x256xf32>
    %120 = arith.subf %114, %119 : vector<512x256xf32>
    %121 = arith.mulf %120, %120 : vector<512x256xf32>
    %cst_94 = arith.constant dense<0.000000e+00> : vector<256xf32>
    %122 = vector.multi_reduction <add>, %121, %cst_94 [0] : vector<512x256xf32> to vector<256xf32>
    %123 = vector.shape_cast %122 : vector<256xf32> to vector<1x256xf32>
    %cst_95 = arith.constant 5.120000e+02 : f32
    %124 = vector.broadcast %cst_95 : f32 to vector<1x256xf32>
    %125 = arith.divf %123, %124 : vector<1x256xf32>
    %126 = vector.broadcast %118 : vector<1x256xf32> to vector<512x256xf32>
    %127 = arith.subf %114, %126 : vector<512x256xf32>
    %cst_96 = arith.constant 9.99999974E-6 : f32
    %128 = vector.broadcast %cst_96 : f32 to vector<1x256xf32>
    %129 = arith.addf %125, %128 : vector<1x256xf32>
    %130 = math.rsqrt %129 : vector<1x256xf32>
    %131 = vector.broadcast %130 : vector<1x256xf32> to vector<512x256xf32>
    %132 = arith.mulf %127, %131 : vector<512x256xf32>
    %c0_97 = arith.constant 0 : index
    %c0_98 = arith.constant 0 : index
    %133 = vector.load %arg4[%c0_97, %c0_98] : memref<64x256xbf16, #tpu.memory_space<vmem>>, vector<64x256xbf16>
    %cst_99 = arith.constant dense<0.000000e+00> : vector<512x256xf32>
    %134 = tpu.matmul %1, %133, %cst_99 {dimension_numbers = #tpu.dot_dimension_numbers<[1], [0], [0], [1], [0, 0, 1, 1], [], []>} : vector<512x64xbf16>, vector<64x256xbf16>, vector<512x256xf32> -> vector<512x256xf32>
    %cst_100 = arith.constant dense<0.000000e+00> : vector<256xf32>
    %135 = vector.multi_reduction <add>, %134, %cst_100 [0] : vector<512x256xf32> to vector<256xf32>
    %136 = vector.shape_cast %135 : vector<256xf32> to vector<1x256xf32>
    %cst_101 = arith.constant 5.120000e+02 : f32
    %137 = vector.broadcast %cst_101 : f32 to vector<1x256xf32>
    %138 = arith.divf %136, %137 : vector<1x256xf32>
    %139 = vector.broadcast %138 : vector<1x256xf32> to vector<512x256xf32>
    %140 = arith.subf %134, %139 : vector<512x256xf32>
    %141 = arith.mulf %140, %140 : vector<512x256xf32>
    %cst_102 = arith.constant dense<0.000000e+00> : vector<256xf32>
    %142 = vector.multi_reduction <add>, %141, %cst_102 [0] : vector<512x256xf32> to vector<256xf32>
    %143 = vector.shape_cast %142 : vector<256xf32> to vector<1x256xf32>
    %cst_103 = arith.constant 5.120000e+02 : f32
    %144 = vector.broadcast %cst_103 : f32 to vector<1x256xf32>
    %145 = arith.divf %143, %144 : vector<1x256xf32>
    %146 = vector.broadcast %138 : vector<1x256xf32> to vector<512x256xf32>
    %147 = arith.subf %134, %146 : vector<512x256xf32>
    %cst_104 = arith.constant 9.99999974E-6 : f32
    %148 = vector.broadcast %cst_104 : f32 to vector<1x256xf32>
    %149 = arith.addf %145, %148 : vector<1x256xf32>
    %150 = math.rsqrt %149 : vector<1x256xf32>
    %151 = vector.broadcast %150 : vector<1x256xf32> to vector<512x256xf32>
    %152 = arith.mulf %147, %151 : vector<512x256xf32>
    %153 = arith.addf %132, %152 : vector<512x256xf32>
    %cst_105 = arith.constant 0.000000e+00 : f32
    %154 = vector.broadcast %cst_105 : f32 to vector<512x256xf32>
    %155 = arith.maximumf %153, %154 : vector<512x256xf32>
    %c0_106 = arith.constant 0 : index
    %c0_107 = arith.constant 0 : index
    %156 = vector.load %arg5[%c0_106, %c0_107] : memref<512x256xf32, #tpu.memory_space<vmem>>, vector<512x256xf32>
    tpu.vector_store %arg5[%c0_106, %c0_107], %155 {strides = array<i32>} : memref<512x256xf32, #tpu.memory_space<vmem>>, vector<512x256xf32>,
    return
  }
}

</mosaic_0001>

<llo_original>
// kernel: bottleneck2_forward.1
$region0: #{bottleneck2_forward.1}
  #allocation0 [shape = 'u32[]', space=smem, size = 0x4, offset = 0x4, fixed_abs, tag = 'smem constant byte address 0x4 - core index']
  #allocation1 [shape = 'u32[144,128]{1,0:T(1,128)}', space=vmem, size = 0x12000, scoped, tag = 'internal scratch']
  #allocation2 [shape = 'f32[2,18,18,64]{3,2,1,0:T(8,128)}', space=vmem, size = 0x6c000, scoped, tag = 'scratch operand']
  %s0 = inlined_call_operand.hbm [shape: f32[512,64], index: 0, kind: input, shape index: {}]
  %s1 = inlined_call_operand.hbm [shape: bf16[64,64], index: 1, kind: input, shape index: {}]
  %s2 = inlined_call_operand.hbm [shape: bf16[9,64,64], index: 2, kind: input, shape index: {}]
  %s3 = inlined_call_operand.hbm [shape: bf16[64,256], index: 3, kind: input, shape index: {}]
  %s4 = inlined_call_operand.hbm [shape: bf16[64,256], index: 4, kind: input, shape index: {}]
  %s5 = inlined_call_operand.hbm [shape: f32[512,256], index: 5, kind: output, shape index: {}]
  %s6 = sld [smem:[#allocation0]]
  $region50: #{bottleneck2_forward.1} parent=0
    _
  %s8 = ssub.s32 1, %s6
  %s9 = scalar_select 0, %s8, %s6
  $region1: #{bottleneck2_forward.1} parent=0
    #allocation3 [shape = 'u8[262144]{0}', space=vmem, size = 0x40000, scoped, tag = 'input window, operand 0, single buffered']
    #allocation4 [shape = 's32[1]{0}', space=sflag, size = 0x4, scoped, tag = 'scoped memory for bottleneck2_forward.1']
    #allocation5 [shape = 's32[1]{0}', space=sflag, size = 0x4, scoped, tag = 'scoped memory for bottleneck2_forward.1']
    #allocation6 [shape = 'u8[16384]{0}', space=vmem, size = 0x4000, scoped, tag = 'input window, operand 1, single buffered']
    #allocation7 [shape = 's32[1]{0}', space=sflag, size = 0x4, scoped, tag = 'scoped memory for bottleneck2_forward.1']
    #allocation8 [shape = 'u8[147456]{0}', space=vmem, size = 0x24000, scoped, tag = 'input window, operand 2, single buffered']
    #allocation9 [shape = 'u8[32768]{0}', space=vmem, size = 0x8000, scoped, tag = 'input window, operand 3, single buffered']
    #allocation10 [shape = 's32[1]{0}', space=sflag, size = 0x4, scoped, tag = 'scoped memory for bottleneck2_forward.1']
    #allocation11 [shape = 'u8[32768]{0}', space=vmem, size = 0x8000, scoped, tag = 'input window, operand 4, single buffered']
    #allocation12 [shape = 'u8[524288]{0}', space=vmem, size = 0x80000, scoped, tag = 'output window, operand 0, single buffered']
    %10 = vsyncpa [#allocation4], 0
    %11 = vsyncpa [#allocation7], 0
    %12 = vsyncpa [#allocation10], 0
    %13 = vsyncpa [#allocation5], 0
    // Predicated region
    $region2: #{bottleneck2_forward.1} parent=1 // pred_check
      _
    $region3: #{bottleneck2_forward.1} parent=1 // pred_check_branch
      %15 = sbr.rel (0) target = $region5
    $region4: #{bottleneck2_forward.1} parent=1 // pred_region
      %s17 = ssub.s32 8192, 8192
      %18 = vsyncadd [#allocation4], %s17
      %s19 = sshll.u32 [#allocation3], 4
      %s20 = int_to_ptr.vmem [resolvable:$true] %s19
      %25 = dma.hbm_to_vmem [thread:$0]  %s0, 8192, %s20, [#allocation4], 128, 128, 8
    $region5: #{bottleneck2_forward.1} parent=1 // pred_fallthru
      _
    // Predicated region
    $region6: #{bottleneck2_forward.1} parent=1 // pred_check
      _
    $region7: #{bottleneck2_forward.1} parent=1 // pred_check_branch
      %27 = sbr.rel (0) target = $region9
    $region8: #{bottleneck2_forward.1} parent=1 // pred_region
      %s29 = ssub.s32 512, 512
      %30 = vsyncadd [#allocation7], %s29
      %s31 = sshll.u32 [#allocation6], 4
      %s32 = int_to_ptr.vmem [resolvable:$true] %s31
      %37 = dma.hbm_to_vmem [thread:$0]  %s1, 512, %s32, [#allocation7], 64, 64, 4
    $region9: #{bottleneck2_forward.1} parent=1 // pred_fallthru
      _
    // Predicated region
    $region10: #{bottleneck2_forward.1} parent=1 // pred_check
      _
    $region11: #{bottleneck2_forward.1} parent=1 // pred_check_branch
      %39 = sbr.rel (0) target = $region13
    $region12: #{bottleneck2_forward.1} parent=1 // pred_region
      %s41 = ssub.s32 4608, 4608
      %42 = vsyncadd [#allocation7], %s41
      %s43 = sshll.u32 [#allocation8], 4
      %s44 = int_to_ptr.vmem [resolvable:$true] %s43
      %49 = dma.hbm_to_vmem [thread:$0]  %s2, 4608, %s44, [#allocation7], 64, 64, 4
    $region13: #{bottleneck2_forward.1} parent=1 // pred_fallthru
      _
    // Predicated region
    $region14: #{bottleneck2_forward.1} parent=1 // pred_check
      _
    $region15: #{bottleneck2_forward.1} parent=1 // pred_check_branch
      %51 = sbr.rel (0) target = $region17
    $region16: #{bottleneck2_forward.1} parent=1 // pred_region
      %s53 = ssub.s32 1024, 1024
      %54 = vsyncadd [#allocation10], %s53
      %s55 = sshll.u32 [#allocation9], 4
      %s56 = int_to_ptr.vmem [resolvable:$true] %s55
      %61 = dma.hbm_to_vmem [thread:$0]  %s3, 1024, %s56, [#allocation10], 128, 128, 8
    $region17: #{bottleneck2_forward.1} parent=1 // pred_fallthru
      _
    // Predicated region
    $region18: #{bottleneck2_forward.1} parent=1 // pred_check
      _
    $region19: #{bottleneck2_forward.1} parent=1 // pred_check_branch
      %63 = sbr.rel (0) target = $region21
    $region20: #{bottleneck2_forward.1} parent=1 // pred_region
      %s65 = ssub.s32 1024, 1024
      %66 = vsyncadd [#allocation10], %s65
      %s67 = sshll.u32 [#allocation11], 4
      %s68 = int_to_ptr.vmem [resolvable:$true] %s67
      %73 = dma.hbm_to_vmem [thread:$0]  %s4, 1024, %s68, [#allocation10], 128, 128, 8
    $region21: #{bottleneck2_forward.1} parent=1 // pred_fallthru
      _
    // Predicated region
    $region22: #{bottleneck2_forward.1} parent=1 // pred_check
      _
    $region23: #{bottleneck2_forward.1} parent=1 // pred_check_branch
      %75 = sbr.rel (0) target = $region25
    $region24: #{bottleneck2_forward.1} parent=1 // pred_region
      %76 = dma.done [#allocation4], 8192
    $region25: #{bottleneck2_forward.1} parent=1 // pred_fallthru
      _
    // Predicated region
    $region26: #{bottleneck2_forward.1} parent=1 // pred_check
      _
    $region27: #{bottleneck2_forward.1} parent=1 // pred_check_branch
      %78 = sbr.rel (0) target = $region29
    $region28: #{bottleneck2_forward.1} parent=1 // pred_region
      %79 = dma.done [#allocation7], 512
    $region29: #{bottleneck2_forward.1} parent=1 // pred_fallthru
      _
    // Predicated region
    $region30: #{bottleneck2_forward.1} parent=1 // pred_check
      _
    $region31: #{bottleneck2_forward.1} parent=1 // pred_check_branch
      %81 = sbr.rel (0) target = $region33
    $region32: #{bottleneck2_forward.1} parent=1 // pred_region
      %82 = dma.done [#allocation7], 4608
    $region33: #{bottleneck2_forward.1} parent=1 // pred_fallthru
      _
    // Predicated region
    $region34: #{bottleneck2_forward.1} parent=1 // pred_check
      _
    $region35: #{bottleneck2_forward.1} parent=1 // pred_check_branch
      %84 = sbr.rel (0) target = $region37
    $region36: #{bottleneck2_forward.1} parent=1 // pred_region
      %85 = dma.done [#allocation10], 1024
    $region37: #{bottleneck2_forward.1} parent=1 // pred_fallthru
      _
    // Predicated region
    $region38: #{bottleneck2_forward.1} parent=1 // pred_check
      _
    $region39: #{bottleneck2_forward.1} parent=1 // pred_check_branch
      %87 = sbr.rel (0) target = $region41
    $region40: #{bottleneck2_forward.1} parent=1 // pred_region
      %88 = dma.done [#allocation10], 1024
    $region41: #{bottleneck2_forward.1} parent=1 // pred_fallthru
      _
    %v90 = vld [vmem:[#allocation3] sm:$0xff]
    %v91 = vld [vmem:[#allocation3 + $0x8] sm:$0xff]
    %v92 = vld [vmem:[#allocation3 + $0x10] sm:$0xff]
    %v93 = vld [vmem:[#allocation3 + $0x18] sm:$0xff]
    %v94 = vld [vmem:[#allocation3 + $0x20] sm:$0xff]
    %v95 = vld [vmem:[#allocation3 + $0x28] sm:$0xff]
    %v96 = vld [vmem:[#allocation3 + $0x30] sm:$0xff]
    %v97 = vld [vmem:[#allocation3 + $0x38] sm:$0xff]
    %v98 = vld [vmem:[#allocation3 + $0x40] sm:$0xff]
    %v99 = vld [vmem:[#allocation3 + $0x48] sm:$0xff]
    %v100 = vld [vmem:[#allocation3 + $0x50] sm:$0xff]
    %v101 = vld [vmem:[#allocation3 + $0x58] sm:$0xff]
    %v102 = vld [vmem:[#allocation3 + $0x60] sm:$0xff]
    %v103 = vld [vmem:[#allocation3 + $0x68] sm:$0xff]
    %v104 = vld [vmem:[#allocation3 + $0x70] sm:$0xff]
    %v105 = vld [vmem:[#allocation3 + $0x78] sm:$0xff]
    %v106 = vld [vmem:[#allocation3 + $0x80] sm:$0xff]
    %v107 = vld [vmem:[#allocation3 + $0x88] sm:$0xff]
    %v108 = vld [vmem:[#allocation3 + $0x90] sm:$0xff]
    %v109 = vld [vmem:[#allocation3 + $0x98] sm:$0xff]
    %v110 = vld [vmem:[#allocation3 + $0xa0] sm:$0xff]
    %v111 = vld [vmem:[#allocation3 + $0xa8] sm:$0xff]
    %v112 = vld [vmem:[#allocation3 + $0xb0] sm:$0xff]
    %v113 = vld [vmem:[#allocation3 + $0xb8] sm:$0xff]
    %v114 = vld [vmem:[#allocation3 + $0xc0] sm:$0xff]
    %v115 = vld [vmem:[#allocation3 + $0xc8] sm:$0xff]
    %v116 = vld [vmem:[#allocation3 + $0xd0] sm:$0xff]
    %v117 = vld [vmem:[#allocation3 + $0xd8] sm:$0xff]
    %v118 = vld [vmem:[#allocation3 + $0xe0] sm:$0xff]
    %v119 = vld [vmem:[#allocation3 + $0xe8] sm:$0xff]
    %v120 = vld [vmem:[#allocation3 + $0xf0] sm:$0xff]
    %v121 = vld [vmem:[#allocation3 + $0xf8] sm:$0xff]
    %v122 = vld [vmem:[#allocation3 + $0x100] sm:$0xff]
    %v123 = vld [vmem:[#allocation3 + $0x108] sm:$0xff]
    %v124 = vld [vmem:[#allocation3 + $0x110] sm:$0xff]
    %v125 = vld [vmem:[#allocation3 + $0x118] sm:$0xff]
    %v126 = vld [vmem:[#allocation3 + $0x120] sm:$0xff]
    %v127 = vld [vmem:[#allocation3 + $0x128] sm:$0xff]
    %v128 = vld [vmem:[#allocation3 + $0x130] sm:$0xff]
    %v129 = vld [vmem:[#allocation3 + $0x138] sm:$0xff]
    %v130 = vld [vmem:[#allocation3 + $0x140] sm:$0xff]
    %v131 = vld [vmem:[#allocation3 + $0x148] sm:$0xff]
    %v132 = vld [vmem:[#allocation3 + $0x150] sm:$0xff]
    %v133 = vld [vmem:[#allocation3 + $0x158] sm:$0xff]
    %v134 = vld [vmem:[#allocation3 + $0x160] sm:$0xff]
    %v135 = vld [vmem:[#allocation3 + $0x168] sm:$0xff]
    %v136 = vld [vmem:[#allocation3 + $0x170] sm:$0xff]
    %v137 = vld [vmem:[#allocation3 + $0x178] sm:$0xff]
    %v138 = vld [vmem:[#allocation3 + $0x180] sm:$0xff]
    %v139 = vld [vmem:[#allocation3 + $0x188] sm:$0xff]
    %v140 = vld [vmem:[#allocation3 + $0x190] sm:$0xff]
    %v141 = vld [vmem:[#allocation3 + $0x198] sm:$0xff]
    %v142 = vld [vmem:[#allocation3 + $0x1a0] sm:$0xff]
    %v143 = vld [vmem:[#allocation3 + $0x1a8] sm:$0xff]
    %v144 = vld [vmem:[#allocation3 + $0x1b0] sm:$0xff]
    %v145 = vld [vmem:[#allocation3 + $0x1b8] sm:$0xff]
    %v146 = vld [vmem:[#allocation3 + $0x1c0] sm:$0xff]
    %v147 = vld [vmem:[#allocation3 + $0x1c8] sm:$0xff]
    %v148 = vld [vmem:[#allocation3 + $0x1d0] sm:$0xff]
    %v149 = vld [vmem:[#allocation3 + $0x1d8] sm:$0xff]
    %v150 = vld [vmem:[#allocation3 + $0x1e0] sm:$0xff]
    %v151 = vld [vmem:[#allocation3 + $0x1e8] sm:$0xff]
    %v152 = vld [vmem:[#allocation3 + $0x1f0] sm:$0xff]
    %v153 = vld [vmem:[#allocation3 + $0x1f8] sm:$0xff]
    %v154 = vpack.c.bf16 %v91, %v90
    %v155 = vpack.c.bf16 %v93, %v92
    %v156 = vpack.c.bf16 %v95, %v94
    %v157 = vpack.c.bf16 %v97, %v96
    %v158 = vpack.c.bf16 %v99, %v98
    %v159 = vpack.c.bf16 %v101, %v100
    %v160 = vpack.c.bf16 %v103, %v102
    %v161 = vpack.c.bf16 %v105, %v104
    %v162 = vpack.c.bf16 %v107, %v106
    %v163 = vpack.c.bf16 %v109, %v108
    %v164 = vpack.c.bf16 %v111, %v110
    %v165 = vpack.c.bf16 %v113, %v112
    %v166 = vpack.c.bf16 %v115, %v114
    %v167 = vpack.c.bf16 %v117, %v116
    %v168 = vpack.c.bf16 %v119, %v118
    %v169 = vpack.c.bf16 %v121, %v120
    %v170 = vpack.c.bf16 %v123, %v122
    %v171 = vpack.c.bf16 %v125, %v124
    %v172 = vpack.c.bf16 %v127, %v126
    %v173 = vpack.c.bf16 %v129, %v128
    %v174 = vpack.c.bf16 %v131, %v130
    %v175 = vpack.c.bf16 %v133, %v132
    %v176 = vpack.c.bf16 %v135, %v134
    %v177 = vpack.c.bf16 %v137, %v136
    %v178 = vpack.c.bf16 %v139, %v138
    %v179 = vpack.c.bf16 %v141, %v140
    %v180 = vpack.c.bf16 %v143, %v142
    %v181 = vpack.c.bf16 %v145, %v144
    %v182 = vpack.c.bf16 %v147, %v146
    %v183 = vpack.c.bf16 %v149, %v148
    %v184 = vpack.c.bf16 %v151, %v150
    %v185 = vpack.c.bf16 %v153, %v152
    %v186 = vld [vmem:[#allocation6] sm:$0xf]
    %v187 = vld [vmem:[#allocation6 + $0x4] sm:$0xf]
    %v188 = vld [vmem:[#allocation6 + $0x8] sm:$0xf]
    %v189 = vld [vmem:[#allocation6 + $0xc] sm:$0xf]
    %v190 = vld [vmem:[#allocation6 + $0x10] sm:$0xf]
    %v191 = vld [vmem:[#allocation6 + $0x14] sm:$0xf]
    %v192 = vld [vmem:[#allocation6 + $0x18] sm:$0xf]
    %v193 = vld [vmem:[#allocation6 + $0x1c] sm:$0xf]
    %v202 = vunpack.c.l.b16 %v186
    %v203 = vunpack.c.l.b16 %v187
    %v204 = vunpack.c.l.b16 %v188
    %v205 = vunpack.c.l.b16 %v189
    %v206 = vunpack.c.l.b16 %v190
    %v207 = vunpack.c.l.b16 %v191
    %v208 = vunpack.c.l.b16 %v192
    %v209 = vunpack.c.l.b16 %v193
    %v210 = vpack.c.b16 %v203, %v202
    %v211 = vpack.c.b16 %v205, %v204
    %v212 = vpack.c.b16 %v207, %v206
    %v213 = vpack.c.b16 %v209, %v208
    %vm218 = vcmask 523264
    %v220 = vsel %vm218, %v154, 0
    %v223 = vsel %vm218, %v155, 0
    %v226 = vsel %vm218, %v156, 0
    %v229 = vsel %vm218, %v157, 0
    %v232 = vsel %vm218, %v158, 0
    %v235 = vsel %vm218, %v159, 0
    %v238 = vsel %vm218, %v160, 0
    %v241 = vsel %vm218, %v161, 0
    %v244 = vsel %vm218, %v162, 0
    %v247 = vsel %vm218, %v163, 0
    %v250 = vsel %vm218, %v164, 0
    %v253 = vsel %vm218, %v165, 0
    %v256 = vsel %vm218, %v166, 0
    %v259 = vsel %vm218, %v167, 0
    %v262 = vsel %vm218, %v168, 0
    %v265 = vsel %vm218, %v169, 0
    %v268 = vsel %vm218, %v170, 0
    %v271 = vsel %vm218, %v171, 0
    %v274 = vsel %vm218, %v172, 0
    %v277 = vsel %vm218, %v173, 0
    %v280 = vsel %vm218, %v174, 0
    %v283 = vsel %vm218, %v175, 0
    %v286 = vsel %vm218, %v176, 0
    %v289 = vsel %vm218, %v177, 0
    %v292 = vsel %vm218, %v178, 0
    %v295 = vsel %vm218, %v179, 0
    %v298 = vsel %vm218, %v180, 0
    %v301 = vsel %vm218, %v181, 0
    %v304 = vsel %vm218, %v182, 0
    %v307 = vsel %vm218, %v183, 0
    %v310 = vsel %vm218, %v184, 0
    %v313 = vsel %vm218, %v185, 0
    %315 = vmatprep.subr.bf16.mxu0 0
    %316 = vmatpush1.bf16.msra.mxu0 %v210
    %317 = vmatprep.subr.bf16.mxu0 0
    %318 = vmatpush1.bf16.msra.mxu0 %v211
    %319 = vmatprep.subr.bf16.mxu0 0
    %320 = vmatpush1.bf16.msra.mxu0 %v212
    %321 = vmatprep.subr.bf16.mxu0 0
    %322 = vmatpush1.bf16.msra.mxu0 %v213
    %323 = vmatprep.subr.bf16.mxu0 0
    %324 = vmatpush1.bf16.msra.mxu0 0
    %325 = vmatprep.subr.bf16.mxu0 0
    %326 = vmatpush1.bf16.msra.mxu0 0
    %327 = vmatprep.subr.bf16.mxu0 0
    %328 = vmatpush1.bf16.msra.mxu0 0
    %329 = vmatprep.subr.bf16.mxu0 0
    %330 = vmatpush1.bf16.msra.mxu0 0
    %331 = vmatprep.subr.bf16.mxu0 0
    %332 = vmatpush1.bf16.msra.mxu0 0
    %333 = vmatprep.subr.bf16.mxu0 0
    %334 = vmatpush1.bf16.msra.mxu0 0
    %335 = vmatprep.subr.bf16.mxu0 0
    %336 = vmatpush1.bf16.msra.mxu0 0
    %337 = vmatprep.subr.bf16.mxu0 0
    %338 = vmatpush1.bf16.msra.mxu0 0
    %339 = vmatprep.subr.bf16.mxu0 0
    %340 = vmatpush1.bf16.msra.mxu0 0
    %341 = vmatprep.subr.bf16.mxu0 0
    %342 = vmatpush1.bf16.msra.mxu0 0
    %343 = vmatprep.subr.bf16.mxu0 0
    %344 = vmatpush1.bf16.msra.mxu0 0
    %345 = vmatprep.subr.bf16.mxu0 0
    %346 = vmatpush1.bf16.msra.mxu0 0
    %347 = vmatprep.mubr.bf16.mxu0 0
    %348 = vmatmul.mubr.bf16.gmra.mrb[0].mxu0 %v220
    %v349 = vpop.f32.mrb[0].mxu0
    %v350 = vadd.f32 0.0, %v349
    %v351 = vpop.f32.mrb[0].mxu0
    %v352 = vpop.f32.mrb[0].mxu0
    %v353 = vadd.f32 0.0, %v352
    %v354 = vpop.f32.mrb[0].mxu0
    %355 = vmatprep.mubr.bf16.mxu0 0
    %356 = vmatmul.mubr.bf16.gmra.mrb[0].mxu0 %v223
    %v357 = vpop.f32.mrb[0].mxu0
    %v358 = vadd.f32 0.0, %v357
    %v359 = vpop.f32.mrb[0].mxu0
    %v360 = vpop.f32.mrb[0].mxu0
    %v361 = vadd.f32 0.0, %v360
    %v362 = vpop.f32.mrb[0].mxu0
    %363 = vmatprep.mubr.bf16.mxu0 0
    %364 = vmatmul.mubr.bf16.gmra.mrb[0].mxu0 %v226
    %v365 = vpop.f32.mrb[0].mxu0
    %v366 = vadd.f32 0.0, %v365
    %v367 = vpop.f32.mrb[0].mxu0
    %v368 = vpop.f32.mrb[0].mxu0
    %v369 = vadd.f32 0.0, %v368
    %v370 = vpop.f32.mrb[0].mxu0
    %371 = vmatprep.mubr.bf16.mxu0 0
    %372 = vmatmul.mubr.bf16.gmra.mrb[0].mxu0 %v229
    %v373 = vpop.f32.mrb[0].mxu0
    %v374 = vadd.f32 0.0, %v373
    %v375 = vpop.f32.mrb[0].mxu0
    %v376 = vpop.f32.mrb[0].mxu0
    %v377 = vadd.f32 0.0, %v376
    %v378 = vpop.f32.mrb[0].mxu0
    %379 = vmatprep.mubr.bf16.mxu0 0
    %380 = vmatmul.mubr.bf16.gmra.mrb[0].mxu0 %v232
    %v381 = vpop.f32.mrb[0].mxu0
    %v382 = vadd.f32 0.0, %v381
    %v383 = vpop.f32.mrb[0].mxu0
    %v384 = vpop.f32.mrb[0].mxu0
    %v385 = vadd.f32 0.0, %v384
    %v386 = vpop.f32.mrb[0].mxu0
    %387 = vmatprep.mubr.bf16.mxu0 0
    %388 = vmatmul.mubr.bf16.gmra.mrb[0].mxu0 %v235
    %v389 = vpop.f32.mrb[0].mxu0
    %v390 = vadd.f32 0.0, %v389
    %v391 = vpop.f32.mrb[0].mxu0
    %v392 = vpop.f32.mrb[0].mxu0
    %v393 = vadd.f32 0.0, %v392
    %v394 = vpop.f32.mrb[0].mxu0
    %395 = vmatprep.mubr.bf16.mxu0 0
    %396 = vmatmul.mubr.bf16.gmra.mrb[0].mxu0 %v238
    %v397 = vpop.f32.mrb[0].mxu0
    %v398 = vadd.f32 0.0, %v397
    %v399 = vpop.f32.mrb[0].mxu0
    %v400 = vpop.f32.mrb[0].mxu0
    %v401 = vadd.f32 0.0, %v400
    %v402 = vpop.f32.mrb[0].mxu0
    %403 = vmatprep.mubr.bf16.mxu0 0
    %404 = vmatmul.mubr.bf16.gmra.mrb[0].mxu0 %v241
    %v405 = vpop.f32.mrb[0].mxu0
    %v406 = vadd.f32 0.0, %v405
    %v407 = vpop.f32.mrb[0].mxu0
    %v408 = vpop.f32.mrb[0].mxu0
    %v409 = vadd.f32 0.0, %v408
    %v410 = vpop.f32.mrb[0].mxu0
    %411 = vmatprep.mubr.bf16.mxu0 0
    %412 = vmatmul.mubr.bf16.gmra.mrb[0].mxu0 %v244
    %v413 = vpop.f32.mrb[0].mxu0
    %v414 = vadd.f32 0.0, %v413
    %v415 = vpop.f32.mrb[0].mxu0
    %v416 = vpop.f32.mrb[0].mxu0
    %v417 = vadd.f32 0.0, %v416
    %v418 = vpop.f32.mrb[0].mxu0
    %419 = vmatprep.mubr.bf16.mxu0 0
    %420 = vmatmul.mubr.bf16.gmra.mrb[0].mxu0 %v247
    %v421 = vpop.f32.mrb[0].mxu0
    %v422 = vadd.f32 0.0, %v421
    %v423 = vpop.f32.mrb[0].mxu0
    %v424 = vpop.f32.mrb[0].mxu0
    %v425 = vadd.f32 0.0, %v424
    %v426 = vpop.f32.mrb[0].mxu0
    %427 = vmatprep.mubr.bf16.mxu0 0
    %428 = vmatmul.mubr.bf16.gmra.mrb[0].mxu0 %v250
    %v429 = vpop.f32.mrb[0].mxu0
    %v430 = vadd.f32 0.0, %v429
    %v431 = vpop.f32.mrb[0].mxu0
    %v432 = vpop.f32.mrb[0].mxu0
    %v433 = vadd.f32 0.0, %v432
    %v434 = vpop.f32.mrb[0].mxu0
    %435 = vmatprep.mubr.bf16.mxu0 0
    %436 = vmatmul.mubr.bf16.gmra.mrb[0].mxu0 %v253
    %v437 = vpop.f32.mrb[0].mxu0
    %v438 = vadd.f32 0.0, %v437
    %v439 = vpop.f32.mrb[0].mxu0
    %v440 = vpop.f32.mrb[0].mxu0
    %v441 = vadd.f32 0.0, %v440
    %v442 = vpop.f32.mrb[0].mxu0
    %443 = vmatprep.mubr.bf16.mxu0 0
    %444 = vmatmul.mubr.bf16.gmra.mrb[0].mxu0 %v256
    %v445 = vpop.f32.mrb[0].mxu0
    %v446 = vadd.f32 0.0, %v445
    %v447 = vpop.f32.mrb[0].mxu0
    %v448 = vpop.f32.mrb[0].mxu0
    %v449 = vadd.f32 0.0, %v448
    %v450 = vpop.f32.mrb[0].mxu0
    %451 = vmatprep.mubr.bf16.mxu0 0
    %452 = vmatmul.mubr.bf16.gmra.mrb[0].mxu0 %v259
    %v453 = vpop.f32.mrb[0].mxu0
    %v454 = vadd.f32 0.0, %v453
    %v455 = vpop.f32.mrb[0].mxu0
    %v456 = vpop.f32.mrb[0].mxu0
    %v457 = vadd.f32 0.0, %v456
    %v458 = vpop.f32.mrb[0].mxu0
    %459 = vmatprep.mubr.bf16.mxu0 0
    %460 = vmatmul.mubr.bf16.gmra.mrb[0].mxu0 %v262
    %v461 = vpop.f32.mrb[0].mxu0
    %v462 = vadd.f32 0.0, %v461
    %v463 = vpop.f32.mrb[0].mxu0
    %v464 = vpop.f32.mrb[0].mxu0
    %v465 = vadd.f32 0.0, %v464
    %v466 = vpop.f32.mrb[0].mxu0
    %467 = vmatprep.mubr.bf16.mxu0 0
    %468 = vmatmul.mubr.bf16.gmra.mrb[0].mxu0 %v265
    %v469 = vpop.f32.mrb[0].mxu0
    %v470 = vadd.f32 0.0, %v469
    %v471 = vpop.f32.mrb[0].mxu0
    %v472 = vpop.f32.mrb[0].mxu0
    %v473 = vadd.f32 0.0, %v472
    %v474 = vpop.f32.mrb[0].mxu0
    %475 = vmatprep.mubr.bf16.mxu0 0
    %476 = vmatmul.mubr.bf16.gmra.mrb[0].mxu0 %v268
    %v477 = vpop.f32.mrb[0].mxu0
    %v478 = vadd.f32 0.0, %v477
    %v479 = vpop.f32.mrb[0].mxu0
    %v480 = vpop.f32.mrb[0].mxu0
    %v481 = vadd.f32 0.0, %v480
    %v482 = vpop.f32.mrb[0].mxu0
    %483 = vmatprep.mubr.bf16.mxu0 0
    %484 = vmatmul.mubr.bf16.gmra.mrb[0].mxu0 %v271
    %v485 = vpop.f32.mrb[0].mxu0
    %v486 = vadd.f32 0.0, %v485
    %v487 = vpop.f32.mrb[0].mxu0
    %v488 = vpop.f32.mrb[0].mxu0
    %v489 = vadd.f32 0.0, %v488
    %v490 = vpop.f32.mrb[0].mxu0
    %491 = vmatprep.mubr.bf16.mxu0 0
    %492 = vmatmul.mubr.bf16.gmra.mrb[0].mxu0 %v274
    %v493 = vpop.f32.mrb[0].mxu0
    %v494 = vadd.f32 0.0, %v493
    %v495 = vpop.f32.mrb[0].mxu0
    %v496 = vpop.f32.mrb[0].mxu0
    %v497 = vadd.f32 0.0, %v496
    %v498 = vpop.f32.mrb[0].mxu0
    %499 = vmatprep.mubr.bf16.mxu0 0
    %500 = vmatmul.mubr.bf16.gmra.mrb[0].mxu0 %v277
    %v501 = vpop.f32.mrb[0].mxu0
    %v502 = vadd.f32 0.0, %v501
    %v503 = vpop.f32.mrb[0].mxu0
    %v504 = vpop.f32.mrb[0].mxu0
    %v505 = vadd.f32 0.0, %v504
    %v506 = vpop.f32.mrb[0].mxu0
    %507 = vmatprep.mubr.bf16.mxu0 0
    %508 = vmatmul.mubr.bf16.gmra.mrb[0].mxu0 %v280
    %v509 = vpop.f32.mrb[0].mxu0
    %v510 = vadd.f32 0.0, %v509
    %v511 = vpop.f32.mrb[0].mxu0
    %v512 = vpop.f32.mrb[0].mxu0
    %v513 = vadd.f32 0.0, %v512
    %v514 = vpop.f32.mrb[0].mxu0
    %515 = vmatprep.mubr.bf16.mxu0 0
    %516 = vmatmul.mubr.bf16.gmra.mrb[0].mxu0 %v283
    %v517 = vpop.f32.mrb[0].mxu0
    %v518 = vadd.f32 0.0, %v517
    %v519 = vpop.f32.mrb[0].mxu0
    %v520 = vpop.f32.mrb[0].mxu0
    %v521 = vadd.f32 0.0, %v520
    %v522 = vpop.f32.mrb[0].mxu0
    %523 = vmatprep.mubr.bf16.mxu0 0
    %524 = vmatmul.mubr.bf16.gmra.mrb[0].mxu0 %v286
    %v525 = vpop.f32.mrb[0].mxu0
    %v526 = vadd.f32 0.0, %v525
    %v527 = vpop.f32.mrb[0].mxu0
    %v528 = vpop.f32.mrb[0].mxu0
    %v529 = vadd.f32 0.0, %v528
    %v530 = vpop.f32.mrb[0].mxu0
    %531 = vmatprep.mubr.bf16.mxu0 0
    %532 = vmatmul.mubr.bf16.gmra.mrb[0].mxu0 %v289
    %v533 = vpop.f32.mrb[0].mxu0
    %v534 = vadd.f32 0.0, %v533
    %v535 = vpop.f32.mrb[0].mxu0
    %v536 = vpop.f32.mrb[0].mxu0
    %v537 = vadd.f32 0.0, %v536
    %v538 = vpop.f32.mrb[0].mxu0
    %539 = vmatprep.mubr.bf16.mxu0 0
    %540 = vmatmul.mubr.bf16.gmra.mrb[0].mxu0 %v292
    %v541 = vpop.f32.mrb[0].mxu0
    %v542 = vadd.f32 0.0, %v541
    %v543 = vpop.f32.mrb[0].mxu0
    %v544 = vpop.f32.mrb[0].mxu0
    %v545 = vadd.f32 0.0, %v544
    %v546 = vpop.f32.mrb[0].mxu0
    %547 = vmatprep.mubr.bf16.mxu0 0
    %548 = vmatmul.mubr.bf16.gmra.mrb[0].mxu0 %v295
    %v549 = vpop.f32.mrb[0].mxu0
    %v550 = vadd.f32 0.0, %v549
    %v551 = vpop.f32.mrb[0].mxu0
    %v552 = vpop.f32.mrb[0].mxu0
    %v553 = vadd.f32 0.0, %v552
    %v554 = vpop.f32.mrb[0].mxu0
    %555 = vmatprep.mubr.bf16.mxu0 0
    %556 = vmatmul.mubr.bf16.gmra.mrb[0].mxu0 %v298
    %v557 = vpop.f32.mrb[0].mxu0
    %v558 = vadd.f32 0.0, %v557
    %v559 = vpop.f32.mrb[0].mxu0
    %v560 = vpop.f32.mrb[0].mxu0
    %v561 = vadd.f32 0.0, %v560
    %v562 = vpop.f32.mrb[0].mxu0
    %563 = vmatprep.mubr.bf16.mxu0 0
    %564 = vmatmul.mubr.bf16.gmra.mrb[0].mxu0 %v301
    %v565 = vpop.f32.mrb[0].mxu0
    %v566 = vadd.f32 0.0, %v565
    %v567 = vpop.f32.mrb[0].mxu0
    %v568 = vpop.f32.mrb[0].mxu0
    %v569 = vadd.f32 0.0, %v568
    %v570 = vpop.f32.mrb[0].mxu0
    %571 = vmatprep.mubr.bf16.mxu0 0
    %572 = vmatmul.mubr.bf16.gmra.mrb[0].mxu0 %v304
    %v573 = vpop.f32.mrb[0].mxu0
    %v574 = vadd.f32 0.0, %v573
    %v575 = vpop.f32.mrb[0].mxu0
    %v576 = vpop.f32.mrb[0].mxu0
    %v577 = vadd.f32 0.0, %v576
    %v578 = vpop.f32.mrb[0].mxu0
    %579 = vmatprep.mubr.bf16.mxu0 0
    %580 = vmatmul.mubr.bf16.gmra.mrb[0].mxu0 %v307
    %v581 = vpop.f32.mrb[0].mxu0
    %v582 = vadd.f32 0.0, %v581
    %v583 = vpop.f32.mrb[0].mxu0
    %v584 = vpop.f32.mrb[0].mxu0
    %v585 = vadd.f32 0.0, %v584
    %v586 = vpop.f32.mrb[0].mxu0
    %587 = vmatprep.mubr.bf16.mxu0 0
    %588 = vmatmul.mubr.bf16.gmra.mrb[0].mxu0 %v310
    %v589 = vpop.f32.mrb[0].mxu0
    %v590 = vadd.f32 0.0, %v589
    %v591 = vpop.f32.mrb[0].mxu0
    %v592 = vpop.f32.mrb[0].mxu0
    %v593 = vadd.f32 0.0, %v592
    %v594 = vpop.f32.mrb[0].mxu0
    %595 = vmatprep.mubr.bf16.mxu0 0
    %596 = vmatmul.mubr.bf16.gmra.mrb[0].mxu0 %v313
    %v597 = vpop.f32.mrb[0].mxu0
    %v598 = vadd.f32 0.0, %v597
    %v599 = vpop.f32.mrb[0].mxu0
    %v600 = vpop.f32.mrb[0].mxu0
    %v601 = vadd.f32 0.0, %v600
    %v602 = vpop.f32.mrb[0].mxu0
    %603 = vdwg.mxu0
    %v604 = vsel %vm218, %v350, 0.0
    %v605 = vsel %vm218, %v353, 0.0
    %v606 = vadd.f32 %v604, %v605
    %v607 = vsel %vm218, %v358, 0.0
    %v608 = vadd.f32 %v606, %v607
    %v609 = vsel %vm218, %v361, 0.0
    %v610 = vadd.f32 %v608, %v609
    %v611 = vsel %vm218, %v366, 0.0
    %v612 = vadd.f32 %v610, %v611
    %v613 = vsel %vm218, %v369, 0.0
    %v614 = vadd.f32 %v612, %v613
    %v615 = vsel %vm218, %v374, 0.0
    %v616 = vadd.f32 %v614, %v615
    %v617 = vsel %vm218, %v377, 0.0
    %v618 = vadd.f32 %v616, %v617
    %v619 = vsel %vm218, %v382, 0.0
    %v620 = vadd.f32 %v618, %v619
    %v621 = vsel %vm218, %v385, 0.0
    %v622 = vadd.f32 %v620, %v621
    %v623 = vsel %vm218, %v390, 0.0
    %v624 = vadd.f32 %v622, %v623
    %v625 = vsel %vm218, %v393, 0.0
    %v626 = vadd.f32 %v624, %v625
    %v627 = vsel %vm218, %v398, 0.0
    %v628 = vadd.f32 %v626, %v627
    %v629 = vsel %vm218, %v401, 0.0
    %v630 = vadd.f32 %v628, %v629
    %v631 = vsel %vm218, %v406, 0.0
    %v632 = vadd.f32 %v630, %v631
    %v633 = vsel %vm218, %v409, 0.0
    %v634 = vadd.f32 %v632, %v633
    %v635 = vsel %vm218, %v414, 0.0
    %v636 = vadd.f32 %v634, %v635
    %v637 = vsel %vm218, %v417, 0.0
    %v638 = vadd.f32 %v636, %v637
    %v639 = vsel %vm218, %v422, 0.0
    %v640 = vadd.f32 %v638, %v639
    %v641 = vsel %vm218, %v425, 0.0
    %v642 = vadd.f32 %v640, %v641
    %v643 = vsel %vm218, %v430, 0.0
    %v644 = vadd.f32 %v642, %v643
    %v645 = vsel %vm218, %v433, 0.0
    %v646 = vadd.f32 %v644, %v645
    %v647 = vsel %vm218, %v438, 0.0
    %v648 = vadd.f32 %v646, %v647
    %v649 = vsel %vm218, %v441, 0.0
    %v650 = vadd.f32 %v648, %v649
    %v651 = vsel %vm218, %v446, 0.0
    %v652 = vadd.f32 %v650, %v651
    %v653 = vsel %vm218, %v449, 0.0
    %v654 = vadd.f32 %v652, %v653
    %v655 = vsel %vm218, %v454, 0.0
    %v656 = vadd.f32 %v654, %v655
    %v657 = vsel %vm218, %v457, 0.0
    %v658 = vadd.f32 %v656, %v657
    %v659 = vsel %vm218, %v462, 0.0
    %v660 = vadd.f32 %v658, %v659
    %v661 = vsel %vm218, %v465, 0.0
    %v662 = vadd.f32 %v660, %v661
    %v663 = vsel %vm218, %v470, 0.0
    %v664 = vadd.f32 %v662, %v663
    %v665 = vsel %vm218, %v473, 0.0
    %v666 = vadd.f32 %v664, %v665
    %v667 = vsel %vm218, %v478, 0.0
    %v668 = vadd.f32 %v666, %v667
    %v669 = vsel %vm218, %v481, 0.0
    %v670 = vadd.f32 %v668, %v669
    %v671 = vsel %vm218, %v486, 0.0
    %v672 = vadd.f32 %v670, %v671
    %v673 = vsel %vm218, %v489, 0.0
    %v674 = vadd.f32 %v672, %v673
    %v675 = vsel %vm218, %v494, 0.0
    %v676 = vadd.f32 %v674, %v675
    %v677 = vsel %vm218, %v497, 0.0
    %v678 = vadd.f32 %v676, %v677
    %v679 = vsel %vm218, %v502, 0.0
    %v680 = vadd.f32 %v678, %v679
    %v681 = vsel %vm218, %v505, 0.0
    %v682 = vadd.f32 %v680, %v681
    %v683 = vsel %vm218, %v510, 0.0
    %v684 = vadd.f32 %v682, %v683
    %v685 = vsel %vm218, %v513, 0.0
    %v686 = vadd.f32 %v684, %v685
    %v687 = vsel %vm218, %v518, 0.0
    %v688 = vadd.f32 %v686, %v687
    %v689 = vsel %vm218, %v521, 0.0
    %v690 = vadd.f32 %v688, %v689
    %v691 = vsel %vm218, %v526, 0.0
    %v692 = vadd.f32 %v690, %v691
    %v693 = vsel %vm218, %v529, 0.0
    %v694 = vadd.f32 %v692, %v693
    %v695 = vsel %vm218, %v534, 0.0
    %v696 = vadd.f32 %v694, %v695
    %v697 = vsel %vm218, %v537, 0.0
    %v698 = vadd.f32 %v696, %v697
    %v699 = vsel %vm218, %v542, 0.0
    %v700 = vadd.f32 %v698, %v699
    %v701 = vsel %vm218, %v545, 0.0
    %v702 = vadd.f32 %v700, %v701
    %v703 = vsel %vm218, %v550, 0.0
    %v704 = vadd.f32 %v702, %v703
    %v705 = vsel %vm218, %v553, 0.0
    %v706 = vadd.f32 %v704, %v705
    %v707 = vsel %vm218, %v558, 0.0
    %v708 = vadd.f32 %v706, %v707
    %v709 = vsel %vm218, %v561, 0.0
    %v710 = vadd.f32 %v708, %v709
    %v711 = vsel %vm218, %v566, 0.0
    %v712 = vadd.f32 %v710, %v711
    %v713 = vsel %vm218, %v569, 0.0
    %v714 = vadd.f32 %v712, %v713
    %v715 = vsel %vm218, %v574, 0.0
    %v716 = vadd.f32 %v714, %v715
    %v717 = vsel %vm218, %v577, 0.0
    %v718 = vadd.f32 %v716, %v717
    %v719 = vsel %vm218, %v582, 0.0
    %v720 = vadd.f32 %v718, %v719
    %v721 = vsel %vm218, %v585, 0.0
    %v722 = vadd.f32 %v720, %v721
    %v723 = vsel %vm218, %v590, 0.0
    %v724 = vadd.f32 %v722, %v723
    %v725 = vsel %vm218, %v593, 0.0
    %v726 = vadd.f32 %v724, %v725
    %v727 = vsel %vm218, %v598, 0.0
    %v728 = vadd.f32 %v726, %v727
    %v729 = vsel %vm218, %v601, 0.0
    %v730 = vadd.f32 %v728, %v729
    %v731 = vrot.slane %v730, 4
    %v732 = vadd.f32 %v730, %v731
    %v733 = vrot.slane %v732, 2
    %v734 = vadd.f32 %v732, %v733
    %v735 = vrot.slane %v734, 1
    %v736 = vadd.f32 %v734, %v735
    %v737 = vrcp.pop 512.0
    %v738 = vmul.f32 %v736, %v737
    %v739 = vsub.f32 %v350, %v738
    %v740 = vsub.f32 %v353, %v738
    %v741 = vsub.f32 %v358, %v738
    %v742 = vsub.f32 %v361, %v738
    %v743 = vsub.f32 %v366, %v738
    %v744 = vsub.f32 %v369, %v738
    %v745 = vsub.f32 %v374, %v738
    %v746 = vsub.f32 %v377, %v738
    %v747 = vsub.f32 %v382, %v738
    %v748 = vsub.f32 %v385, %v738
    %v749 = vsub.f32 %v390, %v738
    %v750 = vsub.f32 %v393, %v738
    %v751 = vsub.f32 %v398, %v738
    %v752 = vsub.f32 %v401, %v738
    %v753 = vsub.f32 %v406, %v738
    %v754 = vsub.f32 %v409, %v738
    %v755 = vsub.f32 %v414, %v738
    %v756 = vsub.f32 %v417, %v738
    %v757 = vsub.f32 %v422, %v738
    %v758 = vsub.f32 %v425, %v738
    %v759 = vsub.f32 %v430, %v738
    %v760 = vsub.f32 %v433, %v738
    %v761 = vsub.f32 %v438, %v738
    %v762 = vsub.f32 %v441, %v738
    %v763 = vsub.f32 %v446, %v738
    %v764 = vsub.f32 %v449, %v738
    %v765 = vsub.f32 %v454, %v738
    %v766 = vsub.f32 %v457, %v738
    %v767 = vsub.f32 %v462, %v738
    %v768 = vsub.f32 %v465, %v738
    %v769 = vsub.f32 %v470, %v738
    %v770 = vsub.f32 %v473, %v738
    %v771 = vsub.f32 %v478, %v738
    %v772 = vsub.f32 %v481, %v738
    %v773 = vsub.f32 %v486, %v738
    %v774 = vsub.f32 %v489, %v738
    %v775 = vsub.f32 %v494, %v738
    %v776 = vsub.f32 %v497, %v738
    %v777 = vsub.f32 %v502, %v738
    %v778 = vsub.f32 %v505, %v738
    %v779 = vsub.f32 %v510, %v738
    %v780 = vsub.f32 %v513, %v738
    %v781 = vsub.f32 %v518, %v738
    %v782 = vsub.f32 %v521, %v738
    %v783 = vsub.f32 %v526, %v738
    %v784 = vsub.f32 %v529, %v738
    %v785 = vsub.f32 %v534, %v738
    %v786 = vsub.f32 %v537, %v738
    %v787 = vsub.f32 %v542, %v738
    %v788 = vsub.f32 %v545, %v738
    %v789 = vsub.f32 %v550, %v738
    %v790 = vsub.f32 %v553, %v738
    %v791 = vsub.f32 %v558, %v738
    %v792 = vsub.f32 %v561, %v738
    %v793 = vsub.f32 %v566, %v738
    %v794 = vsub.f32 %v569, %v738
    %v795 = vsub.f32 %v574, %v738
    %v796 = vsub.f32 %v577, %v738
    %v797 = vsub.f32 %v582, %v738
    %v798 = vsub.f32 %v585, %v738
    %v799 = vsub.f32 %v590, %v738
    %v800 = vsub.f32 %v593, %v738
    %v801 = vsub.f32 %v598, %v738
    %v802 = vsub.f32 %v601, %v738
    %v803 = vmul.f32 %v739, %v739
    %v804 = vmul.f32 %v740, %v740
    %v805 = vmul.f32 %v741, %v741
    %v806 = vmul.f32 %v742, %v742
    %v807 = vmul.f32 %v743, %v743
    %v808 = vmul.f32 %v744, %v744
    %v809 = vmul.f32 %v745, %v745
    %v810 = vmul.f32 %v746, %v746
    %v811 = vmul.f32 %v747, %v747
    %v812 = vmul.f32 %v748, %v748
    %v813 = vmul.f32 %v749, %v749
    %v814 = vmul.f32 %v750, %v750
    %v815 = vmul.f32 %v751, %v751
    %v816 = vmul.f32 %v752, %v752
    %v817 = vmul.f32 %v753, %v753
    %v818 = vmul.f32 %v754, %v754
    %v819 = vmul.f32 %v755, %v755
    %v820 = vmul.f32 %v756, %v756
    %v821 = vmul.f32 %v757, %v757
    %v822 = vmul.f32 %v758, %v758
    %v823 = vmul.f32 %v759, %v759
    %v824 = vmul.f32 %v760, %v760
    %v825 = vmul.f32 %v761, %v761
    %v826 = vmul.f32 %v762, %v762
    %v827 = vmul.f32 %v763, %v763
    %v828 = vmul.f32 %v764, %v764
    %v829 = vmul.f32 %v765, %v765
    %v830 = vmul.f32 %v766, %v766
    %v831 = vmul.f32 %v767, %v767
    %v832 = vmul.f32 %v768, %v768
    %v833 = vmul.f32 %v769, %v769
    %v834 = vmul.f32 %v770, %v770
    %v835 = vmul.f32 %v771, %v771
    %v836 = vmul.f32 %v772, %v772
    %v837 = vmul.f32 %v773, %v773
    %v838 = vmul.f32 %v774, %v774
    %v839 = vmul.f32 %v775, %v775
    %v840 = vmul.f32 %v776, %v776
    %v841 = vmul.f32 %v777, %v777
    %v842 = vmul.f32 %v778, %v778
    %v843 = vmul.f32 %v779, %v779
    %v844 = vmul.f32 %v780, %v780
    %v845 = vmul.f32 %v781, %v781
    %v846 = vmul.f32 %v782, %v782
    %v847 = vmul.f32 %v783, %v783
    %v848 = vmul.f32 %v784, %v784
    %v849 = vmul.f32 %v785, %v785
    %v850 = vmul.f32 %v786, %v786
    %v851 = vmul.f32 %v787, %v787
    %v852 = vmul.f32 %v788, %v788
    %v853 = vmul.f32 %v789, %v789
    %v854 = vmul.f32 %v790, %v790
    %v855 = vmul.f32 %v791, %v791
    %v856 = vmul.f32 %v792, %v792
    %v857 = vmul.f32 %v793, %v793
    %v858 = vmul.f32 %v794, %v794
    %v859 = vmul.f32 %v795, %v795
    %v860 = vmul.f32 %v796, %v796
    %v861 = vmul.f32 %v797, %v797
    %v862 = vmul.f32 %v798, %v798
    %v863 = vmul.f32 %v799, %v799
    %v864 = vmul.f32 %v800, %v800
    %v865 = vmul.f32 %v801, %v801
    %v866 = vmul.f32 %v802, %v802
    %v867 = vsel %vm218, %v803, 0.0
    %v868 = vsel %vm218, %v804, 0.0
    %v869 = vadd.f32 %v867, %v868
    %v870 = vsel %vm218, %v805, 0.0
    %v871 = vadd.f32 %v869, %v870
    %v872 = vsel %vm218, %v806, 0.0
    %v873 = vadd.f32 %v871, %v872
    %v874 = vsel %vm218, %v807, 0.0
    %v875 = vadd.f32 %v873, %v874
    %v876 = vsel %vm218, %v808, 0.0
    %v877 = vadd.f32 %v875, %v876
    %v878 = vsel %vm218, %v809, 0.0
    %v879 = vadd.f32 %v877, %v878
    %v880 = vsel %vm218, %v810, 0.0
    %v881 = vadd.f32 %v879, %v880
    %v882 = vsel %vm218, %v811, 0.0
    %v883 = vadd.f32 %v881, %v882
    %v884 = vsel %vm218, %v812, 0.0
    %v885 = vadd.f32 %v883, %v884
    %v886 = vsel %vm218, %v813, 0.0
    %v887 = vadd.f32 %v885, %v886
    %v888 = vsel %vm218, %v814, 0.0
    %v889 = vadd.f32 %v887, %v888
    %v890 = vsel %vm218, %v815, 0.0
    %v891 = vadd.f32 %v889, %v890
    %v892 = vsel %vm218, %v816, 0.0
    %v893 = vadd.f32 %v891, %v892
    %v894 = vsel %vm218, %v817, 0.0
    %v895 = vadd.f32 %v893, %v894
    %v896 = vsel %vm218, %v818, 0.0
    %v897 = vadd.f32 %v895, %v896
    %v898 = vsel %vm218, %v819, 0.0
    %v899 = vadd.f32 %v897, %v898
    %v900 = vsel %vm218, %v820, 0.0
    %v901 = vadd.f32 %v899, %v900
    %v902 = vsel %vm218, %v821, 0.0
    %v903 = vadd.f32 %v901, %v902
    %v904 = vsel %vm218, %v822, 0.0
    %v905 = vadd.f32 %v903, %v904
    %v906 = vsel %vm218, %v823, 0.0
    %v907 = vadd.f32 %v905, %v906
    %v908 = vsel %vm218, %v824, 0.0
    %v909 = vadd.f32 %v907, %v908
    %v910 = vsel %vm218, %v825, 0.0
    %v911 = vadd.f32 %v909, %v910
    %v912 = vsel %vm218, %v826, 0.0
    %v913 = vadd.f32 %v911, %v912
    %v914 = vsel %vm218, %v827, 0.0
    %v915 = vadd.f32 %v913, %v914
    %v916 = vsel %vm218, %v828, 0.0
    %v917 = vadd.f32 %v915, %v916
    %v918 = vsel %vm218, %v829, 0.0
    %v919 = vadd.f32 %v917, %v918
    %v920 = vsel %vm218, %v830, 0.0
    %v921 = vadd.f32 %v919, %v920
    %v922 = vsel %vm218, %v831, 0.0
    %v923 = vadd.f32 %v921, %v922
    %v924 = vsel %vm218, %v832, 0.0
    %v925 = vadd.f32 %v923, %v924
    %v926 = vsel %vm218, %v833, 0.0
    %v927 = vadd.f32 %v925, %v926
    %v928 = vsel %vm218, %v834, 0.0
    %v929 = vadd.f32 %v927, %v928
    %v930 = vsel %vm218, %v835, 0.0
    %v931 = vadd.f32 %v929, %v930
    %v932 = vsel %vm218, %v836, 0.0
    %v933 = vadd.f32 %v931, %v932
    %v934 = vsel %vm218, %v837, 0.0
    %v935 = vadd.f32 %v933, %v934
    %v936 = vsel %vm218, %v838, 0.0
    %v937 = vadd.f32 %v935, %v936
    %v938 = vsel %vm218, %v839, 0.0
    %v939 = vadd.f32 %v937, %v938
    %v940 = vsel %vm218, %v840, 0.0
    %v941 = vadd.f32 %v939, %v940
    %v942 = vsel %vm218, %v841, 0.0
    %v943 = vadd.f32 %v941, %v942
    %v944 = vsel %vm218, %v842, 0.0
    %v945 = vadd.f32 %v943, %v944
    %v946 = vsel %vm218, %v843, 0.0
    %v947 = vadd.f32 %v945, %v946
    %v948 = vsel %vm218, %v844, 0.0
    %v949 = vadd.f32 %v947, %v948
    %v950 = vsel %vm218, %v845, 0.0
    %v951 = vadd.f32 %v949, %v950
    %v952 = vsel %vm218, %v846, 0.0
    %v953 = vadd.f32 %v951, %v952
    %v954 = vsel %vm218, %v847, 0.0
    %v955 = vadd.f32 %v953, %v954
    %v956 = vsel %vm218, %v848, 0.0
    %v957 = vadd.f32 %v955, %v956
    %v958 = vsel %vm218, %v849, 0.0
    %v959 = vadd.f32 %v957, %v958
    %v960 = vsel %vm218, %v850, 0.0
    %v961 = vadd.f32 %v959, %v960
    %v962 = vsel %vm218, %v851, 0.0
    %v963 = vadd.f32 %v961, %v962
    %v964 = vsel %vm218, %v852, 0.0
    %v965 = vadd.f32 %v963, %v964
    %v966 = vsel %vm218, %v853, 0.0
    %v967 = vadd.f32 %v965, %v966
    %v968 = vsel %vm218, %v854, 0.0
    %v969 = vadd.f32 %v967, %v968
    %v970 = vsel %vm218, %v855, 0.0
    %v971 = vadd.f32 %v969, %v970
    %v972 = vsel %vm218, %v856, 0.0
    %v973 = vadd.f32 %v971, %v972
    %v974 = vsel %vm218, %v857, 0.0
    %v975 = vadd.f32 %v973, %v974
    %v976 = vsel %vm218, %v858, 0.0
    %v977 = vadd.f32 %v975, %v976
    %v978 = vsel %vm218, %v859, 0.0
    %v979 = vadd.f32 %v977, %v978
    %v980 = vsel %vm218, %v860, 0.0
    %v981 = vadd.f32 %v979, %v980
    %v982 = vsel %vm218, %v861, 0.0
    %v983 = vadd.f32 %v981, %v982
    %v984 = vsel %vm218, %v862, 0.0
    %v985 = vadd.f32 %v983, %v984
    %v986 = vsel %vm218, %v863, 0.0
    %v987 = vadd.f32 %v985, %v986
    %v988 = vsel %vm218, %v864, 0.0
    %v989 = vadd.f32 %v987, %v988
    %v990 = vsel %vm218, %v865, 0.0
    %v991 = vadd.f32 %v989, %v990
    %v992 = vsel %vm218, %v866, 0.0
    %v993 = vadd.f32 %v991, %v992
    %v994 = vrot.slane %v993, 4
    %v995 = vadd.f32 %v993, %v994
    %v996 = vrot.slane %v995, 2
    %v997 = vadd.f32 %v995, %v996
    %v998 = vrot.slane %v997, 1
    %v999 = vadd.f32 %v997, %v998
    %v1000 = vmul.f32 %v999, %v737
    %v1001 = vadd.f32 %v1000, 1e-05
    %v1002 = vrsqrt.pop %v1001
    %v1003 = vmul.f32 %v739, %v1002
    %v1004 = vmul.f32 %v740, %v1002
    %v1005 = vmul.f32 %v741, %v1002
    %v1006 = vmul.f32 %v742, %v1002
    %v1007 = vmul.f32 %v743, %v1002
    %v1008 = vmul.f32 %v744, %v1002
    %v1009 = vmul.f32 %v745, %v1002
    %v1010 = vmul.f32 %v746, %v1002
    %v1011 = vmul.f32 %v747, %v1002
    %v1012 = vmul.f32 %v748, %v1002
    %v1013 = vmul.f32 %v749, %v1002
    %v1014 = vmul.f32 %v750, %v1002
    %v1015 = vmul.f32 %v751, %v1002
    %v1016 = vmul.f32 %v752, %v1002
    %v1017 = vmul.f32 %v753, %v1002
    %v1018 = vmul.f32 %v754, %v1002
    %v1019 = vmul.f32 %v755, %v1002
    %v1020 = vmul.f32 %v756, %v1002
    %v1021 = vmul.f32 %v757, %v1002
    %v1022 = vmul.f32 %v758, %v1002
    %v1023 = vmul.f32 %v759, %v1002
    %v1024 = vmul.f32 %v760, %v1002
    %v1025 = vmul.f32 %v761, %v1002
    %v1026 = vmul.f32 %v762, %v1002
    %v1027 = vmul.f32 %v763, %v1002
    %v1028 = vmul.f32 %v764, %v1002
    %v1029 = vmul.f32 %v765, %v1002
    %v1030 = vmul.f32 %v766, %v1002
    %v1031 = vmul.f32 %v767, %v1002
    %v1032 = vmul.f32 %v768, %v1002
    %v1033 = vmul.f32 %v769, %v1002
    %v1034 = vmul.f32 %v770, %v1002
    %v1035 = vmul.f32 %v771, %v1002
    %v1036 = vmul.f32 %v772, %v1002
    %v1037 = vmul.f32 %v773, %v1002
    %v1038 = vmul.f32 %v774, %v1002
    %v1039 = vmul.f32 %v775, %v1002
    %v1040 = vmul.f32 %v776, %v1002
    %v1041 = vmul.f32 %v777, %v1002
    %v1042 = vmul.f32 %v778, %v1002
    %v1043 = vmul.f32 %v779, %v1002
    %v1044 = vmul.f32 %v780, %v1002
    %v1045 = vmul.f32 %v781, %v1002
    %v1046 = vmul.f32 %v782, %v1002
    %v1047 = vmul.f32 %v783, %v1002
    %v1048 = vmul.f32 %v784, %v1002
    %v1049 = vmul.f32 %v785, %v1002
    %v1050 = vmul.f32 %v786, %v1002
    %v1051 = vmul.f32 %v787, %v1002
    %v1052 = vmul.f32 %v788, %v1002
    %v1053 = vmul.f32 %v789, %v1002
    %v1054 = vmul.f32 %v790, %v1002
    %v1055 = vmul.f32 %v791, %v1002
    %v1056 = vmul.f32 %v792, %v1002
    %v1057 = vmul.f32 %v793, %v1002
    %v1058 = vmul.f32 %v794, %v1002
    %v1059 = vmul.f32 %v795, %v1002
    %v1060 = vmul.f32 %v796, %v1002
    %v1061 = vmul.f32 %v797, %v1002
    %v1062 = vmul.f32 %v798, %v1002
    %v1063 = vmul.f32 %v799, %v1002
    %v1064 = vmul.f32 %v800, %v1002
    %v1065 = vmul.f32 %v801, %v1002
    %v1066 = vmul.f32 %v802, %v1002
    %v1067 = vmax.f32 %v1003, 0.0
    %v1068 = vmax.f32 %v1004, 0.0
    %v1069 = vmax.f32 %v1005, 0.0
    %v1070 = vmax.f32 %v1006, 0.0
    %v1071 = vmax.f32 %v1007, 0.0
    %v1072 = vmax.f32 %v1008, 0.0
    %v1073 = vmax.f32 %v1009, 0.0
    %v1074 = vmax.f32 %v1010, 0.0
    %v1075 = vmax.f32 %v1011, 0.0
    %v1076 = vmax.f32 %v1012, 0.0
    %v1077 = vmax.f32 %v1013, 0.0
    %v1078 = vmax.f32 %v1014, 0.0
    %v1079 = vmax.f32 %v1015, 0.0
    %v1080 = vmax.f32 %v1016, 0.0
    %v1081 = vmax.f32 %v1017, 0.0
    %v1082 = vmax.f32 %v1018, 0.0
    %v1083 = vmax.f32 %v1019, 0.0
    %v1084 = vmax.f32 %v1020, 0.0
    %v1085 = vmax.f32 %v1021, 0.0
    %v1086 = vmax.f32 %v1022, 0.0
    %v1087 = vmax.f32 %v1023, 0.0
    %v1088 = vmax.f32 %v1024, 0.0
    %v1089 = vmax.f32 %v1025, 0.0
    %v1090 = vmax.f32 %v1026, 0.0
    %v1091 = vmax.f32 %v1027, 0.0
    %v1092 = vmax.f32 %v1028, 0.0
    %v1093 = vmax.f32 %v1029, 0.0
    %v1094 = vmax.f32 %v1030, 0.0
    %v1095 = vmax.f32 %v1031, 0.0
    %v1096 = vmax.f32 %v1032, 0.0
    %v1097 = vmax.f32 %v1033, 0.0
    %v1098 = vmax.f32 %v1034, 0.0
    %v1099 = vmax.f32 %v1035, 0.0
    %v1100 = vmax.f32 %v1036, 0.0
    %v1101 = vmax.f32 %v1037, 0.0
    %v1102 = vmax.f32 %v1038, 0.0
    %v1103 = vmax.f32 %v1039, 0.0
    %v1104 = vmax.f32 %v1040, 0.0
    %v1105 = vmax.f32 %v1041, 0.0
    %v1106 = vmax.f32 %v1042, 0.0
    %v1107 = vmax.f32 %v1043, 0.0
    %v1108 = vmax.f32 %v1044, 0.0
    %v1109 = vmax.f32 %v1045, 0.0
    %v1110 = vmax.f32 %v1046, 0.0
    %v1111 = vmax.f32 %v1047, 0.0
    %v1112 = vmax.f32 %v1048, 0.0
    %v1113 = vmax.f32 %v1049, 0.0
    %v1114 = vmax.f32 %v1050, 0.0
    %v1115 = vmax.f32 %v1051, 0.0
    %v1116 = vmax.f32 %v1052, 0.0
    %v1117 = vmax.f32 %v1053, 0.0
    %v1118 = vmax.f32 %v1054, 0.0
    %v1119 = vmax.f32 %v1055, 0.0
    %v1120 = vmax.f32 %v1056, 0.0
    %v1121 = vmax.f32 %v1057, 0.0
    %v1122 = vmax.f32 %v1058, 0.0
    %v1123 = vmax.f32 %v1059, 0.0
    %v1124 = vmax.f32 %v1060, 0.0
    %v1125 = vmax.f32 %v1061, 0.0
    %v1126 = vmax.f32 %v1062, 0.0
    %v1127 = vmax.f32 %v1063, 0.0
    %v1128 = vmax.f32 %v1064, 0.0
    %v1129 = vmax.f32 %v1065, 0.0
    %v1130 = vmax.f32 %v1066, 0.0
    %1131 = vst.msk [vmem:[#allocation2] sm:$0xff] %vm218, 0.0
    %1132 = vst.msk [vmem:[#allocation2 + $0x8] sm:$0xff] %vm218, 0.0
    %vm1133 = vcmask 517120
    %1134 = vst.msk [vmem:[#allocation2 + $0x10] sm:$0x3] %vm1133, 0.0
    %1135 = vst.msk [vmem:[#allocation2 + $0x18] sm:$0xff] %vm218, 0.0
    %1136 = vst.msk [vmem:[#allocation2 + $0x20] sm:$0xff] %vm218, 0.0
    %1137 = vst.msk [vmem:[#allocation2 + $0x28] sm:$0x3] %vm1133, 0.0
    %1138 = vst.msk [vmem:[#allocation2 + $0x30] sm:$0xff] %vm218, 0.0
    %1139 = vst.msk [vmem:[#allocation2 + $0x38] sm:$0xff] %vm218, 0.0
    %1140 = vst.msk [vmem:[#allocation2 + $0x40] sm:$0x3] %vm1133, 0.0
    %1141 = vst.msk [vmem:[#allocation2 + $0x48] sm:$0xff] %vm218, 0.0
    %1142 = vst.msk [vmem:[#allocation2 + $0x50] sm:$0xff] %vm218, 0.0
    %1143 = vst.msk [vmem:[#allocation2 + $0x58] sm:$0x3] %vm1133, 0.0
    %1144 = vst.msk [vmem:[#allocation2 + $0x60] sm:$0xff] %vm218, 0.0
    %1145 = vst.msk [vmem:[#allocation2 + $0x68] sm:$0xff] %vm218, 0.0
    %1146 = vst.msk [vmem:[#allocation2 + $0x70] sm:$0x3] %vm1133, 0.0
    %1147 = vst.msk [vmem:[#allocation2 + $0x78] sm:$0xff] %vm218, 0.0
    %1148 = vst.msk [vmem:[#allocation2 + $0x80] sm:$0xff] %vm218, 0.0
    %1149 = vst.msk [vmem:[#allocation2 + $0x88] sm:$0x3] %vm1133, 0.0
    %1150 = vst.msk [vmem:[#allocation2 + $0x90] sm:$0xff] %vm218, 0.0
    %1151 = vst.msk [vmem:[#allocation2 + $0x98] sm:$0xff] %vm218, 0.0
    %1152 = vst.msk [vmem:[#allocation2 + $0xa0] sm:$0x3] %vm1133, 0.0
    %1153 = vst.msk [vmem:[#allocation2 + $0xa8] sm:$0xff] %vm218, 0.0
    %1154 = vst.msk [vmem:[#allocation2 + $0xb0] sm:$0xff] %vm218, 0.0
    %1155 = vst.msk [vmem:[#allocation2 + $0xb8] sm:$0x3] %vm1133, 0.0
    %1156 = vst.msk [vmem:[#allocation2 + $0xc0] sm:$0xff] %vm218, 0.0
    %1157 = vst.msk [vmem:[#allocation2 + $0xc8] sm:$0xff] %vm218, 0.0
    %1158 = vst.msk [vmem:[#allocation2 + $0xd0] sm:$0x3] %vm1133, 0.0
    %1159 = vst.msk [vmem:[#allocation2 + $0xd8] sm:$0xff] %vm218, 0.0
    %1160 = vst.msk [vmem:[#allocation2 + $0xe0] sm:$0xff] %vm218, 0.0
    %1161 = vst.msk [vmem:[#allocation2 + $0xe8] sm:$0x3] %vm1133, 0.0
    %1162 = vst.msk [vmem:[#allocation2 + $0xf0] sm:$0xff] %vm218, 0.0
    %1163 = vst.msk [vmem:[#allocation2 + $0xf8] sm:$0xff] %vm218, 0.0
    %1164 = vst.msk [vmem:[#allocation2 + $0x100] sm:$0x3] %vm1133, 0.0
    %1165 = vst.msk [vmem:[#allocation2 + $0x108] sm:$0xff] %vm218, 0.0
    %1166 = vst.msk [vmem:[#allocation2 + $0x110] sm:$0xff] %vm218, 0.0
    %1167 = vst.msk [vmem:[#allocation2 + $0x118] sm:$0x3] %vm1133, 0.0
    %1168 = vst.msk [vmem:[#allocation2 + $0x120] sm:$0xff] %vm218, 0.0
    %1169 = vst.msk [vmem:[#allocation2 + $0x128] sm:$0xff] %vm218, 0.0
    %1170 = vst.msk [vmem:[#allocation2 + $0x130] sm:$0x3] %vm1133, 0.0
    %1171 = vst.msk [vmem:[#allocation2 + $0x138] sm:$0xff] %vm218, 0.0
    %1172 = vst.msk [vmem:[#allocation2 + $0x140] sm:$0xff] %vm218, 0.0
    %1173 = vst.msk [vmem:[#allocation2 + $0x148] sm:$0x3] %vm1133, 0.0
    %1174 = vst.msk [vmem:[#allocation2 + $0x150] sm:$0xff] %vm218, 0.0
    %1175 = vst.msk [vmem:[#allocation2 + $0x158] sm:$0xff] %vm218, 0.0
    %1176 = vst.msk [vmem:[#allocation2 + $0x160] sm:$0x3] %vm1133, 0.0
    %1177 = vst.msk [vmem:[#allocation2 + $0x168] sm:$0xff] %vm218, 0.0
    %1178 = vst.msk [vmem:[#allocation2 + $0x170] sm:$0xff] %vm218, 0.0
    %1179 = vst.msk [vmem:[#allocation2 + $0x178] sm:$0x3] %vm1133, 0.0
    %1180 = vst.msk [vmem:[#allocation2 + $0x180] sm:$0xff] %vm218, 0.0
    %1181 = vst.msk [vmem:[#allocation2 + $0x188] sm:$0xff] %vm218, 0.0
    %1182 = vst.msk [vmem:[#allocation2 + $0x190] sm:$0x3] %vm1133, 0.0
    %1183 = vst.msk [vmem:[#allocation2 + $0x198] sm:$0xff] %vm218, 0.0
    %1184 = vst.msk [vmem:[#allocation2 + $0x1a0] sm:$0xff] %vm218, 0.0
    %1185 = vst.msk [vmem:[#allocation2 + $0x1a8] sm:$0x3] %vm1133, 0.0
    %1186 = vst.msk [vmem:[#allocation2 + $0x1b0] sm:$0xff] %vm218, 0.0
    %1187 = vst.msk [vmem:[#allocation2 + $0x1b8] sm:$0xff] %vm218, 0.0
    %1188 = vst.msk [vmem:[#allocation2 + $0x1c0] sm:$0x3] %vm1133, 0.0
    %1189 = vst.msk [vmem:[#allocation2 + $0x1c8] sm:$0xff] %vm218, 0.0
    %1190 = vst.msk [vmem:[#allocation2 + $0x1d0] sm:$0xff] %vm218, 0.0
    %1191 = vst.msk [vmem:[#allocation2 + $0x1d8] sm:$0x3] %vm1133, 0.0
    %1192 = vst.msk [vmem:[#allocation2 + $0x1e0] sm:$0xff] %vm218, 0.0
    %1193 = vst.msk [vmem:[#allocation2 + $0x1e8] sm:$0xff] %vm218, 0.0
    %1194 = vst.msk [vmem:[#allocation2 + $0x1f0] sm:$0x3] %vm1133, 0.0
    %1195 = vst.msk [vmem:[#allocation2 + $0x1f8] sm:$0xff] %vm218, 0.0
    %1196 = vst.msk [vmem:[#allocation2 + $0x200] sm:$0xff] %vm218, 0.0
    %1197 = vst.msk [vmem:[#allocation2 + $0x208] sm:$0x3] %vm1133, 0.0
    %1198 = vst.msk [vmem:[#allocation2 + $0x210] sm:$0xff] %vm218, 0.0
    %1199 = vst.msk [vmem:[#allocation2 + $0x218] sm:$0xff] %vm218, 0.0
    %1200 = vst.msk [vmem:[#allocation2 + $0x220] sm:$0x3] %vm1133, 0.0
    %1201 = vst.msk [vmem:[#allocation2 + $0x228] sm:$0xff] %vm218, 0.0
    %1202 = vst.msk [vmem:[#allocation2 + $0x230] sm:$0xff] %vm218, 0.0
    %1203 = vst.msk [vmem:[#allocation2 + $0x238] sm:$0x3] %vm1133, 0.0
    %1204 = vst.msk [vmem:[#allocation2 + $0x240] sm:$0xff] %vm218, 0.0
    %1205 = vst.msk [vmem:[#allocation2 + $0x248] sm:$0xff] %vm218, 0.0
    %1206 = vst.msk [vmem:[#allocation2 + $0x250] sm:$0x3] %vm1133, 0.0
    %1207 = vst.msk [vmem:[#allocation2 + $0x258] sm:$0xff] %vm218, 0.0
    %1208 = vst.msk [vmem:[#allocation2 + $0x260] sm:$0xff] %vm218, 0.0
    %1209 = vst.msk [vmem:[#allocation2 + $0x268] sm:$0x3] %vm1133, 0.0
    %1210 = vst.msk [vmem:[#allocation2 + $0x270] sm:$0xff] %vm218, 0.0
    %1211 = vst.msk [vmem:[#allocation2 + $0x278] sm:$0xff] %vm218, 0.0
    %1212 = vst.msk [vmem:[#allocation2 + $0x280] sm:$0x3] %vm1133, 0.0
    %1213 = vst.msk [vmem:[#allocation2 + $0x288] sm:$0xff] %vm218, 0.0
    %1214 = vst.msk [vmem:[#allocation2 + $0x290] sm:$0xff] %vm218, 0.0
    %1215 = vst.msk [vmem:[#allocation2 + $0x298] sm:$0x3] %vm1133, 0.0
    %1216 = vst.msk [vmem:[#allocation2 + $0x2a0] sm:$0xff] %vm218, 0.0
    %1217 = vst.msk [vmem:[#allocation2 + $0x2a8] sm:$0xff] %vm218, 0.0
    %1218 = vst.msk [vmem:[#allocation2 + $0x2b0] sm:$0x3] %vm1133, 0.0
    %1219 = vst.msk [vmem:[#allocation2 + $0x2b8] sm:$0xff] %vm218, 0.0
    %1220 = vst.msk [vmem:[#allocation2 + $0x2c0] sm:$0xff] %vm218, 0.0
    %1221 = vst.msk [vmem:[#allocation2 + $0x2c8] sm:$0x3] %vm1133, 0.0
    %1222 = vst.msk [vmem:[#allocation2 + $0x2d0] sm:$0xff] %vm218, 0.0
    %1223 = vst.msk [vmem:[#allocation2 + $0x2d8] sm:$0xff] %vm218, 0.0
    %1224 = vst.msk [vmem:[#allocation2 + $0x2e0] sm:$0x3] %vm1133, 0.0
    %1225 = vst.msk [vmem:[#allocation2 + $0x2e8] sm:$0xff] %vm218, 0.0
    %1226 = vst.msk [vmem:[#allocation2 + $0x2f0] sm:$0xff] %vm218, 0.0
    %1227 = vst.msk [vmem:[#allocation2 + $0x2f8] sm:$0x3] %vm1133, 0.0
    %1228 = vst.msk [vmem:[#allocation2 + $0x300] sm:$0xff] %vm218, 0.0
    %1229 = vst.msk [vmem:[#allocation2 + $0x308] sm:$0xff] %vm218, 0.0
    %1230 = vst.msk [vmem:[#allocation2 + $0x310] sm:$0x3] %vm1133, 0.0
    %1231 = vst.msk [vmem:[#allocation2 + $0x318] sm:$0xff] %vm218, 0.0
    %1232 = vst.msk [vmem:[#allocation2 + $0x320] sm:$0xff] %vm218, 0.0
    %1233 = vst.msk [vmem:[#allocation2 + $0x328] sm:$0x3] %vm1133, 0.0
    %1234 = vst.msk [vmem:[#allocation2 + $0x330] sm:$0xff] %vm218, 0.0
    %1235 = vst.msk [vmem:[#allocation2 + $0x338] sm:$0xff] %vm218, 0.0
    %1236 = vst.msk [vmem:[#allocation2 + $0x340] sm:$0x3] %vm1133, 0.0
    %1237 = vst.msk [vmem:[#allocation2 + $0x348] sm:$0xff] %vm218, 0.0
    %1238 = vst.msk [vmem:[#allocation2 + $0x350] sm:$0xff] %vm218, 0.0
    %1239 = vst.msk [vmem:[#allocation2 + $0x358] sm:$0x3] %vm1133, 0.0
    %s1240 = scalar_lea.vmem [#allocation2], 24
    %1241 = vst.msk [vmem:[%s1240 + $0x1] sm:$0xff] %vm218, %v1067
    %1242 = vst.msk [vmem:[%s1240 + $0x9] sm:$0xff] %vm218, %v1068
    %1243 = vst.msk [vmem:[%s1240 + $0x19] sm:$0xff] %vm218, %v1069
    %1244 = vst.msk [vmem:[%s1240 + $0x21] sm:$0xff] %vm218, %v1070
    %1245 = vst.msk [vmem:[%s1240 + $0x31] sm:$0xff] %vm218, %v1071
    %1246 = vst.msk [vmem:[%s1240 + $0x39] sm:$0xff] %vm218, %v1072
    %1247 = vst.msk [vmem:[%s1240 + $0x49] sm:$0xff] %vm218, %v1073
    %1248 = vst.msk [vmem:[%s1240 + $0x51] sm:$0xff] %vm218, %v1074
    %1249 = vst.msk [vmem:[%s1240 + $0x61] sm:$0xff] %vm218, %v1075
    %1250 = vst.msk [vmem:[%s1240 + $0x69] sm:$0xff] %vm218, %v1076
    %1251 = vst.msk [vmem:[%s1240 + $0x79] sm:$0xff] %vm218, %v1077
    %1252 = vst.msk [vmem:[%s1240 + $0x81] sm:$0xff] %vm218, %v1078
    %1253 = vst.msk [vmem:[%s1240 + $0x91] sm:$0xff] %vm218, %v1079
    %1254 = vst.msk [vmem:[%s1240 + $0x99] sm:$0xff] %vm218, %v1080
    %1255 = vst.msk [vmem:[%s1240 + $0xa9] sm:$0xff] %vm218, %v1081
    %1256 = vst.msk [vmem:[%s1240 + $0xb1] sm:$0xff] %vm218, %v1082
    %1257 = vst.msk [vmem:[%s1240 + $0xc1] sm:$0xff] %vm218, %v1083
    %1258 = vst.msk [vmem:[%s1240 + $0xc9] sm:$0xff] %vm218, %v1084
    %1259 = vst.msk [vmem:[%s1240 + $0xd9] sm:$0xff] %vm218, %v1085
    %1260 = vst.msk [vmem:[%s1240 + $0xe1] sm:$0xff] %vm218, %v1086
    %1261 = vst.msk [vmem:[%s1240 + $0xf1] sm:$0xff] %vm218, %v1087
    %1262 = vst.msk [vmem:[%s1240 + $0xf9] sm:$0xff] %vm218, %v1088
    %1263 = vst.msk [vmem:[%s1240 + $0x109] sm:$0xff] %vm218, %v1089
    %1264 = vst.msk [vmem:[%s1240 + $0x111] sm:$0xff] %vm218, %v1090
    %1265 = vst.msk [vmem:[%s1240 + $0x121] sm:$0xff] %vm218, %v1091
    %1266 = vst.msk [vmem:[%s1240 + $0x129] sm:$0xff] %vm218, %v1092
    %1267 = vst.msk [vmem:[%s1240 + $0x139] sm:$0xff] %vm218, %v1093
    %1268 = vst.msk [vmem:[%s1240 + $0x141] sm:$0xff] %vm218, %v1094
    %1269 = vst.msk [vmem:[%s1240 + $0x151] sm:$0xff] %vm218, %v1095
    %1270 = vst.msk [vmem:[%s1240 + $0x159] sm:$0xff] %vm218, %v1096
    %1271 = vst.msk [vmem:[%s1240 + $0x169] sm:$0xff] %vm218, %v1097
    %1272 = vst.msk [vmem:[%s1240 + $0x171] sm:$0xff] %vm218, %v1098
    %1273 = vst.msk [vmem:[%s1240 + $0x1b1] sm:$0xff] %vm218, %v1099
    %1274 = vst.msk [vmem:[%s1240 + $0x1b9] sm:$0xff] %vm218, %v1100
    %1275 = vst.msk [vmem:[%s1240 + $0x1c9] sm:$0xff] %vm218, %v1101
    %1276 = vst.msk [vmem:[%s1240 + $0x1d1] sm:$0xff] %vm218, %v1102
    %1277 = vst.msk [vmem:[%s1240 + $0x1e1] sm:$0xff] %vm218, %v1103
    %1278 = vst.msk [vmem:[%s1240 + $0x1e9] sm:$0xff] %vm218, %v1104
    %1279 = vst.msk [vmem:[%s1240 + $0x1f9] sm:$0xff] %vm218, %v1105
    %1280 = vst.msk [vmem:[%s1240 + $0x201] sm:$0xff] %vm218, %v1106
    %1281 = vst.msk [vmem:[%s1240 + $0x211] sm:$0xff] %vm218, %v1107
    %1282 = vst.msk [vmem:[%s1240 + $0x219] sm:$0xff] %vm218, %v1108
    %1283 = vst.msk [vmem:[%s1240 + $0x229] sm:$0xff] %vm218, %v1109
    %1284 = vst.msk [vmem:[%s1240 + $0x231] sm:$0xff] %vm218, %v1110
    %1285 = vst.msk [vmem:[%s1240 + $0x241] sm:$0xff] %vm218, %v1111
    %1286 = vst.msk [vmem:[%s1240 + $0x249] sm:$0xff] %vm218, %v1112
    %1287 = vst.msk [vmem:[%s1240 + $0x259] sm:$0xff] %vm218, %v1113
    %1288 = vst.msk [vmem:[%s1240 + $0x261] sm:$0xff] %vm218, %v1114
    %1289 = vst.msk [vmem:[%s1240 + $0x271] sm:$0xff] %vm218, %v1115
    %1290 = vst.msk [vmem:[%s1240 + $0x279] sm:$0xff] %vm218, %v1116
    %1291 = vst.msk [vmem:[%s1240 + $0x289] sm:$0xff] %vm218, %v1117
    %1292 = vst.msk [vmem:[%s1240 + $0x291] sm:$0xff] %vm218, %v1118
    %1293 = vst.msk [vmem:[%s1240 + $0x2a1] sm:$0xff] %vm218, %v1119
    %1294 = vst.msk [vmem:[%s1240 + $0x2a9] sm:$0xff] %vm218, %v1120
    %1295 = vst.msk [vmem:[%s1240 + $0x2b9] sm:$0xff] %vm218, %v1121
    %1296 = vst.msk [vmem:[%s1240 + $0x2c1] sm:$0xff] %vm218, %v1122
    %1297 = vst.msk [vmem:[%s1240 + $0x2d1] sm:$0xff] %vm218, %v1123
    %1298 = vst.msk [vmem:[%s1240 + $0x2d9] sm:$0xff] %vm218, %v1124
    %1299 = vst.msk [vmem:[%s1240 + $0x2e9] sm:$0xff] %vm218, %v1125
    %1300 = vst.msk [vmem:[%s1240 + $0x2f1] sm:$0xff] %vm218, %v1126
    %1301 = vst.msk [vmem:[%s1240 + $0x301] sm:$0xff] %vm218, %v1127
    %1302 = vst.msk [vmem:[%s1240 + $0x309] sm:$0xff] %vm218, %v1128
    %1303 = vst.msk [vmem:[%s1240 + $0x319] sm:$0xff] %vm218, %v1129
    %1304 = vst.msk [vmem:[%s1240 + $0x321] sm:$0xff] %vm218, %v1130
    %v1305 = vld [vmem:[#allocation2] sm:$0xff]
    %v1306 = vld [vmem:[#allocation2 + $0x8] sm:$0xff]
    %v1307 = vld [vmem:[#allocation2 + $0x18] sm:$0xff]
    %v1308 = vld [vmem:[#allocation2 + $0x20] sm:$0xff]
    %v1309 = vld [vmem:[#allocation2 + $0x30] sm:$0xff]
    %v1310 = vld [vmem:[#allocation2 + $0x38] sm:$0xff]
    %v1311 = vld [vmem:[#allocation2 + $0x48] sm:$0xff]
    %v1312 = vld [vmem:[#allocation2 + $0x50] sm:$0xff]
    %v1313 = vld [vmem:[#allocation2 + $0x60] sm:$0xff]
    %v1314 = vld [vmem:[#allocation2 + $0x68] sm:$0xff]
    %v1315 = vld [vmem:[#allocation2 + $0x78] sm:$0xff]
    %v1316 = vld [vmem:[#allocation2 + $0x80] sm:$0xff]
    %v1317 = vld [vmem:[#allocation2 + $0x90] sm:$0xff]
    %v1318 = vld [vmem:[#allocation2 + $0x98] sm:$0xff]
    %v1319 = vld [vmem:[#allocation2 + $0xa8] sm:$0xff]
    %v1320 = vld [vmem:[#allocation2 + $0xb0] sm:$0xff]
    %v1321 = vld [vmem:[#allocation2 + $0xc0] sm:$0xff]
    %v1322 = vld [vmem:[#allocation2 + $0xc8] sm:$0xff]
    %v1323 = vld [vmem:[#allocation2 + $0xd8] sm:$0xff]
    %v1324 = vld [vmem:[#allocation2 + $0xe0] sm:$0xff]
    %v1325 = vld [vmem:[#allocation2 + $0xf0] sm:$0xff]
    %v1326 = vld [vmem:[#allocation2 + $0xf8] sm:$0xff]
    %v1327 = vld [vmem:[#allocation2 + $0x108] sm:$0xff]
    %v1328 = vld [vmem:[#allocation2 + $0x110] sm:$0xff]
    %v1329 = vld [vmem:[#allocation2 + $0x120] sm:$0xff]
    %v1330 = vld [vmem:[#allocation2 + $0x128] sm:$0xff]
    %v1331 = vld [vmem:[#allocation2 + $0x138] sm:$0xff]
    %v1332 = vld [vmem:[#allocation2 + $0x140] sm:$0xff]
    %v1333 = vld [vmem:[#allocation2 + $0x150] sm:$0xff]
    %v1334 = vld [vmem:[#allocation2 + $0x158] sm:$0xff]
    %v1335 = vld [vmem:[#allocation2 + $0x168] sm:$0xff]
    %v1336 = vld [vmem:[#allocation2 + $0x170] sm:$0xff]
    %v1337 = vld [vmem:[#allocation2 + $0x1b0] sm:$0xff]
    %v1338 = vld [vmem:[#allocation2 + $0x1b8] sm:$0xff]
    %v1339 = vld [vmem:[#allocation2 + $0x1c8] sm:$0xff]
    %v1340 = vld [vmem:[#allocation2 + $0x1d0] sm:$0xff]
    %v1341 = vld [vmem:[#allocation2 + $0x1e0] sm:$0xff]
    %v1342 = vld [vmem:[#allocation2 + $0x1e8] sm:$0xff]
    %v1343 = vld [vmem:[#allocation2 + $0x1f8] sm:$0xff]
    %v1344 = vld [vmem:[#allocation2 + $0x200] sm:$0xff]
    %v1345 = vld [vmem:[#allocation2 + $0x210] sm:$0xff]
    %v1346 = vld [vmem:[#allocation2 + $0x218] sm:$0xff]
    %v1347 = vld [vmem:[#allocation2 + $0x228] sm:$0xff]
    %v1348 = vld [vmem:[#allocation2 + $0x230] sm:$0xff]
    %v1349 = vld [vmem:[#allocation2 + $0x240] sm:$0xff]
    %v1350 = vld [vmem:[#allocation2 + $0x248] sm:$0xff]
    %v1351 = vld [vmem:[#allocation2 + $0x258] sm:$0xff]
    %v1352 = vld [vmem:[#allocation2 + $0x260] sm:$0xff]
    %v1353 = vld [vmem:[#allocation2 + $0x270] sm:$0xff]
    %v1354 = vld [vmem:[#allocation2 + $0x278] sm:$0xff]
    %v1355 = vld [vmem:[#allocation2 + $0x288] sm:$0xff]
    %v1356 = vld [vmem:[#allocation2 + $0x290] sm:$0xff]
    %v1357 = vld [vmem:[#allocation2 + $0x2a0] sm:$0xff]
    %v1358 = vld [vmem:[#allocation2 + $0x2a8] sm:$0xff]
    %v1359 = vld [vmem:[#allocation2 + $0x2b8] sm:$0xff]
    %v1360 = vld [vmem:[#allocation2 + $0x2c0] sm:$0xff]
    %v1361 = vld [vmem:[#allocation2 + $0x2d0] sm:$0xff]
    %v1362 = vld [vmem:[#allocation2 + $0x2d8] sm:$0xff]
    %v1363 = vld [vmem:[#allocation2 + $0x2e8] sm:$0xff]
    %v1364 = vld [vmem:[#allocation2 + $0x2f0] sm:$0xff]
    %v1365 = vld [vmem:[#allocation2 + $0x300] sm:$0xff]
    %v1366 = vld [vmem:[#allocation2 + $0x308] sm:$0xff]
    %v1367 = vld [vmem:[#allocation2 + $0x318] sm:$0xff]
    %v1368 = vld [vmem:[#allocation2 + $0x320] sm:$0xff]
    %v1369 = vpack.c.bf16 %v1306, %v1305
    %v1370 = vpack.c.bf16 %v1308, %v1307
    %v1371 = vpack.c.bf16 %v1310, %v1309
    %v1372 = vpack.c.bf16 %v1312, %v1311
    %v1373 = vpack.c.bf16 %v1314, %v1313
    %v1374 = vpack.c.bf16 %v1316, %v1315
    %v1375 = vpack.c.bf16 %v1318, %v1317
    %v1376 = vpack.c.bf16 %v1320, %v1319
    %v1377 = vpack.c.bf16 %v1322, %v1321
    %v1378 = vpack.c.bf16 %v1324, %v1323
    %v1379 = vpack.c.bf16 %v1326, %v1325
    %v1380 = vpack.c.bf16 %v1328, %v1327
    %v1381 = vpack.c.bf16 %v1330, %v1329
    %v1382 = vpack.c.bf16 %v1332, %v1331
    %v1383 = vpack.c.bf16 %v1334, %v1333
    %v1384 = vpack.c.bf16 %v1336, %v1335
    %v1385 = vpack.c.bf16 %v1338, %v1337
    %v1386 = vpack.c.bf16 %v1340, %v1339
    %v1387 = vpack.c.bf16 %v1342, %v1341
    %v1388 = vpack.c.bf16 %v1344, %v1343
    %v1389 = vpack.c.bf16 %v1346, %v1345
    %v1390 = vpack.c.bf16 %v1348, %v1347
    %v1391 = vpack.c.bf16 %v1350, %v1349
    %v1392 = vpack.c.bf16 %v1352, %v1351
    %v1393 = vpack.c.bf16 %v1354, %v1353
    %v1394 = vpack.c.bf16 %v1356, %v1355
    %v1395 = vpack.c.bf16 %v1358, %v1357
    %v1396 = vpack.c.bf16 %v1360, %v1359
    %v1397 = vpack.c.bf16 %v1362, %v1361
    %v1398 = vpack.c.bf16 %v1364, %v1363
    %v1399 = vpack.c.bf16 %v1366, %v1365
    %v1400 = vpack.c.bf16 %v1368, %v1367
    %v1401 = vld [vmem:[#allocation8] sm:$0xf]
    %v1402 = vld [vmem:[#allocation8 + $0x4] sm:$0xf]
    %v1403 = vld [vmem:[#allocation8 + $0x8] sm:$0xf]
    %v1404 = vld [vmem:[#allocation8 + $0xc] sm:$0xf]
    %v1405 = vld [vmem:[#allocation8 + $0x10] sm:$0xf]
    %v1406 = vld [vmem:[#allocation8 + $0x14] sm:$0xf]
    %v1407 = vld [vmem:[#allocation8 + $0x18] sm:$0xf]
    %v1408 = vld [vmem:[#allocation8 + $0x1c] sm:$0xf]
    %v1409 = vld [vmem:[#allocation2 + $0x1] sm:$0xff]
    %v1410 = vld [vmem:[#allocation2 + $0x9] sm:$0xff]
    %v1411 = vld [vmem:[#allocation2 + $0x19] sm:$0xff]
    %v1412 = vld [vmem:[#allocation2 + $0x21] sm:$0xff]
    %v1413 = vld [vmem:[#allocation2 + $0x31] sm:$0xff]
    %v1414 = vld [vmem:[#allocation2 + $0x39] sm:$0xff]
    %v1415 = vld [vmem:[#allocation2 + $0x49] sm:$0xff]
    %v1416 = vld [vmem:[#allocation2 + $0x51] sm:$0xff]
    %v1417 = vld [vmem:[#allocation2 + $0x61] sm:$0xff]
    %v1418 = vld [vmem:[#allocation2 + $0x69] sm:$0xff]
    %v1419 = vld [vmem:[#allocation2 + $0x79] sm:$0xff]
    %v1420 = vld [vmem:[#allocation2 + $0x81] sm:$0xff]
    %v1421 = vld [vmem:[#allocation2 + $0x91] sm:$0xff]
    %v1422 = vld [vmem:[#allocation2 + $0x99] sm:$0xff]
    %v1423 = vld [vmem:[#allocation2 + $0xa9] sm:$0xff]
    %v1424 = vld [vmem:[#allocation2 + $0xb1] sm:$0xff]
    %v1425 = vld [vmem:[#allocation2 + $0xc1] sm:$0xff]
    %v1426 = vld [vmem:[#allocation2 + $0xc9] sm:$0xff]
    %v1427 = vld [vmem:[#allocation2 + $0xd9] sm:$0xff]
    %v1428 = vld [vmem:[#allocation2 + $0xe1] sm:$0xff]
    %v1429 = vld [vmem:[#allocation2 + $0xf1] sm:$0xff]
    %v1430 = vld [vmem:[#allocation2 + $0xf9] sm:$0xff]
    %v1431 = vld [vmem:[#allocation2 + $0x109] sm:$0xff]
    %v1432 = vld [vmem:[#allocation2 + $0x111] sm:$0xff]
    %v1433 = vld [vmem:[#allocation2 + $0x121] sm:$0xff]
    %v1434 = vld [vmem:[#allocation2 + $0x129] sm:$0xff]
    %v1435 = vld [vmem:[#allocation2 + $0x139] sm:$0xff]
    %v1436 = vld [vmem:[#allocation2 + $0x141] sm:$0xff]
    %v1437 = vld [vmem:[#allocation2 + $0x151] sm:$0xff]
    %v1438 = vld [vmem:[#allocation2 + $0x159] sm:$0xff]
    %v1439 = vld [vmem:[#allocation2 + $0x169] sm:$0xff]
    %v1440 = vld [vmem:[#allocation2 + $0x171] sm:$0xff]
    %v1441 = vld [vmem:[#allocation2 + $0x1b1] sm:$0xff]
    %v1442 = vld [vmem:[#allocation2 + $0x1b9] sm:$0xff]
    %v1443 = vld [vmem:[#allocation2 + $0x1c9] sm:$0xff]
    %v1444 = vld [vmem:[#allocation2 + $0x1d1] sm:$0xff]
    %v1445 = vld [vmem:[#allocation2 + $0x1e1] sm:$0xff]
    %v1446 = vld [vmem:[#allocation2 + $0x1e9] sm:$0xff]
    %v1447 = vld [vmem:[#allocation2 + $0x1f9] sm:$0xff]
    %v1448 = vld [vmem:[#allocation2 + $0x201] sm:$0xff]
    %v1449 = vld [vmem:[#allocation2 + $0x211] sm:$0xff]
    %v1450 = vld [vmem:[#allocation2 + $0x219] sm:$0xff]
    %v1451 = vld [vmem:[#allocation2 + $0x229] sm:$0xff]
    %v1452 = vld [vmem:[#allocation2 + $0x231] sm:$0xff]
    %v1453 = vld [vmem:[#allocation2 + $0x241] sm:$0xff]
    %v1454 = vld [vmem:[#allocation2 + $0x249] sm:$0xff]
    %v1455 = vld [vmem:[#allocation2 + $0x259] sm:$0xff]
    %v1456 = vld [vmem:[#allocation2 + $0x261] sm:$0xff]
    %v1457 = vld [vmem:[#allocation2 + $0x271] sm:$0xff]
    %v1458 = vld [vmem:[#allocation2 + $0x279] sm:$0xff]
    %v1459 = vld [vmem:[#allocation2 + $0x289] sm:$0xff]
    %v1460 = vld [vmem:[#allocation2 + $0x291] sm:$0xff]
    %v1461 = vld [vmem:[#allocation2 + $0x2a1] sm:$0xff]
    %v1462 = vld [vmem:[#allocation2 + $0x2a9] sm:$0xff]
    %v1463 = vld [vmem:[#allocation2 + $0x2b9] sm:$0xff]
    %v1464 = vld [vmem:[#allocation2 + $0x2c1] sm:$0xff]
    %v1465 = vld [vmem:[#allocation2 + $0x2d1] sm:$0xff]
    %v1466 = vld [vmem:[#allocation2 + $0x2d9] sm:$0xff]
    %v1467 = vld [vmem:[#allocation2 + $0x2e9] sm:$0xff]
    %v1468 = vld [vmem:[#allocation2 + $0x2f1] sm:$0xff]
    %v1469 = vld [vmem:[#allocation2 + $0x301] sm:$0xff]
    %v1470 = vld [vmem:[#allocation2 + $0x309] sm:$0xff]
    %v1471 = vld [vmem:[#allocation2 + $0x319] sm:$0xff]
    %v1472 = vld [vmem:[#allocation2 + $0x321] sm:$0xff]
    %v1473 = vpack.c.bf16 %v1410, %v1409
    %v1474 = vpack.c.bf16 %v1412, %v1411
    %v1475 = vpack.c.bf16 %v1414, %v1413
    %v1476 = vpack.c.bf16 %v1416, %v1415
    %v1477 = vpack.c.bf16 %v1418, %v1417
    %v1478 = vpack.c.bf16 %v1420, %v1419
    %v1479 = vpack.c.bf16 %v1422, %v1421
    %v1480 = vpack.c.bf16 %v1424, %v1423
    %v1481 = vpack.c.bf16 %v1426, %v1425
    %v1482 = vpack.c.bf16 %v1428, %v1427
    %v1483 = vpack.c.bf16 %v1430, %v1429
    %v1484 = vpack.c.bf16 %v1432, %v1431
    %v1485 = vpack.c.bf16 %v1434, %v1433
    %v1486 = vpack.c.bf16 %v1436, %v1435
    %v1487 = vpack.c.bf16 %v1438, %v1437
    %v1488 = vpack.c.bf16 %v1440, %v1439
    %v1489 = vpack.c.bf16 %v1442, %v1441
    %v1490 = vpack.c.bf16 %v1444, %v1443
    %v1491 = vpack.c.bf16 %v1446, %v1445
    %v1492 = vpack.c.bf16 %v1448, %v1447
    %v1493 = vpack.c.bf16 %v1450, %v1449
    %v1494 = vpack.c.bf16 %v1452, %v1451
    %v1495 = vpack.c.bf16 %v1454, %v1453
    %v1496 = vpack.c.bf16 %v1456, %v1455
    %v1497 = vpack.c.bf16 %v1458, %v1457
    %v1498 = vpack.c.bf16 %v1460, %v1459
    %v1499 = vpack.c.bf16 %v1462, %v1461
    %v1500 = vpack.c.bf16 %v1464, %v1463
    %v1501 = vpack.c.bf16 %v1466, %v1465
    %v1502 = vpack.c.bf16 %v1468, %v1467
    %v1503 = vpack.c.bf16 %v1470, %v1469
    %v1504 = vpack.c.bf16 %v1472, %v1471
    %s1505 = scalar_lea.vmem [#allocation8], 32
    %v1506 = vld [vmem:[%s1505] sm:$0xf]
    %v1507 = vld [vmem:[%s1505 + $0x4] sm:$0xf]
    %v1508 = vld [vmem:[%s1505 + $0x8] sm:$0xf]
    %v1509 = vld [vmem:[%s1505 + $0xc] sm:$0xf]
    %v1510 = vld [vmem:[%s1505 + $0x10] sm:$0xf]
    %v1511 = vld [vmem:[%s1505 + $0x14] sm:$0xf]
    %v1512 = vld [vmem:[%s1505 + $0x18] sm:$0xf]
    %v1513 = vld [vmem:[%s1505 + $0x1c] sm:$0xf]
    %v1522 = vunpack.c.l.b16 %v1506
    %v1523 = vunpack.c.l.b16 %v1507
    %v1524 = vunpack.c.l.b16 %v1508
    %v1525 = vunpack.c.l.b16 %v1509
    %v1526 = vunpack.c.l.b16 %v1510
    %v1527 = vunpack.c.l.b16 %v1511
    %v1528 = vunpack.c.l.b16 %v1512
    %v1529 = vunpack.c.l.b16 %v1513
    %v1530 = vpack.c.b16 %v1523, %v1522
    %v1531 = vpack.c.b16 %v1525, %v1524
    %v1532 = vpack.c.b16 %v1527, %v1526
    %v1533 = vpack.c.b16 %v1529, %v1528
    %v1539 = vsel %vm218, %v1473, 0
    %v1542 = vsel %vm218, %v1474, 0
    %v1545 = vsel %vm218, %v1475, 0
    %v1548 = vsel %vm218, %v1476, 0
    %v1551 = vsel %vm218, %v1477, 0
    %v1554 = vsel %vm218, %v1478, 0
    %v1557 = vsel %vm218, %v1479, 0
    %v1560 = vsel %vm218, %v1480, 0
    %v1563 = vsel %vm218, %v1481, 0
    %v1566 = vsel %vm218, %v1482, 0
    %v1569 = vsel %vm218, %v1483, 0
    %v1572 = vsel %vm218, %v1484, 0
    %v1575 = vsel %vm218, %v1485, 0
    %v1578 = vsel %vm218, %v1486, 0
    %v1581 = vsel %vm218, %v1487, 0
    %v1584 = vsel %vm218, %v1488, 0
    %v1587 = vsel %vm218, %v1489, 0
    %v1590 = vsel %vm218, %v1490, 0
    %v1593 = vsel %vm218, %v1491, 0
    %v1596 = vsel %vm218, %v1492, 0
    %v1599 = vsel %vm218, %v1493, 0
    %v1602 = vsel %vm218, %v1494, 0
    %v1605 = vsel %vm218, %v1495, 0
    %v1608 = vsel %vm218, %v1496, 0
    %v1611 = vsel %vm218, %v1497, 0
    %v1614 = vsel %vm218, %v1498, 0
    %v1617 = vsel %vm218, %v1499, 0
    %v1620 = vsel %vm218, %v1500, 0
    %v1623 = vsel %vm218, %v1501, 0
    %v1626 = vsel %vm218, %v1502, 0
    %v1629 = vsel %vm218, %v1503, 0
    %v1632 = vsel %vm218, %v1504, 0
    %1634 = vmatprep.subr.bf16.mxu0 0
    %1635 = vmatpush1.bf16.msra.mxu0 %v1530
    %1636 = vmatprep.subr.bf16.mxu0 0
    %1637 = vmatpush1.bf16.msra.mxu0 %v1531
    %1638 = vmatprep.subr.bf16.mxu0 0
    %1639 = vmatpush1.bf16.msra.mxu0 %v1532
    %1640 = vmatprep.subr.bf16.mxu0 0
    %1641 = vmatpush1.bf16.msra.mxu0 %v1533
    %1642 = vmatprep.subr.bf16.mxu0 0
    %1643 = vmatpush1.bf16.msra.mxu0 0
    %1644 = vmatprep.subr.bf16.mxu0 0
    %1645 = vmatpush1.bf16.msra.mxu0 0
    %1646 = vmatprep.subr.bf16.mxu0 0
    %1647 = vmatpush1.bf16.msra.mxu0 0
    %1648 = vmatprep.subr.bf16.mxu0 0
    %1649 = vmatpush1.bf16.msra.mxu0 0
    %1650 = vmatprep.subr.bf16.mxu0 0
    %1651 = vmatpush1.bf16.msra.mxu0 0
    %1652 = vmatprep.subr.bf16.mxu0 0
    %1653 = vmatpush1.bf16.msra.mxu0 0
    %1654 = vmatprep.subr.bf16.mxu0 0
    %1655 = vmatpush1.bf16.msra.mxu0 0
    %1656 = vmatprep.subr.bf16.mxu0 0
    %1657 = vmatpush1.bf16.msra.mxu0 0
    %1658 = vmatprep.subr.bf16.mxu0 0
    %1659 = vmatpush1.bf16.msra.mxu0 0
    %1660 = vmatprep.subr.bf16.mxu0 0
    %1661 = vmatpush1.bf16.msra.mxu0 0
    %1662 = vmatprep.subr.bf16.mxu0 0
    %1663 = vmatpush1.bf16.msra.mxu0 0
    %1664 = vmatprep.subr.bf16.mxu0 0
    %1665 = vmatpush1.bf16.msra.mxu0 0
    %1666 = vmatprep.mubr.bf16.mxu0 0
    %1667 = vmatmul.mubr.bf16.gmra.mrb[0].mxu0 %v1539
    %v1668 = vpop.f32.mrb[0].mxu0
    %v1669 = vadd.f32 0.0, %v1668
    %v1670 = vpop.f32.mrb[0].mxu0
    %v1671 = vpop.f32.mrb[0].mxu0
    %v1672 = vadd.f32 0.0, %v1671
    %v1673 = vpop.f32.mrb[0].mxu0
    %1674 = vmatprep.mubr.bf16.mxu0 0
    %1675 = vmatmul.mubr.bf16.gmra.mrb[0].mxu0 %v1542
    %v1676 = vpop.f32.mrb[0].mxu0
    %v1677 = vadd.f32 0.0, %v1676
    %v1678 = vpop.f32.mrb[0].mxu0
    %v1679 = vpop.f32.mrb[0].mxu0
    %v1680 = vadd.f32 0.0, %v1679
    %v1681 = vpop.f32.mrb[0].mxu0
    %1682 = vmatprep.mubr.bf16.mxu0 0
    %1683 = vmatmul.mubr.bf16.gmra.mrb[0].mxu0 %v1545
    %v1684 = vpop.f32.mrb[0].mxu0
    %v1685 = vadd.f32 0.0, %v1684
    %v1686 = vpop.f32.mrb[0].mxu0
    %v1687 = vpop.f32.mrb[0].mxu0
    %v1688 = vadd.f32 0.0, %v1687
    %v1689 = vpop.f32.mrb[0].mxu0
    %1690 = vmatprep.mubr.bf16.mxu0 0
    %1691 = vmatmul.mubr.bf16.gmra.mrb[0].mxu0 %v1548
    %v1692 = vpop.f32.mrb[0].mxu0
    %v1693 = vadd.f32 0.0, %v1692
    %v1694 = vpop.f32.mrb[0].mxu0
    %v1695 = vpop.f32.mrb[0].mxu0
    %v1696 = vadd.f32 0.0, %v1695
    %v1697 = vpop.f32.mrb[0].mxu0
    %1698 = vmatprep.mubr.bf16.mxu0 0
    %1699 = vmatmul.mubr.bf16.gmra.mrb[0].mxu0 %v1551
    %v1700 = vpop.f32.mrb[0].mxu0
    %v1701 = vadd.f32 0.0, %v1700
    %v1702 = vpop.f32.mrb[0].mxu0
    %v1703 = vpop.f32.mrb[0].mxu0
    %v1704 = vadd.f32 0.0, %v1703
    %v1705 = vpop.f32.mrb[0].mxu0
    %1706 = vmatprep.mubr.bf16.mxu0 0
    %1707 = vmatmul.mubr.bf16.gmra.mrb[0].mxu0 %v1554
    %v1708 = vpop.f32.mrb[0].mxu0
    %v1709 = vadd.f32 0.0, %v1708
    %v1710 = vpop.f32.mrb[0].mxu0
    %v1711 = vpop.f32.mrb[0].mxu0
    %v1712 = vadd.f32 0.0, %v1711
    %v1713 = vpop.f32.mrb[0].mxu0
    %1714 = vmatprep.mubr.bf16.mxu0 0
    %1715 = vmatmul.mubr.bf16.gmra.mrb[0].mxu0 %v1557
    %v1716 = vpop.f32.mrb[0].mxu0
    %v1717 = vadd.f32 0.0, %v1716
    %v1718 = vpop.f32.mrb[0].mxu0
    %v1719 = vpop.f32.mrb[0].mxu0
    %v1720 = vadd.f32 0.0, %v1719
    %v1721 = vpop.f32.mrb[0].mxu0
    %1722 = vmatprep.mubr.bf16.mxu0 0
    %1723 = vmatmul.mubr.bf16.gmra.mrb[0].mxu0 %v1560
    %v1724 = vpop.f32.mrb[0].mxu0
    %v1725 = vadd.f32 0.0, %v1724
    %v1726 = vpop.f32.mrb[0].mxu0
    %v1727 = vpop.f32.mrb[0].mxu0
    %v1728 = vadd.f32 0.0, %v1727
    %v1729 = vpop.f32.mrb[0].mxu0
    %1730 = vmatprep.mubr.bf16.mxu0 0
    %1731 = vmatmul.mubr.bf16.gmra.mrb[0].mxu0 %v1563
    %v1732 = vpop.f32.mrb[0].mxu0
    %v1733 = vadd.f32 0.0, %v1732
    %v1734 = vpop.f32.mrb[0].mxu0
    %v1735 = vpop.f32.mrb[0].mxu0
    %v1736 = vadd.f32 0.0, %v1735
    %v1737 = vpop.f32.mrb[0].mxu0
    %1738 = vmatprep.mubr.bf16.mxu0 0
    %1739 = vmatmul.mubr.bf16.gmra.mrb[0].mxu0 %v1566
    %v1740 = vpop.f32.mrb[0].mxu0
    %v1741 = vadd.f32 0.0, %v1740
    %v1742 = vpop.f32.mrb[0].mxu0
    %v1743 = vpop.f32.mrb[0].mxu0
    %v1744 = vadd.f32 0.0, %v1743
    %v1745 = vpop.f32.mrb[0].mxu0
    %1746 = vmatprep.mubr.bf16.mxu0 0
    %1747 = vmatmul.mubr.bf16.gmra.mrb[0].mxu0 %v1569
    %v1748 = vpop.f32.mrb[0].mxu0
    %v1749 = vadd.f32 0.0, %v1748
    %v1750 = vpop.f32.mrb[0].mxu0
    %v1751 = vpop.f32.mrb[0].mxu0
    %v1752 = vadd.f32 0.0, %v1751
    %v1753 = vpop.f32.mrb[0].mxu0
    %1754 = vmatprep.mubr.bf16.mxu0 0
    %1755 = vmatmul.mubr.bf16.gmra.mrb[0].mxu0 %v1572
    %v1756 = vpop.f32.mrb[0].mxu0
    %v1757 = vadd.f32 0.0, %v1756
    %v1758 = vpop.f32.mrb[0].mxu0
    %v1759 = vpop.f32.mrb[0].mxu0
    %v1760 = vadd.f32 0.0, %v1759
    %v1761 = vpop.f32.mrb[0].mxu0
    %1762 = vmatprep.mubr.bf16.mxu0 0
    %1763 = vmatmul.mubr.bf16.gmra.mrb[0].mxu0 %v1575
    %v1764 = vpop.f32.mrb[0].mxu0
    %v1765 = vadd.f32 0.0, %v1764
    %v1766 = vpop.f32.mrb[0].mxu0
    %v1767 = vpop.f32.mrb[0].mxu0
    %v1768 = vadd.f32 0.0, %v1767
    %v1769 = vpop.f32.mrb[0].mxu0
    %1770 = vmatprep.mubr.bf16.mxu0 0
    %1771 = vmatmul.mubr.bf16.gmra.mrb[0].mxu0 %v1578
    %v1772 = vpop.f32.mrb[0].mxu0
    %v1773 = vadd.f32 0.0, %v1772
    %v1774 = vpop.f32.mrb[0].mxu0
    %v1775 = vpop.f32.mrb[0].mxu0
    %v1776 = vadd.f32 0.0, %v1775
    %v1777 = vpop.f32.mrb[0].mxu0
    %1778 = vmatprep.mubr.bf16.mxu0 0
    %1779 = vmatmul.mubr.bf16.gmra.mrb[0].mxu0 %v1581
    %v1780 = vpop.f32.mrb[0].mxu0
    %v1781 = vadd.f32 0.0, %v1780
    %v1782 = vpop.f32.mrb[0].mxu0
    %v1783 = vpop.f32.mrb[0].mxu0
    %v1784 = vadd.f32 0.0, %v1783
    %v1785 = vpop.f32.mrb[0].mxu0
    %1786 = vmatprep.mubr.bf16.mxu0 0
    %1787 = vmatmul.mubr.bf16.gmra.mrb[0].mxu0 %v1584
    %v1788 = vpop.f32.mrb[0].mxu0
    %v1789 = vadd.f32 0.0, %v1788
    %v1790 = vpop.f32.mrb[0].mxu0
    %v1791 = vpop.f32.mrb[0].mxu0
    %v1792 = vadd.f32 0.0, %v1791
    %v1793 = vpop.f32.mrb[0].mxu0
    %1794 = vmatprep.mubr.bf16.mxu0 0
    %1795 = vmatmul.mubr.bf16.gmra.mrb[0].mxu0 %v1587
    %v1796 = vpop.f32.mrb[0].mxu0
    %v1797 = vadd.f32 0.0, %v1796
    %v1798 = vpop.f32.mrb[0].mxu0
    %v1799 = vpop.f32.mrb[0].mxu0
    %v1800 = vadd.f32 0.0, %v1799
    %v1801 = vpop.f32.mrb[0].mxu0
    %1802 = vmatprep.mubr.bf16.mxu0 0
    %1803 = vmatmul.mubr.bf16.gmra.mrb[0].mxu0 %v1590
    %v1804 = vpop.f32.mrb[0].mxu0
    %v1805 = vadd.f32 0.0, %v1804
    %v1806 = vpop.f32.mrb[0].mxu0
    %v1807 = vpop.f32.mrb[0].mxu0
    %v1808 = vadd.f32 0.0, %v1807
    %v1809 = vpop.f32.mrb[0].mxu0
    %1810 = vmatprep.mubr.bf16.mxu0 0
    %1811 = vmatmul.mubr.bf16.gmra.mrb[0].mxu0 %v1593
    %v1812 = vpop.f32.mrb[0].mxu0
    %v1813 = vadd.f32 0.0, %v1812
    %v1814 = vpop.f32.mrb[0].mxu0
    %v1815 = vpop.f32.mrb[0].mxu0
    %v1816 = vadd.f32 0.0, %v1815
    %v1817 = vpop.f32.mrb[0].mxu0
    %1818 = vmatprep.mubr.bf16.mxu0 0
    %1819 = vmatmul.mubr.bf16.gmra.mrb[0].mxu0 %v1596
    %v1820 = vpop.f32.mrb[0].mxu0
    %v1821 = vadd.f32 0.0, %v1820
    %v1822 = vpop.f32.mrb[0].mxu0
    %v1823 = vpop.f32.mrb[0].mxu0
    %v1824 = vadd.f32 0.0, %v1823
    %v1825 = vpop.f32.mrb[0].mxu0
    %1826 = vmatprep.mubr.bf16.mxu0 0
    %1827 = vmatmul.mubr.bf16.gmra.mrb[0].mxu0 %v1599
    %v1828 = vpop.f32.mrb[0].mxu0
    %v1829 = vadd.f32 0.0, %v1828
    %v1830 = vpop.f32.mrb[0].mxu0
    %v1831 = vpop.f32.mrb[0].mxu0
    %v1832 = vadd.f32 0.0, %v1831
    %v1833 = vpop.f32.mrb[0].mxu0
    %1834 = vmatprep.mubr.bf16.mxu0 0
    %1835 = vmatmul.mubr.bf16.gmra.mrb[0].mxu0 %v1602
    %v1836 = vpop.f32.mrb[0].mxu0
    %v1837 = vadd.f32 0.0, %v1836
    %v1838 = vpop.f32.mrb[0].mxu0
    %v1839 = vpop.f32.mrb[0].mxu0
    %v1840 = vadd.f32 0.0, %v1839
    %v1841 = vpop.f32.mrb[0].mxu0
    %1842 = vmatprep.mubr.bf16.mxu0 0
    %1843 = vmatmul.mubr.bf16.gmra.mrb[0].mxu0 %v1605
    %v1844 = vpop.f32.mrb[0].mxu0
    %v1845 = vadd.f32 0.0, %v1844
    %v1846 = vpop.f32.mrb[0].mxu0
    %v1847 = vpop.f32.mrb[0].mxu0
    %v1848 = vadd.f32 0.0, %v1847
    %v1849 = vpop.f32.mrb[0].mxu0
    %1850 = vmatprep.mubr.bf16.mxu0 0
    %1851 = vmatmul.mubr.bf16.gmra.mrb[0].mxu0 %v1608
    %v1852 = vpop.f32.mrb[0].mxu0
    %v1853 = vadd.f32 0.0, %v1852
    %v1854 = vpop.f32.mrb[0].mxu0
    %v1855 = vpop.f32.mrb[0].mxu0
    %v1856 = vadd.f32 0.0, %v1855
    %v1857 = vpop.f32.mrb[0].mxu0
    %1858 = vmatprep.mubr.bf16.mxu0 0
    %1859 = vmatmul.mubr.bf16.gmra.mrb[0].mxu0 %v1611
    %v1860 = vpop.f32.mrb[0].mxu0
    %v1861 = vadd.f32 0.0, %v1860
    %v1862 = vpop.f32.mrb[0].mxu0
    %v1863 = vpop.f32.mrb[0].mxu0
    %v1864 = vadd.f32 0.0, %v1863
    %v1865 = vpop.f32.mrb[0].mxu0
    %1866 = vmatprep.mubr.bf16.mxu0 0
    %1867 = vmatmul.mubr.bf16.gmra.mrb[0].mxu0 %v1614
    %v1868 = vpop.f32.mrb[0].mxu0
    %v1869 = vadd.f32 0.0, %v1868
    %v1870 = vpop.f32.mrb[0].mxu0
    %v1871 = vpop.f32.mrb[0].mxu0
    %v1872 = vadd.f32 0.0, %v1871
    %v1873 = vpop.f32.mrb[0].mxu0
    %1874 = vmatprep.mubr.bf16.mxu0 0
    %1875 = vmatmul.mubr.bf16.gmra.mrb[0].mxu0 %v1617
    %v1876 = vpop.f32.mrb[0].mxu0
    %v1877 = vadd.f32 0.0, %v1876
    %v1878 = vpop.f32.mrb[0].mxu0
    %v1879 = vpop.f32.mrb[0].mxu0
    %v1880 = vadd.f32 0.0, %v1879
    %v1881 = vpop.f32.mrb[0].mxu0
    %1882 = vmatprep.mubr.bf16.mxu0 0
    %1883 = vmatmul.mubr.bf16.gmra.mrb[0].mxu0 %v1620
    %v1884 = vpop.f32.mrb[0].mxu0
    %v1885 = vadd.f32 0.0, %v1884
    %v1886 = vpop.f32.mrb[0].mxu0
    %v1887 = vpop.f32.mrb[0].mxu0
    %v1888 = vadd.f32 0.0, %v1887
    %v1889 = vpop.f32.mrb[0].mxu0
    %1890 = vmatprep.mubr.bf16.mxu0 0
    %1891 = vmatmul.mubr.bf16.gmra.mrb[0].mxu0 %v1623
    %v1892 = vpop.f32.mrb[0].mxu0
    %v1893 = vadd.f32 0.0, %v1892
    %v1894 = vpop.f32.mrb[0].mxu0
    %v1895 = vpop.f32.mrb[0].mxu0
    %v1896 = vadd.f32 0.0, %v1895
    %v1897 = vpop.f32.mrb[0].mxu0
    %1898 = vmatprep.mubr.bf16.mxu0 0
    %1899 = vmatmul.mubr.bf16.gmra.mrb[0].mxu0 %v1626
    %v1900 = vpop.f32.mrb[0].mxu0
    %v1901 = vadd.f32 0.0, %v1900
    %v1902 = vpop.f32.mrb[0].mxu0
    %v1903 = vpop.f32.mrb[0].mxu0
    %v1904 = vadd.f32 0.0, %v1903
    %v1905 = vpop.f32.mrb[0].mxu0
    %1906 = vmatprep.mubr.bf16.mxu0 0
    %1907 = vmatmul.mubr.bf16.gmra.mrb[0].mxu0 %v1629
    %v1908 = vpop.f32.mrb[0].mxu0
    %v1909 = vadd.f32 0.0, %v1908
    %v1910 = vpop.f32.mrb[0].mxu0
    %v1911 = vpop.f32.mrb[0].mxu0
    %v1912 = vadd.f32 0.0, %v1911
    %v1913 = vpop.f32.mrb[0].mxu0
    %1914 = vmatprep.mubr.bf16.mxu0 0
    %1915 = vmatmul.mubr.bf16.gmra.mrb[0].mxu0 %v1632
    %v1916 = vpop.f32.mrb[0].mxu0
    %v1917 = vadd.f32 0.0, %v1916
    %v1918 = vpop.f32.mrb[0].mxu0
    %v1919 = vpop.f32.mrb[0].mxu0
    %v1920 = vadd.f32 0.0, %v1919
    %v1921 = vpop.f32.mrb[0].mxu0
    %1922 = vdwg.mxu0
    %v1931 = vunpack.c.l.b16 %v1401
    %v1932 = vunpack.c.l.b16 %v1402
    %v1933 = vunpack.c.l.b16 %v1403
    %v1934 = vunpack.c.l.b16 %v1404
    %v1935 = vunpack.c.l.b16 %v1405
    %v1936 = vunpack.c.l.b16 %v1406
    %v1937 = vunpack.c.l.b16 %v1407
    %v1938 = vunpack.c.l.b16 %v1408
    %v1939 = vpack.c.b16 %v1932, %v1931
    %v1940 = vpack.c.b16 %v1934, %v1933
    %v1941 = vpack.c.b16 %v1936, %v1935
    %v1942 = vpack.c.b16 %v1938, %v1937
    %v1948 = vsel %vm218, %v1369, 0
    %v1951 = vsel %vm218, %v1370, 0
    %v1954 = vsel %vm218, %v1371, 0
    %v1957 = vsel %vm218, %v1372, 0
    %v1960 = vsel %vm218, %v1373, 0
    %v1963 = vsel %vm218, %v1374, 0
    %v1966 = vsel %vm218, %v1375, 0
    %v1969 = vsel %vm218, %v1376, 0
    %v1972 = vsel %vm218, %v1377, 0
    %v1975 = vsel %vm218, %v1378, 0
    %v1978 = vsel %vm218, %v1379, 0
    %v1981 = vsel %vm218, %v1380, 0
    %v1984 = vsel %vm218, %v1381, 0
    %v1987 = vsel %vm218, %v1382, 0
    %v1990 = vsel %vm218, %v1383, 0
    %v1993 = vsel %vm218, %v1384, 0
    %v1996 = vsel %vm218, %v1385, 0
    %v1999 = vsel %vm218, %v1386, 0
    %v2002 = vsel %vm218, %v1387, 0
    %v2005 = vsel %vm218, %v1388, 0
    %v2008 = vsel %vm218, %v1389, 0
    %v2011 = vsel %vm218, %v1390, 0
    %v2014 = vsel %vm218, %v1391, 0
    %v2017 = vsel %vm218, %v1392, 0
    %v2020 = vsel %vm218, %v1393, 0
    %v2023 = vsel %vm218, %v1394, 0
    %v2026 = vsel %vm218, %v1395, 0
    %v2029 = vsel %vm218, %v1396, 0
    %v2032 = vsel %vm218, %v1397, 0
    %v2035 = vsel %vm218, %v1398, 0
    %v2038 = vsel %vm218, %v1399, 0
    %v2041 = vsel %vm218, %v1400, 0
    %2043 = vmatprep.subr.bf16.mxu0 0
    %2044 = vmatpush1.bf16.msra.mxu0 %v1939
    %2045 = vmatprep.subr.bf16.mxu0 0
    %2046 = vmatpush1.bf16.msra.mxu0 %v1940
    %2047 = vmatprep.subr.bf16.mxu0 0
    %2048 = vmatpush1.bf16.msra.mxu0 %v1941
    %2049 = vmatprep.subr.bf16.mxu0 0
    %2050 = vmatpush1.bf16.msra.mxu0 %v1942
    %2051 = vmatprep.subr.bf16.mxu0 0
    %2052 = vmatpush1.bf16.msra.mxu0 0
    %2053 = vmatprep.subr.bf16.mxu0 0
    %2054 = vmatpush1.bf16.msra.mxu0 0
    %2055 = vmatprep.subr.bf16.mxu0 0
    %2056 = vmatpush1.bf16.msra.mxu0 0
    %2057 = vmatprep.subr.bf16.mxu0 0
    %2058 = vmatpush1.bf16.msra.mxu0 0
    %2059 = vmatprep.subr.bf16.mxu0 0
    %2060 = vmatpush1.bf16.msra.mxu0 0
    %2061 = vmatprep.subr.bf16.mxu0 0
    %2062 = vmatpush1.bf16.msra.mxu0 0
    %2063 = vmatprep.subr.bf16.mxu0 0
    %2064 = vmatpush1.bf16.msra.mxu0 0
    %2065 = vmatprep.subr.bf16.mxu0 0
    %2066 = vmatpush1.bf16.msra.mxu0 0
    %2067 = vmatprep.subr.bf16.mxu0 0
    %2068 = vmatpush1.bf16.msra.mxu0 0
    %2069 = vmatprep.subr.bf16.mxu0 0
    %2070 = vmatpush1.bf16.msra.mxu0 0
    %2071 = vmatprep.subr.bf16.mxu0 0
    %2072 = vmatpush1.bf16.msra.mxu0 0
    %2073 = vmatprep.subr.bf16.mxu0 0
    %2074 = vmatpush1.bf16.msra.mxu0 0
    %2075 = vmatprep.mubr.bf16.mxu0 0
    %2076 = vmatmul.mubr.bf16.gmra.mrb[0].mxu0 %v1948
    %v2077 = vpop.f32.mrb[0].mxu0
    %v2078 = vadd.f32 %v1669, %v2077
    %v2079 = vpop.f32.mrb[0].mxu0
    %v2080 = vpop.f32.mrb[0].mxu0
    %v2081 = vadd.f32 %v1672, %v2080
    %v2082 = vpop.f32.mrb[0].mxu0
    %2083 = vmatprep.mubr.bf16.mxu0 0
    %2084 = vmatmul.mubr.bf16.gmra.mrb[0].mxu0 %v1951
    %v2085 = vpop.f32.mrb[0].mxu0
    %v2086 = vadd.f32 %v1677, %v2085
    %v2087 = vpop.f32.mrb[0].mxu0
    %v2088 = vpop.f32.mrb[0].mxu0
    %v2089 = vadd.f32 %v1680, %v2088
    %v2090 = vpop.f32.mrb[0].mxu0
    %2091 = vmatprep.mubr.bf16.mxu0 0
    %2092 = vmatmul.mubr.bf16.gmra.mrb[0].mxu0 %v1954
    %v2093 = vpop.f32.mrb[0].mxu0
    %v2094 = vadd.f32 %v1685, %v2093
    %v2095 = vpop.f32.mrb[0].mxu0
    %v2096 = vpop.f32.mrb[0].mxu0
    %v2097 = vadd.f32 %v1688, %v2096
    %v2098 = vpop.f32.mrb[0].mxu0
    %2099 = vmatprep.mubr.bf16.mxu0 0
    %2100 = vmatmul.mubr.bf16.gmra.mrb[0].mxu0 %v1957
    %v2101 = vpop.f32.mrb[0].mxu0
    %v2102 = vadd.f32 %v1693, %v2101
    %v2103 = vpop.f32.mrb[0].mxu0
    %v2104 = vpop.f32.mrb[0].mxu0
    %v2105 = vadd.f32 %v1696, %v2104
    %v2106 = vpop.f32.mrb[0].mxu0
    %2107 = vmatprep.mubr.bf16.mxu0 0
    %2108 = vmatmul.mubr.bf16.gmra.mrb[0].mxu0 %v1960
    %v2109 = vpop.f32.mrb[0].mxu0
    %v2110 = vadd.f32 %v1701, %v2109
    %v2111 = vpop.f32.mrb[0].mxu0
    %v2112 = vpop.f32.mrb[0].mxu0
    %v2113 = vadd.f32 %v1704, %v2112
    %v2114 = vpop.f32.mrb[0].mxu0
    %2115 = vmatprep.mubr.bf16.mxu0 0
    %2116 = vmatmul.mubr.bf16.gmra.mrb[0].mxu0 %v1963
    %v2117 = vpop.f32.mrb[0].mxu0
    %v2118 = vadd.f32 %v1709, %v2117
    %v2119 = vpop.f32.mrb[0].mxu0
    %v2120 = vpop.f32.mrb[0].mxu0
    %v2121 = vadd.f32 %v1712, %v2120
    %v2122 = vpop.f32.mrb[0].mxu0
    %2123 = vmatprep.mubr.bf16.mxu0 0
    %2124 = vmatmul.mubr.bf16.gmra.mrb[0].mxu0 %v1966
    %v2125 = vpop.f32.mrb[0].mxu0
    %v2126 = vadd.f32 %v1717, %v2125
    %v2127 = vpop.f32.mrb[0].mxu0
    %v2128 = vpop.f32.mrb[0].mxu0
    %v2129 = vadd.f32 %v1720, %v2128
    %v2130 = vpop.f32.mrb[0].mxu0
    %2131 = vmatprep.mubr.bf16.mxu0 0
    %2132 = vmatmul.mubr.bf16.gmra.mrb[0].mxu0 %v1969
    %v2133 = vpop.f32.mrb[0].mxu0
    %v2134 = vadd.f32 %v1725, %v2133
    %v2135 = vpop.f32.mrb[0].mxu0
    %v2136 = vpop.f32.mrb[0].mxu0
    %v2137 = vadd.f32 %v1728, %v2136
    %v2138 = vpop.f32.mrb[0].mxu0
    %2139 = vmatprep.mubr.bf16.mxu0 0
    %2140 = vmatmul.mubr.bf16.gmra.mrb[0].mxu0 %v1972
    %v2141 = vpop.f32.mrb[0].mxu0
    %v2142 = vadd.f32 %v1733, %v2141
    %v2143 = vpop.f32.mrb[0].mxu0
    %v2144 = vpop.f32.mrb[0].mxu0
    %v2145 = vadd.f32 %v1736, %v2144
    %v2146 = vpop.f32.mrb[0].mxu0
    %2147 = vmatprep.mubr.bf16.mxu0 0
    %2148 = vmatmul.mubr.bf16.gmra.mrb[0].mxu0 %v1975
    %v2149 = vpop.f32.mrb[0].mxu0
    %v2150 = vadd.f32 %v1741, %v2149
    %v2151 = vpop.f32.mrb[0].mxu0
    %v2152 = vpop.f32.mrb[0].mxu0
    %v2153 = vadd.f32 %v1744, %v2152
    %v2154 = vpop.f32.mrb[0].mxu0
    %2155 = vmatprep.mubr.bf16.mxu0 0
    %2156 = vmatmul.mubr.bf16.gmra.mrb[0].mxu0 %v1978
    %v2157 = vpop.f32.mrb[0].mxu0
    %v2158 = vadd.f32 %v1749, %v2157
    %v2159 = vpop.f32.mrb[0].mxu0
    %v2160 = vpop.f32.mrb[0].mxu0
    %v2161 = vadd.f32 %v1752, %v2160
    %v2162 = vpop.f32.mrb[0].mxu0
    %2163 = vmatprep.mubr.bf16.mxu0 0
    %2164 = vmatmul.mubr.bf16.gmra.mrb[0].mxu0 %v1981
    %v2165 = vpop.f32.mrb[0].mxu0
    %v2166 = vadd.f32 %v1757, %v2165
    %v2167 = vpop.f32.mrb[0].mxu0
    %v2168 = vpop.f32.mrb[0].mxu0
    %v2169 = vadd.f32 %v1760, %v2168
    %v2170 = vpop.f32.mrb[0].mxu0
    %2171 = vmatprep.mubr.bf16.mxu0 0
    %2172 = vmatmul.mubr.bf16.gmra.mrb[0].mxu0 %v1984
    %v2173 = vpop.f32.mrb[0].mxu0
    %v2174 = vadd.f32 %v1765, %v2173
    %v2175 = vpop.f32.mrb[0].mxu0
    %v2176 = vpop.f32.mrb[0].mxu0
    %v2177 = vadd.f32 %v1768, %v2176
    %v2178 = vpop.f32.mrb[0].mxu0
    %2179 = vmatprep.mubr.bf16.mxu0 0
    %2180 = vmatmul.mubr.bf16.gmra.mrb[0].mxu0 %v1987
    %v2181 = vpop.f32.mrb[0].mxu0
    %v2182 = vadd.f32 %v1773, %v2181
    %v2183 = vpop.f32.mrb[0].mxu0
    %v2184 = vpop.f32.mrb[0].mxu0
    %v2185 = vadd.f32 %v1776, %v2184
    %v2186 = vpop.f32.mrb[0].mxu0
    %2187 = vmatprep.mubr.bf16.mxu0 0
    %2188 = vmatmul.mubr.bf16.gmra.mrb[0].mxu0 %v1990
    %v2189 = vpop.f32.mrb[0].mxu0
    %v2190 = vadd.f32 %v1781, %v2189
    %v2191 = vpop.f32.mrb[0].mxu0
    %v2192 = vpop.f32.mrb[0].mxu0
    %v2193 = vadd.f32 %v1784, %v2192
    %v2194 = vpop.f32.mrb[0].mxu0
    %2195 = vmatprep.mubr.bf16.mxu0 0
    %2196 = vmatmul.mubr.bf16.gmra.mrb[0].mxu0 %v1993
    %v2197 = vpop.f32.mrb[0].mxu0
    %v2198 = vadd.f32 %v1789, %v2197
    %v2199 = vpop.f32.mrb[0].mxu0
    %v2200 = vpop.f32.mrb[0].mxu0
    %v2201 = vadd.f32 %v1792, %v2200
    %v2202 = vpop.f32.mrb[0].mxu0
    %2203 = vmatprep.mubr.bf16.mxu0 0
    %2204 = vmatmul.mubr.bf16.gmra.mrb[0].mxu0 %v1996
    %v2205 = vpop.f32.mrb[0].mxu0
    %v2206 = vadd.f32 %v1797, %v2205
    %v2207 = vpop.f32.mrb[0].mxu0
    %v2208 = vpop.f32.mrb[0].mxu0
    %v2209 = vadd.f32 %v1800, %v2208
    %v2210 = vpop.f32.mrb[0].mxu0
    %2211 = vmatprep.mubr.bf16.mxu0 0
    %2212 = vmatmul.mubr.bf16.gmra.mrb[0].mxu0 %v1999
    %v2213 = vpop.f32.mrb[0].mxu0
    %v2214 = vadd.f32 %v1805, %v2213
    %v2215 = vpop.f32.mrb[0].mxu0
    %v2216 = vpop.f32.mrb[0].mxu0
    %v2217 = vadd.f32 %v1808, %v2216
    %v2218 = vpop.f32.mrb[0].mxu0
    %2219 = vmatprep.mubr.bf16.mxu0 0
    %2220 = vmatmul.mubr.bf16.gmra.mrb[0].mxu0 %v2002
    %v2221 = vpop.f32.mrb[0].mxu0
    %v2222 = vadd.f32 %v1813, %v2221
    %v2223 = vpop.f32.mrb[0].mxu0
    %v2224 = vpop.f32.mrb[0].mxu0
    %v2225 = vadd.f32 %v1816, %v2224
    %v2226 = vpop.f32.mrb[0].mxu0
    %2227 = vmatprep.mubr.bf16.mxu0 0
    %2228 = vmatmul.mubr.bf16.gmra.mrb[0].mxu0 %v2005
    %v2229 = vpop.f32.mrb[0].mxu0
    %v2230 = vadd.f32 %v1821, %v2229
    %v2231 = vpop.f32.mrb[0].mxu0
    %v2232 = vpop.f32.mrb[0].mxu0
    %v2233 = vadd.f32 %v1824, %v2232
    %v2234 = vpop.f32.mrb[0].mxu0
    %2235 = vmatprep.mubr.bf16.mxu0 0
    %2236 = vmatmul.mubr.bf16.gmra.mrb[0].mxu0 %v2008
    %v2237 = vpop.f32.mrb[0].mxu0
    %v2238 = vadd.f32 %v1829, %v2237
    %v2239 = vpop.f32.mrb[0].mxu0
    %v2240 = vpop.f32.mrb[0].mxu0
    %v2241 = vadd.f32 %v1832, %v2240
    %v2242 = vpop.f32.mrb[0].mxu0
    %2243 = vmatprep.mubr.bf16.mxu0 0
    %2244 = vmatmul.mubr.bf16.gmra.mrb[0].mxu0 %v2011
    %v2245 = vpop.f32.mrb[0].mxu0
    %v2246 = vadd.f32 %v1837, %v2245
    %v2247 = vpop.f32.mrb[0].mxu0
    %v2248 = vpop.f32.mrb[0].mxu0
    %v2249 = vadd.f32 %v1840, %v2248
    %v2250 = vpop.f32.mrb[0].mxu0
    %2251 = vmatprep.mubr.bf16.mxu0 0
    %2252 = vmatmul.mubr.bf16.gmra.mrb[0].mxu0 %v2014
    %v2253 = vpop.f32.mrb[0].mxu0
    %v2254 = vadd.f32 %v1845, %v2253
    %v2255 = vpop.f32.mrb[0].mxu0
    %v2256 = vpop.f32.mrb[0].mxu0
    %v2257 = vadd.f32 %v1848, %v2256
    %v2258 = vpop.f32.mrb[0].mxu0
    %2259 = vmatprep.mubr.bf16.mxu0 0
    %2260 = vmatmul.mubr.bf16.gmra.mrb[0].mxu0 %v2017
    %v2261 = vpop.f32.mrb[0].mxu0
    %v2262 = vadd.f32 %v1853, %v2261
    %v2263 = vpop.f32.mrb[0].mxu0
    %v2264 = vpop.f32.mrb[0].mxu0
    %v2265 = vadd.f32 %v1856, %v2264
    %v2266 = vpop.f32.mrb[0].mxu0
    %2267 = vmatprep.mubr.bf16.mxu0 0
    %2268 = vmatmul.mubr.bf16.gmra.mrb[0].mxu0 %v2020
    %v2269 = vpop.f32.mrb[0].mxu0
    %v2270 = vadd.f32 %v1861, %v2269
    %v2271 = vpop.f32.mrb[0].mxu0
    %v2272 = vpop.f32.mrb[0].mxu0
    %v2273 = vadd.f32 %v1864, %v2272
    %v2274 = vpop.f32.mrb[0].mxu0
    %2275 = vmatprep.mubr.bf16.mxu0 0
    %2276 = vmatmul.mubr.bf16.gmra.mrb[0].mxu0 %v2023
    %v2277 = vpop.f32.mrb[0].mxu0
    %v2278 = vadd.f32 %v1869, %v2277
    %v2279 = vpop.f32.mrb[0].mxu0
    %v2280 = vpop.f32.mrb[0].mxu0
    %v2281 = vadd.f32 %v1872, %v2280
    %v2282 = vpop.f32.mrb[0].mxu0
    %2283 = vmatprep.mubr.bf16.mxu0 0
    %2284 = vmatmul.mubr.bf16.gmra.mrb[0].mxu0 %v2026
    %v2285 = vpop.f32.mrb[0].mxu0
    %v2286 = vadd.f32 %v1877, %v2285
    %v2287 = vpop.f32.mrb[0].mxu0
    %v2288 = vpop.f32.mrb[0].mxu0
    %v2289 = vadd.f32 %v1880, %v2288
    %v2290 = vpop.f32.mrb[0].mxu0
    %2291 = vmatprep.mubr.bf16.mxu0 0
    %2292 = vmatmul.mubr.bf16.gmra.mrb[0].mxu0 %v2029
    %v2293 = vpop.f32.mrb[0].mxu0
    %v2294 = vadd.f32 %v1885, %v2293
    %v2295 = vpop.f32.mrb[0].mxu0
    %v2296 = vpop.f32.mrb[0].mxu0
    %v2297 = vadd.f32 %v1888, %v2296
    %v2298 = vpop.f32.mrb[0].mxu0
    %2299 = vmatprep.mubr.bf16.mxu0 0
    %2300 = vmatmul.mubr.bf16.gmra.mrb[0].mxu0 %v2032
    %v2301 = vpop.f32.mrb[0].mxu0
    %v2302 = vadd.f32 %v1893, %v2301
    %v2303 = vpop.f32.mrb[0].mxu0
    %v2304 = vpop.f32.mrb[0].mxu0
    %v2305 = vadd.f32 %v1896, %v2304
    %v2306 = vpop.f32.mrb[0].mxu0
    %2307 = vmatprep.mubr.bf16.mxu0 0
    %2308 = vmatmul.mubr.bf16.gmra.mrb[0].mxu0 %v2035
    %v2309 = vpop.f32.mrb[0].mxu0
    %v2310 = vadd.f32 %v1901, %v2309
    %v2311 = vpop.f32.mrb[0].mxu0
    %v2312 = vpop.f32.mrb[0].mxu0
    %v2313 = vadd.f32 %v1904, %v2312
    %v2314 = vpop.f32.mrb[0].mxu0
    %2315 = vmatprep.mubr.bf16.mxu0 0
    %2316 = vmatmul.mubr.bf16.gmra.mrb[0].mxu0 %v2038
    %v2317 = vpop.f32.mrb[0].mxu0
    %v2318 = vadd.f32 %v1909, %v2317
    %v2319 = vpop.f32.mrb[0].mxu0
    %v2320 = vpop.f32.mrb[0].mxu0
    %v2321 = vadd.f32 %v1912, %v2320
    %v2322 = vpop.f32.mrb[0].mxu0
    %2323 = vmatprep.mubr.bf16.mxu0 0
    %2324 = vmatmul.mubr.bf16.gmra.mrb[0].mxu0 %v2041
    %v2325 = vpop.f32.mrb[0].mxu0
    %v2326 = vadd.f32 %v1917, %v2325
    %v2327 = vpop.f32.mrb[0].mxu0
    %v2328 = vpop.f32.mrb[0].mxu0
    %v2329 = vadd.f32 %v1920, %v2328
    %v2330 = vpop.f32.mrb[0].mxu0
    %2331 = vdwg.mxu0
    %v2332 = vld [vmem:[#allocation2 + $0x2] sm:$0xff]
    %v2333 = vld [vmem:[#allocation2 + $0xa] sm:$0xff]
    %v2334 = vld [vmem:[#allocation2 + $0x1a] sm:$0xff]
    %v2335 = vld [vmem:[#allocation2 + $0x22] sm:$0xff]
    %v2336 = vld [vmem:[#allocation2 + $0x32] sm:$0xff]
    %v2337 = vld [vmem:[#allocation2 + $0x3a] sm:$0xff]
    %v2338 = vld [vmem:[#allocation2 + $0x4a] sm:$0xff]
    %v2339 = vld [vmem:[#allocation2 + $0x52] sm:$0xff]
    %v2340 = vld [vmem:[#allocation2 + $0x62] sm:$0xff]
    %v2341 = vld [vmem:[#allocation2 + $0x6a] sm:$0xff]
    %v2342 = vld [vmem:[#allocation2 + $0x7a] sm:$0xff]
    %v2343 = vld [vmem:[#allocation2 + $0x82] sm:$0xff]
    %v2344 = vld [vmem:[#allocation2 + $0x92] sm:$0xff]
    %v2345 = vld [vmem:[#allocation2 + $0x9a] sm:$0xff]
    %v2346 = vld [vmem:[#allocation2 + $0xaa] sm:$0xff]
    %v2347 = vld [vmem:[#allocation2 + $0xb2] sm:$0xff]
    %v2348 = vld [vmem:[#allocation2 + $0xc2] sm:$0xff]
    %v2349 = vld [vmem:[#allocation2 + $0xca] sm:$0xff]
    %v2350 = vld [vmem:[#allocation2 + $0xda] sm:$0xff]
    %v2351 = vld [vmem:[#allocation2 + $0xe2] sm:$0xff]
    %v2352 = vld [vmem:[#allocation2 + $0xf2] sm:$0xff]
    %v2353 = vld [vmem:[#allocation2 + $0xfa] sm:$0xff]
    %v2354 = vld [vmem:[#allocation2 + $0x10a] sm:$0xff]
    %v2355 = vld [vmem:[#allocation2 + $0x112] sm:$0xff]
    %v2356 = vld [vmem:[#allocation2 + $0x122] sm:$0xff]
    %v2357 = vld [vmem:[#allocation2 + $0x12a] sm:$0xff]
    %v2358 = vld [vmem:[#allocation2 + $0x13a] sm:$0xff]
    %v2359 = vld [vmem:[#allocation2 + $0x142] sm:$0xff]
    %v2360 = vld [vmem:[#allocation2 + $0x152] sm:$0xff]
    %v2361 = vld [vmem:[#allocation2 + $0x15a] sm:$0xff]
    %v2362 = vld [vmem:[#allocation2 + $0x16a] sm:$0xff]
    %v2363 = vld [vmem:[#allocation2 + $0x172] sm:$0xff]
    %v2364 = vld [vmem:[#allocation2 + $0x1b2] sm:$0xff]
    %v2365 = vld [vmem:[#allocation2 + $0x1ba] sm:$0xff]
    %v2366 = vld [vmem:[#allocation2 + $0x1ca] sm:$0xff]
    %v2367 = vld [vmem:[#allocation2 + $0x1d2] sm:$0xff]
    %v2368 = vld [vmem:[#allocation2 + $0x1e2] sm:$0xff]
    %v2369 = vld [vmem:[#allocation2 + $0x1ea] sm:$0xff]
    %v2370 = vld [vmem:[#allocation2 + $0x1fa] sm:$0xff]
    %v2371 = vld [vmem:[#allocation2 + $0x202] sm:$0xff]
    %v2372 = vld [vmem:[#allocation2 + $0x212] sm:$0xff]
    %v2373 = vld [vmem:[#allocation2 + $0x21a] sm:$0xff]
    %v2374 = vld [vmem:[#allocation2 + $0x22a] sm:$0xff]
    %v2375 = vld [vmem:[#allocation2 + $0x232] sm:$0xff]
    %v2376 = vld [vmem:[#allocation2 + $0x242] sm:$0xff]
    %v2377 = vld [vmem:[#allocation2 + $0x24a] sm:$0xff]
    %v2378 = vld [vmem:[#allocation2 + $0x25a] sm:$0xff]
    %v2379 = vld [vmem:[#allocation2 + $0x262] sm:$0xff]
    %v2380 = vld [vmem:[#allocation2 + $0x272] sm:$0xff]
    %v2381 = vld [vmem:[#allocation2 + $0x27a] sm:$0xff]
    %v2382 = vld [vmem:[#allocation2 + $0x28a] sm:$0xff]
    %v2383 = vld [vmem:[#allocation2 + $0x292] sm:$0xff]
    %v2384 = vld [vmem:[#allocation2 + $0x2a2] sm:$0xff]
    %v2385 = vld [vmem:[#allocation2 + $0x2aa] sm:$0xff]
    %v2386 = vld [vmem:[#allocation2 + $0x2ba] sm:$0xff]
    %v2387 = vld [vmem:[#allocation2 + $0x2c2] sm:$0xff]
    %v2388 = vld [vmem:[#allocation2 + $0x2d2] sm:$0xff]
    %v2389 = vld [vmem:[#allocation2 + $0x2da] sm:$0xff]
    %v2390 = vld [vmem:[#allocation2 + $0x2ea] sm:$0xff]
    %v2391 = vld [vmem:[#allocation2 + $0x2f2] sm:$0xff]
    %v2392 = vld [vmem:[#allocation2 + $0x302] sm:$0xff]
    %v2393 = vld [vmem:[#allocation2 + $0x30a] sm:$0xff]
    %v2394 = vld [vmem:[#allocation2 + $0x31a] sm:$0xff]
    %v2395 = vld [vmem:[#allocation2 + $0x322] sm:$0xff]
    %v2396 = vpack.c.bf16 %v2333, %v2332
    %v2397 = vpack.c.bf16 %v2335, %v2334
    %v2398 = vpack.c.bf16 %v2337, %v2336
    %v2399 = vpack.c.bf16 %v2339, %v2338
    %v2400 = vpack.c.bf16 %v2341, %v2340
    %v2401 = vpack.c.bf16 %v2343, %v2342
    %v2402 = vpack.c.bf16 %v2345, %v2344
    %v2403 = vpack.c.bf16 %v2347, %v2346
    %v2404 = vpack.c.bf16 %v2349, %v2348
    %v2405 = vpack.c.bf16 %v2351, %v2350
    %v2406 = vpack.c.bf16 %v2353, %v2352
    %v2407 = vpack.c.bf16 %v2355, %v2354
    %v2408 = vpack.c.bf16 %v2357, %v2356
    %v2409 = vpack.c.bf16 %v2359, %v2358
    %v2410 = vpack.c.bf16 %v2361, %v2360
    %v2411 = vpack.c.bf16 %v2363, %v2362
    %v2412 = vpack.c.bf16 %v2365, %v2364
    %v2413 = vpack.c.bf16 %v2367, %v2366
    %v2414 = vpack.c.bf16 %v2369, %v2368
    %v2415 = vpack.c.bf16 %v2371, %v2370
    %v2416 = vpack.c.bf16 %v2373, %v2372
    %v2417 = vpack.c.bf16 %v2375, %v2374
    %v2418 = vpack.c.bf16 %v2377, %v2376
    %v2419 = vpack.c.bf16 %v2379, %v2378
    %v2420 = vpack.c.bf16 %v2381, %v2380
    %v2421 = vpack.c.bf16 %v2383, %v2382
    %v2422 = vpack.c.bf16 %v2385, %v2384
    %v2423 = vpack.c.bf16 %v2387, %v2386
    %v2424 = vpack.c.bf16 %v2389, %v2388
    %v2425 = vpack.c.bf16 %v2391, %v2390
    %v2426 = vpack.c.bf16 %v2393, %v2392
    %v2427 = vpack.c.bf16 %v2395, %v2394
    %s2428 = scalar_lea.vmem [#allocation8], 64
    %v2429 = vld [vmem:[%s2428] sm:$0xf]
    %v2430 = vld [vmem:[%s2428 + $0x4] sm:$0xf]
    %v2431 = vld [vmem:[%s2428 + $0x8] sm:$0xf]
    %v2432 = vld [vmem:[%s2428 + $0xc] sm:$0xf]
    %v2433 = vld [vmem:[%s2428 + $0x10] sm:$0xf]
    %v2434 = vld [vmem:[%s2428 + $0x14] sm:$0xf]
    %v2435 = vld [vmem:[%s2428 + $0x18] sm:$0xf]
    %v2436 = vld [vmem:[%s2428 + $0x1c] sm:$0xf]
    %v2445 = vunpack.c.l.b16 %v2429
    %v2446 = vunpack.c.l.b16 %v2430
    %v2447 = vunpack.c.l.b16 %v2431
    %v2448 = vunpack.c.l.b16 %v2432
    %v2449 = vunpack.c.l.b16 %v2433
    %v2450 = vunpack.c.l.b16 %v2434
    %v2451 = vunpack.c.l.b16 %v2435
    %v2452 = vunpack.c.l.b16 %v2436
    %v2453 = vpack.c.b16 %v2446, %v2445
    %v2454 = vpack.c.b16 %v2448, %v2447
    %v2455 = vpack.c.b16 %v2450, %v2449
    %v2456 = vpack.c.b16 %v2452, %v2451
    %v2462 = vsel %vm218, %v2396, 0
    %v2465 = vsel %vm218, %v2397, 0
    %v2468 = vsel %vm218, %v2398, 0
    %v2471 = vsel %vm218, %v2399, 0
    %v2474 = vsel %vm218, %v2400, 0
    %v2477 = vsel %vm218, %v2401, 0
    %v2480 = vsel %vm218, %v2402, 0
    %v2483 = vsel %vm218, %v2403, 0
    %v2486 = vsel %vm218, %v2404, 0
    %v2489 = vsel %vm218, %v2405, 0
    %v2492 = vsel %vm218, %v2406, 0
    %v2495 = vsel %vm218, %v2407, 0
    %v2498 = vsel %vm218, %v2408, 0
    %v2501 = vsel %vm218, %v2409, 0
    %v2504 = vsel %vm218, %v2410, 0
    %v2507 = vsel %vm218, %v2411, 0
    %v2510 = vsel %vm218, %v2412, 0
    %v2513 = vsel %vm218, %v2413, 0
    %v2516 = vsel %vm218, %v2414, 0
    %v2519 = vsel %vm218, %v2415, 0
    %v2522 = vsel %vm218, %v2416, 0
    %v2525 = vsel %vm218, %v2417, 0
    %v2528 = vsel %vm218, %v2418, 0
    %v2531 = vsel %vm218, %v2419, 0
    %v2534 = vsel %vm218, %v2420, 0
    %v2537 = vsel %vm218, %v2421, 0
    %v2540 = vsel %vm218, %v2422, 0
    %v2543 = vsel %vm218, %v2423, 0
    %v2546 = vsel %vm218, %v2424, 0
    %v2549 = vsel %vm218, %v2425, 0
    %v2552 = vsel %vm218, %v2426, 0
    %v2555 = vsel %vm218, %v2427, 0
    %2557 = vmatprep.subr.bf16.mxu0 0
    %2558 = vmatpush1.bf16.msra.mxu0 %v2453
    %2559 = vmatprep.subr.bf16.mxu0 0
    %2560 = vmatpush1.bf16.msra.mxu0 %v2454
    %2561 = vmatprep.subr.bf16.mxu0 0
    %2562 = vmatpush1.bf16.msra.mxu0 %v2455
    %2563 = vmatprep.subr.bf16.mxu0 0
    %2564 = vmatpush1.bf16.msra.mxu0 %v2456
    %2565 = vmatprep.subr.bf16.mxu0 0
    %2566 = vmatpush1.bf16.msra.mxu0 0
    %2567 = vmatprep.subr.bf16.mxu0 0
    %2568 = vmatpush1.bf16.msra.mxu0 0
    %2569 = vmatprep.subr.bf16.mxu0 0
    %2570 = vmatpush1.bf16.msra.mxu0 0
    %2571 = vmatprep.subr.bf16.mxu0 0
    %2572 = vmatpush1.bf16.msra.mxu0 0
    %2573 = vmatprep.subr.bf16.mxu0 0
    %2574 = vmatpush1.bf16.msra.mxu0 0
    %2575 = vmatprep.subr.bf16.mxu0 0
    %2576 = vmatpush1.bf16.msra.mxu0 0
    %2577 = vmatprep.subr.bf16.mxu0 0
    %2578 = vmatpush1.bf16.msra.mxu0 0
    %2579 = vmatprep.subr.bf16.mxu0 0
    %2580 = vmatpush1.bf16.msra.mxu0 0
    %2581 = vmatprep.subr.bf16.mxu0 0
    %2582 = vmatpush1.bf16.msra.mxu0 0
    %2583 = vmatprep.subr.bf16.mxu0 0
    %2584 = vmatpush1.bf16.msra.mxu0 0
    %2585 = vmatprep.subr.bf16.mxu0 0
    %2586 = vmatpush1.bf16.msra.mxu0 0
    %2587 = vmatprep.subr.bf16.mxu0 0
    %2588 = vmatpush1.bf16.msra.mxu0 0
    %2589 = vmatprep.mubr.bf16.mxu0 0
    %2590 = vmatmul.mubr.bf16.gmra.mrb[0].mxu0 %v2462
    %v2591 = vpop.f32.mrb[0].mxu0
    %v2592 = vadd.f32 0.0, %v2591
    %v2593 = vpop.f32.mrb[0].mxu0
    %v2594 = vpop.f32.mrb[0].mxu0
    %v2595 = vadd.f32 0.0, %v2594
    %v2596 = vpop.f32.mrb[0].mxu0
    %2597 = vmatprep.mubr.bf16.mxu0 0
    %2598 = vmatmul.mubr.bf16.gmra.mrb[0].mxu0 %v2465
    %v2599 = vpop.f32.mrb[0].mxu0
    %v2600 = vadd.f32 0.0, %v2599
    %v2601 = vpop.f32.mrb[0].mxu0
    %v2602 = vpop.f32.mrb[0].mxu0
    %v2603 = vadd.f32 0.0, %v2602
    %v2604 = vpop.f32.mrb[0].mxu0
    %2605 = vmatprep.mubr.bf16.mxu0 0
    %2606 = vmatmul.mubr.bf16.gmra.mrb[0].mxu0 %v2468
    %v2607 = vpop.f32.mrb[0].mxu0
    %v2608 = vadd.f32 0.0, %v2607
    %v2609 = vpop.f32.mrb[0].mxu0
    %v2610 = vpop.f32.mrb[0].mxu0
    %v2611 = vadd.f32 0.0, %v2610
    %v2612 = vpop.f32.mrb[0].mxu0
    %2613 = vmatprep.mubr.bf16.mxu0 0
    %2614 = vmatmul.mubr.bf16.gmra.mrb[0].mxu0 %v2471
    %v2615 = vpop.f32.mrb[0].mxu0
    %v2616 = vadd.f32 0.0, %v2615
    %v2617 = vpop.f32.mrb[0].mxu0
    %v2618 = vpop.f32.mrb[0].mxu0
    %v2619 = vadd.f32 0.0, %v2618
    %v2620 = vpop.f32.mrb[0].mxu0
    %2621 = vmatprep.mubr.bf16.mxu0 0
    %2622 = vmatmul.mubr.bf16.gmra.mrb[0].mxu0 %v2474
    %v2623 = vpop.f32.mrb[0].mxu0
    %v2624 = vadd.f32 0.0, %v2623
    %v2625 = vpop.f32.mrb[0].mxu0
    %v2626 = vpop.f32.mrb[0].mxu0
    %v2627 = vadd.f32 0.0, %v2626
    %v2628 = vpop.f32.mrb[0].mxu0
    %2629 = vmatprep.mubr.bf16.mxu0 0
    %2630 = vmatmul.mubr.bf16.gmra.mrb[0].mxu0 %v2477
    %v2631 = vpop.f32.mrb[0].mxu0
    %v2632 = vadd.f32 0.0, %v2631
    %v2633 = vpop.f32.mrb[0].mxu0
    %v2634 = vpop.f32.mrb[0].mxu0
    %v2635 = vadd.f32 0.0, %v2634
    %v2636 = vpop.f32.mrb[0].mxu0
    %2637 = vmatprep.mubr.bf16.mxu0 0
    %2638 = vmatmul.mubr.bf16.gmra.mrb[0].mxu0 %v2480
    %v2639 = vpop.f32.mrb[0].mxu0
    %v2640 = vadd.f32 0.0, %v2639
    %v2641 = vpop.f32.mrb[0].mxu0
    %v2642 = vpop.f32.mrb[0].mxu0
    %v2643 = vadd.f32 0.0, %v2642
    %v2644 = vpop.f32.mrb[0].mxu0
    %2645 = vmatprep.mubr.bf16.mxu0 0
    %2646 = vmatmul.mubr.bf16.gmra.mrb[0].mxu0 %v2483
    %v2647 = vpop.f32.mrb[0].mxu0
    %v2648 = vadd.f32 0.0, %v2647
    %v2649 = vpop.f32.mrb[0].mxu0
    %v2650 = vpop.f32.mrb[0].mxu0
    %v2651 = vadd.f32 0.0, %v2650
    %v2652 = vpop.f32.mrb[0].mxu0
    %2653 = vmatprep.mubr.bf16.mxu0 0
    %2654 = vmatmul.mubr.bf16.gmra.mrb[0].mxu0 %v2486
    %v2655 = vpop.f32.mrb[0].mxu0
    %v2656 = vadd.f32 0.0, %v2655
    %v2657 = vpop.f32.mrb[0].mxu0
    %v2658 = vpop.f32.mrb[0].mxu0
    %v2659 = vadd.f32 0.0, %v2658
    %v2660 = vpop.f32.mrb[0].mxu0
    %2661 = vmatprep.mubr.bf16.mxu0 0
    %2662 = vmatmul.mubr.bf16.gmra.mrb[0].mxu0 %v2489
    %v2663 = vpop.f32.mrb[0].mxu0
    %v2664 = vadd.f32 0.0, %v2663
    %v2665 = vpop.f32.mrb[0].mxu0
    %v2666 = vpop.f32.mrb[0].mxu0
    %v2667 = vadd.f32 0.0, %v2666
    %v2668 = vpop.f32.mrb[0].mxu0
    %2669 = vmatprep.mubr.bf16.mxu0 0
    %2670 = vmatmul.mubr.bf16.gmra.mrb[0].mxu0 %v2492
    %v2671 = vpop.f32.mrb[0].mxu0
    %v2672 = vadd.f32 0.0, %v2671
    %v2673 = vpop.f32.mrb[0].mxu0
    %v2674 = vpop.f32.mrb[0].mxu0
    %v2675 = vadd.f32 0.0, %v2674
    %v2676 = vpop.f32.mrb[0].mxu0
    %2677 = vmatprep.mubr.bf16.mxu0 0
    %2678 = vmatmul.mubr.bf16.gmra.mrb[0].mxu0 %v2495
    %v2679 = vpop.f32.mrb[0].mxu0
    %v2680 = vadd.f32 0.0, %v2679
    %v2681 = vpop.f32.mrb[0].mxu0
    %v2682 = vpop.f32.mrb[0].mxu0
    %v2683 = vadd.f32 0.0, %v2682
    %v2684 = vpop.f32.mrb[0].mxu0
    %2685 = vmatprep.mubr.bf16.mxu0 0
    %2686 = vmatmul.mubr.bf16.gmra.mrb[0].mxu0 %v2498
    %v2687 = vpop.f32.mrb[0].mxu0
    %v2688 = vadd.f32 0.0, %v2687
    %v2689 = vpop.f32.mrb[0].mxu0
    %v2690 = vpop.f32.mrb[0].mxu0
    %v2691 = vadd.f32 0.0, %v2690
    %v2692 = vpop.f32.mrb[0].mxu0
    %2693 = vmatprep.mubr.bf16.mxu0 0
    %2694 = vmatmul.mubr.bf16.gmra.mrb[0].mxu0 %v2501
    %v2695 = vpop.f32.mrb[0].mxu0
    %v2696 = vadd.f32 0.0, %v2695
    %v2697 = vpop.f32.mrb[0].mxu0
    %v2698 = vpop.f32.mrb[0].mxu0
    %v2699 = vadd.f32 0.0, %v2698
    %v2700 = vpop.f32.mrb[0].mxu0
    %2701 = vmatprep.mubr.bf16.mxu0 0
    %2702 = vmatmul.mubr.bf16.gmra.mrb[0].mxu0 %v2504
    %v2703 = vpop.f32.mrb[0].mxu0
    %v2704 = vadd.f32 0.0, %v2703
    %v2705 = vpop.f32.mrb[0].mxu0
    %v2706 = vpop.f32.mrb[0].mxu0
    %v2707 = vadd.f32 0.0, %v2706
    %v2708 = vpop.f32.mrb[0].mxu0
    %2709 = vmatprep.mubr.bf16.mxu0 0
    %2710 = vmatmul.mubr.bf16.gmra.mrb[0].mxu0 %v2507
    %v2711 = vpop.f32.mrb[0].mxu0
    %v2712 = vadd.f32 0.0, %v2711
    %v2713 = vpop.f32.mrb[0].mxu0
    %v2714 = vpop.f32.mrb[0].mxu0
    %v2715 = vadd.f32 0.0, %v2714
    %v2716 = vpop.f32.mrb[0].mxu0
    %2717 = vmatprep.mubr.bf16.mxu0 0
    %2718 = vmatmul.mubr.bf16.gmra.mrb[0].mxu0 %v2510
    %v2719 = vpop.f32.mrb[0].mxu0
    %v2720 = vadd.f32 0.0, %v2719
    %v2721 = vpop.f32.mrb[0].mxu0
    %v2722 = vpop.f32.mrb[0].mxu0
    %v2723 = vadd.f32 0.0, %v2722
    %v2724 = vpop.f32.mrb[0].mxu0
    %2725 = vmatprep.mubr.bf16.mxu0 0
    %2726 = vmatmul.mubr.bf16.gmra.mrb[0].mxu0 %v2513
    %v2727 = vpop.f32.mrb[0].mxu0
    %v2728 = vadd.f32 0.0, %v2727
    %v2729 = vpop.f32.mrb[0].mxu0
    %v2730 = vpop.f32.mrb[0].mxu0
    %v2731 = vadd.f32 0.0, %v2730
    %v2732 = vpop.f32.mrb[0].mxu0
    %2733 = vmatprep.mubr.bf16.mxu0 0
    %2734 = vmatmul.mubr.bf16.gmra.mrb[0].mxu0 %v2516
    %v2735 = vpop.f32.mrb[0].mxu0
    %v2736 = vadd.f32 0.0, %v2735
    %v2737 = vpop.f32.mrb[0].mxu0
    %v2738 = vpop.f32.mrb[0].mxu0
    %v2739 = vadd.f32 0.0, %v2738
    %v2740 = vpop.f32.mrb[0].mxu0
    %2741 = vmatprep.mubr.bf16.mxu0 0
    %2742 = vmatmul.mubr.bf16.gmra.mrb[0].mxu0 %v2519
    %v2743 = vpop.f32.mrb[0].mxu0
    %v2744 = vadd.f32 0.0, %v2743
    %v2745 = vpop.f32.mrb[0].mxu0
    %v2746 = vpop.f32.mrb[0].mxu0
    %v2747 = vadd.f32 0.0, %v2746
    %v2748 = vpop.f32.mrb[0].mxu0
    %2749 = vmatprep.mubr.bf16.mxu0 0
    %2750 = vmatmul.mubr.bf16.gmra.mrb[0].mxu0 %v2522
    %v2751 = vpop.f32.mrb[0].mxu0
    %v2752 = vadd.f32 0.0, %v2751
    %v2753 = vpop.f32.mrb[0].mxu0
    %v2754 = vpop.f32.mrb[0].mxu0
    %v2755 = vadd.f32 0.0, %v2754
    %v2756 = vpop.f32.mrb[0].mxu0
    %2757 = vmatprep.mubr.bf16.mxu0 0
    %2758 = vmatmul.mubr.bf16.gmra.mrb[0].mxu0 %v2525
    %v2759 = vpop.f32.mrb[0].mxu0
    %v2760 = vadd.f32 0.0, %v2759
    %v2761 = vpop.f32.mrb[0].mxu0
    %v2762 = vpop.f32.mrb[0].mxu0
    %v2763 = vadd.f32 0.0, %v2762
    %v2764 = vpop.f32.mrb[0].mxu0
    %2765 = vmatprep.mubr.bf16.mxu0 0
    %2766 = vmatmul.mubr.bf16.gmra.mrb[0].mxu0 %v2528
    %v2767 = vpop.f32.mrb[0].mxu0
    %v2768 = vadd.f32 0.0, %v2767
    %v2769 = vpop.f32.mrb[0].mxu0
    %v2770 = vpop.f32.mrb[0].mxu0
    %v2771 = vadd.f32 0.0, %v2770
    %v2772 = vpop.f32.mrb[0].mxu0
    %2773 = vmatprep.mubr.bf16.mxu0 0
    %2774 = vmatmul.mubr.bf16.gmra.mrb[0].mxu0 %v2531
    %v2775 = vpop.f32.mrb[0].mxu0
    %v2776 = vadd.f32 0.0, %v2775
    %v2777 = vpop.f32.mrb[0].mxu0
    %v2778 = vpop.f32.mrb[0].mxu0
    %v2779 = vadd.f32 0.0, %v2778
    %v2780 = vpop.f32.mrb[0].mxu0
    %2781 = vmatprep.mubr.bf16.mxu0 0
    %2782 = vmatmul.mubr.bf16.gmra.mrb[0].mxu0 %v2534
    %v2783 = vpop.f32.mrb[0].mxu0
    %v2784 = vadd.f32 0.0, %v2783
    %v2785 = vpop.f32.mrb[0].mxu0
    %v2786 = vpop.f32.mrb[0].mxu0
    %v2787 = vadd.f32 0.0, %v2786
    %v2788 = vpop.f32.mrb[0].mxu0
    %2789 = vmatprep.mubr.bf16.mxu0 0
    %2790 = vmatmul.mubr.bf16.gmra.mrb[0].mxu0 %v2537
    %v2791 = vpop.f32.mrb[0].mxu0
    %v2792 = vadd.f32 0.0, %v2791
    %v2793 = vpop.f32.mrb[0].mxu0
    %v2794 = vpop.f32.mrb[0].mxu0
    %v2795 = vadd.f32 0.0, %v2794
    %v2796 = vpop.f32.mrb[0].mxu0
    %2797 = vmatprep.mubr.bf16.mxu0 0
    %2798 = vmatmul.mubr.bf16.gmra.mrb[0].mxu0 %v2540
    %v2799 = vpop.f32.mrb[0].mxu0
    %v2800 = vadd.f32 0.0, %v2799
    %v2801 = vpop.f32.mrb[0].mxu0
    %v2802 = vpop.f32.mrb[0].mxu0
    %v2803 = vadd.f32 0.0, %v2802
    %v2804 = vpop.f32.mrb[0].mxu0
    %2805 = vmatprep.mubr.bf16.mxu0 0
    %2806 = vmatmul.mubr.bf16.gmra.mrb[0].mxu0 %v2543
    %v2807 = vpop.f32.mrb[0].mxu0
    %v2808 = vadd.f32 0.0, %v2807
    %v2809 = vpop.f32.mrb[0].mxu0
    %v2810 = vpop.f32.mrb[0].mxu0
    %v2811 = vadd.f32 0.0, %v2810
    %v2812 = vpop.f32.mrb[0].mxu0
    %2813 = vmatprep.mubr.bf16.mxu0 0
    %2814 = vmatmul.mubr.bf16.gmra.mrb[0].mxu0 %v2546
    %v2815 = vpop.f32.mrb[0].mxu0
    %v2816 = vadd.f32 0.0, %v2815
    %v2817 = vpop.f32.mrb[0].mxu0
    %v2818 = vpop.f32.mrb[0].mxu0
    %v2819 = vadd.f32 0.0, %v2818
    %v2820 = vpop.f32.mrb[0].mxu0
    %2821 = vmatprep.mubr.bf16.mxu0 0
    %2822 = vmatmul.mubr.bf16.gmra.mrb[0].mxu0 %v2549
    %v2823 = vpop.f32.mrb[0].mxu0
    %v2824 = vadd.f32 0.0, %v2823
    %v2825 = vpop.f32.mrb[0].mxu0
    %v2826 = vpop.f32.mrb[0].mxu0
    %v2827 = vadd.f32 0.0, %v2826
    %v2828 = vpop.f32.mrb[0].mxu0
    %2829 = vmatprep.mubr.bf16.mxu0 0
    %2830 = vmatmul.mubr.bf16.gmra.mrb[0].mxu0 %v2552
    %v2831 = vpop.f32.mrb[0].mxu0
    %v2832 = vadd.f32 0.0, %v2831
    %v2833 = vpop.f32.mrb[0].mxu0
    %v2834 = vpop.f32.mrb[0].mxu0
    %v2835 = vadd.f32 0.0, %v2834
    %v2836 = vpop.f32.mrb[0].mxu0
    %2837 = vmatprep.mubr.bf16.mxu0 0
    %2838 = vmatmul.mubr.bf16.gmra.mrb[0].mxu0 %v2555
    %v2839 = vpop.f32.mrb[0].mxu0
    %v2840 = vadd.f32 0.0, %v2839
    %v2841 = vpop.f32.mrb[0].mxu0
    %v2842 = vpop.f32.mrb[0].mxu0
    %v2843 = vadd.f32 0.0, %v2842
    %v2844 = vpop.f32.mrb[0].mxu0
    %2845 = vdwg.mxu0
    %v2846 = vadd.f32 %v2078, %v2592
    %v2847 = vadd.f32 %v2081, %v2595
    %v2848 = vadd.f32 %v2086, %v2600
    %v2849 = vadd.f32 %v2089, %v2603
    %v2850 = vadd.f32 %v2094, %v2608
    %v2851 = vadd.f32 %v2097, %v2611
    %v2852 = vadd.f32 %v2102, %v2616
    %v2853 = vadd.f32 %v2105, %v2619
    %v2854 = vadd.f32 %v2110, %v2624
    %v2855 = vadd.f32 %v2113, %v2627
    %v2856 = vadd.f32 %v2118, %v2632
    %v2857 = vadd.f32 %v2121, %v2635
    %v2858 = vadd.f32 %v2126, %v2640
    %v2859 = vadd.f32 %v2129, %v2643
    %v2860 = vadd.f32 %v2134, %v2648
    %v2861 = vadd.f32 %v2137, %v2651
    %v2862 = vadd.f32 %v2142, %v2656
    %v2863 = vadd.f32 %v2145, %v2659
    %v2864 = vadd.f32 %v2150, %v2664
    %v2865 = vadd.f32 %v2153, %v2667
    %v2866 = vadd.f32 %v2158, %v2672
    %v2867 = vadd.f32 %v2161, %v2675
    %v2868 = vadd.f32 %v2166, %v2680
    %v2869 = vadd.f32 %v2169, %v2683
    %v2870 = vadd.f32 %v2174, %v2688
    %v2871 = vadd.f32 %v2177, %v2691
    %v2872 = vadd.f32 %v2182, %v2696
    %v2873 = vadd.f32 %v2185, %v2699
    %v2874 = vadd.f32 %v2190, %v2704
    %v2875 = vadd.f32 %v2193, %v2707
    %v2876 = vadd.f32 %v2198, %v2712
    %v2877 = vadd.f32 %v2201, %v2715
    %v2878 = vadd.f32 %v2206, %v2720
    %v2879 = vadd.f32 %v2209, %v2723
    %v2880 = vadd.f32 %v2214, %v2728
    %v2881 = vadd.f32 %v2217, %v2731
    %v2882 = vadd.f32 %v2222, %v2736
    %v2883 = vadd.f32 %v2225, %v2739
    %v2884 = vadd.f32 %v2230, %v2744
    %v2885 = vadd.f32 %v2233, %v2747
    %v2886 = vadd.f32 %v2238, %v2752
    %v2887 = vadd.f32 %v2241, %v2755
    %v2888 = vadd.f32 %v2246, %v2760
    %v2889 = vadd.f32 %v2249, %v2763
    %v2890 = vadd.f32 %v2254, %v2768
    %v2891 = vadd.f32 %v2257, %v2771
    %v2892 = vadd.f32 %v2262, %v2776
    %v2893 = vadd.f32 %v2265, %v2779
    %v2894 = vadd.f32 %v2270, %v2784
    %v2895 = vadd.f32 %v2273, %v2787
    %v2896 = vadd.f32 %v2278, %v2792
    %v2897 = vadd.f32 %v2281, %v2795
    %v2898 = vadd.f32 %v2286, %v2800
    %v2899 = vadd.f32 %v2289, %v2803
    %v2900 = vadd.f32 %v2294, %v2808
    %v2901 = vadd.f32 %v2297, %v2811
    %v2902 = vadd.f32 %v2302, %v2816
    %v2903 = vadd.f32 %v2305, %v2819
    %v2904 = vadd.f32 %v2310, %v2824
    %v2905 = vadd.f32 %v2313, %v2827
    %v2906 = vadd.f32 %v2318, %v2832
    %v2907 = vadd.f32 %v2321, %v2835
    %v2908 = vadd.f32 %v2326, %v2840
    %v2909 = vadd.f32 %v2329, %v2843
    %v2910 = vld [vmem:[%s1240] sm:$0xff]
    %v2911 = vld [vmem:[%s1240 + $0x8] sm:$0xff]
    %v2912 = vld [vmem:[%s1240 + $0x18] sm:$0xff]
    %v2913 = vld [vmem:[%s1240 + $0x20] sm:$0xff]
    %v2914 = vld [vmem:[%s1240 + $0x30] sm:$0xff]
    %v2915 = vld [vmem:[%s1240 + $0x38] sm:$0xff]
    %v2916 = vld [vmem:[%s1240 + $0x48] sm:$0xff]
    %v2917 = vld [vmem:[%s1240 + $0x50] sm:$0xff]
    %v2918 = vld [vmem:[%s1240 + $0x60] sm:$0xff]
    %v2919 = vld [vmem:[%s1240 + $0x68] sm:$0xff]
    %v2920 = vld [vmem:[%s1240 + $0x78] sm:$0xff]
    %v2921 = vld [vmem:[%s1240 + $0x80] sm:$0xff]
    %v2922 = vld [vmem:[%s1240 + $0x90] sm:$0xff]
    %v2923 = vld [vmem:[%s1240 + $0x98] sm:$0xff]
    %v2924 = vld [vmem:[%s1240 + $0xa8] sm:$0xff]
    %v2925 = vld [vmem:[%s1240 + $0xb0] sm:$0xff]
    %v2926 = vld [vmem:[%s1240 + $0xc0] sm:$0xff]
    %v2927 = vld [vmem:[%s1240 + $0xc8] sm:$0xff]
    %v2928 = vld [vmem:[%s1240 + $0xd8] sm:$0xff]
    %v2929 = vld [vmem:[%s1240 + $0xe0] sm:$0xff]
    %v2930 = vld [vmem:[%s1240 + $0xf0] sm:$0xff]
    %v2931 = vld [vmem:[%s1240 + $0xf8] sm:$0xff]
    %v2932 = vld [vmem:[%s1240 + $0x108] sm:$0xff]
    %v2933 = vld [vmem:[%s1240 + $0x110] sm:$0xff]
    %v2934 = vld [vmem:[%s1240 + $0x120] sm:$0xff]
    %v2935 = vld [vmem:[%s1240 + $0x128] sm:$0xff]
    %v2936 = vld [vmem:[%s1240 + $0x138] sm:$0xff]
    %v2937 = vld [vmem:[%s1240 + $0x140] sm:$0xff]
    %v2938 = vld [vmem:[%s1240 + $0x150] sm:$0xff]
    %v2939 = vld [vmem:[%s1240 + $0x158] sm:$0xff]
    %v2940 = vld [vmem:[%s1240 + $0x168] sm:$0xff]
    %v2941 = vld [vmem:[%s1240 + $0x170] sm:$0xff]
    %v2942 = vld [vmem:[%s1240 + $0x1b0] sm:$0xff]
    %v2943 = vld [vmem:[%s1240 + $0x1b8] sm:$0xff]
    %v2944 = vld [vmem:[%s1240 + $0x1c8] sm:$0xff]
    %v2945 = vld [vmem:[%s1240 + $0x1d0] sm:$0xff]
    %v2946 = vld [vmem:[%s1240 + $0x1e0] sm:$0xff]
    %v2947 = vld [vmem:[%s1240 + $0x1e8] sm:$0xff]
    %v2948 = vld [vmem:[%s1240 + $0x1f8] sm:$0xff]
    %v2949 = vld [vmem:[%s1240 + $0x200] sm:$0xff]
    %v2950 = vld [vmem:[%s1240 + $0x210] sm:$0xff]
    %v2951 = vld [vmem:[%s1240 + $0x218] sm:$0xff]
    %v2952 = vld [vmem:[%s1240 + $0x228] sm:$0xff]
    %v2953 = vld [vmem:[%s1240 + $0x230] sm:$0xff]
    %v2954 = vld [vmem:[%s1240 + $0x240] sm:$0xff]
    %v2955 = vld [vmem:[%s1240 + $0x248] sm:$0xff]
    %v2956 = vld [vmem:[%s1240 + $0x258] sm:$0xff]
    %v2957 = vld [vmem:[%s1240 + $0x260] sm:$0xff]
    %v2958 = vld [vmem:[%s1240 + $0x270] sm:$0xff]
    %v2959 = vld [vmem:[%s1240 + $0x278] sm:$0xff]
    %v2960 = vld [vmem:[%s1240 + $0x288] sm:$0xff]
    %v2961 = vld [vmem:[%s1240 + $0x290] sm:$0xff]
    %v2962 = vld [vmem:[%s1240 + $0x2a0] sm:$0xff]
    %v2963 = vld [vmem:[%s1240 + $0x2a8] sm:$0xff]
    %v2964 = vld [vmem:[%s1240 + $0x2b8] sm:$0xff]
    %v2965 = vld [vmem:[%s1240 + $0x2c0] sm:$0xff]
    %v2966 = vld [vmem:[%s1240 + $0x2d0] sm:$0xff]
    %v2967 = vld [vmem:[%s1240 + $0x2d8] sm:$0xff]
    %v2968 = vld [vmem:[%s1240 + $0x2e8] sm:$0xff]
    %v2969 = vld [vmem:[%s1240 + $0x2f0] sm:$0xff]
    %v2970 = vld [vmem:[%s1240 + $0x300] sm:$0xff]
    %v2971 = vld [vmem:[%s1240 + $0x308] sm:$0xff]
    %v2972 = vld [vmem:[%s1240 + $0x318] sm:$0xff]
    %v2973 = vld [vmem:[%s1240 + $0x320] sm:$0xff]
    %v2974 = vpack.c.bf16 %v2911, %v2910
    %v2975 = vpack.c.bf16 %v2913, %v2912
    %v2976 = vpack.c.bf16 %v2915, %v2914
    %v2977 = vpack.c.bf16 %v2917, %v2916
    %v2978 = vpack.c.bf16 %v2919, %v2918
    %v2979 = vpack.c.bf16 %v2921, %v2920
    %v2980 = vpack.c.bf16 %v2923, %v2922
    %v2981 = vpack.c.bf16 %v2925, %v2924
    %v2982 = vpack.c.bf16 %v2927, %v2926
    %v2983 = vpack.c.bf16 %v2929, %v2928
    %v2984 = vpack.c.bf16 %v2931, %v2930
    %v2985 = vpack.c.bf16 %v2933, %v2932
    %v2986 = vpack.c.bf16 %v2935, %v2934
    %v2987 = vpack.c.bf16 %v2937, %v2936
    %v2988 = vpack.c.bf16 %v2939, %v2938
    %v2989 = vpack.c.bf16 %v2941, %v2940
    %v2990 = vpack.c.bf16 %v2943, %v2942
    %v2991 = vpack.c.bf16 %v2945, %v2944
    %v2992 = vpack.c.bf16 %v2947, %v2946
    %v2993 = vpack.c.bf16 %v2949, %v2948
    %v2994 = vpack.c.bf16 %v2951, %v2950
    %v2995 = vpack.c.bf16 %v2953, %v2952
    %v2996 = vpack.c.bf16 %v2955, %v2954
    %v2997 = vpack.c.bf16 %v2957, %v2956
    %v2998 = vpack.c.bf16 %v2959, %v2958
    %v2999 = vpack.c.bf16 %v2961, %v2960
    %v3000 = vpack.c.bf16 %v2963, %v2962
    %v3001 = vpack.c.bf16 %v2965, %v2964
    %v3002 = vpack.c.bf16 %v2967, %v2966
    %v3003 = vpack.c.bf16 %v2969, %v2968
    %v3004 = vpack.c.bf16 %v2971, %v2970
    %v3005 = vpack.c.bf16 %v2973, %v2972
    %s3006 = scalar_lea.vmem [#allocation8], 96
    %v3007 = vld [vmem:[%s3006] sm:$0xf]
    %v3008 = vld [vmem:[%s3006 + $0x4] sm:$0xf]
    %v3009 = vld [vmem:[%s3006 + $0x8] sm:$0xf]
    %v3010 = vld [vmem:[%s3006 + $0xc] sm:$0xf]
    %v3011 = vld [vmem:[%s3006 + $0x10] sm:$0xf]
    %v3012 = vld [vmem:[%s3006 + $0x14] sm:$0xf]
    %v3013 = vld [vmem:[%s3006 + $0x18] sm:$0xf]
    %v3014 = vld [vmem:[%s3006 + $0x1c] sm:$0xf]
    %v3023 = vunpack.c.l.b16 %v3007
    %v3024 = vunpack.c.l.b16 %v3008
    %v3025 = vunpack.c.l.b16 %v3009
    %v3026 = vunpack.c.l.b16 %v3010
    %v3027 = vunpack.c.l.b16 %v3011
    %v3028 = vunpack.c.l.b16 %v3012
    %v3029 = vunpack.c.l.b16 %v3013
    %v3030 = vunpack.c.l.b16 %v3014
    %v3031 = vpack.c.b16 %v3024, %v3023
    %v3032 = vpack.c.b16 %v3026, %v3025
    %v3033 = vpack.c.b16 %v3028, %v3027
    %v3034 = vpack.c.b16 %v3030, %v3029
    %v3040 = vsel %vm218, %v2974, 0
    %v3043 = vsel %vm218, %v2975, 0
    %v3046 = vsel %vm218, %v2976, 0
    %v3049 = vsel %vm218, %v2977, 0
    %v3052 = vsel %vm218, %v2978, 0
    %v3055 = vsel %vm218, %v2979, 0
    %v3058 = vsel %vm218, %v2980, 0
    %v3061 = vsel %vm218, %v2981, 0
    %v3064 = vsel %vm218, %v2982, 0
    %v3067 = vsel %vm218, %v2983, 0
    %v3070 = vsel %vm218, %v2984, 0
    %v3073 = vsel %vm218, %v2985, 0
    %v3076 = vsel %vm218, %v2986, 0
    %v3079 = vsel %vm218, %v2987, 0
    %v3082 = vsel %vm218, %v2988, 0
    %v3085 = vsel %vm218, %v2989, 0
    %v3088 = vsel %vm218, %v2990, 0
    %v3091 = vsel %vm218, %v2991, 0
    %v3094 = vsel %vm218, %v2992, 0
    %v3097 = vsel %vm218, %v2993, 0
    %v3100 = vsel %vm218, %v2994, 0
    %v3103 = vsel %vm218, %v2995, 0
    %v3106 = vsel %vm218, %v2996, 0
    %v3109 = vsel %vm218, %v2997, 0
    %v3112 = vsel %vm218, %v2998, 0
    %v3115 = vsel %vm218, %v2999, 0
    %v3118 = vsel %vm218, %v3000, 0
    %v3121 = vsel %vm218, %v3001, 0
    %v3124 = vsel %vm218, %v3002, 0
    %v3127 = vsel %vm218, %v3003, 0
    %v3130 = vsel %vm218, %v3004, 0
    %v3133 = vsel %vm218, %v3005, 0
    %3135 = vmatprep.subr.bf16.mxu0 0
    %3136 = vmatpush1.bf16.msra.mxu0 %v3031
    %3137 = vmatprep.subr.bf16.mxu0 0
    %3138 = vmatpush1.bf16.msra.mxu0 %v3032
    %3139 = vmatprep.subr.bf16.mxu0 0
    %3140 = vmatpush1.bf16.msra.mxu0 %v3033
    %3141 = vmatprep.subr.bf16.mxu0 0
    %3142 = vmatpush1.bf16.msra.mxu0 %v3034
    %3143 = vmatprep.subr.bf16.mxu0 0
    %3144 = vmatpush1.bf16.msra.mxu0 0
    %3145 = vmatprep.subr.bf16.mxu0 0
    %3146 = vmatpush1.bf16.msra.mxu0 0
    %3147 = vmatprep.subr.bf16.mxu0 0
    %3148 = vmatpush1.bf16.msra.mxu0 0
    %3149 = vmatprep.subr.bf16.mxu0 0
    %3150 = vmatpush1.bf16.msra.mxu0 0
    %3151 = vmatprep.subr.bf16.mxu0 0
    %3152 = vmatpush1.bf16.msra.mxu0 0
    %3153 = vmatprep.subr.bf16.mxu0 0
    %3154 = vmatpush1.bf16.msra.mxu0 0
    %3155 = vmatprep.subr.bf16.mxu0 0
    %3156 = vmatpush1.bf16.msra.mxu0 0
    %3157 = vmatprep.subr.bf16.mxu0 0
    %3158 = vmatpush1.bf16.msra.mxu0 0
    %3159 = vmatprep.subr.bf16.mxu0 0
    %3160 = vmatpush1.bf16.msra.mxu0 0
    %3161 = vmatprep.subr.bf16.mxu0 0
    %3162 = vmatpush1.bf16.msra.mxu0 0
    %3163 = vmatprep.subr.bf16.mxu0 0
    %3164 = vmatpush1.bf16.msra.mxu0 0
    %3165 = vmatprep.subr.bf16.mxu0 0
    %3166 = vmatpush1.bf16.msra.mxu0 0
    %3167 = vmatprep.mubr.bf16.mxu0 0
    %3168 = vmatmul.mubr.bf16.gmra.mrb[0].mxu0 %v3040
    %v3169 = vpop.f32.mrb[0].mxu0
    %v3170 = vadd.f32 0.0, %v3169
    %v3171 = vpop.f32.mrb[0].mxu0
    %v3172 = vpop.f32.mrb[0].mxu0
    %v3173 = vadd.f32 0.0, %v3172
    %v3174 = vpop.f32.mrb[0].mxu0
    %3175 = vmatprep.mubr.bf16.mxu0 0
    %3176 = vmatmul.mubr.bf16.gmra.mrb[0].mxu0 %v3043
    %v3177 = vpop.f32.mrb[0].mxu0
    %v3178 = vadd.f32 0.0, %v3177
    %v3179 = vpop.f32.mrb[0].mxu0
    %v3180 = vpop.f32.mrb[0].mxu0
    %v3181 = vadd.f32 0.0, %v3180
    %v3182 = vpop.f32.mrb[0].mxu0
    %3183 = vmatprep.mubr.bf16.mxu0 0
    %3184 = vmatmul.mubr.bf16.gmra.mrb[0].mxu0 %v3046
    %v3185 = vpop.f32.mrb[0].mxu0
    %v3186 = vadd.f32 0.0, %v3185
    %v3187 = vpop.f32.mrb[0].mxu0
    %v3188 = vpop.f32.mrb[0].mxu0
    %v3189 = vadd.f32 0.0, %v3188
    %v3190 = vpop.f32.mrb[0].mxu0
    %3191 = vmatprep.mubr.bf16.mxu0 0
    %3192 = vmatmul.mubr.bf16.gmra.mrb[0].mxu0 %v3049
    %v3193 = vpop.f32.mrb[0].mxu0
    %v3194 = vadd.f32 0.0, %v3193
    %v3195 = vpop.f32.mrb[0].mxu0
    %v3196 = vpop.f32.mrb[0].mxu0
    %v3197 = vadd.f32 0.0, %v3196
    %v3198 = vpop.f32.mrb[0].mxu0
    %3199 = vmatprep.mubr.bf16.mxu0 0
    %3200 = vmatmul.mubr.bf16.gmra.mrb[0].mxu0 %v3052
    %v3201 = vpop.f32.mrb[0].mxu0
    %v3202 = vadd.f32 0.0, %v3201
    %v3203 = vpop.f32.mrb[0].mxu0
    %v3204 = vpop.f32.mrb[0].mxu0
    %v3205 = vadd.f32 0.0, %v3204
    %v3206 = vpop.f32.mrb[0].mxu0
    %3207 = vmatprep.mubr.bf16.mxu0 0
    %3208 = vmatmul.mubr.bf16.gmra.mrb[0].mxu0 %v3055
    %v3209 = vpop.f32.mrb[0].mxu0
    %v3210 = vadd.f32 0.0, %v3209
    %v3211 = vpop.f32.mrb[0].mxu0
    %v3212 = vpop.f32.mrb[0].mxu0
    %v3213 = vadd.f32 0.0, %v3212
    %v3214 = vpop.f32.mrb[0].mxu0
    %3215 = vmatprep.mubr.bf16.mxu0 0
    %3216 = vmatmul.mubr.bf16.gmra.mrb[0].mxu0 %v3058
    %v3217 = vpop.f32.mrb[0].mxu0
    %v3218 = vadd.f32 0.0, %v3217
    %v3219 = vpop.f32.mrb[0].mxu0
    %v3220 = vpop.f32.mrb[0].mxu0
    %v3221 = vadd.f32 0.0, %v3220
    %v3222 = vpop.f32.mrb[0].mxu0
    %3223 = vmatprep.mubr.bf16.mxu0 0
    %3224 = vmatmul.mubr.bf16.gmra.mrb[0].mxu0 %v3061
    %v3225 = vpop.f32.mrb[0].mxu0
    %v3226 = vadd.f32 0.0, %v3225
    %v3227 = vpop.f32.mrb[0].mxu0
    %v3228 = vpop.f32.mrb[0].mxu0
    %v3229 = vadd.f32 0.0, %v3228
    %v3230 = vpop.f32.mrb[0].mxu0
    %3231 = vmatprep.mubr.bf16.mxu0 0
    %3232 = vmatmul.mubr.bf16.gmra.mrb[0].mxu0 %v3064
    %v3233 = vpop.f32.mrb[0].mxu0
    %v3234 = vadd.f32 0.0, %v3233
    %v3235 = vpop.f32.mrb[0].mxu0
    %v3236 = vpop.f32.mrb[0].mxu0
    %v3237 = vadd.f32 0.0, %v3236
    %v3238 = vpop.f32.mrb[0].mxu0
    %3239 = vmatprep.mubr.bf16.mxu0 0
    %3240 = vmatmul.mubr.bf16.gmra.mrb[0].mxu0 %v3067
    %v3241 = vpop.f32.mrb[0].mxu0
    %v3242 = vadd.f32 0.0, %v3241
    %v3243 = vpop.f32.mrb[0].mxu0
    %v3244 = vpop.f32.mrb[0].mxu0
    %v3245 = vadd.f32 0.0, %v3244
    %v3246 = vpop.f32.mrb[0].mxu0
    %3247 = vmatprep.mubr.bf16.mxu0 0
    %3248 = vmatmul.mubr.bf16.gmra.mrb[0].mxu0 %v3070
    %v3249 = vpop.f32.mrb[0].mxu0
    %v3250 = vadd.f32 0.0, %v3249
    %v3251 = vpop.f32.mrb[0].mxu0
    %v3252 = vpop.f32.mrb[0].mxu0
    %v3253 = vadd.f32 0.0, %v3252
    %v3254 = vpop.f32.mrb[0].mxu0
    %3255 = vmatprep.mubr.bf16.mxu0 0
    %3256 = vmatmul.mubr.bf16.gmra.mrb[0].mxu0 %v3073
    %v3257 = vpop.f32.mrb[0].mxu0
    %v3258 = vadd.f32 0.0, %v3257
    %v3259 = vpop.f32.mrb[0].mxu0
    %v3260 = vpop.f32.mrb[0].mxu0
    %v3261 = vadd.f32 0.0, %v3260
    %v3262 = vpop.f32.mrb[0].mxu0
    %3263 = vmatprep.mubr.bf16.mxu0 0
    %3264 = vmatmul.mubr.bf16.gmra.mrb[0].mxu0 %v3076
    %v3265 = vpop.f32.mrb[0].mxu0
    %v3266 = vadd.f32 0.0, %v3265
    %v3267 = vpop.f32.mrb[0].mxu0
    %v3268 = vpop.f32.mrb[0].mxu0
    %v3269 = vadd.f32 0.0, %v3268
    %v3270 = vpop.f32.mrb[0].mxu0
    %3271 = vmatprep.mubr.bf16.mxu0 0
    %3272 = vmatmul.mubr.bf16.gmra.mrb[0].mxu0 %v3079
    %v3273 = vpop.f32.mrb[0].mxu0
    %v3274 = vadd.f32 0.0, %v3273
    %v3275 = vpop.f32.mrb[0].mxu0
    %v3276 = vpop.f32.mrb[0].mxu0
    %v3277 = vadd.f32 0.0, %v3276
    %v3278 = vpop.f32.mrb[0].mxu0
    %3279 = vmatprep.mubr.bf16.mxu0 0
    %3280 = vmatmul.mubr.bf16.gmra.mrb[0].mxu0 %v3082
    %v3281 = vpop.f32.mrb[0].mxu0
    %v3282 = vadd.f32 0.0, %v3281
    %v3283 = vpop.f32.mrb[0].mxu0
    %v3284 = vpop.f32.mrb[0].mxu0
    %v3285 = vadd.f32 0.0, %v3284
    %v3286 = vpop.f32.mrb[0].mxu0
    %3287 = vmatprep.mubr.bf16.mxu0 0
    %3288 = vmatmul.mubr.bf16.gmra.mrb[0].mxu0 %v3085
    %v3289 = vpop.f32.mrb[0].mxu0
    %v3290 = vadd.f32 0.0, %v3289
    %v3291 = vpop.f32.mrb[0].mxu0
    %v3292 = vpop.f32.mrb[0].mxu0
    %v3293 = vadd.f32 0.0, %v3292
    %v3294 = vpop.f32.mrb[0].mxu0
    %3295 = vmatprep.mubr.bf16.mxu0 0
    %3296 = vmatmul.mubr.bf16.gmra.mrb[0].mxu0 %v3088
    %v3297 = vpop.f32.mrb[0].mxu0
    %v3298 = vadd.f32 0.0, %v3297
    %v3299 = vpop.f32.mrb[0].mxu0
    %v3300 = vpop.f32.mrb[0].mxu0
    %v3301 = vadd.f32 0.0, %v3300
    %v3302 = vpop.f32.mrb[0].mxu0
    %3303 = vmatprep.mubr.bf16.mxu0 0
    %3304 = vmatmul.mubr.bf16.gmra.mrb[0].mxu0 %v3091
    %v3305 = vpop.f32.mrb[0].mxu0
    %v3306 = vadd.f32 0.0, %v3305
    %v3307 = vpop.f32.mrb[0].mxu0
    %v3308 = vpop.f32.mrb[0].mxu0
    %v3309 = vadd.f32 0.0, %v3308
    %v3310 = vpop.f32.mrb[0].mxu0
    %3311 = vmatprep.mubr.bf16.mxu0 0
    %3312 = vmatmul.mubr.bf16.gmra.mrb[0].mxu0 %v3094
    %v3313 = vpop.f32.mrb[0].mxu0
    %v3314 = vadd.f32 0.0, %v3313
    %v3315 = vpop.f32.mrb[0].mxu0
    %v3316 = vpop.f32.mrb[0].mxu0
    %v3317 = vadd.f32 0.0, %v3316
    %v3318 = vpop.f32.mrb[0].mxu0
    %3319 = vmatprep.mubr.bf16.mxu0 0
    %3320 = vmatmul.mubr.bf16.gmra.mrb[0].mxu0 %v3097
    %v3321 = vpop.f32.mrb[0].mxu0
    %v3322 = vadd.f32 0.0, %v3321
    %v3323 = vpop.f32.mrb[0].mxu0
    %v3324 = vpop.f32.mrb[0].mxu0
    %v3325 = vadd.f32 0.0, %v3324
    %v3326 = vpop.f32.mrb[0].mxu0
    %3327 = vmatprep.mubr.bf16.mxu0 0
    %3328 = vmatmul.mubr.bf16.gmra.mrb[0].mxu0 %v3100
    %v3329 = vpop.f32.mrb[0].mxu0
    %v3330 = vadd.f32 0.0, %v3329
    %v3331 = vpop.f32.mrb[0].mxu0
    %v3332 = vpop.f32.mrb[0].mxu0
    %v3333 = vadd.f32 0.0, %v3332
    %v3334 = vpop.f32.mrb[0].mxu0
    %3335 = vmatprep.mubr.bf16.mxu0 0
    %3336 = vmatmul.mubr.bf16.gmra.mrb[0].mxu0 %v3103
    %v3337 = vpop.f32.mrb[0].mxu0
    %v3338 = vadd.f32 0.0, %v3337
    %v3339 = vpop.f32.mrb[0].mxu0
    %v3340 = vpop.f32.mrb[0].mxu0
    %v3341 = vadd.f32 0.0, %v3340
    %v3342 = vpop.f32.mrb[0].mxu0
    %3343 = vmatprep.mubr.bf16.mxu0 0
    %3344 = vmatmul.mubr.bf16.gmra.mrb[0].mxu0 %v3106
    %v3345 = vpop.f32.mrb[0].mxu0
    %v3346 = vadd.f32 0.0, %v3345
    %v3347 = vpop.f32.mrb[0].mxu0
    %v3348 = vpop.f32.mrb[0].mxu0
    %v3349 = vadd.f32 0.0, %v3348
    %v3350 = vpop.f32.mrb[0].mxu0
    %3351 = vmatprep.mubr.bf16.mxu0 0
    %3352 = vmatmul.mubr.bf16.gmra.mrb[0].mxu0 %v3109
    %v3353 = vpop.f32.mrb[0].mxu0
    %v3354 = vadd.f32 0.0, %v3353
    %v3355 = vpop.f32.mrb[0].mxu0
    %v3356 = vpop.f32.mrb[0].mxu0
    %v3357 = vadd.f32 0.0, %v3356
    %v3358 = vpop.f32.mrb[0].mxu0
    %3359 = vmatprep.mubr.bf16.mxu0 0
    %3360 = vmatmul.mubr.bf16.gmra.mrb[0].mxu0 %v3112
    %v3361 = vpop.f32.mrb[0].mxu0
    %v3362 = vadd.f32 0.0, %v3361
    %v3363 = vpop.f32.mrb[0].mxu0
    %v3364 = vpop.f32.mrb[0].mxu0
    %v3365 = vadd.f32 0.0, %v3364
    %v3366 = vpop.f32.mrb[0].mxu0
    %3367 = vmatprep.mubr.bf16.mxu0 0
    %3368 = vmatmul.mubr.bf16.gmra.mrb[0].mxu0 %v3115
    %v3369 = vpop.f32.mrb[0].mxu0
    %v3370 = vadd.f32 0.0, %v3369
    %v3371 = vpop.f32.mrb[0].mxu0
    %v3372 = vpop.f32.mrb[0].mxu0
    %v3373 = vadd.f32 0.0, %v3372
    %v3374 = vpop.f32.mrb[0].mxu0
    %3375 = vmatprep.mubr.bf16.mxu0 0
    %3376 = vmatmul.mubr.bf16.gmra.mrb[0].mxu0 %v3118
    %v3377 = vpop.f32.mrb[0].mxu0
    %v3378 = vadd.f32 0.0, %v3377
    %v3379 = vpop.f32.mrb[0].mxu0
    %v3380 = vpop.f32.mrb[0].mxu0
    %v3381 = vadd.f32 0.0, %v3380
    %v3382 = vpop.f32.mrb[0].mxu0
    %3383 = vmatprep.mubr.bf16.mxu0 0
    %3384 = vmatmul.mubr.bf16.gmra.mrb[0].mxu0 %v3121
    %v3385 = vpop.f32.mrb[0].mxu0
    %v3386 = vadd.f32 0.0, %v3385
    %v3387 = vpop.f32.mrb[0].mxu0
    %v3388 = vpop.f32.mrb[0].mxu0
    %v3389 = vadd.f32 0.0, %v3388
    %v3390 = vpop.f32.mrb[0].mxu0
    %3391 = vmatprep.mubr.bf16.mxu0 0
    %3392 = vmatmul.mubr.bf16.gmra.mrb[0].mxu0 %v3124
    %v3393 = vpop.f32.mrb[0].mxu0
    %v3394 = vadd.f32 0.0, %v3393
    %v3395 = vpop.f32.mrb[0].mxu0
    %v3396 = vpop.f32.mrb[0].mxu0
    %v3397 = vadd.f32 0.0, %v3396
    %v3398 = vpop.f32.mrb[0].mxu0
    %3399 = vmatprep.mubr.bf16.mxu0 0
    %3400 = vmatmul.mubr.bf16.gmra.mrb[0].mxu0 %v3127
    %v3401 = vpop.f32.mrb[0].mxu0
    %v3402 = vadd.f32 0.0, %v3401
    %v3403 = vpop.f32.mrb[0].mxu0
    %v3404 = vpop.f32.mrb[0].mxu0
    %v3405 = vadd.f32 0.0, %v3404
    %v3406 = vpop.f32.mrb[0].mxu0
    %3407 = vmatprep.mubr.bf16.mxu0 0
    %3408 = vmatmul.mubr.bf16.gmra.mrb[0].mxu0 %v3130
    %v3409 = vpop.f32.mrb[0].mxu0
    %v3410 = vadd.f32 0.0, %v3409
    %v3411 = vpop.f32.mrb[0].mxu0
    %v3412 = vpop.f32.mrb[0].mxu0
    %v3413 = vadd.f32 0.0, %v3412
    %v3414 = vpop.f32.mrb[0].mxu0
    %3415 = vmatprep.mubr.bf16.mxu0 0
    %3416 = vmatmul.mubr.bf16.gmra.mrb[0].mxu0 %v3133
    %v3417 = vpop.f32.mrb[0].mxu0
    %v3418 = vadd.f32 0.0, %v3417
    %v3419 = vpop.f32.mrb[0].mxu0
    %v3420 = vpop.f32.mrb[0].mxu0
    %v3421 = vadd.f32 0.0, %v3420
    %v3422 = vpop.f32.mrb[0].mxu0
    %3423 = vdwg.mxu0
    %v3424 = vadd.f32 %v2846, %v3170
    %v3425 = vadd.f32 %v2847, %v3173
    %v3426 = vadd.f32 %v2848, %v3178
    %v3427 = vadd.f32 %v2849, %v3181
    %v3428 = vadd.f32 %v2850, %v3186
    %v3429 = vadd.f32 %v2851, %v3189
    %v3430 = vadd.f32 %v2852, %v3194
    %v3431 = vadd.f32 %v2853, %v3197
    %v3432 = vadd.f32 %v2854, %v3202
    %v3433 = vadd.f32 %v2855, %v3205
    %v3434 = vadd.f32 %v2856, %v3210
    %v3435 = vadd.f32 %v2857, %v3213
    %v3436 = vadd.f32 %v2858, %v3218
    %v3437 = vadd.f32 %v2859, %v3221
    %v3438 = vadd.f32 %v2860, %v3226
    %v3439 = vadd.f32 %v2861, %v3229
    %v3440 = vadd.f32 %v2862, %v3234
    %v3441 = vadd.f32 %v2863, %v3237
    %v3442 = vadd.f32 %v2864, %v3242
    %v3443 = vadd.f32 %v2865, %v3245
    %v3444 = vadd.f32 %v2866, %v3250
    %v3445 = vadd.f32 %v2867, %v3253
    %v3446 = vadd.f32 %v2868, %v3258
    %v3447 = vadd.f32 %v2869, %v3261
    %v3448 = vadd.f32 %v2870, %v3266
    %v3449 = vadd.f32 %v2871, %v3269
    %v3450 = vadd.f32 %v2872, %v3274
    %v3451 = vadd.f32 %v2873, %v3277
    %v3452 = vadd.f32 %v2874, %v3282
    %v3453 = vadd.f32 %v2875, %v3285
    %v3454 = vadd.f32 %v2876, %v3290
    %v3455 = vadd.f32 %v2877, %v3293
    %v3456 = vadd.f32 %v2878, %v3298
    %v3457 = vadd.f32 %v2879, %v3301
    %v3458 = vadd.f32 %v2880, %v3306
    %v3459 = vadd.f32 %v2881, %v3309
    %v3460 = vadd.f32 %v2882, %v3314
    %v3461 = vadd.f32 %v2883, %v3317
    %v3462 = vadd.f32 %v2884, %v3322
    %v3463 = vadd.f32 %v2885, %v3325
    %v3464 = vadd.f32 %v2886, %v3330
    %v3465 = vadd.f32 %v2887, %v3333
    %v3466 = vadd.f32 %v2888, %v3338
    %v3467 = vadd.f32 %v2889, %v3341
    %v3468 = vadd.f32 %v2890, %v3346
    %v3469 = vadd.f32 %v2891, %v3349
    %v3470 = vadd.f32 %v2892, %v3354
    %v3471 = vadd.f32 %v2893, %v3357
    %v3472 = vadd.f32 %v2894, %v3362
    %v3473 = vadd.f32 %v2895, %v3365
    %v3474 = vadd.f32 %v2896, %v3370
    %v3475 = vadd.f32 %v2897, %v3373
    %v3476 = vadd.f32 %v2898, %v3378
    %v3477 = vadd.f32 %v2899, %v3381
    %v3478 = vadd.f32 %v2900, %v3386
    %v3479 = vadd.f32 %v2901, %v3389
    %v3480 = vadd.f32 %v2902, %v3394
    %v3481 = vadd.f32 %v2903, %v3397
    %v3482 = vadd.f32 %v2904, %v3402
    %v3483 = vadd.f32 %v2905, %v3405
    %v3484 = vadd.f32 %v2906, %v3410
    %v3485 = vadd.f32 %v2907, %v3413
    %v3486 = vadd.f32 %v2908, %v3418
    %v3487 = vadd.f32 %v2909, %v3421
    %v3488 = vld [vmem:[%s1240 + $0x1] sm:$0xff]
    %v3489 = vld [vmem:[%s1240 + $0x9] sm:$0xff]
    %v3490 = vld [vmem:[%s1240 + $0x19] sm:$0xff]
    %v3491 = vld [vmem:[%s1240 + $0x21] sm:$0xff]
    %v3492 = vld [vmem:[%s1240 + $0x31] sm:$0xff]
    %v3493 = vld [vmem:[%s1240 + $0x39] sm:$0xff]
    %v3494 = vld [vmem:[%s1240 + $0x49] sm:$0xff]
    %v3495 = vld [vmem:[%s1240 + $0x51] sm:$0xff]
    %v3496 = vld [vmem:[%s1240 + $0x61] sm:$0xff]
    %v3497 = vld [vmem:[%s1240 + $0x69] sm:$0xff]
    %v3498 = vld [vmem:[%s1240 + $0x79] sm:$0xff]
    %v3499 = vld [vmem:[%s1240 + $0x81] sm:$0xff]
    %v3500 = vld [vmem:[%s1240 + $0x91] sm:$0xff]
    %v3501 = vld [vmem:[%s1240 + $0x99] sm:$0xff]
    %v3502 = vld [vmem:[%s1240 + $0xa9] sm:$0xff]
    %v3503 = vld [vmem:[%s1240 + $0xb1] sm:$0xff]
    %v3504 = vld [vmem:[%s1240 + $0xc1] sm:$0xff]
    %v3505 = vld [vmem:[%s1240 + $0xc9] sm:$0xff]
    %v3506 = vld [vmem:[%s1240 + $0xd9] sm:$0xff]
    %v3507 = vld [vmem:[%s1240 + $0xe1] sm:$0xff]
    %v3508 = vld [vmem:[%s1240 + $0xf1] sm:$0xff]
    %v3509 = vld [vmem:[%s1240 + $0xf9] sm:$0xff]
    %v3510 = vld [vmem:[%s1240 + $0x109] sm:$0xff]
    %v3511 = vld [vmem:[%s1240 + $0x111] sm:$0xff]
    %v3512 = vld [vmem:[%s1240 + $0x121] sm:$0xff]
    %v3513 = vld [vmem:[%s1240 + $0x129] sm:$0xff]
    %v3514 = vld [vmem:[%s1240 + $0x139] sm:$0xff]
    %v3515 = vld [vmem:[%s1240 + $0x141] sm:$0xff]
    %v3516 = vld [vmem:[%s1240 + $0x151] sm:$0xff]
    %v3517 = vld [vmem:[%s1240 + $0x159] sm:$0xff]
    %v3518 = vld [vmem:[%s1240 + $0x169] sm:$0xff]
    %v3519 = vld [vmem:[%s1240 + $0x171] sm:$0xff]
    %v3520 = vld [vmem:[%s1240 + $0x1b1] sm:$0xff]
    %v3521 = vld [vmem:[%s1240 + $0x1b9] sm:$0xff]
    %v3522 = vld [vmem:[%s1240 + $0x1c9] sm:$0xff]
    %v3523 = vld [vmem:[%s1240 + $0x1d1] sm:$0xff]
    %v3524 = vld [vmem:[%s1240 + $0x1e1] sm:$0xff]
    %v3525 = vld [vmem:[%s1240 + $0x1e9] sm:$0xff]
    %v3526 = vld [vmem:[%s1240 + $0x1f9] sm:$0xff]
    %v3527 = vld [vmem:[%s1240 + $0x201] sm:$0xff]
    %v3528 = vld [vmem:[%s1240 + $0x211] sm:$0xff]
    %v3529 = vld [vmem:[%s1240 + $0x219] sm:$0xff]
    %v3530 = vld [vmem:[%s1240 + $0x229] sm:$0xff]
    %v3531 = vld [vmem:[%s1240 + $0x231] sm:$0xff]
    %v3532 = vld [vmem:[%s1240 + $0x241] sm:$0xff]
    %v3533 = vld [vmem:[%s1240 + $0x249] sm:$0xff]
    %v3534 = vld [vmem:[%s1240 + $0x259] sm:$0xff]
    %v3535 = vld [vmem:[%s1240 + $0x261] sm:$0xff]
    %v3536 = vld [vmem:[%s1240 + $0x271] sm:$0xff]
    %v3537 = vld [vmem:[%s1240 + $0x279] sm:$0xff]
    %v3538 = vld [vmem:[%s1240 + $0x289] sm:$0xff]
    %v3539 = vld [vmem:[%s1240 + $0x291] sm:$0xff]
    %v3540 = vld [vmem:[%s1240 + $0x2a1] sm:$0xff]
    %v3541 = vld [vmem:[%s1240 + $0x2a9] sm:$0xff]
    %v3542 = vld [vmem:[%s1240 + $0x2b9] sm:$0xff]
    %v3543 = vld [vmem:[%s1240 + $0x2c1] sm:$0xff]
    %v3544 = vld [vmem:[%s1240 + $0x2d1] sm:$0xff]
    %v3545 = vld [vmem:[%s1240 + $0x2d9] sm:$0xff]
    %v3546 = vld [vmem:[%s1240 + $0x2e9] sm:$0xff]
    %v3547 = vld [vmem:[%s1240 + $0x2f1] sm:$0xff]
    %v3548 = vld [vmem:[%s1240 + $0x301] sm:$0xff]
    %v3549 = vld [vmem:[%s1240 + $0x309] sm:$0xff]
    %v3550 = vld [vmem:[%s1240 + $0x319] sm:$0xff]
    %v3551 = vld [vmem:[%s1240 + $0x321] sm:$0xff]
    %v3552 = vpack.c.bf16 %v3489, %v3488
    %v3553 = vpack.c.bf16 %v3491, %v3490
    %v3554 = vpack.c.bf16 %v3493, %v3492
    %v3555 = vpack.c.bf16 %v3495, %v3494
    %v3556 = vpack.c.bf16 %v3497, %v3496
    %v3557 = vpack.c.bf16 %v3499, %v3498
    %v3558 = vpack.c.bf16 %v3501, %v3500
    %v3559 = vpack.c.bf16 %v3503, %v3502
    %v3560 = vpack.c.bf16 %v3505, %v3504
    %v3561 = vpack.c.bf16 %v3507, %v3506
    %v3562 = vpack.c.bf16 %v3509, %v3508
    %v3563 = vpack.c.bf16 %v3511, %v3510
    %v3564 = vpack.c.bf16 %v3513, %v3512
    %v3565 = vpack.c.bf16 %v3515, %v3514
    %v3566 = vpack.c.bf16 %v3517, %v3516
    %v3567 = vpack.c.bf16 %v3519, %v3518
    %v3568 = vpack.c.bf16 %v3521, %v3520
    %v3569 = vpack.c.bf16 %v3523, %v3522
    %v3570 = vpack.c.bf16 %v3525, %v3524
    %v3571 = vpack.c.bf16 %v3527, %v3526
    %v3572 = vpack.c.bf16 %v3529, %v3528
    %v3573 = vpack.c.bf16 %v3531, %v3530
    %v3574 = vpack.c.bf16 %v3533, %v3532
    %v3575 = vpack.c.bf16 %v3535, %v3534
    %v3576 = vpack.c.bf16 %v3537, %v3536
    %v3577 = vpack.c.bf16 %v3539, %v3538
    %v3578 = vpack.c.bf16 %v3541, %v3540
    %v3579 = vpack.c.bf16 %v3543, %v3542
    %v3580 = vpack.c.bf16 %v3545, %v3544
    %v3581 = vpack.c.bf16 %v3547, %v3546
    %v3582 = vpack.c.bf16 %v3549, %v3548
    %v3583 = vpack.c.bf16 %v3551, %v3550
    %s3584 = scalar_lea.vmem [#allocation8], 128
    %v3585 = vld [vmem:[%s3584] sm:$0xf]
    %v3586 = vld [vmem:[%s3584 + $0x4] sm:$0xf]
    %v3587 = vld [vmem:[%s3584 + $0x8] sm:$0xf]
    %v3588 = vld [vmem:[%s3584 + $0xc] sm:$0xf]
    %v3589 = vld [vmem:[%s3584 + $0x10] sm:$0xf]
    %v3590 = vld [vmem:[%s3584 + $0x14] sm:$0xf]
    %v3591 = vld [vmem:[%s3584 + $0x18] sm:$0xf]
    %v3592 = vld [vmem:[%s3584 + $0x1c] sm:$0xf]
    %v3601 = vunpack.c.l.b16 %v3585
    %v3602 = vunpack.c.l.b16 %v3586
    %v3603 = vunpack.c.l.b16 %v3587
    %v3604 = vunpack.c.l.b16 %v3588
    %v3605 = vunpack.c.l.b16 %v3589
    %v3606 = vunpack.c.l.b16 %v3590
    %v3607 = vunpack.c.l.b16 %v3591
    %v3608 = vunpack.c.l.b16 %v3592
    %v3609 = vpack.c.b16 %v3602, %v3601
    %v3610 = vpack.c.b16 %v3604, %v3603
    %v3611 = vpack.c.b16 %v3606, %v3605
    %v3612 = vpack.c.b16 %v3608, %v3607
    %v3618 = vsel %vm218, %v3552, 0
    %v3621 = vsel %vm218, %v3553, 0
    %v3624 = vsel %vm218, %v3554, 0
    %v3627 = vsel %vm218, %v3555, 0
    %v3630 = vsel %vm218, %v3556, 0
    %v3633 = vsel %vm218, %v3557, 0
    %v3636 = vsel %vm218, %v3558, 0
    %v3639 = vsel %vm218, %v3559, 0
    %v3642 = vsel %vm218, %v3560, 0
    %v3645 = vsel %vm218, %v3561, 0
    %v3648 = vsel %vm218, %v3562, 0
    %v3651 = vsel %vm218, %v3563, 0
    %v3654 = vsel %vm218, %v3564, 0
    %v3657 = vsel %vm218, %v3565, 0
    %v3660 = vsel %vm218, %v3566, 0
    %v3663 = vsel %vm218, %v3567, 0
    %v3666 = vsel %vm218, %v3568, 0
    %v3669 = vsel %vm218, %v3569, 0
    %v3672 = vsel %vm218, %v3570, 0
    %v3675 = vsel %vm218, %v3571, 0
    %v3678 = vsel %vm218, %v3572, 0
    %v3681 = vsel %vm218, %v3573, 0
    %v3684 = vsel %vm218, %v3574, 0
    %v3687 = vsel %vm218, %v3575, 0
    %v3690 = vsel %vm218, %v3576, 0
    %v3693 = vsel %vm218, %v3577, 0
    %v3696 = vsel %vm218, %v3578, 0
    %v3699 = vsel %vm218, %v3579, 0
    %v3702 = vsel %vm218, %v3580, 0
    %v3705 = vsel %vm218, %v3581, 0
    %v3708 = vsel %vm218, %v3582, 0
    %v3711 = vsel %vm218, %v3583, 0
    %3713 = vmatprep.subr.bf16.mxu0 0
    %3714 = vmatpush1.bf16.msra.mxu0 %v3609
    %3715 = vmatprep.subr.bf16.mxu0 0
    %3716 = vmatpush1.bf16.msra.mxu0 %v3610
    %3717 = vmatprep.subr.bf16.mxu0 0
    %3718 = vmatpush1.bf16.msra.mxu0 %v3611
    %3719 = vmatprep.subr.bf16.mxu0 0
    %3720 = vmatpush1.bf16.msra.mxu0 %v3612
    %3721 = vmatprep.subr.bf16.mxu0 0
    %3722 = vmatpush1.bf16.msra.mxu0 0
    %3723 = vmatprep.subr.bf16.mxu0 0
    %3724 = vmatpush1.bf16.msra.mxu0 0
    %3725 = vmatprep.subr.bf16.mxu0 0
    %3726 = vmatpush1.bf16.msra.mxu0 0
    %3727 = vmatprep.subr.bf16.mxu0 0
    %3728 = vmatpush1.bf16.msra.mxu0 0
    %3729 = vmatprep.subr.bf16.mxu0 0
    %3730 = vmatpush1.bf16.msra.mxu0 0
    %3731 = vmatprep.subr.bf16.mxu0 0
    %3732 = vmatpush1.bf16.msra.mxu0 0
    %3733 = vmatprep.subr.bf16.mxu0 0
    %3734 = vmatpush1.bf16.msra.mxu0 0
    %3735 = vmatprep.subr.bf16.mxu0 0
    %3736 = vmatpush1.bf16.msra.mxu0 0
    %3737 = vmatprep.subr.bf16.mxu0 0
    %3738 = vmatpush1.bf16.msra.mxu0 0
    %3739 = vmatprep.subr.bf16.mxu0 0
    %3740 = vmatpush1.bf16.msra.mxu0 0
    %3741 = vmatprep.subr.bf16.mxu0 0
    %3742 = vmatpush1.bf16.msra.mxu0 0
    %3743 = vmatprep.subr.bf16.mxu0 0
    %3744 = vmatpush1.bf16.msra.mxu0 0
    %3745 = vmatprep.mubr.bf16.mxu0 0
    %3746 = vmatmul.mubr.bf16.gmra.mrb[0].mxu0 %v3618
    %v3747 = vpop.f32.mrb[0].mxu0
    %v3748 = vadd.f32 0.0, %v3747
    %v3749 = vpop.f32.mrb[0].mxu0
    %v3750 = vpop.f32.mrb[0].mxu0
    %v3751 = vadd.f32 0.0, %v3750
    %v3752 = vpop.f32.mrb[0].mxu0
    %3753 = vmatprep.mubr.bf16.mxu0 0
    %3754 = vmatmul.mubr.bf16.gmra.mrb[0].mxu0 %v3621
    %v3755 = vpop.f32.mrb[0].mxu0
    %v3756 = vadd.f32 0.0, %v3755
    %v3757 = vpop.f32.mrb[0].mxu0
    %v3758 = vpop.f32.mrb[0].mxu0
    %v3759 = vadd.f32 0.0, %v3758
    %v3760 = vpop.f32.mrb[0].mxu0
    %3761 = vmatprep.mubr.bf16.mxu0 0
    %3762 = vmatmul.mubr.bf16.gmra.mrb[0].mxu0 %v3624
    %v3763 = vpop.f32.mrb[0].mxu0
    %v3764 = vadd.f32 0.0, %v3763
    %v3765 = vpop.f32.mrb[0].mxu0
    %v3766 = vpop.f32.mrb[0].mxu0
    %v3767 = vadd.f32 0.0, %v3766
    %v3768 = vpop.f32.mrb[0].mxu0
    %3769 = vmatprep.mubr.bf16.mxu0 0
    %3770 = vmatmul.mubr.bf16.gmra.mrb[0].mxu0 %v3627
    %v3771 = vpop.f32.mrb[0].mxu0
    %v3772 = vadd.f32 0.0, %v3771
    %v3773 = vpop.f32.mrb[0].mxu0
    %v3774 = vpop.f32.mrb[0].mxu0
    %v3775 = vadd.f32 0.0, %v3774
    %v3776 = vpop.f32.mrb[0].mxu0
    %3777 = vmatprep.mubr.bf16.mxu0 0
    %3778 = vmatmul.mubr.bf16.gmra.mrb[0].mxu0 %v3630
    %v3779 = vpop.f32.mrb[0].mxu0
    %v3780 = vadd.f32 0.0, %v3779
    %v3781 = vpop.f32.mrb[0].mxu0
    %v3782 = vpop.f32.mrb[0].mxu0
    %v3783 = vadd.f32 0.0, %v3782
    %v3784 = vpop.f32.mrb[0].mxu0
    %3785 = vmatprep.mubr.bf16.mxu0 0
    %3786 = vmatmul.mubr.bf16.gmra.mrb[0].mxu0 %v3633
    %v3787 = vpop.f32.mrb[0].mxu0
    %v3788 = vadd.f32 0.0, %v3787
    %v3789 = vpop.f32.mrb[0].mxu0
    %v3790 = vpop.f32.mrb[0].mxu0
    %v3791 = vadd.f32 0.0, %v3790
    %v3792 = vpop.f32.mrb[0].mxu0
    %3793 = vmatprep.mubr.bf16.mxu0 0
    %3794 = vmatmul.mubr.bf16.gmra.mrb[0].mxu0 %v3636
    %v3795 = vpop.f32.mrb[0].mxu0
    %v3796 = vadd.f32 0.0, %v3795
    %v3797 = vpop.f32.mrb[0].mxu0
    %v3798 = vpop.f32.mrb[0].mxu0
    %v3799 = vadd.f32 0.0, %v3798
    %v3800 = vpop.f32.mrb[0].mxu0
    %3801 = vmatprep.mubr.bf16.mxu0 0
    %3802 = vmatmul.mubr.bf16.gmra.mrb[0].mxu0 %v3639
    %v3803 = vpop.f32.mrb[0].mxu0
    %v3804 = vadd.f32 0.0, %v3803
    %v3805 = vpop.f32.mrb[0].mxu0
    %v3806 = vpop.f32.mrb[0].mxu0
    %v3807 = vadd.f32 0.0, %v3806
    %v3808 = vpop.f32.mrb[0].mxu0
    %3809 = vmatprep.mubr.bf16.mxu0 0
    %3810 = vmatmul.mubr.bf16.gmra.mrb[0].mxu0 %v3642
    %v3811 = vpop.f32.mrb[0].mxu0
    %v3812 = vadd.f32 0.0, %v3811
    %v3813 = vpop.f32.mrb[0].mxu0
    %v3814 = vpop.f32.mrb[0].mxu0
    %v3815 = vadd.f32 0.0, %v3814
    %v3816 = vpop.f32.mrb[0].mxu0
    %3817 = vmatprep.mubr.bf16.mxu0 0
    %3818 = vmatmul.mubr.bf16.gmra.mrb[0].mxu0 %v3645
    %v3819 = vpop.f32.mrb[0].mxu0
    %v3820 = vadd.f32 0.0, %v3819
    %v3821 = vpop.f32.mrb[0].mxu0
    %v3822 = vpop.f32.mrb[0].mxu0
    %v3823 = vadd.f32 0.0, %v3822
    %v3824 = vpop.f32.mrb[0].mxu0
    %3825 = vmatprep.mubr.bf16.mxu0 0
    %3826 = vmatmul.mubr.bf16.gmra.mrb[0].mxu0 %v3648
    %v3827 = vpop.f32.mrb[0].mxu0
    %v3828 = vadd.f32 0.0, %v3827
    %v3829 = vpop.f32.mrb[0].mxu0
    %v3830 = vpop.f32.mrb[0].mxu0
    %v3831 = vadd.f32 0.0, %v3830
    %v3832 = vpop.f32.mrb[0].mxu0
    %3833 = vmatprep.mubr.bf16.mxu0 0
    %3834 = vmatmul.mubr.bf16.gmra.mrb[0].mxu0 %v3651
    %v3835 = vpop.f32.mrb[0].mxu0
    %v3836 = vadd.f32 0.0, %v3835
    %v3837 = vpop.f32.mrb[0].mxu0
    %v3838 = vpop.f32.mrb[0].mxu0
    %v3839 = vadd.f32 0.0, %v3838
    %v3840 = vpop.f32.mrb[0].mxu0
    %3841 = vmatprep.mubr.bf16.mxu0 0
    %3842 = vmatmul.mubr.bf16.gmra.mrb[0].mxu0 %v3654
    %v3843 = vpop.f32.mrb[0].mxu0
    %v3844 = vadd.f32 0.0, %v3843
    %v3845 = vpop.f32.mrb[0].mxu0
    %v3846 = vpop.f32.mrb[0].mxu0
    %v3847 = vadd.f32 0.0, %v3846
    %v3848 = vpop.f32.mrb[0].mxu0
    %3849 = vmatprep.mubr.bf16.mxu0 0
    %3850 = vmatmul.mubr.bf16.gmra.mrb[0].mxu0 %v3657
    %v3851 = vpop.f32.mrb[0].mxu0
    %v3852 = vadd.f32 0.0, %v3851
    %v3853 = vpop.f32.mrb[0].mxu0
    %v3854 = vpop.f32.mrb[0].mxu0
    %v3855 = vadd.f32 0.0, %v3854
    %v3856 = vpop.f32.mrb[0].mxu0
    %3857 = vmatprep.mubr.bf16.mxu0 0
    %3858 = vmatmul.mubr.bf16.gmra.mrb[0].mxu0 %v3660
    %v3859 = vpop.f32.mrb[0].mxu0
    %v3860 = vadd.f32 0.0, %v3859
    %v3861 = vpop.f32.mrb[0].mxu0
    %v3862 = vpop.f32.mrb[0].mxu0
    %v3863 = vadd.f32 0.0, %v3862
    %v3864 = vpop.f32.mrb[0].mxu0
    %3865 = vmatprep.mubr.bf16.mxu0 0
    %3866 = vmatmul.mubr.bf16.gmra.mrb[0].mxu0 %v3663
    %v3867 = vpop.f32.mrb[0].mxu0
    %v3868 = vadd.f32 0.0, %v3867
    %v3869 = vpop.f32.mrb[0].mxu0
    %v3870 = vpop.f32.mrb[0].mxu0
    %v3871 = vadd.f32 0.0, %v3870
    %v3872 = vpop.f32.mrb[0].mxu0
    %3873 = vmatprep.mubr.bf16.mxu0 0
    %3874 = vmatmul.mubr.bf16.gmra.mrb[0].mxu0 %v3666
    %v3875 = vpop.f32.mrb[0].mxu0
    %v3876 = vadd.f32 0.0, %v3875
    %v3877 = vpop.f32.mrb[0].mxu0
    %v3878 = vpop.f32.mrb[0].mxu0
    %v3879 = vadd.f32 0.0, %v3878
    %v3880 = vpop.f32.mrb[0].mxu0
    %3881 = vmatprep.mubr.bf16.mxu0 0
    %3882 = vmatmul.mubr.bf16.gmra.mrb[0].mxu0 %v3669
    %v3883 = vpop.f32.mrb[0].mxu0
    %v3884 = vadd.f32 0.0, %v3883
    %v3885 = vpop.f32.mrb[0].mxu0
    %v3886 = vpop.f32.mrb[0].mxu0
    %v3887 = vadd.f32 0.0, %v3886
    %v3888 = vpop.f32.mrb[0].mxu0
    %3889 = vmatprep.mubr.bf16.mxu0 0
    %3890 = vmatmul.mubr.bf16.gmra.mrb[0].mxu0 %v3672
    %v3891 = vpop.f32.mrb[0].mxu0
    %v3892 = vadd.f32 0.0, %v3891
    %v3893 = vpop.f32.mrb[0].mxu0
    %v3894 = vpop.f32.mrb[0].mxu0
    %v3895 = vadd.f32 0.0, %v3894
    %v3896 = vpop.f32.mrb[0].mxu0
    %3897 = vmatprep.mubr.bf16.mxu0 0
    %3898 = vmatmul.mubr.bf16.gmra.mrb[0].mxu0 %v3675
    %v3899 = vpop.f32.mrb[0].mxu0
    %v3900 = vadd.f32 0.0, %v3899
    %v3901 = vpop.f32.mrb[0].mxu0
    %v3902 = vpop.f32.mrb[0].mxu0
    %v3903 = vadd.f32 0.0, %v3902
    %v3904 = vpop.f32.mrb[0].mxu0
    %3905 = vmatprep.mubr.bf16.mxu0 0
    %3906 = vmatmul.mubr.bf16.gmra.mrb[0].mxu0 %v3678
    %v3907 = vpop.f32.mrb[0].mxu0
    %v3908 = vadd.f32 0.0, %v3907
    %v3909 = vpop.f32.mrb[0].mxu0
    %v3910 = vpop.f32.mrb[0].mxu0
    %v3911 = vadd.f32 0.0, %v3910
    %v3912 = vpop.f32.mrb[0].mxu0
    %3913 = vmatprep.mubr.bf16.mxu0 0
    %3914 = vmatmul.mubr.bf16.gmra.mrb[0].mxu0 %v3681
    %v3915 = vpop.f32.mrb[0].mxu0
    %v3916 = vadd.f32 0.0, %v3915
    %v3917 = vpop.f32.mrb[0].mxu0
    %v3918 = vpop.f32.mrb[0].mxu0
    %v3919 = vadd.f32 0.0, %v3918
    %v3920 = vpop.f32.mrb[0].mxu0
    %3921 = vmatprep.mubr.bf16.mxu0 0
    %3922 = vmatmul.mubr.bf16.gmra.mrb[0].mxu0 %v3684
    %v3923 = vpop.f32.mrb[0].mxu0
    %v3924 = vadd.f32 0.0, %v3923
    %v3925 = vpop.f32.mrb[0].mxu0
    %v3926 = vpop.f32.mrb[0].mxu0
    %v3927 = vadd.f32 0.0, %v3926
    %v3928 = vpop.f32.mrb[0].mxu0
    %3929 = vmatprep.mubr.bf16.mxu0 0
    %3930 = vmatmul.mubr.bf16.gmra.mrb[0].mxu0 %v3687
    %v3931 = vpop.f32.mrb[0].mxu0
    %v3932 = vadd.f32 0.0, %v3931
    %v3933 = vpop.f32.mrb[0].mxu0
    %v3934 = vpop.f32.mrb[0].mxu0
    %v3935 = vadd.f32 0.0, %v3934
    %v3936 = vpop.f32.mrb[0].mxu0
    %3937 = vmatprep.mubr.bf16.mxu0 0
    %3938 = vmatmul.mubr.bf16.gmra.mrb[0].mxu0 %v3690
    %v3939 = vpop.f32.mrb[0].mxu0
    %v3940 = vadd.f32 0.0, %v3939
    %v3941 = vpop.f32.mrb[0].mxu0
    %v3942 = vpop.f32.mrb[0].mxu0
    %v3943 = vadd.f32 0.0, %v3942
    %v3944 = vpop.f32.mrb[0].mxu0
    %3945 = vmatprep.mubr.bf16.mxu0 0
    %3946 = vmatmul.mubr.bf16.gmra.mrb[0].mxu0 %v3693
    %v3947 = vpop.f32.mrb[0].mxu0
    %v3948 = vadd.f32 0.0, %v3947
    %v3949 = vpop.f32.mrb[0].mxu0
    %v3950 = vpop.f32.mrb[0].mxu0
    %v3951 = vadd.f32 0.0, %v3950
    %v3952 = vpop.f32.mrb[0].mxu0
    %3953 = vmatprep.mubr.bf16.mxu0 0
    %3954 = vmatmul.mubr.bf16.gmra.mrb[0].mxu0 %v3696
    %v3955 = vpop.f32.mrb[0].mxu0
    %v3956 = vadd.f32 0.0, %v3955
    %v3957 = vpop.f32.mrb[0].mxu0
    %v3958 = vpop.f32.mrb[0].mxu0
    %v3959 = vadd.f32 0.0, %v3958
    %v3960 = vpop.f32.mrb[0].mxu0
    %3961 = vmatprep.mubr.bf16.mxu0 0
    %3962 = vmatmul.mubr.bf16.gmra.mrb[0].mxu0 %v3699
    %v3963 = vpop.f32.mrb[0].mxu0
    %v3964 = vadd.f32 0.0, %v3963
    %v3965 = vpop.f32.mrb[0].mxu0
    %v3966 = vpop.f32.mrb[0].mxu0
    %v3967 = vadd.f32 0.0, %v3966
    %v3968 = vpop.f32.mrb[0].mxu0
    %3969 = vmatprep.mubr.bf16.mxu0 0
    %3970 = vmatmul.mubr.bf16.gmra.mrb[0].mxu0 %v3702
    %v3971 = vpop.f32.mrb[0].mxu0
    %v3972 = vadd.f32 0.0, %v3971
    %v3973 = vpop.f32.mrb[0].mxu0
    %v3974 = vpop.f32.mrb[0].mxu0
    %v3975 = vadd.f32 0.0, %v3974
    %v3976 = vpop.f32.mrb[0].mxu0
    %3977 = vmatprep.mubr.bf16.mxu0 0
    %3978 = vmatmul.mubr.bf16.gmra.mrb[0].mxu0 %v3705
    %v3979 = vpop.f32.mrb[0].mxu0
    %v3980 = vadd.f32 0.0, %v3979
    %v3981 = vpop.f32.mrb[0].mxu0
    %v3982 = vpop.f32.mrb[0].mxu0
    %v3983 = vadd.f32 0.0, %v3982
    %v3984 = vpop.f32.mrb[0].mxu0
    %3985 = vmatprep.mubr.bf16.mxu0 0
    %3986 = vmatmul.mubr.bf16.gmra.mrb[0].mxu0 %v3708
    %v3987 = vpop.f32.mrb[0].mxu0
    %v3988 = vadd.f32 0.0, %v3987
    %v3989 = vpop.f32.mrb[0].mxu0
    %v3990 = vpop.f32.mrb[0].mxu0
    %v3991 = vadd.f32 0.0, %v3990
    %v3992 = vpop.f32.mrb[0].mxu0
    %3993 = vmatprep.mubr.bf16.mxu0 0
    %3994 = vmatmul.mubr.bf16.gmra.mrb[0].mxu0 %v3711
    %v3995 = vpop.f32.mrb[0].mxu0
    %v3996 = vadd.f32 0.0, %v3995
    %v3997 = vpop.f32.mrb[0].mxu0
    %v3998 = vpop.f32.mrb[0].mxu0
    %v3999 = vadd.f32 0.0, %v3998
    %v4000 = vpop.f32.mrb[0].mxu0
    %4001 = vdwg.mxu0
    %v4002 = vadd.f32 %v3424, %v3748
    %v4003 = vadd.f32 %v3425, %v3751
    %v4004 = vadd.f32 %v3426, %v3756
    %v4005 = vadd.f32 %v3427, %v3759
    %v4006 = vadd.f32 %v3428, %v3764
    %v4007 = vadd.f32 %v3429, %v3767
    %v4008 = vadd.f32 %v3430, %v3772
    %v4009 = vadd.f32 %v3431, %v3775
    %v4010 = vadd.f32 %v3432, %v3780
    %v4011 = vadd.f32 %v3433, %v3783
    %v4012 = vadd.f32 %v3434, %v3788
    %v4013 = vadd.f32 %v3435, %v3791
    %v4014 = vadd.f32 %v3436, %v3796
    %v4015 = vadd.f32 %v3437, %v3799
    %v4016 = vadd.f32 %v3438, %v3804
    %v4017 = vadd.f32 %v3439, %v3807
    %v4018 = vadd.f32 %v3440, %v3812
    %v4019 = vadd.f32 %v3441, %v3815
    %v4020 = vadd.f32 %v3442, %v3820
    %v4021 = vadd.f32 %v3443, %v3823
    %v4022 = vadd.f32 %v3444, %v3828
    %v4023 = vadd.f32 %v3445, %v3831
    %v4024 = vadd.f32 %v3446, %v3836
    %v4025 = vadd.f32 %v3447, %v3839
    %v4026 = vadd.f32 %v3448, %v3844
    %v4027 = vadd.f32 %v3449, %v3847
    %v4028 = vadd.f32 %v3450, %v3852
    %v4029 = vadd.f32 %v3451, %v3855
    %v4030 = vadd.f32 %v3452, %v3860
    %v4031 = vadd.f32 %v3453, %v3863
    %v4032 = vadd.f32 %v3454, %v3868
    %v4033 = vadd.f32 %v3455, %v3871
    %v4034 = vadd.f32 %v3456, %v3876
    %v4035 = vadd.f32 %v3457, %v3879
    %v4036 = vadd.f32 %v3458, %v3884
    %v4037 = vadd.f32 %v3459, %v3887
    %v4038 = vadd.f32 %v3460, %v3892
    %v4039 = vadd.f32 %v3461, %v3895
    %v4040 = vadd.f32 %v3462, %v3900
    %v4041 = vadd.f32 %v3463, %v3903
    %v4042 = vadd.f32 %v3464, %v3908
    %v4043 = vadd.f32 %v3465, %v3911
    %v4044 = vadd.f32 %v3466, %v3916
    %v4045 = vadd.f32 %v3467, %v3919
    %v4046 = vadd.f32 %v3468, %v3924
    %v4047 = vadd.f32 %v3469, %v3927
    %v4048 = vadd.f32 %v3470, %v3932
    %v4049 = vadd.f32 %v3471, %v3935
    %v4050 = vadd.f32 %v3472, %v3940
    %v4051 = vadd.f32 %v3473, %v3943
    %v4052 = vadd.f32 %v3474, %v3948
    %v4053 = vadd.f32 %v3475, %v3951
    %v4054 = vadd.f32 %v3476, %v3956
    %v4055 = vadd.f32 %v3477, %v3959
    %v4056 = vadd.f32 %v3478, %v3964
    %v4057 = vadd.f32 %v3479, %v3967
    %v4058 = vadd.f32 %v3480, %v3972
    %v4059 = vadd.f32 %v3481, %v3975
    %v4060 = vadd.f32 %v3482, %v3980
    %v4061 = vadd.f32 %v3483, %v3983
    %v4062 = vadd.f32 %v3484, %v3988
    %v4063 = vadd.f32 %v3485, %v3991
    %v4064 = vadd.f32 %v3486, %v3996
    %v4065 = vadd.f32 %v3487, %v3999
    %v4066 = vld [vmem:[%s1240 + $0x2] sm:$0xff]
    %v4067 = vld [vmem:[%s1240 + $0xa] sm:$0xff]
    %v4068 = vld [vmem:[%s1240 + $0x1a] sm:$0xff]
    %v4069 = vld [vmem:[%s1240 + $0x22] sm:$0xff]
    %v4070 = vld [vmem:[%s1240 + $0x32] sm:$0xff]
    %v4071 = vld [vmem:[%s1240 + $0x3a] sm:$0xff]
    %v4072 = vld [vmem:[%s1240 + $0x4a] sm:$0xff]
    %v4073 = vld [vmem:[%s1240 + $0x52] sm:$0xff]
    %v4074 = vld [vmem:[%s1240 + $0x62] sm:$0xff]
    %v4075 = vld [vmem:[%s1240 + $0x6a] sm:$0xff]
    %v4076 = vld [vmem:[%s1240 + $0x7a] sm:$0xff]
    %v4077 = vld [vmem:[%s1240 + $0x82] sm:$0xff]
    %v4078 = vld [vmem:[%s1240 + $0x92] sm:$0xff]
    %v4079 = vld [vmem:[%s1240 + $0x9a] sm:$0xff]
    %v4080 = vld [vmem:[%s1240 + $0xaa] sm:$0xff]
    %v4081 = vld [vmem:[%s1240 + $0xb2] sm:$0xff]
    %v4082 = vld [vmem:[%s1240 + $0xc2] sm:$0xff]
    %v4083 = vld [vmem:[%s1240 + $0xca] sm:$0xff]
    %v4084 = vld [vmem:[%s1240 + $0xda] sm:$0xff]
    %v4085 = vld [vmem:[%s1240 + $0xe2] sm:$0xff]
    %v4086 = vld [vmem:[%s1240 + $0xf2] sm:$0xff]
    %v4087 = vld [vmem:[%s1240 + $0xfa] sm:$0xff]
    %v4088 = vld [vmem:[%s1240 + $0x10a] sm:$0xff]
    %v4089 = vld [vmem:[%s1240 + $0x112] sm:$0xff]
    %v4090 = vld [vmem:[%s1240 + $0x122] sm:$0xff]
    %v4091 = vld [vmem:[%s1240 + $0x12a] sm:$0xff]
    %v4092 = vld [vmem:[%s1240 + $0x13a] sm:$0xff]
    %v4093 = vld [vmem:[%s1240 + $0x142] sm:$0xff]
    %v4094 = vld [vmem:[%s1240 + $0x152] sm:$0xff]
    %v4095 = vld [vmem:[%s1240 + $0x15a] sm:$0xff]
    %v4096 = vld [vmem:[%s1240 + $0x16a] sm:$0xff]
    %v4097 = vld [vmem:[%s1240 + $0x172] sm:$0xff]
    %v4098 = vld [vmem:[%s1240 + $0x1b2] sm:$0xff]
    %v4099 = vld [vmem:[%s1240 + $0x1ba] sm:$0xff]
    %v4100 = vld [vmem:[%s1240 + $0x1ca] sm:$0xff]
    %v4101 = vld [vmem:[%s1240 + $0x1d2] sm:$0xff]
    %v4102 = vld [vmem:[%s1240 + $0x1e2] sm:$0xff]
    %v4103 = vld [vmem:[%s1240 + $0x1ea] sm:$0xff]
    %v4104 = vld [vmem:[%s1240 + $0x1fa] sm:$0xff]
    %v4105 = vld [vmem:[%s1240 + $0x202] sm:$0xff]
    %v4106 = vld [vmem:[%s1240 + $0x212] sm:$0xff]
    %v4107 = vld [vmem:[%s1240 + $0x21a] sm:$0xff]
    %v4108 = vld [vmem:[%s1240 + $0x22a] sm:$0xff]
    %v4109 = vld [vmem:[%s1240 + $0x232] sm:$0xff]
    %v4110 = vld [vmem:[%s1240 + $0x242] sm:$0xff]
    %v4111 = vld [vmem:[%s1240 + $0x24a] sm:$0xff]
    %v4112 = vld [vmem:[%s1240 + $0x25a] sm:$0xff]
    %v4113 = vld [vmem:[%s1240 + $0x262] sm:$0xff]
    %v4114 = vld [vmem:[%s1240 + $0x272] sm:$0xff]
    %v4115 = vld [vmem:[%s1240 + $0x27a] sm:$0xff]
    %v4116 = vld [vmem:[%s1240 + $0x28a] sm:$0xff]
    %v4117 = vld [vmem:[%s1240 + $0x292] sm:$0xff]
    %v4118 = vld [vmem:[%s1240 + $0x2a2] sm:$0xff]
    %v4119 = vld [vmem:[%s1240 + $0x2aa] sm:$0xff]
    %v4120 = vld [vmem:[%s1240 + $0x2ba] sm:$0xff]
    %v4121 = vld [vmem:[%s1240 + $0x2c2] sm:$0xff]
    %v4122 = vld [vmem:[%s1240 + $0x2d2] sm:$0xff]
    %v4123 = vld [vmem:[%s1240 + $0x2da] sm:$0xff]
    %v4124 = vld [vmem:[%s1240 + $0x2ea] sm:$0xff]
    %v4125 = vld [vmem:[%s1240 + $0x2f2] sm:$0xff]
    %v4126 = vld [vmem:[%s1240 + $0x302] sm:$0xff]
    %v4127 = vld [vmem:[%s1240 + $0x30a] sm:$0xff]
    %v4128 = vld [vmem:[%s1240 + $0x31a] sm:$0xff]
    %v4129 = vld [vmem:[%s1240 + $0x322] sm:$0xff]
    %v4130 = vpack.c.bf16 %v4067, %v4066
    %v4131 = vpack.c.bf16 %v4069, %v4068
    %v4132 = vpack.c.bf16 %v4071, %v4070
    %v4133 = vpack.c.bf16 %v4073, %v4072
    %v4134 = vpack.c.bf16 %v4075, %v4074
    %v4135 = vpack.c.bf16 %v4077, %v4076
    %v4136 = vpack.c.bf16 %v4079, %v4078
    %v4137 = vpack.c.bf16 %v4081, %v4080
    %v4138 = vpack.c.bf16 %v4083, %v4082
    %v4139 = vpack.c.bf16 %v4085, %v4084
    %v4140 = vpack.c.bf16 %v4087, %v4086
    %v4141 = vpack.c.bf16 %v4089, %v4088
    %v4142 = vpack.c.bf16 %v4091, %v4090
    %v4143 = vpack.c.bf16 %v4093, %v4092
    %v4144 = vpack.c.bf16 %v4095, %v4094
    %v4145 = vpack.c.bf16 %v4097, %v4096
    %v4146 = vpack.c.bf16 %v4099, %v4098
    %v4147 = vpack.c.bf16 %v4101, %v4100
    %v4148 = vpack.c.bf16 %v4103, %v4102
    %v4149 = vpack.c.bf16 %v4105, %v4104
    %v4150 = vpack.c.bf16 %v4107, %v4106
    %v4151 = vpack.c.bf16 %v4109, %v4108
    %v4152 = vpack.c.bf16 %v4111, %v4110
    %v4153 = vpack.c.bf16 %v4113, %v4112
    %v4154 = vpack.c.bf16 %v4115, %v4114
    %v4155 = vpack.c.bf16 %v4117, %v4116
    %v4156 = vpack.c.bf16 %v4119, %v4118
    %v4157 = vpack.c.bf16 %v4121, %v4120
    %v4158 = vpack.c.bf16 %v4123, %v4122
    %v4159 = vpack.c.bf16 %v4125, %v4124
    %v4160 = vpack.c.bf16 %v4127, %v4126
    %v4161 = vpack.c.bf16 %v4129, %v4128
    %s4162 = scalar_lea.vmem [#allocation8], 160
    %v4163 = vld [vmem:[%s4162] sm:$0xf]
    %v4164 = vld [vmem:[%s4162 + $0x4] sm:$0xf]
    %v4165 = vld [vmem:[%s4162 + $0x8] sm:$0xf]
    %v4166 = vld [vmem:[%s4162 + $0xc] sm:$0xf]
    %v4167 = vld [vmem:[%s4162 + $0x10] sm:$0xf]
    %v4168 = vld [vmem:[%s4162 + $0x14] sm:$0xf]
    %v4169 = vld [vmem:[%s4162 + $0x18] sm:$0xf]
    %v4170 = vld [vmem:[%s4162 + $0x1c] sm:$0xf]
    %v4179 = vunpack.c.l.b16 %v4163
    %v4180 = vunpack.c.l.b16 %v4164
    %v4181 = vunpack.c.l.b16 %v4165
    %v4182 = vunpack.c.l.b16 %v4166
    %v4183 = vunpack.c.l.b16 %v4167
    %v4184 = vunpack.c.l.b16 %v4168
    %v4185 = vunpack.c.l.b16 %v4169
    %v4186 = vunpack.c.l.b16 %v4170
    %v4187 = vpack.c.b16 %v4180, %v4179
    %v4188 = vpack.c.b16 %v4182, %v4181
    %v4189 = vpack.c.b16 %v4184, %v4183
    %v4190 = vpack.c.b16 %v4186, %v4185
    %v4196 = vsel %vm218, %v4130, 0
    %v4199 = vsel %vm218, %v4131, 0
    %v4202 = vsel %vm218, %v4132, 0
    %v4205 = vsel %vm218, %v4133, 0
    %v4208 = vsel %vm218, %v4134, 0
    %v4211 = vsel %vm218, %v4135, 0
    %v4214 = vsel %vm218, %v4136, 0
    %v4217 = vsel %vm218, %v4137, 0
    %v4220 = vsel %vm218, %v4138, 0
    %v4223 = vsel %vm218, %v4139, 0
    %v4226 = vsel %vm218, %v4140, 0
    %v4229 = vsel %vm218, %v4141, 0
    %v4232 = vsel %vm218, %v4142, 0
    %v4235 = vsel %vm218, %v4143, 0
    %v4238 = vsel %vm218, %v4144, 0
    %v4241 = vsel %vm218, %v4145, 0
    %v4244 = vsel %vm218, %v4146, 0
    %v4247 = vsel %vm218, %v4147, 0
    %v4250 = vsel %vm218, %v4148, 0
    %v4253 = vsel %vm218, %v4149, 0
    %v4256 = vsel %vm218, %v4150, 0
    %v4259 = vsel %vm218, %v4151, 0
    %v4262 = vsel %vm218, %v4152, 0
    %v4265 = vsel %vm218, %v4153, 0
    %v4268 = vsel %vm218, %v4154, 0
    %v4271 = vsel %vm218, %v4155, 0
    %v4274 = vsel %vm218, %v4156, 0
    %v4277 = vsel %vm218, %v4157, 0
    %v4280 = vsel %vm218, %v4158, 0
    %v4283 = vsel %vm218, %v4159, 0
    %v4286 = vsel %vm218, %v4160, 0
    %v4289 = vsel %vm218, %v4161, 0
    %4291 = vmatprep.subr.bf16.mxu0 0
    %4292 = vmatpush1.bf16.msra.mxu0 %v4187
    %4293 = vmatprep.subr.bf16.mxu0 0
    %4294 = vmatpush1.bf16.msra.mxu0 %v4188
    %4295 = vmatprep.subr.bf16.mxu0 0
    %4296 = vmatpush1.bf16.msra.mxu0 %v4189
    %4297 = vmatprep.subr.bf16.mxu0 0
    %4298 = vmatpush1.bf16.msra.mxu0 %v4190
    %4299 = vmatprep.subr.bf16.mxu0 0
    %4300 = vmatpush1.bf16.msra.mxu0 0
    %4301 = vmatprep.subr.bf16.mxu0 0
    %4302 = vmatpush1.bf16.msra.mxu0 0
    %4303 = vmatprep.subr.bf16.mxu0 0
    %4304 = vmatpush1.bf16.msra.mxu0 0
    %4305 = vmatprep.subr.bf16.mxu0 0
    %4306 = vmatpush1.bf16.msra.mxu0 0
    %4307 = vmatprep.subr.bf16.mxu0 0
    %4308 = vmatpush1.bf16.msra.mxu0 0
    %4309 = vmatprep.subr.bf16.mxu0 0
    %4310 = vmatpush1.bf16.msra.mxu0 0
    %4311 = vmatprep.subr.bf16.mxu0 0
    %4312 = vmatpush1.bf16.msra.mxu0 0
    %4313 = vmatprep.subr.bf16.mxu0 0
    %4314 = vmatpush1.bf16.msra.mxu0 0
    %4315 = vmatprep.subr.bf16.mxu0 0
    %4316 = vmatpush1.bf16.msra.mxu0 0
    %4317 = vmatprep.subr.bf16.mxu0 0
    %4318 = vmatpush1.bf16.msra.mxu0 0
    %4319 = vmatprep.subr.bf16.mxu0 0
    %4320 = vmatpush1.bf16.msra.mxu0 0
    %4321 = vmatprep.subr.bf16.mxu0 0
    %4322 = vmatpush1.bf16.msra.mxu0 0
    %4323 = vmatprep.mubr.bf16.mxu0 0
    %4324 = vmatmul.mubr.bf16.gmra.mrb[0].mxu0 %v4196
    %v4325 = vpop.f32.mrb[0].mxu0
    %v4326 = vadd.f32 0.0, %v4325
    %v4327 = vpop.f32.mrb[0].mxu0
    %v4328 = vpop.f32.mrb[0].mxu0
    %v4329 = vadd.f32 0.0, %v4328
    %v4330 = vpop.f32.mrb[0].mxu0
    %4331 = vmatprep.mubr.bf16.mxu0 0
    %4332 = vmatmul.mubr.bf16.gmra.mrb[0].mxu0 %v4199
    %v4333 = vpop.f32.mrb[0].mxu0
    %v4334 = vadd.f32 0.0, %v4333
    %v4335 = vpop.f32.mrb[0].mxu0
    %v4336 = vpop.f32.mrb[0].mxu0
    %v4337 = vadd.f32 0.0, %v4336
    %v4338 = vpop.f32.mrb[0].mxu0
    %4339 = vmatprep.mubr.bf16.mxu0 0
    %4340 = vmatmul.mubr.bf16.gmra.mrb[0].mxu0 %v4202
    %v4341 = vpop.f32.mrb[0].mxu0
    %v4342 = vadd.f32 0.0, %v4341
    %v4343 = vpop.f32.mrb[0].mxu0
    %v4344 = vpop.f32.mrb[0].mxu0
    %v4345 = vadd.f32 0.0, %v4344
    %v4346 = vpop.f32.mrb[0].mxu0
    %4347 = vmatprep.mubr.bf16.mxu0 0
    %4348 = vmatmul.mubr.bf16.gmra.mrb[0].mxu0 %v4205
    %v4349 = vpop.f32.mrb[0].mxu0
    %v4350 = vadd.f32 0.0, %v4349
    %v4351 = vpop.f32.mrb[0].mxu0
    %v4352 = vpop.f32.mrb[0].mxu0
    %v4353 = vadd.f32 0.0, %v4352
    %v4354 = vpop.f32.mrb[0].mxu0
    %4355 = vmatprep.mubr.bf16.mxu0 0
    %4356 = vmatmul.mubr.bf16.gmra.mrb[0].mxu0 %v4208
    %v4357 = vpop.f32.mrb[0].mxu0
    %v4358 = vadd.f32 0.0, %v4357
    %v4359 = vpop.f32.mrb[0].mxu0
    %v4360 = vpop.f32.mrb[0].mxu0
    %v4361 = vadd.f32 0.0, %v4360
    %v4362 = vpop.f32.mrb[0].mxu0
    %4363 = vmatprep.mubr.bf16.mxu0 0
    %4364 = vmatmul.mubr.bf16.gmra.mrb[0].mxu0 %v4211
    %v4365 = vpop.f32.mrb[0].mxu0
    %v4366 = vadd.f32 0.0, %v4365
    %v4367 = vpop.f32.mrb[0].mxu0
    %v4368 = vpop.f32.mrb[0].mxu0
    %v4369 = vadd.f32 0.0, %v4368
    %v4370 = vpop.f32.mrb[0].mxu0
    %4371 = vmatprep.mubr.bf16.mxu0 0
    %4372 = vmatmul.mubr.bf16.gmra.mrb[0].mxu0 %v4214
    %v4373 = vpop.f32.mrb[0].mxu0
    %v4374 = vadd.f32 0.0, %v4373
    %v4375 = vpop.f32.mrb[0].mxu0
    %v4376 = vpop.f32.mrb[0].mxu0
    %v4377 = vadd.f32 0.0, %v4376
    %v4378 = vpop.f32.mrb[0].mxu0
    %4379 = vmatprep.mubr.bf16.mxu0 0
    %4380 = vmatmul.mubr.bf16.gmra.mrb[0].mxu0 %v4217
    %v4381 = vpop.f32.mrb[0].mxu0
    %v4382 = vadd.f32 0.0, %v4381
    %v4383 = vpop.f32.mrb[0].mxu0
    %v4384 = vpop.f32.mrb[0].mxu0
    %v4385 = vadd.f32 0.0, %v4384
    %v4386 = vpop.f32.mrb[0].mxu0
    %4387 = vmatprep.mubr.bf16.mxu0 0
    %4388 = vmatmul.mubr.bf16.gmra.mrb[0].mxu0 %v4220
    %v4389 = vpop.f32.mrb[0].mxu0
    %v4390 = vadd.f32 0.0, %v4389
    %v4391 = vpop.f32.mrb[0].mxu0
    %v4392 = vpop.f32.mrb[0].mxu0
    %v4393 = vadd.f32 0.0, %v4392
    %v4394 = vpop.f32.mrb[0].mxu0
    %4395 = vmatprep.mubr.bf16.mxu0 0
    %4396 = vmatmul.mubr.bf16.gmra.mrb[0].mxu0 %v4223
    %v4397 = vpop.f32.mrb[0].mxu0
    %v4398 = vadd.f32 0.0, %v4397
    %v4399 = vpop.f32.mrb[0].mxu0
    %v4400 = vpop.f32.mrb[0].mxu0
    %v4401 = vadd.f32 0.0, %v4400
    %v4402 = vpop.f32.mrb[0].mxu0
    %4403 = vmatprep.mubr.bf16.mxu0 0
    %4404 = vmatmul.mubr.bf16.gmra.mrb[0].mxu0 %v4226
    %v4405 = vpop.f32.mrb[0].mxu0
    %v4406 = vadd.f32 0.0, %v4405
    %v4407 = vpop.f32.mrb[0].mxu0
    %v4408 = vpop.f32.mrb[0].mxu0
    %v4409 = vadd.f32 0.0, %v4408
    %v4410 = vpop.f32.mrb[0].mxu0
    %4411 = vmatprep.mubr.bf16.mxu0 0
    %4412 = vmatmul.mubr.bf16.gmra.mrb[0].mxu0 %v4229
    %v4413 = vpop.f32.mrb[0].mxu0
    %v4414 = vadd.f32 0.0, %v4413
    %v4415 = vpop.f32.mrb[0].mxu0
    %v4416 = vpop.f32.mrb[0].mxu0
    %v4417 = vadd.f32 0.0, %v4416
    %v4418 = vpop.f32.mrb[0].mxu0
    %4419 = vmatprep.mubr.bf16.mxu0 0
    %4420 = vmatmul.mubr.bf16.gmra.mrb[0].mxu0 %v4232
    %v4421 = vpop.f32.mrb[0].mxu0
    %v4422 = vadd.f32 0.0, %v4421
    %v4423 = vpop.f32.mrb[0].mxu0
    %v4424 = vpop.f32.mrb[0].mxu0
    %v4425 = vadd.f32 0.0, %v4424
    %v4426 = vpop.f32.mrb[0].mxu0
    %4427 = vmatprep.mubr.bf16.mxu0 0
    %4428 = vmatmul.mubr.bf16.gmra.mrb[0].mxu0 %v4235
    %v4429 = vpop.f32.mrb[0].mxu0
    %v4430 = vadd.f32 0.0, %v4429
    %v4431 = vpop.f32.mrb[0].mxu0
    %v4432 = vpop.f32.mrb[0].mxu0
    %v4433 = vadd.f32 0.0, %v4432
    %v4434 = vpop.f32.mrb[0].mxu0
    %4435 = vmatprep.mubr.bf16.mxu0 0
    %4436 = vmatmul.mubr.bf16.gmra.mrb[0].mxu0 %v4238
    %v4437 = vpop.f32.mrb[0].mxu0
    %v4438 = vadd.f32 0.0, %v4437
    %v4439 = vpop.f32.mrb[0].mxu0
    %v4440 = vpop.f32.mrb[0].mxu0
    %v4441 = vadd.f32 0.0, %v4440
    %v4442 = vpop.f32.mrb[0].mxu0
    %4443 = vmatprep.mubr.bf16.mxu0 0
    %4444 = vmatmul.mubr.bf16.gmra.mrb[0].mxu0 %v4241
    %v4445 = vpop.f32.mrb[0].mxu0
    %v4446 = vadd.f32 0.0, %v4445
    %v4447 = vpop.f32.mrb[0].mxu0
    %v4448 = vpop.f32.mrb[0].mxu0
    %v4449 = vadd.f32 0.0, %v4448
    %v4450 = vpop.f32.mrb[0].mxu0
    %4451 = vmatprep.mubr.bf16.mxu0 0
    %4452 = vmatmul.mubr.bf16.gmra.mrb[0].mxu0 %v4244
    %v4453 = vpop.f32.mrb[0].mxu0
    %v4454 = vadd.f32 0.0, %v4453
    %v4455 = vpop.f32.mrb[0].mxu0
    %v4456 = vpop.f32.mrb[0].mxu0
    %v4457 = vadd.f32 0.0, %v4456
    %v4458 = vpop.f32.mrb[0].mxu0
    %4459 = vmatprep.mubr.bf16.mxu0 0
    %4460 = vmatmul.mubr.bf16.gmra.mrb[0].mxu0 %v4247
    %v4461 = vpop.f32.mrb[0].mxu0
    %v4462 = vadd.f32 0.0, %v4461
    %v4463 = vpop.f32.mrb[0].mxu0
    %v4464 = vpop.f32.mrb[0].mxu0
    %v4465 = vadd.f32 0.0, %v4464
    %v4466 = vpop.f32.mrb[0].mxu0
    %4467 = vmatprep.mubr.bf16.mxu0 0
    %4468 = vmatmul.mubr.bf16.gmra.mrb[0].mxu0 %v4250
    %v4469 = vpop.f32.mrb[0].mxu0
    %v4470 = vadd.f32 0.0, %v4469
    %v4471 = vpop.f32.mrb[0].mxu0
    %v4472 = vpop.f32.mrb[0].mxu0
    %v4473 = vadd.f32 0.0, %v4472
    %v4474 = vpop.f32.mrb[0].mxu0
    %4475 = vmatprep.mubr.bf16.mxu0 0
    %4476 = vmatmul.mubr.bf16.gmra.mrb[0].mxu0 %v4253
    %v4477 = vpop.f32.mrb[0].mxu0
    %v4478 = vadd.f32 0.0, %v4477
    %v4479 = vpop.f32.mrb[0].mxu0
    %v4480 = vpop.f32.mrb[0].mxu0
    %v4481 = vadd.f32 0.0, %v4480
    %v4482 = vpop.f32.mrb[0].mxu0
    %4483 = vmatprep.mubr.bf16.mxu0 0
    %4484 = vmatmul.mubr.bf16.gmra.mrb[0].mxu0 %v4256
    %v4485 = vpop.f32.mrb[0].mxu0
    %v4486 = vadd.f32 0.0, %v4485
    %v4487 = vpop.f32.mrb[0].mxu0
    %v4488 = vpop.f32.mrb[0].mxu0
    %v4489 = vadd.f32 0.0, %v4488
    %v4490 = vpop.f32.mrb[0].mxu0
    %4491 = vmatprep.mubr.bf16.mxu0 0
    %4492 = vmatmul.mubr.bf16.gmra.mrb[0].mxu0 %v4259
    %v4493 = vpop.f32.mrb[0].mxu0
    %v4494 = vadd.f32 0.0, %v4493
    %v4495 = vpop.f32.mrb[0].mxu0
    %v4496 = vpop.f32.mrb[0].mxu0
    %v4497 = vadd.f32 0.0, %v4496
    %v4498 = vpop.f32.mrb[0].mxu0
    %4499 = vmatprep.mubr.bf16.mxu0 0
    %4500 = vmatmul.mubr.bf16.gmra.mrb[0].mxu0 %v4262
    %v4501 = vpop.f32.mrb[0].mxu0
    %v4502 = vadd.f32 0.0, %v4501
    %v4503 = vpop.f32.mrb[0].mxu0
    %v4504 = vpop.f32.mrb[0].mxu0
    %v4505 = vadd.f32 0.0, %v4504
    %v4506 = vpop.f32.mrb[0].mxu0
    %4507 = vmatprep.mubr.bf16.mxu0 0
    %4508 = vmatmul.mubr.bf16.gmra.mrb[0].mxu0 %v4265
    %v4509 = vpop.f32.mrb[0].mxu0
    %v4510 = vadd.f32 0.0, %v4509
    %v4511 = vpop.f32.mrb[0].mxu0
    %v4512 = vpop.f32.mrb[0].mxu0
    %v4513 = vadd.f32 0.0, %v4512
    %v4514 = vpop.f32.mrb[0].mxu0
    %4515 = vmatprep.mubr.bf16.mxu0 0
    %4516 = vmatmul.mubr.bf16.gmra.mrb[0].mxu0 %v4268
    %v4517 = vpop.f32.mrb[0].mxu0
    %v4518 = vadd.f32 0.0, %v4517
    %v4519 = vpop.f32.mrb[0].mxu0
    %v4520 = vpop.f32.mrb[0].mxu0
    %v4521 = vadd.f32 0.0, %v4520
    %v4522 = vpop.f32.mrb[0].mxu0
    %4523 = vmatprep.mubr.bf16.mxu0 0
    %4524 = vmatmul.mubr.bf16.gmra.mrb[0].mxu0 %v4271
    %v4525 = vpop.f32.mrb[0].mxu0
    %v4526 = vadd.f32 0.0, %v4525
    %v4527 = vpop.f32.mrb[0].mxu0
    %v4528 = vpop.f32.mrb[0].mxu0
    %v4529 = vadd.f32 0.0, %v4528
    %v4530 = vpop.f32.mrb[0].mxu0
    %4531 = vmatprep.mubr.bf16.mxu0 0
    %4532 = vmatmul.mubr.bf16.gmra.mrb[0].mxu0 %v4274
    %v4533 = vpop.f32.mrb[0].mxu0
    %v4534 = vadd.f32 0.0, %v4533
    %v4535 = vpop.f32.mrb[0].mxu0
    %v4536 = vpop.f32.mrb[0].mxu0
    %v4537 = vadd.f32 0.0, %v4536
    %v4538 = vpop.f32.mrb[0].mxu0
    %4539 = vmatprep.mubr.bf16.mxu0 0
    %4540 = vmatmul.mubr.bf16.gmra.mrb[0].mxu0 %v4277
    %v4541 = vpop.f32.mrb[0].mxu0
    %v4542 = vadd.f32 0.0, %v4541
    %v4543 = vpop.f32.mrb[0].mxu0
    %v4544 = vpop.f32.mrb[0].mxu0
    %v4545 = vadd.f32 0.0, %v4544
    %v4546 = vpop.f32.mrb[0].mxu0
    %4547 = vmatprep.mubr.bf16.mxu0 0
    %4548 = vmatmul.mubr.bf16.gmra.mrb[0].mxu0 %v4280
    %v4549 = vpop.f32.mrb[0].mxu0
    %v4550 = vadd.f32 0.0, %v4549
    %v4551 = vpop.f32.mrb[0].mxu0
    %v4552 = vpop.f32.mrb[0].mxu0
    %v4553 = vadd.f32 0.0, %v4552
    %v4554 = vpop.f32.mrb[0].mxu0
    %4555 = vmatprep.mubr.bf16.mxu0 0
    %4556 = vmatmul.mubr.bf16.gmra.mrb[0].mxu0 %v4283
    %v4557 = vpop.f32.mrb[0].mxu0
    %v4558 = vadd.f32 0.0, %v4557
    %v4559 = vpop.f32.mrb[0].mxu0
    %v4560 = vpop.f32.mrb[0].mxu0
    %v4561 = vadd.f32 0.0, %v4560
    %v4562 = vpop.f32.mrb[0].mxu0
    %4563 = vmatprep.mubr.bf16.mxu0 0
    %4564 = vmatmul.mubr.bf16.gmra.mrb[0].mxu0 %v4286
    %v4565 = vpop.f32.mrb[0].mxu0
    %v4566 = vadd.f32 0.0, %v4565
    %v4567 = vpop.f32.mrb[0].mxu0
    %v4568 = vpop.f32.mrb[0].mxu0
    %v4569 = vadd.f32 0.0, %v4568
    %v4570 = vpop.f32.mrb[0].mxu0
    %4571 = vmatprep.mubr.bf16.mxu0 0
    %4572 = vmatmul.mubr.bf16.gmra.mrb[0].mxu0 %v4289
    %v4573 = vpop.f32.mrb[0].mxu0
    %v4574 = vadd.f32 0.0, %v4573
    %v4575 = vpop.f32.mrb[0].mxu0
    %v4576 = vpop.f32.mrb[0].mxu0
    %v4577 = vadd.f32 0.0, %v4576
    %v4578 = vpop.f32.mrb[0].mxu0
    %4579 = vdwg.mxu0
    %v4580 = vadd.f32 %v4002, %v4326
    %v4581 = vadd.f32 %v4003, %v4329
    %v4582 = vadd.f32 %v4004, %v4334
    %v4583 = vadd.f32 %v4005, %v4337
    %v4584 = vadd.f32 %v4006, %v4342
    %v4585 = vadd.f32 %v4007, %v4345
    %v4586 = vadd.f32 %v4008, %v4350
    %v4587 = vadd.f32 %v4009, %v4353
    %v4588 = vadd.f32 %v4010, %v4358
    %v4589 = vadd.f32 %v4011, %v4361
    %v4590 = vadd.f32 %v4012, %v4366
    %v4591 = vadd.f32 %v4013, %v4369
    %v4592 = vadd.f32 %v4014, %v4374
    %v4593 = vadd.f32 %v4015, %v4377
    %v4594 = vadd.f32 %v4016, %v4382
    %v4595 = vadd.f32 %v4017, %v4385
    %v4596 = vadd.f32 %v4018, %v4390
    %v4597 = vadd.f32 %v4019, %v4393
    %v4598 = vadd.f32 %v4020, %v4398
    %v4599 = vadd.f32 %v4021, %v4401
    %v4600 = vadd.f32 %v4022, %v4406
    %v4601 = vadd.f32 %v4023, %v4409
    %v4602 = vadd.f32 %v4024, %v4414
    %v4603 = vadd.f32 %v4025, %v4417
    %v4604 = vadd.f32 %v4026, %v4422
    %v4605 = vadd.f32 %v4027, %v4425
    %v4606 = vadd.f32 %v4028, %v4430
    %v4607 = vadd.f32 %v4029, %v4433
    %v4608 = vadd.f32 %v4030, %v4438
    %v4609 = vadd.f32 %v4031, %v4441
    %v4610 = vadd.f32 %v4032, %v4446
    %v4611 = vadd.f32 %v4033, %v4449
    %v4612 = vadd.f32 %v4034, %v4454
    %v4613 = vadd.f32 %v4035, %v4457
    %v4614 = vadd.f32 %v4036, %v4462
    %v4615 = vadd.f32 %v4037, %v4465
    %v4616 = vadd.f32 %v4038, %v4470
    %v4617 = vadd.f32 %v4039, %v4473
    %v4618 = vadd.f32 %v4040, %v4478
    %v4619 = vadd.f32 %v4041, %v4481
    %v4620 = vadd.f32 %v4042, %v4486
    %v4621 = vadd.f32 %v4043, %v4489
    %v4622 = vadd.f32 %v4044, %v4494
    %v4623 = vadd.f32 %v4045, %v4497
    %v4624 = vadd.f32 %v4046, %v4502
    %v4625 = vadd.f32 %v4047, %v4505
    %v4626 = vadd.f32 %v4048, %v4510
    %v4627 = vadd.f32 %v4049, %v4513
    %v4628 = vadd.f32 %v4050, %v4518
    %v4629 = vadd.f32 %v4051, %v4521
    %v4630 = vadd.f32 %v4052, %v4526
    %v4631 = vadd.f32 %v4053, %v4529
    %v4632 = vadd.f32 %v4054, %v4534
    %v4633 = vadd.f32 %v4055, %v4537
    %v4634 = vadd.f32 %v4056, %v4542
    %v4635 = vadd.f32 %v4057, %v4545
    %v4636 = vadd.f32 %v4058, %v4550
    %v4637 = vadd.f32 %v4059, %v4553
    %v4638 = vadd.f32 %v4060, %v4558
    %v4639 = vadd.f32 %v4061, %v4561
    %v4640 = vadd.f32 %v4062, %v4566
    %v4641 = vadd.f32 %v4063, %v4569
    %v4642 = vadd.f32 %v4064, %v4574
    %v4643 = vadd.f32 %v4065, %v4577
    %s4644 = scalar_lea.vmem [#allocation2], 48
    %v4645 = vld [vmem:[%s4644] sm:$0xff]
    %v4646 = vld [vmem:[%s4644 + $0x8] sm:$0xff]
    %v4647 = vld [vmem:[%s4644 + $0x18] sm:$0xff]
    %v4648 = vld [vmem:[%s4644 + $0x20] sm:$0xff]
    %v4649 = vld [vmem:[%s4644 + $0x30] sm:$0xff]
    %v4650 = vld [vmem:[%s4644 + $0x38] sm:$0xff]
    %v4651 = vld [vmem:[%s4644 + $0x48] sm:$0xff]
    %v4652 = vld [vmem:[%s4644 + $0x50] sm:$0xff]
    %v4653 = vld [vmem:[%s4644 + $0x60] sm:$0xff]
    %v4654 = vld [vmem:[%s4644 + $0x68] sm:$0xff]
    %v4655 = vld [vmem:[%s4644 + $0x78] sm:$0xff]
    %v4656 = vld [vmem:[%s4644 + $0x80] sm:$0xff]
    %v4657 = vld [vmem:[%s4644 + $0x90] sm:$0xff]
    %v4658 = vld [vmem:[%s4644 + $0x98] sm:$0xff]
    %v4659 = vld [vmem:[%s4644 + $0xa8] sm:$0xff]
    %v4660 = vld [vmem:[%s4644 + $0xb0] sm:$0xff]
    %v4661 = vld [vmem:[%s4644 + $0xc0] sm:$0xff]
    %v4662 = vld [vmem:[%s4644 + $0xc8] sm:$0xff]
    %v4663 = vld [vmem:[%s4644 + $0xd8] sm:$0xff]
    %v4664 = vld [vmem:[%s4644 + $0xe0] sm:$0xff]
    %v4665 = vld [vmem:[%s4644 + $0xf0] sm:$0xff]
    %v4666 = vld [vmem:[%s4644 + $0xf8] sm:$0xff]
    %v4667 = vld [vmem:[%s4644 + $0x108] sm:$0xff]
    %v4668 = vld [vmem:[%s4644 + $0x110] sm:$0xff]
    %v4669 = vld [vmem:[%s4644 + $0x120] sm:$0xff]
    %v4670 = vld [vmem:[%s4644 + $0x128] sm:$0xff]
    %v4671 = vld [vmem:[%s4644 + $0x138] sm:$0xff]
    %v4672 = vld [vmem:[%s4644 + $0x140] sm:$0xff]
    %v4673 = vld [vmem:[%s4644 + $0x150] sm:$0xff]
    %v4674 = vld [vmem:[%s4644 + $0x158] sm:$0xff]
    %v4675 = vld [vmem:[%s4644 + $0x168] sm:$0xff]
    %v4676 = vld [vmem:[%s4644 + $0x170] sm:$0xff]
    %v4677 = vld [vmem:[%s4644 + $0x1b0] sm:$0xff]
    %v4678 = vld [vmem:[%s4644 + $0x1b8] sm:$0xff]
    %v4679 = vld [vmem:[%s4644 + $0x1c8] sm:$0xff]
    %v4680 = vld [vmem:[%s4644 + $0x1d0] sm:$0xff]
    %v4681 = vld [vmem:[%s4644 + $0x1e0] sm:$0xff]
    %v4682 = vld [vmem:[%s4644 + $0x1e8] sm:$0xff]
    %v4683 = vld [vmem:[%s4644 + $0x1f8] sm:$0xff]
    %v4684 = vld [vmem:[%s4644 + $0x200] sm:$0xff]
    %v4685 = vld [vmem:[%s4644 + $0x210] sm:$0xff]
    %v4686 = vld [vmem:[%s4644 + $0x218] sm:$0xff]
    %v4687 = vld [vmem:[%s4644 + $0x228] sm:$0xff]
    %v4688 = vld [vmem:[%s4644 + $0x230] sm:$0xff]
    %v4689 = vld [vmem:[%s4644 + $0x240] sm:$0xff]
    %v4690 = vld [vmem:[%s4644 + $0x248] sm:$0xff]
    %v4691 = vld [vmem:[%s4644 + $0x258] sm:$0xff]
    %v4692 = vld [vmem:[%s4644 + $0x260] sm:$0xff]
    %v4693 = vld [vmem:[%s4644 + $0x270] sm:$0xff]
    %v4694 = vld [vmem:[%s4644 + $0x278] sm:$0xff]
    %v4695 = vld [vmem:[%s4644 + $0x288] sm:$0xff]
    %v4696 = vld [vmem:[%s4644 + $0x290] sm:$0xff]
    %v4697 = vld [vmem:[%s4644 + $0x2a0] sm:$0xff]
    %v4698 = vld [vmem:[%s4644 + $0x2a8] sm:$0xff]
    %v4699 = vld [vmem:[%s4644 + $0x2b8] sm:$0xff]
    %v4700 = vld [vmem:[%s4644 + $0x2c0] sm:$0xff]
    %v4701 = vld [vmem:[%s4644 + $0x2d0] sm:$0xff]
    %v4702 = vld [vmem:[%s4644 + $0x2d8] sm:$0xff]
    %v4703 = vld [vmem:[%s4644 + $0x2e8] sm:$0xff]
    %v4704 = vld [vmem:[%s4644 + $0x2f0] sm:$0xff]
    %v4705 = vld [vmem:[%s4644 + $0x300] sm:$0xff]
    %v4706 = vld [vmem:[%s4644 + $0x308] sm:$0xff]
    %v4707 = vld [vmem:[%s4644 + $0x318] sm:$0xff]
    %v4708 = vld [vmem:[%s4644 + $0x320] sm:$0xff]
    %v4709 = vpack.c.bf16 %v4646, %v4645
    %v4710 = vpack.c.bf16 %v4648, %v4647
    %v4711 = vpack.c.bf16 %v4650, %v4649
    %v4712 = vpack.c.bf16 %v4652, %v4651
    %v4713 = vpack.c.bf16 %v4654, %v4653
    %v4714 = vpack.c.bf16 %v4656, %v4655
    %v4715 = vpack.c.bf16 %v4658, %v4657
    %v4716 = vpack.c.bf16 %v4660, %v4659
    %v4717 = vpack.c.bf16 %v4662, %v4661
    %v4718 = vpack.c.bf16 %v4664, %v4663
    %v4719 = vpack.c.bf16 %v4666, %v4665
    %v4720 = vpack.c.bf16 %v4668, %v4667
    %v4721 = vpack.c.bf16 %v4670, %v4669
    %v4722 = vpack.c.bf16 %v4672, %v4671
    %v4723 = vpack.c.bf16 %v4674, %v4673
    %v4724 = vpack.c.bf16 %v4676, %v4675
    %v4725 = vpack.c.bf16 %v4678, %v4677
    %v4726 = vpack.c.bf16 %v4680, %v4679
    %v4727 = vpack.c.bf16 %v4682, %v4681
    %v4728 = vpack.c.bf16 %v4684, %v4683
    %v4729 = vpack.c.bf16 %v4686, %v4685
    %v4730 = vpack.c.bf16 %v4688, %v4687
    %v4731 = vpack.c.bf16 %v4690, %v4689
    %v4732 = vpack.c.bf16 %v4692, %v4691
    %v4733 = vpack.c.bf16 %v4694, %v4693
    %v4734 = vpack.c.bf16 %v4696, %v4695
    %v4735 = vpack.c.bf16 %v4698, %v4697
    %v4736 = vpack.c.bf16 %v4700, %v4699
    %v4737 = vpack.c.bf16 %v4702, %v4701
    %v4738 = vpack.c.bf16 %v4704, %v4703
    %v4739 = vpack.c.bf16 %v4706, %v4705
    %v4740 = vpack.c.bf16 %v4708, %v4707
    %s4741 = scalar_lea.vmem [#allocation8], 192
    %v4742 = vld [vmem:[%s4741] sm:$0xf]
    %v4743 = vld [vmem:[%s4741 + $0x4] sm:$0xf]
    %v4744 = vld [vmem:[%s4741 + $0x8] sm:$0xf]
    %v4745 = vld [vmem:[%s4741 + $0xc] sm:$0xf]
    %v4746 = vld [vmem:[%s4741 + $0x10] sm:$0xf]
    %v4747 = vld [vmem:[%s4741 + $0x14] sm:$0xf]
    %v4748 = vld [vmem:[%s4741 + $0x18] sm:$0xf]
    %v4749 = vld [vmem:[%s4741 + $0x1c] sm:$0xf]
    %v4758 = vunpack.c.l.b16 %v4742
    %v4759 = vunpack.c.l.b16 %v4743
    %v4760 = vunpack.c.l.b16 %v4744
    %v4761 = vunpack.c.l.b16 %v4745
    %v4762 = vunpack.c.l.b16 %v4746
    %v4763 = vunpack.c.l.b16 %v4747
    %v4764 = vunpack.c.l.b16 %v4748
    %v4765 = vunpack.c.l.b16 %v4749
    %v4766 = vpack.c.b16 %v4759, %v4758
    %v4767 = vpack.c.b16 %v4761, %v4760
    %v4768 = vpack.c.b16 %v4763, %v4762
    %v4769 = vpack.c.b16 %v4765, %v4764
    %v4775 = vsel %vm218, %v4709, 0
    %v4778 = vsel %vm218, %v4710, 0
    %v4781 = vsel %vm218, %v4711, 0
    %v4784 = vsel %vm218, %v4712, 0
    %v4787 = vsel %vm218, %v4713, 0
    %v4790 = vsel %vm218, %v4714, 0
    %v4793 = vsel %vm218, %v4715, 0
    %v4796 = vsel %vm218, %v4716, 0
    %v4799 = vsel %vm218, %v4717, 0
    %v4802 = vsel %vm218, %v4718, 0
    %v4805 = vsel %vm218, %v4719, 0
    %v4808 = vsel %vm218, %v4720, 0
    %v4811 = vsel %vm218, %v4721, 0
    %v4814 = vsel %vm218, %v4722, 0
    %v4817 = vsel %vm218, %v4723, 0
    %v4820 = vsel %vm218, %v4724, 0
    %v4823 = vsel %vm218, %v4725, 0
    %v4826 = vsel %vm218, %v4726, 0
    %v4829 = vsel %vm218, %v4727, 0
    %v4832 = vsel %vm218, %v4728, 0
    %v4835 = vsel %vm218, %v4729, 0
    %v4838 = vsel %vm218, %v4730, 0
    %v4841 = vsel %vm218, %v4731, 0
    %v4844 = vsel %vm218, %v4732, 0
    %v4847 = vsel %vm218, %v4733, 0
    %v4850 = vsel %vm218, %v4734, 0
    %v4853 = vsel %vm218, %v4735, 0
    %v4856 = vsel %vm218, %v4736, 0
    %v4859 = vsel %vm218, %v4737, 0
    %v4862 = vsel %vm218, %v4738, 0
    %v4865 = vsel %vm218, %v4739, 0
    %v4868 = vsel %vm218, %v4740, 0
    %4870 = vmatprep.subr.bf16.mxu0 0
    %4871 = vmatpush1.bf16.msra.mxu0 %v4766
    %4872 = vmatprep.subr.bf16.mxu0 0
    %4873 = vmatpush1.bf16.msra.mxu0 %v4767
    %4874 = vmatprep.subr.bf16.mxu0 0
    %4875 = vmatpush1.bf16.msra.mxu0 %v4768
    %4876 = vmatprep.subr.bf16.mxu0 0
    %4877 = vmatpush1.bf16.msra.mxu0 %v4769
    %4878 = vmatprep.subr.bf16.mxu0 0
    %4879 = vmatpush1.bf16.msra.mxu0 0
    %4880 = vmatprep.subr.bf16.mxu0 0
    %4881 = vmatpush1.bf16.msra.mxu0 0
    %4882 = vmatprep.subr.bf16.mxu0 0
    %4883 = vmatpush1.bf16.msra.mxu0 0
    %4884 = vmatprep.subr.bf16.mxu0 0
    %4885 = vmatpush1.bf16.msra.mxu0 0
    %4886 = vmatprep.subr.bf16.mxu0 0
    %4887 = vmatpush1.bf16.msra.mxu0 0
    %4888 = vmatprep.subr.bf16.mxu0 0
    %4889 = vmatpush1.bf16.msra.mxu0 0
    %4890 = vmatprep.subr.bf16.mxu0 0
    %4891 = vmatpush1.bf16.msra.mxu0 0
    %4892 = vmatprep.subr.bf16.mxu0 0
    %4893 = vmatpush1.bf16.msra.mxu0 0
    %4894 = vmatprep.subr.bf16.mxu0 0
    %4895 = vmatpush1.bf16.msra.mxu0 0
    %4896 = vmatprep.subr.bf16.mxu0 0
    %4897 = vmatpush1.bf16.msra.mxu0 0
    %4898 = vmatprep.subr.bf16.mxu0 0
    %4899 = vmatpush1.bf16.msra.mxu0 0
    %4900 = vmatprep.subr.bf16.mxu0 0
    %4901 = vmatpush1.bf16.msra.mxu0 0
    %4902 = vmatprep.mubr.bf16.mxu0 0
    %4903 = vmatmul.mubr.bf16.gmra.mrb[0].mxu0 %v4775
    %v4904 = vpop.f32.mrb[0].mxu0
    %v4905 = vadd.f32 0.0, %v4904
    %v4906 = vpop.f32.mrb[0].mxu0
    %v4907 = vpop.f32.mrb[0].mxu0
    %v4908 = vadd.f32 0.0, %v4907
    %v4909 = vpop.f32.mrb[0].mxu0
    %4910 = vmatprep.mubr.bf16.mxu0 0
    %4911 = vmatmul.mubr.bf16.gmra.mrb[0].mxu0 %v4778
    %v4912 = vpop.f32.mrb[0].mxu0
    %v4913 = vadd.f32 0.0, %v4912
    %v4914 = vpop.f32.mrb[0].mxu0
    %v4915 = vpop.f32.mrb[0].mxu0
    %v4916 = vadd.f32 0.0, %v4915
    %v4917 = vpop.f32.mrb[0].mxu0
    %4918 = vmatprep.mubr.bf16.mxu0 0
    %4919 = vmatmul.mubr.bf16.gmra.mrb[0].mxu0 %v4781
    %v4920 = vpop.f32.mrb[0].mxu0
    %v4921 = vadd.f32 0.0, %v4920
    %v4922 = vpop.f32.mrb[0].mxu0
    %v4923 = vpop.f32.mrb[0].mxu0
    %v4924 = vadd.f32 0.0, %v4923
    %v4925 = vpop.f32.mrb[0].mxu0
    %4926 = vmatprep.mubr.bf16.mxu0 0
    %4927 = vmatmul.mubr.bf16.gmra.mrb[0].mxu0 %v4784
    %v4928 = vpop.f32.mrb[0].mxu0
    %v4929 = vadd.f32 0.0, %v4928
    %v4930 = vpop.f32.mrb[0].mxu0
    %v4931 = vpop.f32.mrb[0].mxu0
    %v4932 = vadd.f32 0.0, %v4931
    %v4933 = vpop.f32.mrb[0].mxu0
    %4934 = vmatprep.mubr.bf16.mxu0 0
    %4935 = vmatmul.mubr.bf16.gmra.mrb[0].mxu0 %v4787
    %v4936 = vpop.f32.mrb[0].mxu0
    %v4937 = vadd.f32 0.0, %v4936
    %v4938 = vpop.f32.mrb[0].mxu0
    %v4939 = vpop.f32.mrb[0].mxu0
    %v4940 = vadd.f32 0.0, %v4939
    %v4941 = vpop.f32.mrb[0].mxu0
    %4942 = vmatprep.mubr.bf16.mxu0 0
    %4943 = vmatmul.mubr.bf16.gmra.mrb[0].mxu0 %v4790
    %v4944 = vpop.f32.mrb[0].mxu0
    %v4945 = vadd.f32 0.0, %v4944
    %v4946 = vpop.f32.mrb[0].mxu0
    %v4947 = vpop.f32.mrb[0].mxu0
    %v4948 = vadd.f32 0.0, %v4947
    %v4949 = vpop.f32.mrb[0].mxu0
    %4950 = vmatprep.mubr.bf16.mxu0 0
    %4951 = vmatmul.mubr.bf16.gmra.mrb[0].mxu0 %v4793
    %v4952 = vpop.f32.mrb[0].mxu0
    %v4953 = vadd.f32 0.0, %v4952
    %v4954 = vpop.f32.mrb[0].mxu0
    %v4955 = vpop.f32.mrb[0].mxu0
    %v4956 = vadd.f32 0.0, %v4955
    %v4957 = vpop.f32.mrb[0].mxu0
    %4958 = vmatprep.mubr.bf16.mxu0 0
    %4959 = vmatmul.mubr.bf16.gmra.mrb[0].mxu0 %v4796
    %v4960 = vpop.f32.mrb[0].mxu0
    %v4961 = vadd.f32 0.0, %v4960
    %v4962 = vpop.f32.mrb[0].mxu0
    %v4963 = vpop.f32.mrb[0].mxu0
    %v4964 = vadd.f32 0.0, %v4963
    %v4965 = vpop.f32.mrb[0].mxu0
    %4966 = vmatprep.mubr.bf16.mxu0 0
    %4967 = vmatmul.mubr.bf16.gmra.mrb[0].mxu0 %v4799
    %v4968 = vpop.f32.mrb[0].mxu0
    %v4969 = vadd.f32 0.0, %v4968
    %v4970 = vpop.f32.mrb[0].mxu0
    %v4971 = vpop.f32.mrb[0].mxu0
    %v4972 = vadd.f32 0.0, %v4971
    %v4973 = vpop.f32.mrb[0].mxu0
    %4974 = vmatprep.mubr.bf16.mxu0 0
    %4975 = vmatmul.mubr.bf16.gmra.mrb[0].mxu0 %v4802
    %v4976 = vpop.f32.mrb[0].mxu0
    %v4977 = vadd.f32 0.0, %v4976
    %v4978 = vpop.f32.mrb[0].mxu0
    %v4979 = vpop.f32.mrb[0].mxu0
    %v4980 = vadd.f32 0.0, %v4979
    %v4981 = vpop.f32.mrb[0].mxu0
    %4982 = vmatprep.mubr.bf16.mxu0 0
    %4983 = vmatmul.mubr.bf16.gmra.mrb[0].mxu0 %v4805
    %v4984 = vpop.f32.mrb[0].mxu0
    %v4985 = vadd.f32 0.0, %v4984
    %v4986 = vpop.f32.mrb[0].mxu0
    %v4987 = vpop.f32.mrb[0].mxu0
    %v4988 = vadd.f32 0.0, %v4987
    %v4989 = vpop.f32.mrb[0].mxu0
    %4990 = vmatprep.mubr.bf16.mxu0 0
    %4991 = vmatmul.mubr.bf16.gmra.mrb[0].mxu0 %v4808
    %v4992 = vpop.f32.mrb[0].mxu0
    %v4993 = vadd.f32 0.0, %v4992
    %v4994 = vpop.f32.mrb[0].mxu0
    %v4995 = vpop.f32.mrb[0].mxu0
    %v4996 = vadd.f32 0.0, %v4995
    %v4997 = vpop.f32.mrb[0].mxu0
    %4998 = vmatprep.mubr.bf16.mxu0 0
    %4999 = vmatmul.mubr.bf16.gmra.mrb[0].mxu0 %v4811
    %v5000 = vpop.f32.mrb[0].mxu0
    %v5001 = vadd.f32 0.0, %v5000
    %v5002 = vpop.f32.mrb[0].mxu0
    %v5003 = vpop.f32.mrb[0].mxu0
    %v5004 = vadd.f32 0.0, %v5003
    %v5005 = vpop.f32.mrb[0].mxu0
    %5006 = vmatprep.mubr.bf16.mxu0 0
    %5007 = vmatmul.mubr.bf16.gmra.mrb[0].mxu0 %v4814
    %v5008 = vpop.f32.mrb[0].mxu0
    %v5009 = vadd.f32 0.0, %v5008
    %v5010 = vpop.f32.mrb[0].mxu0
    %v5011 = vpop.f32.mrb[0].mxu0
    %v5012 = vadd.f32 0.0, %v5011
    %v5013 = vpop.f32.mrb[0].mxu0
    %5014 = vmatprep.mubr.bf16.mxu0 0
    %5015 = vmatmul.mubr.bf16.gmra.mrb[0].mxu0 %v4817
    %v5016 = vpop.f32.mrb[0].mxu0
    %v5017 = vadd.f32 0.0, %v5016
    %v5018 = vpop.f32.mrb[0].mxu0
    %v5019 = vpop.f32.mrb[0].mxu0
    %v5020 = vadd.f32 0.0, %v5019
    %v5021 = vpop.f32.mrb[0].mxu0
    %5022 = vmatprep.mubr.bf16.mxu0 0
    %5023 = vmatmul.mubr.bf16.gmra.mrb[0].mxu0 %v4820
    %v5024 = vpop.f32.mrb[0].mxu0
    %v5025 = vadd.f32 0.0, %v5024
    %v5026 = vpop.f32.mrb[0].mxu0
    %v5027 = vpop.f32.mrb[0].mxu0
    %v5028 = vadd.f32 0.0, %v5027
    %v5029 = vpop.f32.mrb[0].mxu0
    %5030 = vmatprep.mubr.bf16.mxu0 0
    %5031 = vmatmul.mubr.bf16.gmra.mrb[0].mxu0 %v4823
    %v5032 = vpop.f32.mrb[0].mxu0
    %v5033 = vadd.f32 0.0, %v5032
    %v5034 = vpop.f32.mrb[0].mxu0
    %v5035 = vpop.f32.mrb[0].mxu0
    %v5036 = vadd.f32 0.0, %v5035
    %v5037 = vpop.f32.mrb[0].mxu0
    %5038 = vmatprep.mubr.bf16.mxu0 0
    %5039 = vmatmul.mubr.bf16.gmra.mrb[0].mxu0 %v4826
    %v5040 = vpop.f32.mrb[0].mxu0
    %v5041 = vadd.f32 0.0, %v5040
    %v5042 = vpop.f32.mrb[0].mxu0
    %v5043 = vpop.f32.mrb[0].mxu0
    %v5044 = vadd.f32 0.0, %v5043
    %v5045 = vpop.f32.mrb[0].mxu0
    %5046 = vmatprep.mubr.bf16.mxu0 0
    %5047 = vmatmul.mubr.bf16.gmra.mrb[0].mxu0 %v4829
    %v5048 = vpop.f32.mrb[0].mxu0
    %v5049 = vadd.f32 0.0, %v5048
    %v5050 = vpop.f32.mrb[0].mxu0
    %v5051 = vpop.f32.mrb[0].mxu0
    %v5052 = vadd.f32 0.0, %v5051
    %v5053 = vpop.f32.mrb[0].mxu0
    %5054 = vmatprep.mubr.bf16.mxu0 0
    %5055 = vmatmul.mubr.bf16.gmra.mrb[0].mxu0 %v4832
    %v5056 = vpop.f32.mrb[0].mxu0
    %v5057 = vadd.f32 0.0, %v5056
    %v5058 = vpop.f32.mrb[0].mxu0
    %v5059 = vpop.f32.mrb[0].mxu0
    %v5060 = vadd.f32 0.0, %v5059
    %v5061 = vpop.f32.mrb[0].mxu0
    %5062 = vmatprep.mubr.bf16.mxu0 0
    %5063 = vmatmul.mubr.bf16.gmra.mrb[0].mxu0 %v4835
    %v5064 = vpop.f32.mrb[0].mxu0
    %v5065 = vadd.f32 0.0, %v5064
    %v5066 = vpop.f32.mrb[0].mxu0
    %v5067 = vpop.f32.mrb[0].mxu0
    %v5068 = vadd.f32 0.0, %v5067
    %v5069 = vpop.f32.mrb[0].mxu0
    %5070 = vmatprep.mubr.bf16.mxu0 0
    %5071 = vmatmul.mubr.bf16.gmra.mrb[0].mxu0 %v4838
    %v5072 = vpop.f32.mrb[0].mxu0
    %v5073 = vadd.f32 0.0, %v5072
    %v5074 = vpop.f32.mrb[0].mxu0
    %v5075 = vpop.f32.mrb[0].mxu0
    %v5076 = vadd.f32 0.0, %v5075
    %v5077 = vpop.f32.mrb[0].mxu0
    %5078 = vmatprep.mubr.bf16.mxu0 0
    %5079 = vmatmul.mubr.bf16.gmra.mrb[0].mxu0 %v4841
    %v5080 = vpop.f32.mrb[0].mxu0
    %v5081 = vadd.f32 0.0, %v5080
    %v5082 = vpop.f32.mrb[0].mxu0
    %v5083 = vpop.f32.mrb[0].mxu0
    %v5084 = vadd.f32 0.0, %v5083
    %v5085 = vpop.f32.mrb[0].mxu0
    %5086 = vmatprep.mubr.bf16.mxu0 0
    %5087 = vmatmul.mubr.bf16.gmra.mrb[0].mxu0 %v4844
    %v5088 = vpop.f32.mrb[0].mxu0
    %v5089 = vadd.f32 0.0, %v5088
    %v5090 = vpop.f32.mrb[0].mxu0
    %v5091 = vpop.f32.mrb[0].mxu0
    %v5092 = vadd.f32 0.0, %v5091
    %v5093 = vpop.f32.mrb[0].mxu0
    %5094 = vmatprep.mubr.bf16.mxu0 0
    %5095 = vmatmul.mubr.bf16.gmra.mrb[0].mxu0 %v4847
    %v5096 = vpop.f32.mrb[0].mxu0
    %v5097 = vadd.f32 0.0, %v5096
    %v5098 = vpop.f32.mrb[0].mxu0
    %v5099 = vpop.f32.mrb[0].mxu0
    %v5100 = vadd.f32 0.0, %v5099
    %v5101 = vpop.f32.mrb[0].mxu0
    %5102 = vmatprep.mubr.bf16.mxu0 0
    %5103 = vmatmul.mubr.bf16.gmra.mrb[0].mxu0 %v4850
    %v5104 = vpop.f32.mrb[0].mxu0
    %v5105 = vadd.f32 0.0, %v5104
    %v5106 = vpop.f32.mrb[0].mxu0
    %v5107 = vpop.f32.mrb[0].mxu0
    %v5108 = vadd.f32 0.0, %v5107
    %v5109 = vpop.f32.mrb[0].mxu0
    %5110 = vmatprep.mubr.bf16.mxu0 0
    %5111 = vmatmul.mubr.bf16.gmra.mrb[0].mxu0 %v4853
    %v5112 = vpop.f32.mrb[0].mxu0
    %v5113 = vadd.f32 0.0, %v5112
    %v5114 = vpop.f32.mrb[0].mxu0
    %v5115 = vpop.f32.mrb[0].mxu0
    %v5116 = vadd.f32 0.0, %v5115
    %v5117 = vpop.f32.mrb[0].mxu0
    %5118 = vmatprep.mubr.bf16.mxu0 0
    %5119 = vmatmul.mubr.bf16.gmra.mrb[0].mxu0 %v4856
    %v5120 = vpop.f32.mrb[0].mxu0
    %v5121 = vadd.f32 0.0, %v5120
    %v5122 = vpop.f32.mrb[0].mxu0
    %v5123 = vpop.f32.mrb[0].mxu0
    %v5124 = vadd.f32 0.0, %v5123
    %v5125 = vpop.f32.mrb[0].mxu0
    %5126 = vmatprep.mubr.bf16.mxu0 0
    %5127 = vmatmul.mubr.bf16.gmra.mrb[0].mxu0 %v4859
    %v5128 = vpop.f32.mrb[0].mxu0
    %v5129 = vadd.f32 0.0, %v5128
    %v5130 = vpop.f32.mrb[0].mxu0
    %v5131 = vpop.f32.mrb[0].mxu0
    %v5132 = vadd.f32 0.0, %v5131
    %v5133 = vpop.f32.mrb[0].mxu0
    %5134 = vmatprep.mubr.bf16.mxu0 0
    %5135 = vmatmul.mubr.bf16.gmra.mrb[0].mxu0 %v4862
    %v5136 = vpop.f32.mrb[0].mxu0
    %v5137 = vadd.f32 0.0, %v5136
    %v5138 = vpop.f32.mrb[0].mxu0
    %v5139 = vpop.f32.mrb[0].mxu0
    %v5140 = vadd.f32 0.0, %v5139
    %v5141 = vpop.f32.mrb[0].mxu0
    %5142 = vmatprep.mubr.bf16.mxu0 0
    %5143 = vmatmul.mubr.bf16.gmra.mrb[0].mxu0 %v4865
    %v5144 = vpop.f32.mrb[0].mxu0
    %v5145 = vadd.f32 0.0, %v5144
    %v5146 = vpop.f32.mrb[0].mxu0
    %v5147 = vpop.f32.mrb[0].mxu0
    %v5148 = vadd.f32 0.0, %v5147
    %v5149 = vpop.f32.mrb[0].mxu0
    %5150 = vmatprep.mubr.bf16.mxu0 0
    %5151 = vmatmul.mubr.bf16.gmra.mrb[0].mxu0 %v4868
    %v5152 = vpop.f32.mrb[0].mxu0
    %v5153 = vadd.f32 0.0, %v5152
    %v5154 = vpop.f32.mrb[0].mxu0
    %v5155 = vpop.f32.mrb[0].mxu0
    %v5156 = vadd.f32 0.0, %v5155
    %v5157 = vpop.f32.mrb[0].mxu0
    %5158 = vdwg.mxu0
    %v5159 = vadd.f32 %v4580, %v4905
    %v5160 = vadd.f32 %v4581, %v4908
    %v5161 = vadd.f32 %v4582, %v4913
    %v5162 = vadd.f32 %v4583, %v4916
    %v5163 = vadd.f32 %v4584, %v4921
    %v5164 = vadd.f32 %v4585, %v4924
    %v5165 = vadd.f32 %v4586, %v4929
    %v5166 = vadd.f32 %v4587, %v4932
    %v5167 = vadd.f32 %v4588, %v4937
    %v5168 = vadd.f32 %v4589, %v4940
    %v5169 = vadd.f32 %v4590, %v4945
    %v5170 = vadd.f32 %v4591, %v4948
    %v5171 = vadd.f32 %v4592, %v4953
    %v5172 = vadd.f32 %v4593, %v4956
    %v5173 = vadd.f32 %v4594, %v4961
    %v5174 = vadd.f32 %v4595, %v4964
    %v5175 = vadd.f32 %v4596, %v4969
    %v5176 = vadd.f32 %v4597, %v4972
    %v5177 = vadd.f32 %v4598, %v4977
    %v5178 = vadd.f32 %v4599, %v4980
    %v5179 = vadd.f32 %v4600, %v4985
    %v5180 = vadd.f32 %v4601, %v4988
    %v5181 = vadd.f32 %v4602, %v4993
    %v5182 = vadd.f32 %v4603, %v4996
    %v5183 = vadd.f32 %v4604, %v5001
    %v5184 = vadd.f32 %v4605, %v5004
    %v5185 = vadd.f32 %v4606, %v5009
    %v5186 = vadd.f32 %v4607, %v5012
    %v5187 = vadd.f32 %v4608, %v5017
    %v5188 = vadd.f32 %v4609, %v5020
    %v5189 = vadd.f32 %v4610, %v5025
    %v5190 = vadd.f32 %v4611, %v5028
    %v5191 = vadd.f32 %v4612, %v5033
    %v5192 = vadd.f32 %v4613, %v5036
    %v5193 = vadd.f32 %v4614, %v5041
    %v5194 = vadd.f32 %v4615, %v5044
    %v5195 = vadd.f32 %v4616, %v5049
    %v5196 = vadd.f32 %v4617, %v5052
    %v5197 = vadd.f32 %v4618, %v5057
    %v5198 = vadd.f32 %v4619, %v5060
    %v5199 = vadd.f32 %v4620, %v5065
    %v5200 = vadd.f32 %v4621, %v5068
    %v5201 = vadd.f32 %v4622, %v5073
    %v5202 = vadd.f32 %v4623, %v5076
    %v5203 = vadd.f32 %v4624, %v5081
    %v5204 = vadd.f32 %v4625, %v5084
    %v5205 = vadd.f32 %v4626, %v5089
    %v5206 = vadd.f32 %v4627, %v5092
    %v5207 = vadd.f32 %v4628, %v5097
    %v5208 = vadd.f32 %v4629, %v5100
    %v5209 = vadd.f32 %v4630, %v5105
    %v5210 = vadd.f32 %v4631, %v5108
    %v5211 = vadd.f32 %v4632, %v5113
    %v5212 = vadd.f32 %v4633, %v5116
    %v5213 = vadd.f32 %v4634, %v5121
    %v5214 = vadd.f32 %v4635, %v5124
    %v5215 = vadd.f32 %v4636, %v5129
    %v5216 = vadd.f32 %v4637, %v5132
    %v5217 = vadd.f32 %v4638, %v5137
    %v5218 = vadd.f32 %v4639, %v5140
    %v5219 = vadd.f32 %v4640, %v5145
    %v5220 = vadd.f32 %v4641, %v5148
    %v5221 = vadd.f32 %v4642, %v5153
    %v5222 = vadd.f32 %v4643, %v5156
    %v5223 = vld [vmem:[%s4644 + $0x1] sm:$0xff]
    %v5224 = vld [vmem:[%s4644 + $0x9] sm:$0xff]
    %v5225 = vld [vmem:[%s4644 + $0x19] sm:$0xff]
    %v5226 = vld [vmem:[%s4644 + $0x21] sm:$0xff]
    %v5227 = vld [vmem:[%s4644 + $0x31] sm:$0xff]
    %v5228 = vld [vmem:[%s4644 + $0x39] sm:$0xff]
    %v5229 = vld [vmem:[%s4644 + $0x49] sm:$0xff]
    %v5230 = vld [vmem:[%s4644 + $0x51] sm:$0xff]
    %v5231 = vld [vmem:[%s4644 + $0x61] sm:$0xff]
    %v5232 = vld [vmem:[%s4644 + $0x69] sm:$0xff]
    %v5233 = vld [vmem:[%s4644 + $0x79] sm:$0xff]
    %v5234 = vld [vmem:[%s4644 + $0x81] sm:$0xff]
    %v5235 = vld [vmem:[%s4644 + $0x91] sm:$0xff]
    %v5236 = vld [vmem:[%s4644 + $0x99] sm:$0xff]
    %v5237 = vld [vmem:[%s4644 + $0xa9] sm:$0xff]
    %v5238 = vld [vmem:[%s4644 + $0xb1] sm:$0xff]
    %v5239 = vld [vmem:[%s4644 + $0xc1] sm:$0xff]
    %v5240 = vld [vmem:[%s4644 + $0xc9] sm:$0xff]
    %v5241 = vld [vmem:[%s4644 + $0xd9] sm:$0xff]
    %v5242 = vld [vmem:[%s4644 + $0xe1] sm:$0xff]
    %v5243 = vld [vmem:[%s4644 + $0xf1] sm:$0xff]
    %v5244 = vld [vmem:[%s4644 + $0xf9] sm:$0xff]
    %v5245 = vld [vmem:[%s4644 + $0x109] sm:$0xff]
    %v5246 = vld [vmem:[%s4644 + $0x111] sm:$0xff]
    %v5247 = vld [vmem:[%s4644 + $0x121] sm:$0xff]
    %v5248 = vld [vmem:[%s4644 + $0x129] sm:$0xff]
    %v5249 = vld [vmem:[%s4644 + $0x139] sm:$0xff]
    %v5250 = vld [vmem:[%s4644 + $0x141] sm:$0xff]
    %v5251 = vld [vmem:[%s4644 + $0x151] sm:$0xff]
    %v5252 = vld [vmem:[%s4644 + $0x159] sm:$0xff]
    %v5253 = vld [vmem:[%s4644 + $0x169] sm:$0xff]
    %v5254 = vld [vmem:[%s4644 + $0x171] sm:$0xff]
    %v5255 = vld [vmem:[%s4644 + $0x1b1] sm:$0xff]
    %v5256 = vld [vmem:[%s4644 + $0x1b9] sm:$0xff]
    %v5257 = vld [vmem:[%s4644 + $0x1c9] sm:$0xff]
    %v5258 = vld [vmem:[%s4644 + $0x1d1] sm:$0xff]
    %v5259 = vld [vmem:[%s4644 + $0x1e1] sm:$0xff]
    %v5260 = vld [vmem:[%s4644 + $0x1e9] sm:$0xff]
    %v5261 = vld [vmem:[%s4644 + $0x1f9] sm:$0xff]
    %v5262 = vld [vmem:[%s4644 + $0x201] sm:$0xff]
    %v5263 = vld [vmem:[%s4644 + $0x211] sm:$0xff]
    %v5264 = vld [vmem:[%s4644 + $0x219] sm:$0xff]
    %v5265 = vld [vmem:[%s4644 + $0x229] sm:$0xff]
    %v5266 = vld [vmem:[%s4644 + $0x231] sm:$0xff]
    %v5267 = vld [vmem:[%s4644 + $0x241] sm:$0xff]
    %v5268 = vld [vmem:[%s4644 + $0x249] sm:$0xff]
    %v5269 = vld [vmem:[%s4644 + $0x259] sm:$0xff]
    %v5270 = vld [vmem:[%s4644 + $0x261] sm:$0xff]
    %v5271 = vld [vmem:[%s4644 + $0x271] sm:$0xff]
    %v5272 = vld [vmem:[%s4644 + $0x279] sm:$0xff]
    %v5273 = vld [vmem:[%s4644 + $0x289] sm:$0xff]
    %v5274 = vld [vmem:[%s4644 + $0x291] sm:$0xff]
    %v5275 = vld [vmem:[%s4644 + $0x2a1] sm:$0xff]
    %v5276 = vld [vmem:[%s4644 + $0x2a9] sm:$0xff]
    %v5277 = vld [vmem:[%s4644 + $0x2b9] sm:$0xff]
    %v5278 = vld [vmem:[%s4644 + $0x2c1] sm:$0xff]
    %v5279 = vld [vmem:[%s4644 + $0x2d1] sm:$0xff]
    %v5280 = vld [vmem:[%s4644 + $0x2d9] sm:$0xff]
    %v5281 = vld [vmem:[%s4644 + $0x2e9] sm:$0xff]
    %v5282 = vld [vmem:[%s4644 + $0x2f1] sm:$0xff]
    %v5283 = vld [vmem:[%s4644 + $0x301] sm:$0xff]
    %v5284 = vld [vmem:[%s4644 + $0x309] sm:$0xff]
    %v5285 = vld [vmem:[%s4644 + $0x319] sm:$0xff]
    %v5286 = vld [vmem:[%s4644 + $0x321] sm:$0xff]
    %v5287 = vpack.c.bf16 %v5224, %v5223
    %v5288 = vpack.c.bf16 %v5226, %v5225
    %v5289 = vpack.c.bf16 %v5228, %v5227
    %v5290 = vpack.c.bf16 %v5230, %v5229
    %v5291 = vpack.c.bf16 %v5232, %v5231
    %v5292 = vpack.c.bf16 %v5234, %v5233
    %v5293 = vpack.c.bf16 %v5236, %v5235
    %v5294 = vpack.c.bf16 %v5238, %v5237
    %v5295 = vpack.c.bf16 %v5240, %v5239
    %v5296 = vpack.c.bf16 %v5242, %v5241
    %v5297 = vpack.c.bf16 %v5244, %v5243
    %v5298 = vpack.c.bf16 %v5246, %v5245
    %v5299 = vpack.c.bf16 %v5248, %v5247
    %v5300 = vpack.c.bf16 %v5250, %v5249
    %v5301 = vpack.c.bf16 %v5252, %v5251
    %v5302 = vpack.c.bf16 %v5254, %v5253
    %v5303 = vpack.c.bf16 %v5256, %v5255
    %v5304 = vpack.c.bf16 %v5258, %v5257
    %v5305 = vpack.c.bf16 %v5260, %v5259
    %v5306 = vpack.c.bf16 %v5262, %v5261
    %v5307 = vpack.c.bf16 %v5264, %v5263
    %v5308 = vpack.c.bf16 %v5266, %v5265
    %v5309 = vpack.c.bf16 %v5268, %v5267
    %v5310 = vpack.c.bf16 %v5270, %v5269
    %v5311 = vpack.c.bf16 %v5272, %v5271
    %v5312 = vpack.c.bf16 %v5274, %v5273
    %v5313 = vpack.c.bf16 %v5276, %v5275
    %v5314 = vpack.c.bf16 %v5278, %v5277
    %v5315 = vpack.c.bf16 %v5280, %v5279
    %v5316 = vpack.c.bf16 %v5282, %v5281
    %v5317 = vpack.c.bf16 %v5284, %v5283
    %v5318 = vpack.c.bf16 %v5286, %v5285
    %s5319 = scalar_lea.vmem [#allocation8], 224
    %v5320 = vld [vmem:[%s5319] sm:$0xf]
    %v5321 = vld [vmem:[%s5319 + $0x4] sm:$0xf]
    %v5322 = vld [vmem:[%s5319 + $0x8] sm:$0xf]
    %v5323 = vld [vmem:[%s5319 + $0xc] sm:$0xf]
    %v5324 = vld [vmem:[%s5319 + $0x10] sm:$0xf]
    %v5325 = vld [vmem:[%s5319 + $0x14] sm:$0xf]
    %v5326 = vld [vmem:[%s5319 + $0x18] sm:$0xf]
    %v5327 = vld [vmem:[%s5319 + $0x1c] sm:$0xf]
    %v5336 = vunpack.c.l.b16 %v5320
    %v5337 = vunpack.c.l.b16 %v5321
    %v5338 = vunpack.c.l.b16 %v5322
    %v5339 = vunpack.c.l.b16 %v5323
    %v5340 = vunpack.c.l.b16 %v5324
    %v5341 = vunpack.c.l.b16 %v5325
    %v5342 = vunpack.c.l.b16 %v5326
    %v5343 = vunpack.c.l.b16 %v5327
    %v5344 = vpack.c.b16 %v5337, %v5336
    %v5345 = vpack.c.b16 %v5339, %v5338
    %v5346 = vpack.c.b16 %v5341, %v5340
    %v5347 = vpack.c.b16 %v5343, %v5342
    %v5353 = vsel %vm218, %v5287, 0
    %v5356 = vsel %vm218, %v5288, 0
    %v5359 = vsel %vm218, %v5289, 0
    %v5362 = vsel %vm218, %v5290, 0
    %v5365 = vsel %vm218, %v5291, 0
    %v5368 = vsel %vm218, %v5292, 0
    %v5371 = vsel %vm218, %v5293, 0
    %v5374 = vsel %vm218, %v5294, 0
    %v5377 = vsel %vm218, %v5295, 0
    %v5380 = vsel %vm218, %v5296, 0
    %v5383 = vsel %vm218, %v5297, 0
    %v5386 = vsel %vm218, %v5298, 0
    %v5389 = vsel %vm218, %v5299, 0
    %v5392 = vsel %vm218, %v5300, 0
    %v5395 = vsel %vm218, %v5301, 0
    %v5398 = vsel %vm218, %v5302, 0
    %v5401 = vsel %vm218, %v5303, 0
    %v5404 = vsel %vm218, %v5304, 0
    %v5407 = vsel %vm218, %v5305, 0
    %v5410 = vsel %vm218, %v5306, 0
    %v5413 = vsel %vm218, %v5307, 0
    %v5416 = vsel %vm218, %v5308, 0
    %v5419 = vsel %vm218, %v5309, 0
    %v5422 = vsel %vm218, %v5310, 0
    %v5425 = vsel %vm218, %v5311, 0
    %v5428 = vsel %vm218, %v5312, 0
    %v5431 = vsel %vm218, %v5313, 0
    %v5434 = vsel %vm218, %v5314, 0
    %v5437 = vsel %vm218, %v5315, 0
    %v5440 = vsel %vm218, %v5316, 0
    %v5443 = vsel %vm218, %v5317, 0
    %v5446 = vsel %vm218, %v5318, 0
    %5448 = vmatprep.subr.bf16.mxu0 0
    %5449 = vmatpush1.bf16.msra.mxu0 %v5344
    %5450 = vmatprep.subr.bf16.mxu0 0
    %5451 = vmatpush1.bf16.msra.mxu0 %v5345
    %5452 = vmatprep.subr.bf16.mxu0 0
    %5453 = vmatpush1.bf16.msra.mxu0 %v5346
    %5454 = vmatprep.subr.bf16.mxu0 0
    %5455 = vmatpush1.bf16.msra.mxu0 %v5347
    %5456 = vmatprep.subr.bf16.mxu0 0
    %5457 = vmatpush1.bf16.msra.mxu0 0
    %5458 = vmatprep.subr.bf16.mxu0 0
    %5459 = vmatpush1.bf16.msra.mxu0 0
    %5460 = vmatprep.subr.bf16.mxu0 0
    %5461 = vmatpush1.bf16.msra.mxu0 0
    %5462 = vmatprep.subr.bf16.mxu0 0
    %5463 = vmatpush1.bf16.msra.mxu0 0
    %5464 = vmatprep.subr.bf16.mxu0 0
    %5465 = vmatpush1.bf16.msra.mxu0 0
    %5466 = vmatprep.subr.bf16.mxu0 0
    %5467 = vmatpush1.bf16.msra.mxu0 0
    %5468 = vmatprep.subr.bf16.mxu0 0
    %5469 = vmatpush1.bf16.msra.mxu0 0
    %5470 = vmatprep.subr.bf16.mxu0 0
    %5471 = vmatpush1.bf16.msra.mxu0 0
    %5472 = vmatprep.subr.bf16.mxu0 0
    %5473 = vmatpush1.bf16.msra.mxu0 0
    %5474 = vmatprep.subr.bf16.mxu0 0
    %5475 = vmatpush1.bf16.msra.mxu0 0
    %5476 = vmatprep.subr.bf16.mxu0 0
    %5477 = vmatpush1.bf16.msra.mxu0 0
    %5478 = vmatprep.subr.bf16.mxu0 0
    %5479 = vmatpush1.bf16.msra.mxu0 0
    %5480 = vmatprep.mubr.bf16.mxu0 0
    %5481 = vmatmul.mubr.bf16.gmra.mrb[0].mxu0 %v5353
    %v5482 = vpop.f32.mrb[0].mxu0
    %v5483 = vadd.f32 0.0, %v5482
    %v5484 = vpop.f32.mrb[0].mxu0
    %v5485 = vpop.f32.mrb[0].mxu0
    %v5486 = vadd.f32 0.0, %v5485
    %v5487 = vpop.f32.mrb[0].mxu0
    %5488 = vmatprep.mubr.bf16.mxu0 0
    %5489 = vmatmul.mubr.bf16.gmra.mrb[0].mxu0 %v5356
    %v5490 = vpop.f32.mrb[0].mxu0
    %v5491 = vadd.f32 0.0, %v5490
    %v5492 = vpop.f32.mrb[0].mxu0
    %v5493 = vpop.f32.mrb[0].mxu0
    %v5494 = vadd.f32 0.0, %v5493
    %v5495 = vpop.f32.mrb[0].mxu0
    %5496 = vmatprep.mubr.bf16.mxu0 0
    %5497 = vmatmul.mubr.bf16.gmra.mrb[0].mxu0 %v5359
    %v5498 = vpop.f32.mrb[0].mxu0
    %v5499 = vadd.f32 0.0, %v5498
    %v5500 = vpop.f32.mrb[0].mxu0
    %v5501 = vpop.f32.mrb[0].mxu0
    %v5502 = vadd.f32 0.0, %v5501
    %v5503 = vpop.f32.mrb[0].mxu0
    %5504 = vmatprep.mubr.bf16.mxu0 0
    %5505 = vmatmul.mubr.bf16.gmra.mrb[0].mxu0 %v5362
    %v5506 = vpop.f32.mrb[0].mxu0
    %v5507 = vadd.f32 0.0, %v5506
    %v5508 = vpop.f32.mrb[0].mxu0
    %v5509 = vpop.f32.mrb[0].mxu0
    %v5510 = vadd.f32 0.0, %v5509
    %v5511 = vpop.f32.mrb[0].mxu0
    %5512 = vmatprep.mubr.bf16.mxu0 0
    %5513 = vmatmul.mubr.bf16.gmra.mrb[0].mxu0 %v5365
    %v5514 = vpop.f32.mrb[0].mxu0
    %v5515 = vadd.f32 0.0, %v5514
    %v5516 = vpop.f32.mrb[0].mxu0
    %v5517 = vpop.f32.mrb[0].mxu0
    %v5518 = vadd.f32 0.0, %v5517
    %v5519 = vpop.f32.mrb[0].mxu0
    %5520 = vmatprep.mubr.bf16.mxu0 0
    %5521 = vmatmul.mubr.bf16.gmra.mrb[0].mxu0 %v5368
    %v5522 = vpop.f32.mrb[0].mxu0
    %v5523 = vadd.f32 0.0, %v5522
    %v5524 = vpop.f32.mrb[0].mxu0
    %v5525 = vpop.f32.mrb[0].mxu0
    %v5526 = vadd.f32 0.0, %v5525
    %v5527 = vpop.f32.mrb[0].mxu0
    %5528 = vmatprep.mubr.bf16.mxu0 0
    %5529 = vmatmul.mubr.bf16.gmra.mrb[0].mxu0 %v5371
    %v5530 = vpop.f32.mrb[0].mxu0
    %v5531 = vadd.f32 0.0, %v5530
    %v5532 = vpop.f32.mrb[0].mxu0
    %v5533 = vpop.f32.mrb[0].mxu0
    %v5534 = vadd.f32 0.0, %v5533
    %v5535 = vpop.f32.mrb[0].mxu0
    %5536 = vmatprep.mubr.bf16.mxu0 0
    %5537 = vmatmul.mubr.bf16.gmra.mrb[0].mxu0 %v5374
    %v5538 = vpop.f32.mrb[0].mxu0
    %v5539 = vadd.f32 0.0, %v5538
    %v5540 = vpop.f32.mrb[0].mxu0
    %v5541 = vpop.f32.mrb[0].mxu0
    %v5542 = vadd.f32 0.0, %v5541
    %v5543 = vpop.f32.mrb[0].mxu0
    %5544 = vmatprep.mubr.bf16.mxu0 0
    %5545 = vmatmul.mubr.bf16.gmra.mrb[0].mxu0 %v5377
    %v5546 = vpop.f32.mrb[0].mxu0
    %v5547 = vadd.f32 0.0, %v5546
    %v5548 = vpop.f32.mrb[0].mxu0
    %v5549 = vpop.f32.mrb[0].mxu0
    %v5550 = vadd.f32 0.0, %v5549
    %v5551 = vpop.f32.mrb[0].mxu0
    %5552 = vmatprep.mubr.bf16.mxu0 0
    %5553 = vmatmul.mubr.bf16.gmra.mrb[0].mxu0 %v5380
    %v5554 = vpop.f32.mrb[0].mxu0
    %v5555 = vadd.f32 0.0, %v5554
    %v5556 = vpop.f32.mrb[0].mxu0
    %v5557 = vpop.f32.mrb[0].mxu0
    %v5558 = vadd.f32 0.0, %v5557
    %v5559 = vpop.f32.mrb[0].mxu0
    %5560 = vmatprep.mubr.bf16.mxu0 0
    %5561 = vmatmul.mubr.bf16.gmra.mrb[0].mxu0 %v5383
    %v5562 = vpop.f32.mrb[0].mxu0
    %v5563 = vadd.f32 0.0, %v5562
    %v5564 = vpop.f32.mrb[0].mxu0
    %v5565 = vpop.f32.mrb[0].mxu0
    %v5566 = vadd.f32 0.0, %v5565
    %v5567 = vpop.f32.mrb[0].mxu0
    %5568 = vmatprep.mubr.bf16.mxu0 0
    %5569 = vmatmul.mubr.bf16.gmra.mrb[0].mxu0 %v5386
    %v5570 = vpop.f32.mrb[0].mxu0
    %v5571 = vadd.f32 0.0, %v5570
    %v5572 = vpop.f32.mrb[0].mxu0
    %v5573 = vpop.f32.mrb[0].mxu0
    %v5574 = vadd.f32 0.0, %v5573
    %v5575 = vpop.f32.mrb[0].mxu0
    %5576 = vmatprep.mubr.bf16.mxu0 0
    %5577 = vmatmul.mubr.bf16.gmra.mrb[0].mxu0 %v5389
    %v5578 = vpop.f32.mrb[0].mxu0
    %v5579 = vadd.f32 0.0, %v5578
    %v5580 = vpop.f32.mrb[0].mxu0
    %v5581 = vpop.f32.mrb[0].mxu0
    %v5582 = vadd.f32 0.0, %v5581
    %v5583 = vpop.f32.mrb[0].mxu0
    %5584 = vmatprep.mubr.bf16.mxu0 0
    %5585 = vmatmul.mubr.bf16.gmra.mrb[0].mxu0 %v5392
    %v5586 = vpop.f32.mrb[0].mxu0
    %v5587 = vadd.f32 0.0, %v5586
    %v5588 = vpop.f32.mrb[0].mxu0
    %v5589 = vpop.f32.mrb[0].mxu0
    %v5590 = vadd.f32 0.0, %v5589
    %v5591 = vpop.f32.mrb[0].mxu0
    %5592 = vmatprep.mubr.bf16.mxu0 0
    %5593 = vmatmul.mubr.bf16.gmra.mrb[0].mxu0 %v5395
    %v5594 = vpop.f32.mrb[0].mxu0
    %v5595 = vadd.f32 0.0, %v5594
    %v5596 = vpop.f32.mrb[0].mxu0
    %v5597 = vpop.f32.mrb[0].mxu0
    %v5598 = vadd.f32 0.0, %v5597
    %v5599 = vpop.f32.mrb[0].mxu0
    %5600 = vmatprep.mubr.bf16.mxu0 0
    %5601 = vmatmul.mubr.bf16.gmra.mrb[0].mxu0 %v5398
    %v5602 = vpop.f32.mrb[0].mxu0
    %v5603 = vadd.f32 0.0, %v5602
    %v5604 = vpop.f32.mrb[0].mxu0
    %v5605 = vpop.f32.mrb[0].mxu0
    %v5606 = vadd.f32 0.0, %v5605
    %v5607 = vpop.f32.mrb[0].mxu0
    %5608 = vmatprep.mubr.bf16.mxu0 0
    %5609 = vmatmul.mubr.bf16.gmra.mrb[0].mxu0 %v5401
    %v5610 = vpop.f32.mrb[0].mxu0
    %v5611 = vadd.f32 0.0, %v5610
    %v5612 = vpop.f32.mrb[0].mxu0
    %v5613 = vpop.f32.mrb[0].mxu0
    %v5614 = vadd.f32 0.0, %v5613
    %v5615 = vpop.f32.mrb[0].mxu0
    %5616 = vmatprep.mubr.bf16.mxu0 0
    %5617 = vmatmul.mubr.bf16.gmra.mrb[0].mxu0 %v5404
    %v5618 = vpop.f32.mrb[0].mxu0
    %v5619 = vadd.f32 0.0, %v5618
    %v5620 = vpop.f32.mrb[0].mxu0
    %v5621 = vpop.f32.mrb[0].mxu0
    %v5622 = vadd.f32 0.0, %v5621
    %v5623 = vpop.f32.mrb[0].mxu0
    %5624 = vmatprep.mubr.bf16.mxu0 0
    %5625 = vmatmul.mubr.bf16.gmra.mrb[0].mxu0 %v5407
    %v5626 = vpop.f32.mrb[0].mxu0
    %v5627 = vadd.f32 0.0, %v5626
    %v5628 = vpop.f32.mrb[0].mxu0
    %v5629 = vpop.f32.mrb[0].mxu0
    %v5630 = vadd.f32 0.0, %v5629
    %v5631 = vpop.f32.mrb[0].mxu0
    %5632 = vmatprep.mubr.bf16.mxu0 0
    %5633 = vmatmul.mubr.bf16.gmra.mrb[0].mxu0 %v5410
    %v5634 = vpop.f32.mrb[0].mxu0
    %v5635 = vadd.f32 0.0, %v5634
    %v5636 = vpop.f32.mrb[0].mxu0
    %v5637 = vpop.f32.mrb[0].mxu0
    %v5638 = vadd.f32 0.0, %v5637
    %v5639 = vpop.f32.mrb[0].mxu0
    %5640 = vmatprep.mubr.bf16.mxu0 0
    %5641 = vmatmul.mubr.bf16.gmra.mrb[0].mxu0 %v5413
    %v5642 = vpop.f32.mrb[0].mxu0
    %v5643 = vadd.f32 0.0, %v5642
    %v5644 = vpop.f32.mrb[0].mxu0
    %v5645 = vpop.f32.mrb[0].mxu0
    %v5646 = vadd.f32 0.0, %v5645
    %v5647 = vpop.f32.mrb[0].mxu0
    %5648 = vmatprep.mubr.bf16.mxu0 0
    %5649 = vmatmul.mubr.bf16.gmra.mrb[0].mxu0 %v5416
    %v5650 = vpop.f32.mrb[0].mxu0
    %v5651 = vadd.f32 0.0, %v5650
    %v5652 = vpop.f32.mrb[0].mxu0
    %v5653 = vpop.f32.mrb[0].mxu0
    %v5654 = vadd.f32 0.0, %v5653
    %v5655 = vpop.f32.mrb[0].mxu0
    %5656 = vmatprep.mubr.bf16.mxu0 0
    %5657 = vmatmul.mubr.bf16.gmra.mrb[0].mxu0 %v5419
    %v5658 = vpop.f32.mrb[0].mxu0
    %v5659 = vadd.f32 0.0, %v5658
    %v5660 = vpop.f32.mrb[0].mxu0
    %v5661 = vpop.f32.mrb[0].mxu0
    %v5662 = vadd.f32 0.0, %v5661
    %v5663 = vpop.f32.mrb[0].mxu0
    %5664 = vmatprep.mubr.bf16.mxu0 0
    %5665 = vmatmul.mubr.bf16.gmra.mrb[0].mxu0 %v5422
    %v5666 = vpop.f32.mrb[0].mxu0
    %v5667 = vadd.f32 0.0, %v5666
    %v5668 = vpop.f32.mrb[0].mxu0
    %v5669 = vpop.f32.mrb[0].mxu0
    %v5670 = vadd.f32 0.0, %v5669
    %v5671 = vpop.f32.mrb[0].mxu0
    %5672 = vmatprep.mubr.bf16.mxu0 0
    %5673 = vmatmul.mubr.bf16.gmra.mrb[0].mxu0 %v5425
    %v5674 = vpop.f32.mrb[0].mxu0
    %v5675 = vadd.f32 0.0, %v5674
    %v5676 = vpop.f32.mrb[0].mxu0
    %v5677 = vpop.f32.mrb[0].mxu0
    %v5678 = vadd.f32 0.0, %v5677
    %v5679 = vpop.f32.mrb[0].mxu0
    %5680 = vmatprep.mubr.bf16.mxu0 0
    %5681 = vmatmul.mubr.bf16.gmra.mrb[0].mxu0 %v5428
    %v5682 = vpop.f32.mrb[0].mxu0
    %v5683 = vadd.f32 0.0, %v5682
    %v5684 = vpop.f32.mrb[0].mxu0
    %v5685 = vpop.f32.mrb[0].mxu0
    %v5686 = vadd.f32 0.0, %v5685
    %v5687 = vpop.f32.mrb[0].mxu0
    %5688 = vmatprep.mubr.bf16.mxu0 0
    %5689 = vmatmul.mubr.bf16.gmra.mrb[0].mxu0 %v5431
    %v5690 = vpop.f32.mrb[0].mxu0
    %v5691 = vadd.f32 0.0, %v5690
    %v5692 = vpop.f32.mrb[0].mxu0
    %v5693 = vpop.f32.mrb[0].mxu0
    %v5694 = vadd.f32 0.0, %v5693
    %v5695 = vpop.f32.mrb[0].mxu0
    %5696 = vmatprep.mubr.bf16.mxu0 0
    %5697 = vmatmul.mubr.bf16.gmra.mrb[0].mxu0 %v5434
    %v5698 = vpop.f32.mrb[0].mxu0
    %v5699 = vadd.f32 0.0, %v5698
    %v5700 = vpop.f32.mrb[0].mxu0
    %v5701 = vpop.f32.mrb[0].mxu0
    %v5702 = vadd.f32 0.0, %v5701
    %v5703 = vpop.f32.mrb[0].mxu0
    %5704 = vmatprep.mubr.bf16.mxu0 0
    %5705 = vmatmul.mubr.bf16.gmra.mrb[0].mxu0 %v5437
    %v5706 = vpop.f32.mrb[0].mxu0
    %v5707 = vadd.f32 0.0, %v5706
    %v5708 = vpop.f32.mrb[0].mxu0
    %v5709 = vpop.f32.mrb[0].mxu0
    %v5710 = vadd.f32 0.0, %v5709
    %v5711 = vpop.f32.mrb[0].mxu0
    %5712 = vmatprep.mubr.bf16.mxu0 0
    %5713 = vmatmul.mubr.bf16.gmra.mrb[0].mxu0 %v5440
    %v5714 = vpop.f32.mrb[0].mxu0
    %v5715 = vadd.f32 0.0, %v5714
    %v5716 = vpop.f32.mrb[0].mxu0
    %v5717 = vpop.f32.mrb[0].mxu0
    %v5718 = vadd.f32 0.0, %v5717
    %v5719 = vpop.f32.mrb[0].mxu0
    %5720 = vmatprep.mubr.bf16.mxu0 0
    %5721 = vmatmul.mubr.bf16.gmra.mrb[0].mxu0 %v5443
    %v5722 = vpop.f32.mrb[0].mxu0
    %v5723 = vadd.f32 0.0, %v5722
    %v5724 = vpop.f32.mrb[0].mxu0
    %v5725 = vpop.f32.mrb[0].mxu0
    %v5726 = vadd.f32 0.0, %v5725
    %v5727 = vpop.f32.mrb[0].mxu0
    %5728 = vmatprep.mubr.bf16.mxu0 0
    %5729 = vmatmul.mubr.bf16.gmra.mrb[0].mxu0 %v5446
    %v5730 = vpop.f32.mrb[0].mxu0
    %v5731 = vadd.f32 0.0, %v5730
    %v5732 = vpop.f32.mrb[0].mxu0
    %v5733 = vpop.f32.mrb[0].mxu0
    %v5734 = vadd.f32 0.0, %v5733
    %v5735 = vpop.f32.mrb[0].mxu0
    %5736 = vdwg.mxu0
    %v5737 = vadd.f32 %v5159, %v5483
    %v5738 = vadd.f32 %v5160, %v5486
    %v5739 = vadd.f32 %v5161, %v5491
    %v5740 = vadd.f32 %v5162, %v5494
    %v5741 = vadd.f32 %v5163, %v5499
    %v5742 = vadd.f32 %v5164, %v5502
    %v5743 = vadd.f32 %v5165, %v5507
    %v5744 = vadd.f32 %v5166, %v5510
    %v5745 = vadd.f32 %v5167, %v5515
    %v5746 = vadd.f32 %v5168, %v5518
    %v5747 = vadd.f32 %v5169, %v5523
    %v5748 = vadd.f32 %v5170, %v5526
    %v5749 = vadd.f32 %v5171, %v5531
    %v5750 = vadd.f32 %v5172, %v5534
    %v5751 = vadd.f32 %v5173, %v5539
    %v5752 = vadd.f32 %v5174, %v5542
    %v5753 = vadd.f32 %v5175, %v5547
    %v5754 = vadd.f32 %v5176, %v5550
    %v5755 = vadd.f32 %v5177, %v5555
    %v5756 = vadd.f32 %v5178, %v5558
    %v5757 = vadd.f32 %v5179, %v5563
    %v5758 = vadd.f32 %v5180, %v5566
    %v5759 = vadd.f32 %v5181, %v5571
    %v5760 = vadd.f32 %v5182, %v5574
    %v5761 = vadd.f32 %v5183, %v5579
    %v5762 = vadd.f32 %v5184, %v5582
    %v5763 = vadd.f32 %v5185, %v5587
    %v5764 = vadd.f32 %v5186, %v5590
    %v5765 = vadd.f32 %v5187, %v5595
    %v5766 = vadd.f32 %v5188, %v5598
    %v5767 = vadd.f32 %v5189, %v5603
    %v5768 = vadd.f32 %v5190, %v5606
    %v5769 = vadd.f32 %v5191, %v5611
    %v5770 = vadd.f32 %v5192, %v5614
    %v5771 = vadd.f32 %v5193, %v5619
    %v5772 = vadd.f32 %v5194, %v5622
    %v5773 = vadd.f32 %v5195, %v5627
    %v5774 = vadd.f32 %v5196, %v5630
    %v5775 = vadd.f32 %v5197, %v5635
    %v5776 = vadd.f32 %v5198, %v5638
    %v5777 = vadd.f32 %v5199, %v5643
    %v5778 = vadd.f32 %v5200, %v5646
    %v5779 = vadd.f32 %v5201, %v5651
    %v5780 = vadd.f32 %v5202, %v5654
    %v5781 = vadd.f32 %v5203, %v5659
    %v5782 = vadd.f32 %v5204, %v5662
    %v5783 = vadd.f32 %v5205, %v5667
    %v5784 = vadd.f32 %v5206, %v5670
    %v5785 = vadd.f32 %v5207, %v5675
    %v5786 = vadd.f32 %v5208, %v5678
    %v5787 = vadd.f32 %v5209, %v5683
    %v5788 = vadd.f32 %v5210, %v5686
    %v5789 = vadd.f32 %v5211, %v5691
    %v5790 = vadd.f32 %v5212, %v5694
    %v5791 = vadd.f32 %v5213, %v5699
    %v5792 = vadd.f32 %v5214, %v5702
    %v5793 = vadd.f32 %v5215, %v5707
    %v5794 = vadd.f32 %v5216, %v5710
    %v5795 = vadd.f32 %v5217, %v5715
    %v5796 = vadd.f32 %v5218, %v5718
    %v5797 = vadd.f32 %v5219, %v5723
    %v5798 = vadd.f32 %v5220, %v5726
    %v5799 = vadd.f32 %v5221, %v5731
    %v5800 = vadd.f32 %v5222, %v5734
    %v5801 = vld [vmem:[%s4644 + $0x2] sm:$0xff]
    %v5802 = vld [vmem:[%s4644 + $0xa] sm:$0xff]
    %v5803 = vld [vmem:[%s4644 + $0x1a] sm:$0xff]
    %v5804 = vld [vmem:[%s4644 + $0x22] sm:$0xff]
    %v5805 = vld [vmem:[%s4644 + $0x32] sm:$0xff]
    %v5806 = vld [vmem:[%s4644 + $0x3a] sm:$0xff]
    %v5807 = vld [vmem:[%s4644 + $0x4a] sm:$0xff]
    %v5808 = vld [vmem:[%s4644 + $0x52] sm:$0xff]
    %v5809 = vld [vmem:[%s4644 + $0x62] sm:$0xff]
    %v5810 = vld [vmem:[%s4644 + $0x6a] sm:$0xff]
    %v5811 = vld [vmem:[%s4644 + $0x7a] sm:$0xff]
    %v5812 = vld [vmem:[%s4644 + $0x82] sm:$0xff]
    %v5813 = vld [vmem:[%s4644 + $0x92] sm:$0xff]
    %v5814 = vld [vmem:[%s4644 + $0x9a] sm:$0xff]
    %v5815 = vld [vmem:[%s4644 + $0xaa] sm:$0xff]
    %v5816 = vld [vmem:[%s4644 + $0xb2] sm:$0xff]
    %v5817 = vld [vmem:[%s4644 + $0xc2] sm:$0xff]
    %v5818 = vld [vmem:[%s4644 + $0xca] sm:$0xff]
    %v5819 = vld [vmem:[%s4644 + $0xda] sm:$0xff]
    %v5820 = vld [vmem:[%s4644 + $0xe2] sm:$0xff]
    %v5821 = vld [vmem:[%s4644 + $0xf2] sm:$0xff]
    %v5822 = vld [vmem:[%s4644 + $0xfa] sm:$0xff]
    %v5823 = vld [vmem:[%s4644 + $0x10a] sm:$0xff]
    %v5824 = vld [vmem:[%s4644 + $0x112] sm:$0xff]
    %v5825 = vld [vmem:[%s4644 + $0x122] sm:$0xff]
    %v5826 = vld [vmem:[%s4644 + $0x12a] sm:$0xff]
    %v5827 = vld [vmem:[%s4644 + $0x13a] sm:$0xff]
    %v5828 = vld [vmem:[%s4644 + $0x142] sm:$0xff]
    %v5829 = vld [vmem:[%s4644 + $0x152] sm:$0xff]
    %v5830 = vld [vmem:[%s4644 + $0x15a] sm:$0xff]
    %v5831 = vld [vmem:[%s4644 + $0x16a] sm:$0xff]
    %v5832 = vld [vmem:[%s4644 + $0x172] sm:$0xff]
    %v5833 = vld [vmem:[%s4644 + $0x1b2] sm:$0xff]
    %v5834 = vld [vmem:[%s4644 + $0x1ba] sm:$0xff]
    %v5835 = vld [vmem:[%s4644 + $0x1ca] sm:$0xff]
    %v5836 = vld [vmem:[%s4644 + $0x1d2] sm:$0xff]
    %v5837 = vld [vmem:[%s4644 + $0x1e2] sm:$0xff]
    %v5838 = vld [vmem:[%s4644 + $0x1ea] sm:$0xff]
    %v5839 = vld [vmem:[%s4644 + $0x1fa] sm:$0xff]
    %v5840 = vld [vmem:[%s4644 + $0x202] sm:$0xff]
    %v5841 = vld [vmem:[%s4644 + $0x212] sm:$0xff]
    %v5842 = vld [vmem:[%s4644 + $0x21a] sm:$0xff]
    %v5843 = vld [vmem:[%s4644 + $0x22a] sm:$0xff]
    %v5844 = vld [vmem:[%s4644 + $0x232] sm:$0xff]
    %v5845 = vld [vmem:[%s4644 + $0x242] sm:$0xff]
    %v5846 = vld [vmem:[%s4644 + $0x24a] sm:$0xff]
    %v5847 = vld [vmem:[%s4644 + $0x25a] sm:$0xff]
    %v5848 = vld [vmem:[%s4644 + $0x262] sm:$0xff]
    %v5849 = vld [vmem:[%s4644 + $0x272] sm:$0xff]
    %v5850 = vld [vmem:[%s4644 + $0x27a] sm:$0xff]
    %v5851 = vld [vmem:[%s4644 + $0x28a] sm:$0xff]
    %v5852 = vld [vmem:[%s4644 + $0x292] sm:$0xff]
    %v5853 = vld [vmem:[%s4644 + $0x2a2] sm:$0xff]
    %v5854 = vld [vmem:[%s4644 + $0x2aa] sm:$0xff]
    %v5855 = vld [vmem:[%s4644 + $0x2ba] sm:$0xff]
    %v5856 = vld [vmem:[%s4644 + $0x2c2] sm:$0xff]
    %v5857 = vld [vmem:[%s4644 + $0x2d2] sm:$0xff]
    %v5858 = vld [vmem:[%s4644 + $0x2da] sm:$0xff]
    %v5859 = vld [vmem:[%s4644 + $0x2ea] sm:$0xff]
    %v5860 = vld [vmem:[%s4644 + $0x2f2] sm:$0xff]
    %v5861 = vld [vmem:[%s4644 + $0x302] sm:$0xff]
    %v5862 = vld [vmem:[%s4644 + $0x30a] sm:$0xff]
    %v5863 = vld [vmem:[%s4644 + $0x31a] sm:$0xff]
    %v5864 = vld [vmem:[%s4644 + $0x322] sm:$0xff]
    %v5865 = vpack.c.bf16 %v5802, %v5801
    %v5866 = vpack.c.bf16 %v5804, %v5803
    %v5867 = vpack.c.bf16 %v5806, %v5805
    %v5868 = vpack.c.bf16 %v5808, %v5807
    %v5869 = vpack.c.bf16 %v5810, %v5809
    %v5870 = vpack.c.bf16 %v5812, %v5811
    %v5871 = vpack.c.bf16 %v5814, %v5813
    %v5872 = vpack.c.bf16 %v5816, %v5815
    %v5873 = vpack.c.bf16 %v5818, %v5817
    %v5874 = vpack.c.bf16 %v5820, %v5819
    %v5875 = vpack.c.bf16 %v5822, %v5821
    %v5876 = vpack.c.bf16 %v5824, %v5823
    %v5877 = vpack.c.bf16 %v5826, %v5825
    %v5878 = vpack.c.bf16 %v5828, %v5827
    %v5879 = vpack.c.bf16 %v5830, %v5829
    %v5880 = vpack.c.bf16 %v5832, %v5831
    %v5881 = vpack.c.bf16 %v5834, %v5833
    %v5882 = vpack.c.bf16 %v5836, %v5835
    %v5883 = vpack.c.bf16 %v5838, %v5837
    %v5884 = vpack.c.bf16 %v5840, %v5839
    %v5885 = vpack.c.bf16 %v5842, %v5841
    %v5886 = vpack.c.bf16 %v5844, %v5843
    %v5887 = vpack.c.bf16 %v5846, %v5845
    %v5888 = vpack.c.bf16 %v5848, %v5847
    %v5889 = vpack.c.bf16 %v5850, %v5849
    %v5890 = vpack.c.bf16 %v5852, %v5851
    %v5891 = vpack.c.bf16 %v5854, %v5853
    %v5892 = vpack.c.bf16 %v5856, %v5855
    %v5893 = vpack.c.bf16 %v5858, %v5857
    %v5894 = vpack.c.bf16 %v5860, %v5859
    %v5895 = vpack.c.bf16 %v5862, %v5861
    %v5896 = vpack.c.bf16 %v5864, %v5863
    %s5897 = scalar_lea.vmem [#allocation8], 256
    %v5898 = vld [vmem:[%s5897] sm:$0xf]
    %v5899 = vld [vmem:[%s5897 + $0x4] sm:$0xf]
    %v5900 = vld [vmem:[%s5897 + $0x8] sm:$0xf]
    %v5901 = vld [vmem:[%s5897 + $0xc] sm:$0xf]
    %v5902 = vld [vmem:[%s5897 + $0x10] sm:$0xf]
    %v5903 = vld [vmem:[%s5897 + $0x14] sm:$0xf]
    %v5904 = vld [vmem:[%s5897 + $0x18] sm:$0xf]
    %v5905 = vld [vmem:[%s5897 + $0x1c] sm:$0xf]
    %v5914 = vunpack.c.l.b16 %v5898
    %v5915 = vunpack.c.l.b16 %v5899
    %v5916 = vunpack.c.l.b16 %v5900
    %v5917 = vunpack.c.l.b16 %v5901
    %v5918 = vunpack.c.l.b16 %v5902
    %v5919 = vunpack.c.l.b16 %v5903
    %v5920 = vunpack.c.l.b16 %v5904
    %v5921 = vunpack.c.l.b16 %v5905
    %v5922 = vpack.c.b16 %v5915, %v5914
    %v5923 = vpack.c.b16 %v5917, %v5916
    %v5924 = vpack.c.b16 %v5919, %v5918
    %v5925 = vpack.c.b16 %v5921, %v5920
    %v5931 = vsel %vm218, %v5865, 0
    %v5934 = vsel %vm218, %v5866, 0
    %v5937 = vsel %vm218, %v5867, 0
    %v5940 = vsel %vm218, %v5868, 0
    %v5943 = vsel %vm218, %v5869, 0
    %v5946 = vsel %vm218, %v5870, 0
    %v5949 = vsel %vm218, %v5871, 0
    %v5952 = vsel %vm218, %v5872, 0
    %v5955 = vsel %vm218, %v5873, 0
    %v5958 = vsel %vm218, %v5874, 0
    %v5961 = vsel %vm218, %v5875, 0
    %v5964 = vsel %vm218, %v5876, 0
    %v5967 = vsel %vm218, %v5877, 0
    %v5970 = vsel %vm218, %v5878, 0
    %v5973 = vsel %vm218, %v5879, 0
    %v5976 = vsel %vm218, %v5880, 0
    %v5979 = vsel %vm218, %v5881, 0
    %v5982 = vsel %vm218, %v5882, 0
    %v5985 = vsel %vm218, %v5883, 0
    %v5988 = vsel %vm218, %v5884, 0
    %v5991 = vsel %vm218, %v5885, 0
    %v5994 = vsel %vm218, %v5886, 0
    %v5997 = vsel %vm218, %v5887, 0
    %v6000 = vsel %vm218, %v5888, 0
    %v6003 = vsel %vm218, %v5889, 0
    %v6006 = vsel %vm218, %v5890, 0
    %v6009 = vsel %vm218, %v5891, 0
    %v6012 = vsel %vm218, %v5892, 0
    %v6015 = vsel %vm218, %v5893, 0
    %v6018 = vsel %vm218, %v5894, 0
    %v6021 = vsel %vm218, %v5895, 0
    %v6024 = vsel %vm218, %v5896, 0
    %6026 = vmatprep.subr.bf16.mxu0 0
    %6027 = vmatpush1.bf16.msra.mxu0 %v5922
    %6028 = vmatprep.subr.bf16.mxu0 0
    %6029 = vmatpush1.bf16.msra.mxu0 %v5923
    %6030 = vmatprep.subr.bf16.mxu0 0
    %6031 = vmatpush1.bf16.msra.mxu0 %v5924
    %6032 = vmatprep.subr.bf16.mxu0 0
    %6033 = vmatpush1.bf16.msra.mxu0 %v5925
    %6034 = vmatprep.subr.bf16.mxu0 0
    %6035 = vmatpush1.bf16.msra.mxu0 0
    %6036 = vmatprep.subr.bf16.mxu0 0
    %6037 = vmatpush1.bf16.msra.mxu0 0
    %6038 = vmatprep.subr.bf16.mxu0 0
    %6039 = vmatpush1.bf16.msra.mxu0 0
    %6040 = vmatprep.subr.bf16.mxu0 0
    %6041 = vmatpush1.bf16.msra.mxu0 0
    %6042 = vmatprep.subr.bf16.mxu0 0
    %6043 = vmatpush1.bf16.msra.mxu0 0
    %6044 = vmatprep.subr.bf16.mxu0 0
    %6045 = vmatpush1.bf16.msra.mxu0 0
    %6046 = vmatprep.subr.bf16.mxu0 0
    %6047 = vmatpush1.bf16.msra.mxu0 0
    %6048 = vmatprep.subr.bf16.mxu0 0
    %6049 = vmatpush1.bf16.msra.mxu0 0
    %6050 = vmatprep.subr.bf16.mxu0 0
    %6051 = vmatpush1.bf16.msra.mxu0 0
    %6052 = vmatprep.subr.bf16.mxu0 0
    %6053 = vmatpush1.bf16.msra.mxu0 0
    %6054 = vmatprep.subr.bf16.mxu0 0
    %6055 = vmatpush1.bf16.msra.mxu0 0
    %6056 = vmatprep.subr.bf16.mxu0 0
    %6057 = vmatpush1.bf16.msra.mxu0 0
    %6058 = vmatprep.mubr.bf16.mxu0 0
    %6059 = vmatmul.mubr.bf16.gmra.mrb[0].mxu0 %v5931
    %v6060 = vpop.f32.mrb[0].mxu0
    %v6061 = vadd.f32 0.0, %v6060
    %v6062 = vpop.f32.mrb[0].mxu0
    %v6063 = vpop.f32.mrb[0].mxu0
    %v6064 = vadd.f32 0.0, %v6063
    %v6065 = vpop.f32.mrb[0].mxu0
    %6066 = vmatprep.mubr.bf16.mxu0 0
    %6067 = vmatmul.mubr.bf16.gmra.mrb[0].mxu0 %v5934
    %v6068 = vpop.f32.mrb[0].mxu0
    %v6069 = vadd.f32 0.0, %v6068
    %v6070 = vpop.f32.mrb[0].mxu0
    %v6071 = vpop.f32.mrb[0].mxu0
    %v6072 = vadd.f32 0.0, %v6071
    %v6073 = vpop.f32.mrb[0].mxu0
    %6074 = vmatprep.mubr.bf16.mxu0 0
    %6075 = vmatmul.mubr.bf16.gmra.mrb[0].mxu0 %v5937
    %v6076 = vpop.f32.mrb[0].mxu0
    %v6077 = vadd.f32 0.0, %v6076
    %v6078 = vpop.f32.mrb[0].mxu0
    %v6079 = vpop.f32.mrb[0].mxu0
    %v6080 = vadd.f32 0.0, %v6079
    %v6081 = vpop.f32.mrb[0].mxu0
    %6082 = vmatprep.mubr.bf16.mxu0 0
    %6083 = vmatmul.mubr.bf16.gmra.mrb[0].mxu0 %v5940
    %v6084 = vpop.f32.mrb[0].mxu0
    %v6085 = vadd.f32 0.0, %v6084
    %v6086 = vpop.f32.mrb[0].mxu0
    %v6087 = vpop.f32.mrb[0].mxu0
    %v6088 = vadd.f32 0.0, %v6087
    %v6089 = vpop.f32.mrb[0].mxu0
    %6090 = vmatprep.mubr.bf16.mxu0 0
    %6091 = vmatmul.mubr.bf16.gmra.mrb[0].mxu0 %v5943
    %v6092 = vpop.f32.mrb[0].mxu0
    %v6093 = vadd.f32 0.0, %v6092
    %v6094 = vpop.f32.mrb[0].mxu0
    %v6095 = vpop.f32.mrb[0].mxu0
    %v6096 = vadd.f32 0.0, %v6095
    %v6097 = vpop.f32.mrb[0].mxu0
    %6098 = vmatprep.mubr.bf16.mxu0 0
    %6099 = vmatmul.mubr.bf16.gmra.mrb[0].mxu0 %v5946
    %v6100 = vpop.f32.mrb[0].mxu0
    %v6101 = vadd.f32 0.0, %v6100
    %v6102 = vpop.f32.mrb[0].mxu0
    %v6103 = vpop.f32.mrb[0].mxu0
    %v6104 = vadd.f32 0.0, %v6103
    %v6105 = vpop.f32.mrb[0].mxu0
    %6106 = vmatprep.mubr.bf16.mxu0 0
    %6107 = vmatmul.mubr.bf16.gmra.mrb[0].mxu0 %v5949
    %v6108 = vpop.f32.mrb[0].mxu0
    %v6109 = vadd.f32 0.0, %v6108
    %v6110 = vpop.f32.mrb[0].mxu0
    %v6111 = vpop.f32.mrb[0].mxu0
    %v6112 = vadd.f32 0.0, %v6111
    %v6113 = vpop.f32.mrb[0].mxu0
    %6114 = vmatprep.mubr.bf16.mxu0 0
    %6115 = vmatmul.mubr.bf16.gmra.mrb[0].mxu0 %v5952
    %v6116 = vpop.f32.mrb[0].mxu0
    %v6117 = vadd.f32 0.0, %v6116
    %v6118 = vpop.f32.mrb[0].mxu0
    %v6119 = vpop.f32.mrb[0].mxu0
    %v6120 = vadd.f32 0.0, %v6119
    %v6121 = vpop.f32.mrb[0].mxu0
    %6122 = vmatprep.mubr.bf16.mxu0 0
    %6123 = vmatmul.mubr.bf16.gmra.mrb[0].mxu0 %v5955
    %v6124 = vpop.f32.mrb[0].mxu0
    %v6125 = vadd.f32 0.0, %v6124
    %v6126 = vpop.f32.mrb[0].mxu0
    %v6127 = vpop.f32.mrb[0].mxu0
    %v6128 = vadd.f32 0.0, %v6127
    %v6129 = vpop.f32.mrb[0].mxu0
    %6130 = vmatprep.mubr.bf16.mxu0 0
    %6131 = vmatmul.mubr.bf16.gmra.mrb[0].mxu0 %v5958
    %v6132 = vpop.f32.mrb[0].mxu0
    %v6133 = vadd.f32 0.0, %v6132
    %v6134 = vpop.f32.mrb[0].mxu0
    %v6135 = vpop.f32.mrb[0].mxu0
    %v6136 = vadd.f32 0.0, %v6135
    %v6137 = vpop.f32.mrb[0].mxu0
    %6138 = vmatprep.mubr.bf16.mxu0 0
    %6139 = vmatmul.mubr.bf16.gmra.mrb[0].mxu0 %v5961
    %v6140 = vpop.f32.mrb[0].mxu0
    %v6141 = vadd.f32 0.0, %v6140
    %v6142 = vpop.f32.mrb[0].mxu0
    %v6143 = vpop.f32.mrb[0].mxu0
    %v6144 = vadd.f32 0.0, %v6143
    %v6145 = vpop.f32.mrb[0].mxu0
    %6146 = vmatprep.mubr.bf16.mxu0 0
    %6147 = vmatmul.mubr.bf16.gmra.mrb[0].mxu0 %v5964
    %v6148 = vpop.f32.mrb[0].mxu0
    %v6149 = vadd.f32 0.0, %v6148
    %v6150 = vpop.f32.mrb[0].mxu0
    %v6151 = vpop.f32.mrb[0].mxu0
    %v6152 = vadd.f32 0.0, %v6151
    %v6153 = vpop.f32.mrb[0].mxu0
    %6154 = vmatprep.mubr.bf16.mxu0 0
    %6155 = vmatmul.mubr.bf16.gmra.mrb[0].mxu0 %v5967
    %v6156 = vpop.f32.mrb[0].mxu0
    %v6157 = vadd.f32 0.0, %v6156
    %v6158 = vpop.f32.mrb[0].mxu0
    %v6159 = vpop.f32.mrb[0].mxu0
    %v6160 = vadd.f32 0.0, %v6159
    %v6161 = vpop.f32.mrb[0].mxu0
    %6162 = vmatprep.mubr.bf16.mxu0 0
    %6163 = vmatmul.mubr.bf16.gmra.mrb[0].mxu0 %v5970
    %v6164 = vpop.f32.mrb[0].mxu0
    %v6165 = vadd.f32 0.0, %v6164
    %v6166 = vpop.f32.mrb[0].mxu0
    %v6167 = vpop.f32.mrb[0].mxu0
    %v6168 = vadd.f32 0.0, %v6167
    %v6169 = vpop.f32.mrb[0].mxu0
    %6170 = vmatprep.mubr.bf16.mxu0 0
    %6171 = vmatmul.mubr.bf16.gmra.mrb[0].mxu0 %v5973
    %v6172 = vpop.f32.mrb[0].mxu0
    %v6173 = vadd.f32 0.0, %v6172
    %v6174 = vpop.f32.mrb[0].mxu0
    %v6175 = vpop.f32.mrb[0].mxu0
    %v6176 = vadd.f32 0.0, %v6175
    %v6177 = vpop.f32.mrb[0].mxu0
    %6178 = vmatprep.mubr.bf16.mxu0 0
    %6179 = vmatmul.mubr.bf16.gmra.mrb[0].mxu0 %v5976
    %v6180 = vpop.f32.mrb[0].mxu0
    %v6181 = vadd.f32 0.0, %v6180
    %v6182 = vpop.f32.mrb[0].mxu0
    %v6183 = vpop.f32.mrb[0].mxu0
    %v6184 = vadd.f32 0.0, %v6183
    %v6185 = vpop.f32.mrb[0].mxu0
    %6186 = vmatprep.mubr.bf16.mxu0 0
    %6187 = vmatmul.mubr.bf16.gmra.mrb[0].mxu0 %v5979
    %v6188 = vpop.f32.mrb[0].mxu0
    %v6189 = vadd.f32 0.0, %v6188
    %v6190 = vpop.f32.mrb[0].mxu0
    %v6191 = vpop.f32.mrb[0].mxu0
    %v6192 = vadd.f32 0.0, %v6191
    %v6193 = vpop.f32.mrb[0].mxu0
    %6194 = vmatprep.mubr.bf16.mxu0 0
    %6195 = vmatmul.mubr.bf16.gmra.mrb[0].mxu0 %v5982
    %v6196 = vpop.f32.mrb[0].mxu0
    %v6197 = vadd.f32 0.0, %v6196
    %v6198 = vpop.f32.mrb[0].mxu0
    %v6199 = vpop.f32.mrb[0].mxu0
    %v6200 = vadd.f32 0.0, %v6199
    %v6201 = vpop.f32.mrb[0].mxu0
    %6202 = vmatprep.mubr.bf16.mxu0 0
    %6203 = vmatmul.mubr.bf16.gmra.mrb[0].mxu0 %v5985
    %v6204 = vpop.f32.mrb[0].mxu0
    %v6205 = vadd.f32 0.0, %v6204
    %v6206 = vpop.f32.mrb[0].mxu0
    %v6207 = vpop.f32.mrb[0].mxu0
    %v6208 = vadd.f32 0.0, %v6207
    %v6209 = vpop.f32.mrb[0].mxu0
    %6210 = vmatprep.mubr.bf16.mxu0 0
    %6211 = vmatmul.mubr.bf16.gmra.mrb[0].mxu0 %v5988
    %v6212 = vpop.f32.mrb[0].mxu0
    %v6213 = vadd.f32 0.0, %v6212
    %v6214 = vpop.f32.mrb[0].mxu0
    %v6215 = vpop.f32.mrb[0].mxu0
    %v6216 = vadd.f32 0.0, %v6215
    %v6217 = vpop.f32.mrb[0].mxu0
    %6218 = vmatprep.mubr.bf16.mxu0 0
    %6219 = vmatmul.mubr.bf16.gmra.mrb[0].mxu0 %v5991
    %v6220 = vpop.f32.mrb[0].mxu0
    %v6221 = vadd.f32 0.0, %v6220
    %v6222 = vpop.f32.mrb[0].mxu0
    %v6223 = vpop.f32.mrb[0].mxu0
    %v6224 = vadd.f32 0.0, %v6223
    %v6225 = vpop.f32.mrb[0].mxu0
    %6226 = vmatprep.mubr.bf16.mxu0 0
    %6227 = vmatmul.mubr.bf16.gmra.mrb[0].mxu0 %v5994
    %v6228 = vpop.f32.mrb[0].mxu0
    %v6229 = vadd.f32 0.0, %v6228
    %v6230 = vpop.f32.mrb[0].mxu0
    %v6231 = vpop.f32.mrb[0].mxu0
    %v6232 = vadd.f32 0.0, %v6231
    %v6233 = vpop.f32.mrb[0].mxu0
    %6234 = vmatprep.mubr.bf16.mxu0 0
    %6235 = vmatmul.mubr.bf16.gmra.mrb[0].mxu0 %v5997
    %v6236 = vpop.f32.mrb[0].mxu0
    %v6237 = vadd.f32 0.0, %v6236
    %v6238 = vpop.f32.mrb[0].mxu0
    %v6239 = vpop.f32.mrb[0].mxu0
    %v6240 = vadd.f32 0.0, %v6239
    %v6241 = vpop.f32.mrb[0].mxu0
    %6242 = vmatprep.mubr.bf16.mxu0 0
    %6243 = vmatmul.mubr.bf16.gmra.mrb[0].mxu0 %v6000
    %v6244 = vpop.f32.mrb[0].mxu0
    %v6245 = vadd.f32 0.0, %v6244
    %v6246 = vpop.f32.mrb[0].mxu0
    %v6247 = vpop.f32.mrb[0].mxu0
    %v6248 = vadd.f32 0.0, %v6247
    %v6249 = vpop.f32.mrb[0].mxu0
    %6250 = vmatprep.mubr.bf16.mxu0 0
    %6251 = vmatmul.mubr.bf16.gmra.mrb[0].mxu0 %v6003
    %v6252 = vpop.f32.mrb[0].mxu0
    %v6253 = vadd.f32 0.0, %v6252
    %v6254 = vpop.f32.mrb[0].mxu0
    %v6255 = vpop.f32.mrb[0].mxu0
    %v6256 = vadd.f32 0.0, %v6255
    %v6257 = vpop.f32.mrb[0].mxu0
    %6258 = vmatprep.mubr.bf16.mxu0 0
    %6259 = vmatmul.mubr.bf16.gmra.mrb[0].mxu0 %v6006
    %v6260 = vpop.f32.mrb[0].mxu0
    %v6261 = vadd.f32 0.0, %v6260
    %v6262 = vpop.f32.mrb[0].mxu0
    %v6263 = vpop.f32.mrb[0].mxu0
    %v6264 = vadd.f32 0.0, %v6263
    %v6265 = vpop.f32.mrb[0].mxu0
    %6266 = vmatprep.mubr.bf16.mxu0 0
    %6267 = vmatmul.mubr.bf16.gmra.mrb[0].mxu0 %v6009
    %v6268 = vpop.f32.mrb[0].mxu0
    %v6269 = vadd.f32 0.0, %v6268
    %v6270 = vpop.f32.mrb[0].mxu0
    %v6271 = vpop.f32.mrb[0].mxu0
    %v6272 = vadd.f32 0.0, %v6271
    %v6273 = vpop.f32.mrb[0].mxu0
    %6274 = vmatprep.mubr.bf16.mxu0 0
    %6275 = vmatmul.mubr.bf16.gmra.mrb[0].mxu0 %v6012
    %v6276 = vpop.f32.mrb[0].mxu0
    %v6277 = vadd.f32 0.0, %v6276
    %v6278 = vpop.f32.mrb[0].mxu0
    %v6279 = vpop.f32.mrb[0].mxu0
    %v6280 = vadd.f32 0.0, %v6279
    %v6281 = vpop.f32.mrb[0].mxu0
    %6282 = vmatprep.mubr.bf16.mxu0 0
    %6283 = vmatmul.mubr.bf16.gmra.mrb[0].mxu0 %v6015
    %v6284 = vpop.f32.mrb[0].mxu0
    %v6285 = vadd.f32 0.0, %v6284
    %v6286 = vpop.f32.mrb[0].mxu0
    %v6287 = vpop.f32.mrb[0].mxu0
    %v6288 = vadd.f32 0.0, %v6287
    %v6289 = vpop.f32.mrb[0].mxu0
    %6290 = vmatprep.mubr.bf16.mxu0 0
    %6291 = vmatmul.mubr.bf16.gmra.mrb[0].mxu0 %v6018
    %v6292 = vpop.f32.mrb[0].mxu0
    %v6293 = vadd.f32 0.0, %v6292
    %v6294 = vpop.f32.mrb[0].mxu0
    %v6295 = vpop.f32.mrb[0].mxu0
    %v6296 = vadd.f32 0.0, %v6295
    %v6297 = vpop.f32.mrb[0].mxu0
    %6298 = vmatprep.mubr.bf16.mxu0 0
    %6299 = vmatmul.mubr.bf16.gmra.mrb[0].mxu0 %v6021
    %v6300 = vpop.f32.mrb[0].mxu0
    %v6301 = vadd.f32 0.0, %v6300
    %v6302 = vpop.f32.mrb[0].mxu0
    %v6303 = vpop.f32.mrb[0].mxu0
    %v6304 = vadd.f32 0.0, %v6303
    %v6305 = vpop.f32.mrb[0].mxu0
    %6306 = vmatprep.mubr.bf16.mxu0 0
    %6307 = vmatmul.mubr.bf16.gmra.mrb[0].mxu0 %v6024
    %v6308 = vpop.f32.mrb[0].mxu0
    %v6309 = vadd.f32 0.0, %v6308
    %v6310 = vpop.f32.mrb[0].mxu0
    %v6311 = vpop.f32.mrb[0].mxu0
    %v6312 = vadd.f32 0.0, %v6311
    %v6313 = vpop.f32.mrb[0].mxu0
    %6314 = vdwg.mxu0
    %v6315 = vadd.f32 %v5737, %v6061
    %v6316 = vadd.f32 %v5738, %v6064
    %v6317 = vadd.f32 %v5739, %v6069
    %v6318 = vadd.f32 %v5740, %v6072
    %v6319 = vadd.f32 %v5741, %v6077
    %v6320 = vadd.f32 %v5742, %v6080
    %v6321 = vadd.f32 %v5743, %v6085
    %v6322 = vadd.f32 %v5744, %v6088
    %v6323 = vadd.f32 %v5745, %v6093
    %v6324 = vadd.f32 %v5746, %v6096
    %v6325 = vadd.f32 %v5747, %v6101
    %v6326 = vadd.f32 %v5748, %v6104
    %v6327 = vadd.f32 %v5749, %v6109
    %v6328 = vadd.f32 %v5750, %v6112
    %v6329 = vadd.f32 %v5751, %v6117
    %v6330 = vadd.f32 %v5752, %v6120
    %v6331 = vadd.f32 %v5753, %v6125
    %v6332 = vadd.f32 %v5754, %v6128
    %v6333 = vadd.f32 %v5755, %v6133
    %v6334 = vadd.f32 %v5756, %v6136
    %v6335 = vadd.f32 %v5757, %v6141
    %v6336 = vadd.f32 %v5758, %v6144
    %v6337 = vadd.f32 %v5759, %v6149
    %v6338 = vadd.f32 %v5760, %v6152
    %v6339 = vadd.f32 %v5761, %v6157
    %v6340 = vadd.f32 %v5762, %v6160
    %v6341 = vadd.f32 %v5763, %v6165
    %v6342 = vadd.f32 %v5764, %v6168
    %v6343 = vadd.f32 %v5765, %v6173
    %v6344 = vadd.f32 %v5766, %v6176
    %v6345 = vadd.f32 %v5767, %v6181
    %v6346 = vadd.f32 %v5768, %v6184
    %v6347 = vadd.f32 %v5769, %v6189
    %v6348 = vadd.f32 %v5770, %v6192
    %v6349 = vadd.f32 %v5771, %v6197
    %v6350 = vadd.f32 %v5772, %v6200
    %v6351 = vadd.f32 %v5773, %v6205
    %v6352 = vadd.f32 %v5774, %v6208
    %v6353 = vadd.f32 %v5775, %v6213
    %v6354 = vadd.f32 %v5776, %v6216
    %v6355 = vadd.f32 %v5777, %v6221
    %v6356 = vadd.f32 %v5778, %v6224
    %v6357 = vadd.f32 %v5779, %v6229
    %v6358 = vadd.f32 %v5780, %v6232
    %v6359 = vadd.f32 %v5781, %v6237
    %v6360 = vadd.f32 %v5782, %v6240
    %v6361 = vadd.f32 %v5783, %v6245
    %v6362 = vadd.f32 %v5784, %v6248
    %v6363 = vadd.f32 %v5785, %v6253
    %v6364 = vadd.f32 %v5786, %v6256
    %v6365 = vadd.f32 %v5787, %v6261
    %v6366 = vadd.f32 %v5788, %v6264
    %v6367 = vadd.f32 %v5789, %v6269
    %v6368 = vadd.f32 %v5790, %v6272
    %v6369 = vadd.f32 %v5791, %v6277
    %v6370 = vadd.f32 %v5792, %v6280
    %v6371 = vadd.f32 %v5793, %v6285
    %v6372 = vadd.f32 %v5794, %v6288
    %v6373 = vadd.f32 %v5795, %v6293
    %v6374 = vadd.f32 %v5796, %v6296
    %v6375 = vadd.f32 %v5797, %v6301
    %v6376 = vadd.f32 %v5798, %v6304
    %v6377 = vadd.f32 %v5799, %v6309
    %v6378 = vadd.f32 %v5800, %v6312
    %v6379 = vsel %vm218, %v6315, 0.0
    %v6380 = vsel %vm218, %v6316, 0.0
    %v6381 = vadd.f32 %v6379, %v6380
    %v6382 = vsel %vm218, %v6317, 0.0
    %v6383 = vadd.f32 %v6381, %v6382
    %v6384 = vsel %vm218, %v6318, 0.0
    %v6385 = vadd.f32 %v6383, %v6384
    %v6386 = vsel %vm218, %v6319, 0.0
    %v6387 = vadd.f32 %v6385, %v6386
    %v6388 = vsel %vm218, %v6320, 0.0
    %v6389 = vadd.f32 %v6387, %v6388
    %v6390 = vsel %vm218, %v6321, 0.0
    %v6391 = vadd.f32 %v6389, %v6390
    %v6392 = vsel %vm218, %v6322, 0.0
    %v6393 = vadd.f32 %v6391, %v6392
    %v6394 = vsel %vm218, %v6323, 0.0
    %v6395 = vadd.f32 %v6393, %v6394
    %v6396 = vsel %vm218, %v6324, 0.0
    %v6397 = vadd.f32 %v6395, %v6396
    %v6398 = vsel %vm218, %v6325, 0.0
    %v6399 = vadd.f32 %v6397, %v6398
    %v6400 = vsel %vm218, %v6326, 0.0
    %v6401 = vadd.f32 %v6399, %v6400
    %v6402 = vsel %vm218, %v6327, 0.0
    %v6403 = vadd.f32 %v6401, %v6402
    %v6404 = vsel %vm218, %v6328, 0.0
    %v6405 = vadd.f32 %v6403, %v6404
    %v6406 = vsel %vm218, %v6329, 0.0
    %v6407 = vadd.f32 %v6405, %v6406
    %v6408 = vsel %vm218, %v6330, 0.0
    %v6409 = vadd.f32 %v6407, %v6408
    %v6410 = vsel %vm218, %v6331, 0.0
    %v6411 = vadd.f32 %v6409, %v6410
    %v6412 = vsel %vm218, %v6332, 0.0
    %v6413 = vadd.f32 %v6411, %v6412
    %v6414 = vsel %vm218, %v6333, 0.0
    %v6415 = vadd.f32 %v6413, %v6414
    %v6416 = vsel %vm218, %v6334, 0.0
    %v6417 = vadd.f32 %v6415, %v6416
    %v6418 = vsel %vm218, %v6335, 0.0
    %v6419 = vadd.f32 %v6417, %v6418
    %v6420 = vsel %vm218, %v6336, 0.0
    %v6421 = vadd.f32 %v6419, %v6420
    %v6422 = vsel %vm218, %v6337, 0.0
    %v6423 = vadd.f32 %v6421, %v6422
    %v6424 = vsel %vm218, %v6338, 0.0
    %v6425 = vadd.f32 %v6423, %v6424
    %v6426 = vsel %vm218, %v6339, 0.0
    %v6427 = vadd.f32 %v6425, %v6426
    %v6428 = vsel %vm218, %v6340, 0.0
    %v6429 = vadd.f32 %v6427, %v6428
    %v6430 = vsel %vm218, %v6341, 0.0
    %v6431 = vadd.f32 %v6429, %v6430
    %v6432 = vsel %vm218, %v6342, 0.0
    %v6433 = vadd.f32 %v6431, %v6432
    %v6434 = vsel %vm218, %v6343, 0.0
    %v6435 = vadd.f32 %v6433, %v6434
    %v6436 = vsel %vm218, %v6344, 0.0
    %v6437 = vadd.f32 %v6435, %v6436
    %v6438 = vsel %vm218, %v6345, 0.0
    %v6439 = vadd.f32 %v6437, %v6438
    %v6440 = vsel %vm218, %v6346, 0.0
    %v6441 = vadd.f32 %v6439, %v6440
    %v6442 = vsel %vm218, %v6347, 0.0
    %v6443 = vadd.f32 %v6441, %v6442
    %v6444 = vsel %vm218, %v6348, 0.0
    %v6445 = vadd.f32 %v6443, %v6444
    %v6446 = vsel %vm218, %v6349, 0.0
    %v6447 = vadd.f32 %v6445, %v6446
    %v6448 = vsel %vm218, %v6350, 0.0
    %v6449 = vadd.f32 %v6447, %v6448
    %v6450 = vsel %vm218, %v6351, 0.0
    %v6451 = vadd.f32 %v6449, %v6450
    %v6452 = vsel %vm218, %v6352, 0.0
    %v6453 = vadd.f32 %v6451, %v6452
    %v6454 = vsel %vm218, %v6353, 0.0
    %v6455 = vadd.f32 %v6453, %v6454
    %v6456 = vsel %vm218, %v6354, 0.0
    %v6457 = vadd.f32 %v6455, %v6456
    %v6458 = vsel %vm218, %v6355, 0.0
    %v6459 = vadd.f32 %v6457, %v6458
    %v6460 = vsel %vm218, %v6356, 0.0
    %v6461 = vadd.f32 %v6459, %v6460
    %v6462 = vsel %vm218, %v6357, 0.0
    %v6463 = vadd.f32 %v6461, %v6462
    %v6464 = vsel %vm218, %v6358, 0.0
    %v6465 = vadd.f32 %v6463, %v6464
    %v6466 = vsel %vm218, %v6359, 0.0
    %v6467 = vadd.f32 %v6465, %v6466
    %v6468 = vsel %vm218, %v6360, 0.0
    %v6469 = vadd.f32 %v6467, %v6468
    %v6470 = vsel %vm218, %v6361, 0.0
    %v6471 = vadd.f32 %v6469, %v6470
    %v6472 = vsel %vm218, %v6362, 0.0
    %v6473 = vadd.f32 %v6471, %v6472
    %v6474 = vsel %vm218, %v6363, 0.0
    %v6475 = vadd.f32 %v6473, %v6474
    %v6476 = vsel %vm218, %v6364, 0.0
    %v6477 = vadd.f32 %v6475, %v6476
    %v6478 = vsel %vm218, %v6365, 0.0
    %v6479 = vadd.f32 %v6477, %v6478
    %v6480 = vsel %vm218, %v6366, 0.0
    %v6481 = vadd.f32 %v6479, %v6480
    %v6482 = vsel %vm218, %v6367, 0.0
    %v6483 = vadd.f32 %v6481, %v6482
    %v6484 = vsel %vm218, %v6368, 0.0
    %v6485 = vadd.f32 %v6483, %v6484
    %v6486 = vsel %vm218, %v6369, 0.0
    %v6487 = vadd.f32 %v6485, %v6486
    %v6488 = vsel %vm218, %v6370, 0.0
    %v6489 = vadd.f32 %v6487, %v6488
    %v6490 = vsel %vm218, %v6371, 0.0
    %v6491 = vadd.f32 %v6489, %v6490
    %v6492 = vsel %vm218, %v6372, 0.0
    %v6493 = vadd.f32 %v6491, %v6492
    %v6494 = vsel %vm218, %v6373, 0.0
    %v6495 = vadd.f32 %v6493, %v6494
    %v6496 = vsel %vm218, %v6374, 0.0
    %v6497 = vadd.f32 %v6495, %v6496
    %v6498 = vsel %vm218, %v6375, 0.0
    %v6499 = vadd.f32 %v6497, %v6498
    %v6500 = vsel %vm218, %v6376, 0.0
    %v6501 = vadd.f32 %v6499, %v6500
    %v6502 = vsel %vm218, %v6377, 0.0
    %v6503 = vadd.f32 %v6501, %v6502
    %v6504 = vsel %vm218, %v6378, 0.0
    %v6505 = vadd.f32 %v6503, %v6504
    %v6506 = vrot.slane %v6505, 4
    %v6507 = vadd.f32 %v6505, %v6506
    %v6508 = vrot.slane %v6507, 2
    %v6509 = vadd.f32 %v6507, %v6508
    %v6510 = vrot.slane %v6509, 1
    %v6511 = vadd.f32 %v6509, %v6510
    %v6512 = vmul.f32 %v6511, %v737
    %v6513 = vsub.f32 %v6315, %v6512
    %v6514 = vsub.f32 %v6316, %v6512
    %v6515 = vsub.f32 %v6317, %v6512
    %v6516 = vsub.f32 %v6318, %v6512
    %v6517 = vsub.f32 %v6319, %v6512
    %v6518 = vsub.f32 %v6320, %v6512
    %v6519 = vsub.f32 %v6321, %v6512
    %v6520 = vsub.f32 %v6322, %v6512
    %v6521 = vsub.f32 %v6323, %v6512
    %v6522 = vsub.f32 %v6324, %v6512
    %v6523 = vsub.f32 %v6325, %v6512
    %v6524 = vsub.f32 %v6326, %v6512
    %v6525 = vsub.f32 %v6327, %v6512
    %v6526 = vsub.f32 %v6328, %v6512
    %v6527 = vsub.f32 %v6329, %v6512
    %v6528 = vsub.f32 %v6330, %v6512
    %v6529 = vsub.f32 %v6331, %v6512
    %v6530 = vsub.f32 %v6332, %v6512
    %v6531 = vsub.f32 %v6333, %v6512
    %v6532 = vsub.f32 %v6334, %v6512
    %v6533 = vsub.f32 %v6335, %v6512
    %v6534 = vsub.f32 %v6336, %v6512
    %v6535 = vsub.f32 %v6337, %v6512
    %v6536 = vsub.f32 %v6338, %v6512
    %v6537 = vsub.f32 %v6339, %v6512
    %v6538 = vsub.f32 %v6340, %v6512
    %v6539 = vsub.f32 %v6341, %v6512
    %v6540 = vsub.f32 %v6342, %v6512
    %v6541 = vsub.f32 %v6343, %v6512
    %v6542 = vsub.f32 %v6344, %v6512
    %v6543 = vsub.f32 %v6345, %v6512
    %v6544 = vsub.f32 %v6346, %v6512
    %v6545 = vsub.f32 %v6347, %v6512
    %v6546 = vsub.f32 %v6348, %v6512
    %v6547 = vsub.f32 %v6349, %v6512
    %v6548 = vsub.f32 %v6350, %v6512
    %v6549 = vsub.f32 %v6351, %v6512
    %v6550 = vsub.f32 %v6352, %v6512
    %v6551 = vsub.f32 %v6353, %v6512
    %v6552 = vsub.f32 %v6354, %v6512
    %v6553 = vsub.f32 %v6355, %v6512
    %v6554 = vsub.f32 %v6356, %v6512
    %v6555 = vsub.f32 %v6357, %v6512
    %v6556 = vsub.f32 %v6358, %v6512
    %v6557 = vsub.f32 %v6359, %v6512
    %v6558 = vsub.f32 %v6360, %v6512
    %v6559 = vsub.f32 %v6361, %v6512
    %v6560 = vsub.f32 %v6362, %v6512
    %v6561 = vsub.f32 %v6363, %v6512
    %v6562 = vsub.f32 %v6364, %v6512
    %v6563 = vsub.f32 %v6365, %v6512
    %v6564 = vsub.f32 %v6366, %v6512
    %v6565 = vsub.f32 %v6367, %v6512
    %v6566 = vsub.f32 %v6368, %v6512
    %v6567 = vsub.f32 %v6369, %v6512
    %v6568 = vsub.f32 %v6370, %v6512
    %v6569 = vsub.f32 %v6371, %v6512
    %v6570 = vsub.f32 %v6372, %v6512
    %v6571 = vsub.f32 %v6373, %v6512
    %v6572 = vsub.f32 %v6374, %v6512
    %v6573 = vsub.f32 %v6375, %v6512
    %v6574 = vsub.f32 %v6376, %v6512
    %v6575 = vsub.f32 %v6377, %v6512
    %v6576 = vsub.f32 %v6378, %v6512
    %v6577 = vmul.f32 %v6513, %v6513
    %v6578 = vmul.f32 %v6514, %v6514
    %v6579 = vmul.f32 %v6515, %v6515
    %v6580 = vmul.f32 %v6516, %v6516
    %v6581 = vmul.f32 %v6517, %v6517
    %v6582 = vmul.f32 %v6518, %v6518
    %v6583 = vmul.f32 %v6519, %v6519
    %v6584 = vmul.f32 %v6520, %v6520
    %v6585 = vmul.f32 %v6521, %v6521
    %v6586 = vmul.f32 %v6522, %v6522
    %v6587 = vmul.f32 %v6523, %v6523
    %v6588 = vmul.f32 %v6524, %v6524
    %v6589 = vmul.f32 %v6525, %v6525
    %v6590 = vmul.f32 %v6526, %v6526
    %v6591 = vmul.f32 %v6527, %v6527
    %v6592 = vmul.f32 %v6528, %v6528
    %v6593 = vmul.f32 %v6529, %v6529
    %v6594 = vmul.f32 %v6530, %v6530
    %v6595 = vmul.f32 %v6531, %v6531
    %v6596 = vmul.f32 %v6532, %v6532
    %v6597 = vmul.f32 %v6533, %v6533
    %v6598 = vmul.f32 %v6534, %v6534
    %v6599 = vmul.f32 %v6535, %v6535
    %v6600 = vmul.f32 %v6536, %v6536
    %v6601 = vmul.f32 %v6537, %v6537
    %v6602 = vmul.f32 %v6538, %v6538
    %v6603 = vmul.f32 %v6539, %v6539
    %v6604 = vmul.f32 %v6540, %v6540
    %v6605 = vmul.f32 %v6541, %v6541
    %v6606 = vmul.f32 %v6542, %v6542
    %v6607 = vmul.f32 %v6543, %v6543
    %v6608 = vmul.f32 %v6544, %v6544
    %v6609 = vmul.f32 %v6545, %v6545
    %v6610 = vmul.f32 %v6546, %v6546
    %v6611 = vmul.f32 %v6547, %v6547
    %v6612 = vmul.f32 %v6548, %v6548
    %v6613 = vmul.f32 %v6549, %v6549
    %v6614 = vmul.f32 %v6550, %v6550
    %v6615 = vmul.f32 %v6551, %v6551
    %v6616 = vmul.f32 %v6552, %v6552
    %v6617 = vmul.f32 %v6553, %v6553
    %v6618 = vmul.f32 %v6554, %v6554
    %v6619 = vmul.f32 %v6555, %v6555
    %v6620 = vmul.f32 %v6556, %v6556
    %v6621 = vmul.f32 %v6557, %v6557
    %v6622 = vmul.f32 %v6558, %v6558
    %v6623 = vmul.f32 %v6559, %v6559
    %v6624 = vmul.f32 %v6560, %v6560
    %v6625 = vmul.f32 %v6561, %v6561
    %v6626 = vmul.f32 %v6562, %v6562
    %v6627 = vmul.f32 %v6563, %v6563
    %v6628 = vmul.f32 %v6564, %v6564
    %v6629 = vmul.f32 %v6565, %v6565
    %v6630 = vmul.f32 %v6566, %v6566
    %v6631 = vmul.f32 %v6567, %v6567
    %v6632 = vmul.f32 %v6568, %v6568
    %v6633 = vmul.f32 %v6569, %v6569
    %v6634 = vmul.f32 %v6570, %v6570
    %v6635 = vmul.f32 %v6571, %v6571
    %v6636 = vmul.f32 %v6572, %v6572
    %v6637 = vmul.f32 %v6573, %v6573
    %v6638 = vmul.f32 %v6574, %v6574
    %v6639 = vmul.f32 %v6575, %v6575
    %v6640 = vmul.f32 %v6576, %v6576
    %v6641 = vsel %vm218, %v6577, 0.0
    %v6642 = vsel %vm218, %v6578, 0.0
    %v6643 = vadd.f32 %v6641, %v6642
    %v6644 = vsel %vm218, %v6579, 0.0
    %v6645 = vadd.f32 %v6643, %v6644
    %v6646 = vsel %vm218, %v6580, 0.0
    %v6647 = vadd.f32 %v6645, %v6646
    %v6648 = vsel %vm218, %v6581, 0.0
    %v6649 = vadd.f32 %v6647, %v6648
    %v6650 = vsel %vm218, %v6582, 0.0
    %v6651 = vadd.f32 %v6649, %v6650
    %v6652 = vsel %vm218, %v6583, 0.0
    %v6653 = vadd.f32 %v6651, %v6652
    %v6654 = vsel %vm218, %v6584, 0.0
    %v6655 = vadd.f32 %v6653, %v6654
    %v6656 = vsel %vm218, %v6585, 0.0
    %v6657 = vadd.f32 %v6655, %v6656
    %v6658 = vsel %vm218, %v6586, 0.0
    %v6659 = vadd.f32 %v6657, %v6658
    %v6660 = vsel %vm218, %v6587, 0.0
    %v6661 = vadd.f32 %v6659, %v6660
    %v6662 = vsel %vm218, %v6588, 0.0
    %v6663 = vadd.f32 %v6661, %v6662
    %v6664 = vsel %vm218, %v6589, 0.0
    %v6665 = vadd.f32 %v6663, %v6664
    %v6666 = vsel %vm218, %v6590, 0.0
    %v6667 = vadd.f32 %v6665, %v6666
    %v6668 = vsel %vm218, %v6591, 0.0
    %v6669 = vadd.f32 %v6667, %v6668
    %v6670 = vsel %vm218, %v6592, 0.0
    %v6671 = vadd.f32 %v6669, %v6670
    %v6672 = vsel %vm218, %v6593, 0.0
    %v6673 = vadd.f32 %v6671, %v6672
    %v6674 = vsel %vm218, %v6594, 0.0
    %v6675 = vadd.f32 %v6673, %v6674
    %v6676 = vsel %vm218, %v6595, 0.0
    %v6677 = vadd.f32 %v6675, %v6676
    %v6678 = vsel %vm218, %v6596, 0.0
    %v6679 = vadd.f32 %v6677, %v6678
    %v6680 = vsel %vm218, %v6597, 0.0
    %v6681 = vadd.f32 %v6679, %v6680
    %v6682 = vsel %vm218, %v6598, 0.0
    %v6683 = vadd.f32 %v6681, %v6682
    %v6684 = vsel %vm218, %v6599, 0.0
    %v6685 = vadd.f32 %v6683, %v6684
    %v6686 = vsel %vm218, %v6600, 0.0
    %v6687 = vadd.f32 %v6685, %v6686
    %v6688 = vsel %vm218, %v6601, 0.0
    %v6689 = vadd.f32 %v6687, %v6688
    %v6690 = vsel %vm218, %v6602, 0.0
    %v6691 = vadd.f32 %v6689, %v6690
    %v6692 = vsel %vm218, %v6603, 0.0
    %v6693 = vadd.f32 %v6691, %v6692
    %v6694 = vsel %vm218, %v6604, 0.0
    %v6695 = vadd.f32 %v6693, %v6694
    %v6696 = vsel %vm218, %v6605, 0.0
    %v6697 = vadd.f32 %v6695, %v6696
    %v6698 = vsel %vm218, %v6606, 0.0
    %v6699 = vadd.f32 %v6697, %v6698
    %v6700 = vsel %vm218, %v6607, 0.0
    %v6701 = vadd.f32 %v6699, %v6700
    %v6702 = vsel %vm218, %v6608, 0.0
    %v6703 = vadd.f32 %v6701, %v6702
    %v6704 = vsel %vm218, %v6609, 0.0
    %v6705 = vadd.f32 %v6703, %v6704
    %v6706 = vsel %vm218, %v6610, 0.0
    %v6707 = vadd.f32 %v6705, %v6706
    %v6708 = vsel %vm218, %v6611, 0.0
    %v6709 = vadd.f32 %v6707, %v6708
    %v6710 = vsel %vm218, %v6612, 0.0
    %v6711 = vadd.f32 %v6709, %v6710
    %v6712 = vsel %vm218, %v6613, 0.0
    %v6713 = vadd.f32 %v6711, %v6712
    %v6714 = vsel %vm218, %v6614, 0.0
    %v6715 = vadd.f32 %v6713, %v6714
    %v6716 = vsel %vm218, %v6615, 0.0
    %v6717 = vadd.f32 %v6715, %v6716
    %v6718 = vsel %vm218, %v6616, 0.0
    %v6719 = vadd.f32 %v6717, %v6718
    %v6720 = vsel %vm218, %v6617, 0.0
    %v6721 = vadd.f32 %v6719, %v6720
    %v6722 = vsel %vm218, %v6618, 0.0
    %v6723 = vadd.f32 %v6721, %v6722
    %v6724 = vsel %vm218, %v6619, 0.0
    %v6725 = vadd.f32 %v6723, %v6724
    %v6726 = vsel %vm218, %v6620, 0.0
    %v6727 = vadd.f32 %v6725, %v6726
    %v6728 = vsel %vm218, %v6621, 0.0
    %v6729 = vadd.f32 %v6727, %v6728
    %v6730 = vsel %vm218, %v6622, 0.0
    %v6731 = vadd.f32 %v6729, %v6730
    %v6732 = vsel %vm218, %v6623, 0.0
    %v6733 = vadd.f32 %v6731, %v6732
    %v6734 = vsel %vm218, %v6624, 0.0
    %v6735 = vadd.f32 %v6733, %v6734
    %v6736 = vsel %vm218, %v6625, 0.0
    %v6737 = vadd.f32 %v6735, %v6736
    %v6738 = vsel %vm218, %v6626, 0.0
    %v6739 = vadd.f32 %v6737, %v6738
    %v6740 = vsel %vm218, %v6627, 0.0
    %v6741 = vadd.f32 %v6739, %v6740
    %v6742 = vsel %vm218, %v6628, 0.0
    %v6743 = vadd.f32 %v6741, %v6742
    %v6744 = vsel %vm218, %v6629, 0.0
    %v6745 = vadd.f32 %v6743, %v6744
    %v6746 = vsel %vm218, %v6630, 0.0
    %v6747 = vadd.f32 %v6745, %v6746
    %v6748 = vsel %vm218, %v6631, 0.0
    %v6749 = vadd.f32 %v6747, %v6748
    %v6750 = vsel %vm218, %v6632, 0.0
    %v6751 = vadd.f32 %v6749, %v6750
    %v6752 = vsel %vm218, %v6633, 0.0
    %v6753 = vadd.f32 %v6751, %v6752
    %v6754 = vsel %vm218, %v6634, 0.0
    %v6755 = vadd.f32 %v6753, %v6754
    %v6756 = vsel %vm218, %v6635, 0.0
    %v6757 = vadd.f32 %v6755, %v6756
    %v6758 = vsel %vm218, %v6636, 0.0
    %v6759 = vadd.f32 %v6757, %v6758
    %v6760 = vsel %vm218, %v6637, 0.0
    %v6761 = vadd.f32 %v6759, %v6760
    %v6762 = vsel %vm218, %v6638, 0.0
    %v6763 = vadd.f32 %v6761, %v6762
    %v6764 = vsel %vm218, %v6639, 0.0
    %v6765 = vadd.f32 %v6763, %v6764
    %v6766 = vsel %vm218, %v6640, 0.0
    %v6767 = vadd.f32 %v6765, %v6766
    %v6768 = vrot.slane %v6767, 4
    %v6769 = vadd.f32 %v6767, %v6768
    %v6770 = vrot.slane %v6769, 2
    %v6771 = vadd.f32 %v6769, %v6770
    %v6772 = vrot.slane %v6771, 1
    %v6773 = vadd.f32 %v6771, %v6772
    %v6774 = vmul.f32 %v6773, %v737
    %v6775 = vadd.f32 %v6774, 1e-05
    %v6776 = vrsqrt.pop %v6775
    %v6777 = vmul.f32 %v6513, %v6776
    %v6778 = vmul.f32 %v6514, %v6776
    %v6779 = vmul.f32 %v6515, %v6776
    %v6780 = vmul.f32 %v6516, %v6776
    %v6781 = vmul.f32 %v6517, %v6776
    %v6782 = vmul.f32 %v6518, %v6776
    %v6783 = vmul.f32 %v6519, %v6776
    %v6784 = vmul.f32 %v6520, %v6776
    %v6785 = vmul.f32 %v6521, %v6776
    %v6786 = vmul.f32 %v6522, %v6776
    %v6787 = vmul.f32 %v6523, %v6776
    %v6788 = vmul.f32 %v6524, %v6776
    %v6789 = vmul.f32 %v6525, %v6776
    %v6790 = vmul.f32 %v6526, %v6776
    %v6791 = vmul.f32 %v6527, %v6776
    %v6792 = vmul.f32 %v6528, %v6776
    %v6793 = vmul.f32 %v6529, %v6776
    %v6794 = vmul.f32 %v6530, %v6776
    %v6795 = vmul.f32 %v6531, %v6776
    %v6796 = vmul.f32 %v6532, %v6776
    %v6797 = vmul.f32 %v6533, %v6776
    %v6798 = vmul.f32 %v6534, %v6776
    %v6799 = vmul.f32 %v6535, %v6776
    %v6800 = vmul.f32 %v6536, %v6776
    %v6801 = vmul.f32 %v6537, %v6776
    %v6802 = vmul.f32 %v6538, %v6776
    %v6803 = vmul.f32 %v6539, %v6776
    %v6804 = vmul.f32 %v6540, %v6776
    %v6805 = vmul.f32 %v6541, %v6776
    %v6806 = vmul.f32 %v6542, %v6776
    %v6807 = vmul.f32 %v6543, %v6776
    %v6808 = vmul.f32 %v6544, %v6776
    %v6809 = vmul.f32 %v6545, %v6776
    %v6810 = vmul.f32 %v6546, %v6776
    %v6811 = vmul.f32 %v6547, %v6776
    %v6812 = vmul.f32 %v6548, %v6776
    %v6813 = vmul.f32 %v6549, %v6776
    %v6814 = vmul.f32 %v6550, %v6776
    %v6815 = vmul.f32 %v6551, %v6776
    %v6816 = vmul.f32 %v6552, %v6776
    %v6817 = vmul.f32 %v6553, %v6776
    %v6818 = vmul.f32 %v6554, %v6776
    %v6819 = vmul.f32 %v6555, %v6776
    %v6820 = vmul.f32 %v6556, %v6776
    %v6821 = vmul.f32 %v6557, %v6776
    %v6822 = vmul.f32 %v6558, %v6776
    %v6823 = vmul.f32 %v6559, %v6776
    %v6824 = vmul.f32 %v6560, %v6776
    %v6825 = vmul.f32 %v6561, %v6776
    %v6826 = vmul.f32 %v6562, %v6776
    %v6827 = vmul.f32 %v6563, %v6776
    %v6828 = vmul.f32 %v6564, %v6776
    %v6829 = vmul.f32 %v6565, %v6776
    %v6830 = vmul.f32 %v6566, %v6776
    %v6831 = vmul.f32 %v6567, %v6776
    %v6832 = vmul.f32 %v6568, %v6776
    %v6833 = vmul.f32 %v6569, %v6776
    %v6834 = vmul.f32 %v6570, %v6776
    %v6835 = vmul.f32 %v6571, %v6776
    %v6836 = vmul.f32 %v6572, %v6776
    %v6837 = vmul.f32 %v6573, %v6776
    %v6838 = vmul.f32 %v6574, %v6776
    %v6839 = vmul.f32 %v6575, %v6776
    %v6840 = vmul.f32 %v6576, %v6776
    %v6841 = vmax.f32 %v6777, 0.0
    %v6842 = vmax.f32 %v6778, 0.0
    %v6843 = vmax.f32 %v6779, 0.0
    %v6844 = vmax.f32 %v6780, 0.0
    %v6845 = vmax.f32 %v6781, 0.0
    %v6846 = vmax.f32 %v6782, 0.0
    %v6847 = vmax.f32 %v6783, 0.0
    %v6848 = vmax.f32 %v6784, 0.0
    %v6849 = vmax.f32 %v6785, 0.0
    %v6850 = vmax.f32 %v6786, 0.0
    %v6851 = vmax.f32 %v6787, 0.0
    %v6852 = vmax.f32 %v6788, 0.0
    %v6853 = vmax.f32 %v6789, 0.0
    %v6854 = vmax.f32 %v6790, 0.0
    %v6855 = vmax.f32 %v6791, 0.0
    %v6856 = vmax.f32 %v6792, 0.0
    %v6857 = vmax.f32 %v6793, 0.0
    %v6858 = vmax.f32 %v6794, 0.0
    %v6859 = vmax.f32 %v6795, 0.0
    %v6860 = vmax.f32 %v6796, 0.0
    %v6861 = vmax.f32 %v6797, 0.0
    %v6862 = vmax.f32 %v6798, 0.0
    %v6863 = vmax.f32 %v6799, 0.0
    %v6864 = vmax.f32 %v6800, 0.0
    %v6865 = vmax.f32 %v6801, 0.0
    %v6866 = vmax.f32 %v6802, 0.0
    %v6867 = vmax.f32 %v6803, 0.0
    %v6868 = vmax.f32 %v6804, 0.0
    %v6869 = vmax.f32 %v6805, 0.0
    %v6870 = vmax.f32 %v6806, 0.0
    %v6871 = vmax.f32 %v6807, 0.0
    %v6872 = vmax.f32 %v6808, 0.0
    %v6873 = vmax.f32 %v6809, 0.0
    %v6874 = vmax.f32 %v6810, 0.0
    %v6875 = vmax.f32 %v6811, 0.0
    %v6876 = vmax.f32 %v6812, 0.0
    %v6877 = vmax.f32 %v6813, 0.0
    %v6878 = vmax.f32 %v6814, 0.0
    %v6879 = vmax.f32 %v6815, 0.0
    %v6880 = vmax.f32 %v6816, 0.0
    %v6881 = vmax.f32 %v6817, 0.0
    %v6882 = vmax.f32 %v6818, 0.0
    %v6883 = vmax.f32 %v6819, 0.0
    %v6884 = vmax.f32 %v6820, 0.0
    %v6885 = vmax.f32 %v6821, 0.0
    %v6886 = vmax.f32 %v6822, 0.0
    %v6887 = vmax.f32 %v6823, 0.0
    %v6888 = vmax.f32 %v6824, 0.0
    %v6889 = vmax.f32 %v6825, 0.0
    %v6890 = vmax.f32 %v6826, 0.0
    %v6891 = vmax.f32 %v6827, 0.0
    %v6892 = vmax.f32 %v6828, 0.0
    %v6893 = vmax.f32 %v6829, 0.0
    %v6894 = vmax.f32 %v6830, 0.0
    %v6895 = vmax.f32 %v6831, 0.0
    %v6896 = vmax.f32 %v6832, 0.0
    %v6897 = vmax.f32 %v6833, 0.0
    %v6898 = vmax.f32 %v6834, 0.0
    %v6899 = vmax.f32 %v6835, 0.0
    %v6900 = vmax.f32 %v6836, 0.0
    %v6901 = vmax.f32 %v6837, 0.0
    %v6902 = vmax.f32 %v6838, 0.0
    %v6903 = vmax.f32 %v6839, 0.0
    %v6904 = vmax.f32 %v6840, 0.0
    %v6905 = vpack.c.bf16 %v6842, %v6841
    %v6906 = vpack.c.bf16 %v6844, %v6843
    %v6907 = vpack.c.bf16 %v6846, %v6845
    %v6908 = vpack.c.bf16 %v6848, %v6847
    %v6909 = vpack.c.bf16 %v6850, %v6849
    %v6910 = vpack.c.bf16 %v6852, %v6851
    %v6911 = vpack.c.bf16 %v6854, %v6853
    %v6912 = vpack.c.bf16 %v6856, %v6855
    %v6913 = vpack.c.bf16 %v6858, %v6857
    %v6914 = vpack.c.bf16 %v6860, %v6859
    %v6915 = vpack.c.bf16 %v6862, %v6861
    %v6916 = vpack.c.bf16 %v6864, %v6863
    %v6917 = vpack.c.bf16 %v6866, %v6865
    %v6918 = vpack.c.bf16 %v6868, %v6867
    %v6919 = vpack.c.bf16 %v6870, %v6869
    %v6920 = vpack.c.bf16 %v6872, %v6871
    %v6921 = vpack.c.bf16 %v6874, %v6873
    %v6922 = vpack.c.bf16 %v6876, %v6875
    %v6923 = vpack.c.bf16 %v6878, %v6877
    %v6924 = vpack.c.bf16 %v6880, %v6879
    %v6925 = vpack.c.bf16 %v6882, %v6881
    %v6926 = vpack.c.bf16 %v6884, %v6883
    %v6927 = vpack.c.bf16 %v6886, %v6885
    %v6928 = vpack.c.bf16 %v6888, %v6887
    %v6929 = vpack.c.bf16 %v6890, %v6889
    %v6930 = vpack.c.bf16 %v6892, %v6891
    %v6931 = vpack.c.bf16 %v6894, %v6893
    %v6932 = vpack.c.bf16 %v6896, %v6895
    %v6933 = vpack.c.bf16 %v6898, %v6897
    %v6934 = vpack.c.bf16 %v6900, %v6899
    %v6935 = vpack.c.bf16 %v6902, %v6901
    %v6936 = vpack.c.bf16 %v6904, %v6903
    %v6937 = vld [vmem:[#allocation9] sm:$0xff]
    %v6938 = vld [vmem:[#allocation9 + $0x8] sm:$0xff]
    %v6939 = vld [vmem:[#allocation9 + $0x10] sm:$0xff]
    %v6940 = vld [vmem:[#allocation9 + $0x18] sm:$0xff]
    %v6941 = vld [vmem:[#allocation9 + $0x20] sm:$0xff]
    %v6942 = vld [vmem:[#allocation9 + $0x28] sm:$0xff]
    %v6943 = vld [vmem:[#allocation9 + $0x30] sm:$0xff]
    %v6944 = vld [vmem:[#allocation9 + $0x38] sm:$0xff]
    %v6953 = vunpack.c.l.b16 %v6937
    %v6954 = vunpack.c.h.b16 %v6937
    %v6955 = vunpack.c.l.b16 %v6938
    %v6956 = vunpack.c.h.b16 %v6938
    %v6957 = vunpack.c.l.b16 %v6939
    %v6958 = vunpack.c.h.b16 %v6939
    %v6959 = vunpack.c.l.b16 %v6940
    %v6960 = vunpack.c.h.b16 %v6940
    %v6961 = vunpack.c.l.b16 %v6941
    %v6962 = vunpack.c.h.b16 %v6941
    %v6963 = vunpack.c.l.b16 %v6942
    %v6964 = vunpack.c.h.b16 %v6942
    %v6965 = vunpack.c.l.b16 %v6943
    %v6966 = vunpack.c.h.b16 %v6943
    %v6967 = vunpack.c.l.b16 %v6944
    %v6968 = vunpack.c.h.b16 %v6944
    %v6969 = vpack.c.b16 %v6955, %v6953
    %v6970 = vpack.c.b16 %v6956, %v6954
    %v6971 = vpack.c.b16 %v6959, %v6957
    %v6972 = vpack.c.b16 %v6960, %v6958
    %v6973 = vpack.c.b16 %v6963, %v6961
    %v6974 = vpack.c.b16 %v6964, %v6962
    %v6975 = vpack.c.b16 %v6967, %v6965
    %v6976 = vpack.c.b16 %v6968, %v6966
    %v6986 = vsel %vm218, %v6905, 0
    %v6989 = vsel %vm218, %v6906, 0
    %v6992 = vsel %vm218, %v6907, 0
    %v6995 = vsel %vm218, %v6908, 0
    %v6998 = vsel %vm218, %v6909, 0
    %v7001 = vsel %vm218, %v6910, 0
    %v7004 = vsel %vm218, %v6911, 0
    %v7007 = vsel %vm218, %v6912, 0
    %v7010 = vsel %vm218, %v6913, 0
    %v7013 = vsel %vm218, %v6914, 0
    %v7016 = vsel %vm218, %v6915, 0
    %v7019 = vsel %vm218, %v6916, 0
    %v7022 = vsel %vm218, %v6917, 0
    %v7025 = vsel %vm218, %v6918, 0
    %v7028 = vsel %vm218, %v6919, 0
    %v7031 = vsel %vm218, %v6920, 0
    %v7034 = vsel %vm218, %v6921, 0
    %v7037 = vsel %vm218, %v6922, 0
    %v7040 = vsel %vm218, %v6923, 0
    %v7043 = vsel %vm218, %v6924, 0
    %v7046 = vsel %vm218, %v6925, 0
    %v7049 = vsel %vm218, %v6926, 0
    %v7052 = vsel %vm218, %v6927, 0
    %v7055 = vsel %vm218, %v6928, 0
    %v7058 = vsel %vm218, %v6929, 0
    %v7061 = vsel %vm218, %v6930, 0
    %v7064 = vsel %vm218, %v6931, 0
    %v7067 = vsel %vm218, %v6932, 0
    %v7070 = vsel %vm218, %v6933, 0
    %v7073 = vsel %vm218, %v6934, 0
    %v7076 = vsel %vm218, %v6935, 0
    %v7079 = vsel %vm218, %v6936, 0
    %7081 = vmatprep.subr.bf16.mxu0 %v6970
    %7082 = vmatpush1.bf16.msra.mxu0 %v6969
    %7083 = vmatprep.subr.bf16.mxu0 %v6972
    %7084 = vmatpush1.bf16.msra.mxu0 %v6971
    %7085 = vmatprep.subr.bf16.mxu0 %v6974
    %7086 = vmatpush1.bf16.msra.mxu0 %v6973
    %7087 = vmatprep.subr.bf16.mxu0 %v6976
    %7088 = vmatpush1.bf16.msra.mxu0 %v6975
    %7089 = vmatprep.subr.bf16.mxu0 0
    %7090 = vmatpush1.bf16.msra.mxu0 0
    %7091 = vmatprep.subr.bf16.mxu0 0
    %7092 = vmatpush1.bf16.msra.mxu0 0
    %7093 = vmatprep.subr.bf16.mxu0 0
    %7094 = vmatpush1.bf16.msra.mxu0 0
    %7095 = vmatprep.subr.bf16.mxu0 0
    %7096 = vmatpush1.bf16.msra.mxu0 0
    %7097 = vmatprep.subr.bf16.mxu0 0
    %7098 = vmatpush1.bf16.msra.mxu0 0
    %7099 = vmatprep.subr.bf16.mxu0 0
    %7100 = vmatpush1.bf16.msra.mxu0 0
    %7101 = vmatprep.subr.bf16.mxu0 0
    %7102 = vmatpush1.bf16.msra.mxu0 0
    %7103 = vmatprep.subr.bf16.mxu0 0
    %7104 = vmatpush1.bf16.msra.mxu0 0
    %7105 = vmatprep.subr.bf16.mxu0 0
    %7106 = vmatpush1.bf16.msra.mxu0 0
    %7107 = vmatprep.subr.bf16.mxu0 0
    %7108 = vmatpush1.bf16.msra.mxu0 0
    %7109 = vmatprep.subr.bf16.mxu0 0
    %7110 = vmatpush1.bf16.msra.mxu0 0
    %7111 = vmatprep.subr.bf16.mxu0 0
    %7112 = vmatpush1.bf16.msra.mxu0 0
    %7113 = vmatprep.mubr.bf16.mxu0 0
    %7114 = vmatmul.mubr.bf16.gmra.mrb[0].mxu0 %v6986
    %v7115 = vpop.f32.mrb[0].mxu0
    %v7116 = vadd.f32 0.0, %v7115
    %v7117 = vpop.f32.mrb[0].mxu0
    %v7118 = vadd.f32 0.0, %v7117
    %v7119 = vpop.f32.mrb[0].mxu0
    %v7120 = vadd.f32 0.0, %v7119
    %v7121 = vpop.f32.mrb[0].mxu0
    %v7122 = vadd.f32 0.0, %v7121
    %7123 = vmatprep.mubr.bf16.mxu0 0
    %7124 = vmatmul.mubr.bf16.gmra.mrb[0].mxu0 %v6989
    %v7125 = vpop.f32.mrb[0].mxu0
    %v7126 = vadd.f32 0.0, %v7125
    %v7127 = vpop.f32.mrb[0].mxu0
    %v7128 = vadd.f32 0.0, %v7127
    %v7129 = vpop.f32.mrb[0].mxu0
    %v7130 = vadd.f32 0.0, %v7129
    %v7131 = vpop.f32.mrb[0].mxu0
    %v7132 = vadd.f32 0.0, %v7131
    %7133 = vmatprep.mubr.bf16.mxu0 0
    %7134 = vmatmul.mubr.bf16.gmra.mrb[0].mxu0 %v6992
    %v7135 = vpop.f32.mrb[0].mxu0
    %v7136 = vadd.f32 0.0, %v7135
    %v7137 = vpop.f32.mrb[0].mxu0
    %v7138 = vadd.f32 0.0, %v7137
    %v7139 = vpop.f32.mrb[0].mxu0
    %v7140 = vadd.f32 0.0, %v7139
    %v7141 = vpop.f32.mrb[0].mxu0
    %v7142 = vadd.f32 0.0, %v7141
    %7143 = vmatprep.mubr.bf16.mxu0 0
    %7144 = vmatmul.mubr.bf16.gmra.mrb[0].mxu0 %v6995
    %v7145 = vpop.f32.mrb[0].mxu0
    %v7146 = vadd.f32 0.0, %v7145
    %v7147 = vpop.f32.mrb[0].mxu0
    %v7148 = vadd.f32 0.0, %v7147
    %v7149 = vpop.f32.mrb[0].mxu0
    %v7150 = vadd.f32 0.0, %v7149
    %v7151 = vpop.f32.mrb[0].mxu0
    %v7152 = vadd.f32 0.0, %v7151
    %7153 = vmatprep.mubr.bf16.mxu0 0
    %7154 = vmatmul.mubr.bf16.gmra.mrb[0].mxu0 %v6998
    %v7155 = vpop.f32.mrb[0].mxu0
    %v7156 = vadd.f32 0.0, %v7155
    %v7157 = vpop.f32.mrb[0].mxu0
    %v7158 = vadd.f32 0.0, %v7157
    %v7159 = vpop.f32.mrb[0].mxu0
    %v7160 = vadd.f32 0.0, %v7159
    %v7161 = vpop.f32.mrb[0].mxu0
    %v7162 = vadd.f32 0.0, %v7161
    %7163 = vmatprep.mubr.bf16.mxu0 0
    %7164 = vmatmul.mubr.bf16.gmra.mrb[0].mxu0 %v7001
    %v7165 = vpop.f32.mrb[0].mxu0
    %v7166 = vadd.f32 0.0, %v7165
    %v7167 = vpop.f32.mrb[0].mxu0
    %v7168 = vadd.f32 0.0, %v7167
    %v7169 = vpop.f32.mrb[0].mxu0
    %v7170 = vadd.f32 0.0, %v7169
    %v7171 = vpop.f32.mrb[0].mxu0
    %v7172 = vadd.f32 0.0, %v7171
    %7173 = vmatprep.mubr.bf16.mxu0 0
    %7174 = vmatmul.mubr.bf16.gmra.mrb[0].mxu0 %v7004
    %v7175 = vpop.f32.mrb[0].mxu0
    %v7176 = vadd.f32 0.0, %v7175
    %v7177 = vpop.f32.mrb[0].mxu0
    %v7178 = vadd.f32 0.0, %v7177
    %v7179 = vpop.f32.mrb[0].mxu0
    %v7180 = vadd.f32 0.0, %v7179
    %v7181 = vpop.f32.mrb[0].mxu0
    %v7182 = vadd.f32 0.0, %v7181
    %7183 = vmatprep.mubr.bf16.mxu0 0
    %7184 = vmatmul.mubr.bf16.gmra.mrb[0].mxu0 %v7007
    %v7185 = vpop.f32.mrb[0].mxu0
    %v7186 = vadd.f32 0.0, %v7185
    %v7187 = vpop.f32.mrb[0].mxu0
    %v7188 = vadd.f32 0.0, %v7187
    %v7189 = vpop.f32.mrb[0].mxu0
    %v7190 = vadd.f32 0.0, %v7189
    %v7191 = vpop.f32.mrb[0].mxu0
    %v7192 = vadd.f32 0.0, %v7191
    %7193 = vmatprep.mubr.bf16.mxu0 0
    %7194 = vmatmul.mubr.bf16.gmra.mrb[0].mxu0 %v7010
    %v7195 = vpop.f32.mrb[0].mxu0
    %v7196 = vadd.f32 0.0, %v7195
    %v7197 = vpop.f32.mrb[0].mxu0
    %v7198 = vadd.f32 0.0, %v7197
    %v7199 = vpop.f32.mrb[0].mxu0
    %v7200 = vadd.f32 0.0, %v7199
    %v7201 = vpop.f32.mrb[0].mxu0
    %v7202 = vadd.f32 0.0, %v7201
    %7203 = vmatprep.mubr.bf16.mxu0 0
    %7204 = vmatmul.mubr.bf16.gmra.mrb[0].mxu0 %v7013
    %v7205 = vpop.f32.mrb[0].mxu0
    %v7206 = vadd.f32 0.0, %v7205
    %v7207 = vpop.f32.mrb[0].mxu0
    %v7208 = vadd.f32 0.0, %v7207
    %v7209 = vpop.f32.mrb[0].mxu0
    %v7210 = vadd.f32 0.0, %v7209
    %v7211 = vpop.f32.mrb[0].mxu0
    %v7212 = vadd.f32 0.0, %v7211
    %7213 = vmatprep.mubr.bf16.mxu0 0
    %7214 = vmatmul.mubr.bf16.gmra.mrb[0].mxu0 %v7016
    %v7215 = vpop.f32.mrb[0].mxu0
    %v7216 = vadd.f32 0.0, %v7215
    %v7217 = vpop.f32.mrb[0].mxu0
    %v7218 = vadd.f32 0.0, %v7217
    %v7219 = vpop.f32.mrb[0].mxu0
    %v7220 = vadd.f32 0.0, %v7219
    %v7221 = vpop.f32.mrb[0].mxu0
    %v7222 = vadd.f32 0.0, %v7221
    %7223 = vmatprep.mubr.bf16.mxu0 0
    %7224 = vmatmul.mubr.bf16.gmra.mrb[0].mxu0 %v7019
    %v7225 = vpop.f32.mrb[0].mxu0
    %v7226 = vadd.f32 0.0, %v7225
    %v7227 = vpop.f32.mrb[0].mxu0
    %v7228 = vadd.f32 0.0, %v7227
    %v7229 = vpop.f32.mrb[0].mxu0
    %v7230 = vadd.f32 0.0, %v7229
    %v7231 = vpop.f32.mrb[0].mxu0
    %v7232 = vadd.f32 0.0, %v7231
    %7233 = vmatprep.mubr.bf16.mxu0 0
    %7234 = vmatmul.mubr.bf16.gmra.mrb[0].mxu0 %v7022
    %v7235 = vpop.f32.mrb[0].mxu0
    %v7236 = vadd.f32 0.0, %v7235
    %v7237 = vpop.f32.mrb[0].mxu0
    %v7238 = vadd.f32 0.0, %v7237
    %v7239 = vpop.f32.mrb[0].mxu0
    %v7240 = vadd.f32 0.0, %v7239
    %v7241 = vpop.f32.mrb[0].mxu0
    %v7242 = vadd.f32 0.0, %v7241
    %7243 = vmatprep.mubr.bf16.mxu0 0
    %7244 = vmatmul.mubr.bf16.gmra.mrb[0].mxu0 %v7025
    %v7245 = vpop.f32.mrb[0].mxu0
    %v7246 = vadd.f32 0.0, %v7245
    %v7247 = vpop.f32.mrb[0].mxu0
    %v7248 = vadd.f32 0.0, %v7247
    %v7249 = vpop.f32.mrb[0].mxu0
    %v7250 = vadd.f32 0.0, %v7249
    %v7251 = vpop.f32.mrb[0].mxu0
    %v7252 = vadd.f32 0.0, %v7251
    %7253 = vmatprep.mubr.bf16.mxu0 0
    %7254 = vmatmul.mubr.bf16.gmra.mrb[0].mxu0 %v7028
    %v7255 = vpop.f32.mrb[0].mxu0
    %v7256 = vadd.f32 0.0, %v7255
    %v7257 = vpop.f32.mrb[0].mxu0
    %v7258 = vadd.f32 0.0, %v7257
    %v7259 = vpop.f32.mrb[0].mxu0
    %v7260 = vadd.f32 0.0, %v7259
    %v7261 = vpop.f32.mrb[0].mxu0
    %v7262 = vadd.f32 0.0, %v7261
    %7263 = vmatprep.mubr.bf16.mxu0 0
    %7264 = vmatmul.mubr.bf16.gmra.mrb[0].mxu0 %v7031
    %v7265 = vpop.f32.mrb[0].mxu0
    %v7266 = vadd.f32 0.0, %v7265
    %v7267 = vpop.f32.mrb[0].mxu0
    %v7268 = vadd.f32 0.0, %v7267
    %v7269 = vpop.f32.mrb[0].mxu0
    %v7270 = vadd.f32 0.0, %v7269
    %v7271 = vpop.f32.mrb[0].mxu0
    %v7272 = vadd.f32 0.0, %v7271
    %7273 = vmatprep.mubr.bf16.mxu0 0
    %7274 = vmatmul.mubr.bf16.gmra.mrb[0].mxu0 %v7034
    %v7275 = vpop.f32.mrb[0].mxu0
    %v7276 = vadd.f32 0.0, %v7275
    %v7277 = vpop.f32.mrb[0].mxu0
    %v7278 = vadd.f32 0.0, %v7277
    %v7279 = vpop.f32.mrb[0].mxu0
    %v7280 = vadd.f32 0.0, %v7279
    %v7281 = vpop.f32.mrb[0].mxu0
    %v7282 = vadd.f32 0.0, %v7281
    %7283 = vmatprep.mubr.bf16.mxu0 0
    %7284 = vmatmul.mubr.bf16.gmra.mrb[0].mxu0 %v7037
    %v7285 = vpop.f32.mrb[0].mxu0
    %v7286 = vadd.f32 0.0, %v7285
    %v7287 = vpop.f32.mrb[0].mxu0
    %v7288 = vadd.f32 0.0, %v7287
    %v7289 = vpop.f32.mrb[0].mxu0
    %v7290 = vadd.f32 0.0, %v7289
    %v7291 = vpop.f32.mrb[0].mxu0
    %v7292 = vadd.f32 0.0, %v7291
    %7293 = vmatprep.mubr.bf16.mxu0 0
    %7294 = vmatmul.mubr.bf16.gmra.mrb[0].mxu0 %v7040
    %v7295 = vpop.f32.mrb[0].mxu0
    %v7296 = vadd.f32 0.0, %v7295
    %v7297 = vpop.f32.mrb[0].mxu0
    %v7298 = vadd.f32 0.0, %v7297
    %v7299 = vpop.f32.mrb[0].mxu0
    %v7300 = vadd.f32 0.0, %v7299
    %v7301 = vpop.f32.mrb[0].mxu0
    %v7302 = vadd.f32 0.0, %v7301
    %7303 = vmatprep.mubr.bf16.mxu0 0
    %7304 = vmatmul.mubr.bf16.gmra.mrb[0].mxu0 %v7043
    %v7305 = vpop.f32.mrb[0].mxu0
    %v7306 = vadd.f32 0.0, %v7305
    %v7307 = vpop.f32.mrb[0].mxu0
    %v7308 = vadd.f32 0.0, %v7307
    %v7309 = vpop.f32.mrb[0].mxu0
    %v7310 = vadd.f32 0.0, %v7309
    %v7311 = vpop.f32.mrb[0].mxu0
    %v7312 = vadd.f32 0.0, %v7311
    %7313 = vmatprep.mubr.bf16.mxu0 0
    %7314 = vmatmul.mubr.bf16.gmra.mrb[0].mxu0 %v7046
    %v7315 = vpop.f32.mrb[0].mxu0
    %v7316 = vadd.f32 0.0, %v7315
    %v7317 = vpop.f32.mrb[0].mxu0
    %v7318 = vadd.f32 0.0, %v7317
    %v7319 = vpop.f32.mrb[0].mxu0
    %v7320 = vadd.f32 0.0, %v7319
    %v7321 = vpop.f32.mrb[0].mxu0
    %v7322 = vadd.f32 0.0, %v7321
    %7323 = vmatprep.mubr.bf16.mxu0 0
    %7324 = vmatmul.mubr.bf16.gmra.mrb[0].mxu0 %v7049
    %v7325 = vpop.f32.mrb[0].mxu0
    %v7326 = vadd.f32 0.0, %v7325
    %v7327 = vpop.f32.mrb[0].mxu0
    %v7328 = vadd.f32 0.0, %v7327
    %v7329 = vpop.f32.mrb[0].mxu0
    %v7330 = vadd.f32 0.0, %v7329
    %v7331 = vpop.f32.mrb[0].mxu0
    %v7332 = vadd.f32 0.0, %v7331
    %7333 = vmatprep.mubr.bf16.mxu0 0
    %7334 = vmatmul.mubr.bf16.gmra.mrb[0].mxu0 %v7052
    %v7335 = vpop.f32.mrb[0].mxu0
    %v7336 = vadd.f32 0.0, %v7335
    %v7337 = vpop.f32.mrb[0].mxu0
    %v7338 = vadd.f32 0.0, %v7337
    %v7339 = vpop.f32.mrb[0].mxu0
    %v7340 = vadd.f32 0.0, %v7339
    %v7341 = vpop.f32.mrb[0].mxu0
    %v7342 = vadd.f32 0.0, %v7341
    %7343 = vmatprep.mubr.bf16.mxu0 0
    %7344 = vmatmul.mubr.bf16.gmra.mrb[0].mxu0 %v7055
    %v7345 = vpop.f32.mrb[0].mxu0
    %v7346 = vadd.f32 0.0, %v7345
    %v7347 = vpop.f32.mrb[0].mxu0
    %v7348 = vadd.f32 0.0, %v7347
    %v7349 = vpop.f32.mrb[0].mxu0
    %v7350 = vadd.f32 0.0, %v7349
    %v7351 = vpop.f32.mrb[0].mxu0
    %v7352 = vadd.f32 0.0, %v7351
    %7353 = vmatprep.mubr.bf16.mxu0 0
    %7354 = vmatmul.mubr.bf16.gmra.mrb[0].mxu0 %v7058
    %v7355 = vpop.f32.mrb[0].mxu0
    %v7356 = vadd.f32 0.0, %v7355
    %v7357 = vpop.f32.mrb[0].mxu0
    %v7358 = vadd.f32 0.0, %v7357
    %v7359 = vpop.f32.mrb[0].mxu0
    %v7360 = vadd.f32 0.0, %v7359
    %v7361 = vpop.f32.mrb[0].mxu0
    %v7362 = vadd.f32 0.0, %v7361
    %7363 = vmatprep.mubr.bf16.mxu0 0
    %7364 = vmatmul.mubr.bf16.gmra.mrb[0].mxu0 %v7061
    %v7365 = vpop.f32.mrb[0].mxu0
    %v7366 = vadd.f32 0.0, %v7365
    %v7367 = vpop.f32.mrb[0].mxu0
    %v7368 = vadd.f32 0.0, %v7367
    %v7369 = vpop.f32.mrb[0].mxu0
    %v7370 = vadd.f32 0.0, %v7369
    %v7371 = vpop.f32.mrb[0].mxu0
    %v7372 = vadd.f32 0.0, %v7371
    %7373 = vmatprep.mubr.bf16.mxu0 0
    %7374 = vmatmul.mubr.bf16.gmra.mrb[0].mxu0 %v7064
    %v7375 = vpop.f32.mrb[0].mxu0
    %v7376 = vadd.f32 0.0, %v7375
    %v7377 = vpop.f32.mrb[0].mxu0
    %v7378 = vadd.f32 0.0, %v7377
    %v7379 = vpop.f32.mrb[0].mxu0
    %v7380 = vadd.f32 0.0, %v7379
    %v7381 = vpop.f32.mrb[0].mxu0
    %v7382 = vadd.f32 0.0, %v7381
    %7383 = vmatprep.mubr.bf16.mxu0 0
    %7384 = vmatmul.mubr.bf16.gmra.mrb[0].mxu0 %v7067
    %v7385 = vpop.f32.mrb[0].mxu0
    %v7386 = vadd.f32 0.0, %v7385
    %v7387 = vpop.f32.mrb[0].mxu0
    %v7388 = vadd.f32 0.0, %v7387
    %v7389 = vpop.f32.mrb[0].mxu0
    %v7390 = vadd.f32 0.0, %v7389
    %v7391 = vpop.f32.mrb[0].mxu0
    %v7392 = vadd.f32 0.0, %v7391
    %7393 = vmatprep.mubr.bf16.mxu0 0
    %7394 = vmatmul.mubr.bf16.gmra.mrb[0].mxu0 %v7070
    %v7395 = vpop.f32.mrb[0].mxu0
    %v7396 = vadd.f32 0.0, %v7395
    %v7397 = vpop.f32.mrb[0].mxu0
    %v7398 = vadd.f32 0.0, %v7397
    %v7399 = vpop.f32.mrb[0].mxu0
    %v7400 = vadd.f32 0.0, %v7399
    %v7401 = vpop.f32.mrb[0].mxu0
    %v7402 = vadd.f32 0.0, %v7401
    %7403 = vmatprep.mubr.bf16.mxu0 0
    %7404 = vmatmul.mubr.bf16.gmra.mrb[0].mxu0 %v7073
    %v7405 = vpop.f32.mrb[0].mxu0
    %v7406 = vadd.f32 0.0, %v7405
    %v7407 = vpop.f32.mrb[0].mxu0
    %v7408 = vadd.f32 0.0, %v7407
    %v7409 = vpop.f32.mrb[0].mxu0
    %v7410 = vadd.f32 0.0, %v7409
    %v7411 = vpop.f32.mrb[0].mxu0
    %v7412 = vadd.f32 0.0, %v7411
    %7413 = vmatprep.mubr.bf16.mxu0 0
    %7414 = vmatmul.mubr.bf16.gmra.mrb[0].mxu0 %v7076
    %v7415 = vpop.f32.mrb[0].mxu0
    %v7416 = vadd.f32 0.0, %v7415
    %v7417 = vpop.f32.mrb[0].mxu0
    %v7418 = vadd.f32 0.0, %v7417
    %v7419 = vpop.f32.mrb[0].mxu0
    %v7420 = vadd.f32 0.0, %v7419
    %v7421 = vpop.f32.mrb[0].mxu0
    %v7422 = vadd.f32 0.0, %v7421
    %7423 = vmatprep.mubr.bf16.mxu0 0
    %7424 = vmatmul.mubr.bf16.gmra.mrb[0].mxu0 %v7079
    %v7425 = vpop.f32.mrb[0].mxu0
    %v7426 = vadd.f32 0.0, %v7425
    %v7427 = vpop.f32.mrb[0].mxu0
    %v7428 = vadd.f32 0.0, %v7427
    %v7429 = vpop.f32.mrb[0].mxu0
    %v7430 = vadd.f32 0.0, %v7429
    %v7431 = vpop.f32.mrb[0].mxu0
    %v7432 = vadd.f32 0.0, %v7431
    %7433 = vdwg.mxu0
    %v7434 = vadd.f32 %v7116, %v7120
    %v7435 = vadd.f32 %v7434, %v7126
    %v7436 = vadd.f32 %v7435, %v7130
    %v7437 = vadd.f32 %v7436, %v7136
    %v7438 = vadd.f32 %v7437, %v7140
    %v7439 = vadd.f32 %v7438, %v7146
    %v7440 = vadd.f32 %v7439, %v7150
    %v7441 = vadd.f32 %v7440, %v7156
    %v7442 = vadd.f32 %v7441, %v7160
    %v7443 = vadd.f32 %v7442, %v7166
    %v7444 = vadd.f32 %v7443, %v7170
    %v7445 = vadd.f32 %v7444, %v7176
    %v7446 = vadd.f32 %v7445, %v7180
    %v7447 = vadd.f32 %v7446, %v7186
    %v7448 = vadd.f32 %v7447, %v7190
    %v7449 = vadd.f32 %v7448, %v7196
    %v7450 = vadd.f32 %v7449, %v7200
    %v7451 = vadd.f32 %v7450, %v7206
    %v7452 = vadd.f32 %v7451, %v7210
    %v7453 = vadd.f32 %v7452, %v7216
    %v7454 = vadd.f32 %v7453, %v7220
    %v7455 = vadd.f32 %v7454, %v7226
    %v7456 = vadd.f32 %v7455, %v7230
    %v7457 = vadd.f32 %v7456, %v7236
    %v7458 = vadd.f32 %v7457, %v7240
    %v7459 = vadd.f32 %v7458, %v7246
    %v7460 = vadd.f32 %v7459, %v7250
    %v7461 = vadd.f32 %v7460, %v7256
    %v7462 = vadd.f32 %v7461, %v7260
    %v7463 = vadd.f32 %v7462, %v7266
    %v7464 = vadd.f32 %v7463, %v7270
    %v7465 = vadd.f32 %v7464, %v7276
    %v7466 = vadd.f32 %v7465, %v7280
    %v7467 = vadd.f32 %v7466, %v7286
    %v7468 = vadd.f32 %v7467, %v7290
    %v7469 = vadd.f32 %v7468, %v7296
    %v7470 = vadd.f32 %v7469, %v7300
    %v7471 = vadd.f32 %v7470, %v7306
    %v7472 = vadd.f32 %v7471, %v7310
    %v7473 = vadd.f32 %v7472, %v7316
    %v7474 = vadd.f32 %v7473, %v7320
    %v7475 = vadd.f32 %v7474, %v7326
    %v7476 = vadd.f32 %v7475, %v7330
    %v7477 = vadd.f32 %v7476, %v7336
    %v7478 = vadd.f32 %v7477, %v7340
    %v7479 = vadd.f32 %v7478, %v7346
    %v7480 = vadd.f32 %v7479, %v7350
    %v7481 = vadd.f32 %v7480, %v7356
    %v7482 = vadd.f32 %v7481, %v7360
    %v7483 = vadd.f32 %v7482, %v7366
    %v7484 = vadd.f32 %v7483, %v7370
    %v7485 = vadd.f32 %v7484, %v7376
    %v7486 = vadd.f32 %v7485, %v7380
    %v7487 = vadd.f32 %v7486, %v7386
    %v7488 = vadd.f32 %v7487, %v7390
    %v7489 = vadd.f32 %v7488, %v7396
    %v7490 = vadd.f32 %v7489, %v7400
    %v7491 = vadd.f32 %v7490, %v7406
    %v7492 = vadd.f32 %v7491, %v7410
    %v7493 = vadd.f32 %v7492, %v7416
    %v7494 = vadd.f32 %v7493, %v7420
    %v7495 = vadd.f32 %v7494, %v7426
    %v7496 = vadd.f32 %v7495, %v7430
    %v7497 = vrot.slane %v7496, 4
    %v7498 = vadd.f32 %v7496, %v7497
    %v7499 = vrot.slane %v7498, 2
    %v7500 = vadd.f32 %v7498, %v7499
    %v7501 = vrot.slane %v7500, 1
    %v7502 = vadd.f32 %v7500, %v7501
    %v7503 = vadd.f32 %v7118, %v7122
    %v7504 = vadd.f32 %v7503, %v7128
    %v7505 = vadd.f32 %v7504, %v7132
    %v7506 = vadd.f32 %v7505, %v7138
    %v7507 = vadd.f32 %v7506, %v7142
    %v7508 = vadd.f32 %v7507, %v7148
    %v7509 = vadd.f32 %v7508, %v7152
    %v7510 = vadd.f32 %v7509, %v7158
    %v7511 = vadd.f32 %v7510, %v7162
    %v7512 = vadd.f32 %v7511, %v7168
    %v7513 = vadd.f32 %v7512, %v7172
    %v7514 = vadd.f32 %v7513, %v7178
    %v7515 = vadd.f32 %v7514, %v7182
    %v7516 = vadd.f32 %v7515, %v7188
    %v7517 = vadd.f32 %v7516, %v7192
    %v7518 = vadd.f32 %v7517, %v7198
    %v7519 = vadd.f32 %v7518, %v7202
    %v7520 = vadd.f32 %v7519, %v7208
    %v7521 = vadd.f32 %v7520, %v7212
    %v7522 = vadd.f32 %v7521, %v7218
    %v7523 = vadd.f32 %v7522, %v7222
    %v7524 = vadd.f32 %v7523, %v7228
    %v7525 = vadd.f32 %v7524, %v7232
    %v7526 = vadd.f32 %v7525, %v7238
    %v7527 = vadd.f32 %v7526, %v7242
    %v7528 = vadd.f32 %v7527, %v7248
    %v7529 = vadd.f32 %v7528, %v7252
    %v7530 = vadd.f32 %v7529, %v7258
    %v7531 = vadd.f32 %v7530, %v7262
    %v7532 = vadd.f32 %v7531, %v7268
    %v7533 = vadd.f32 %v7532, %v7272
    %v7534 = vadd.f32 %v7533, %v7278
    %v7535 = vadd.f32 %v7534, %v7282
    %v7536 = vadd.f32 %v7535, %v7288
    %v7537 = vadd.f32 %v7536, %v7292
    %v7538 = vadd.f32 %v7537, %v7298
    %v7539 = vadd.f32 %v7538, %v7302
    %v7540 = vadd.f32 %v7539, %v7308
    %v7541 = vadd.f32 %v7540, %v7312
    %v7542 = vadd.f32 %v7541, %v7318
    %v7543 = vadd.f32 %v7542, %v7322
    %v7544 = vadd.f32 %v7543, %v7328
    %v7545 = vadd.f32 %v7544, %v7332
    %v7546 = vadd.f32 %v7545, %v7338
    %v7547 = vadd.f32 %v7546, %v7342
    %v7548 = vadd.f32 %v7547, %v7348
    %v7549 = vadd.f32 %v7548, %v7352
    %v7550 = vadd.f32 %v7549, %v7358
    %v7551 = vadd.f32 %v7550, %v7362
    %v7552 = vadd.f32 %v7551, %v7368
    %v7553 = vadd.f32 %v7552, %v7372
    %v7554 = vadd.f32 %v7553, %v7378
    %v7555 = vadd.f32 %v7554, %v7382
    %v7556 = vadd.f32 %v7555, %v7388
    %v7557 = vadd.f32 %v7556, %v7392
    %v7558 = vadd.f32 %v7557, %v7398
    %v7559 = vadd.f32 %v7558, %v7402
    %v7560 = vadd.f32 %v7559, %v7408
    %v7561 = vadd.f32 %v7560, %v7412
    %v7562 = vadd.f32 %v7561, %v7418
    %v7563 = vadd.f32 %v7562, %v7422
    %v7564 = vadd.f32 %v7563, %v7428
    %v7565 = vadd.f32 %v7564, %v7432
    %v7566 = vrot.slane %v7565, 4
    %v7567 = vadd.f32 %v7565, %v7566
    %v7568 = vrot.slane %v7567, 2
    %v7569 = vadd.f32 %v7567, %v7568
    %v7570 = vrot.slane %v7569, 1
    %v7571 = vadd.f32 %v7569, %v7570
    %v7572 = vmul.f32 %v7502, %v737
    %v7573 = vmul.f32 %v7571, %v737
    %v7574 = vsub.f32 %v7116, %v7572
    %v7575 = vsub.f32 %v7118, %v7573
    %v7576 = vsub.f32 %v7120, %v7572
    %v7577 = vsub.f32 %v7122, %v7573
    %v7578 = vsub.f32 %v7126, %v7572
    %v7579 = vsub.f32 %v7128, %v7573
    %v7580 = vsub.f32 %v7130, %v7572
    %v7581 = vsub.f32 %v7132, %v7573
    %v7582 = vsub.f32 %v7136, %v7572
    %v7583 = vsub.f32 %v7138, %v7573
    %v7584 = vsub.f32 %v7140, %v7572
    %v7585 = vsub.f32 %v7142, %v7573
    %v7586 = vsub.f32 %v7146, %v7572
    %v7587 = vsub.f32 %v7148, %v7573
    %v7588 = vsub.f32 %v7150, %v7572
    %v7589 = vsub.f32 %v7152, %v7573
    %v7590 = vsub.f32 %v7156, %v7572
    %v7591 = vsub.f32 %v7158, %v7573
    %v7592 = vsub.f32 %v7160, %v7572
    %v7593 = vsub.f32 %v7162, %v7573
    %v7594 = vsub.f32 %v7166, %v7572
    %v7595 = vsub.f32 %v7168, %v7573
    %v7596 = vsub.f32 %v7170, %v7572
    %v7597 = vsub.f32 %v7172, %v7573
    %v7598 = vsub.f32 %v7176, %v7572
    %v7599 = vsub.f32 %v7178, %v7573
    %v7600 = vsub.f32 %v7180, %v7572
    %v7601 = vsub.f32 %v7182, %v7573
    %v7602 = vsub.f32 %v7186, %v7572
    %v7603 = vsub.f32 %v7188, %v7573
    %v7604 = vsub.f32 %v7190, %v7572
    %v7605 = vsub.f32 %v7192, %v7573
    %v7606 = vsub.f32 %v7196, %v7572
    %v7607 = vsub.f32 %v7198, %v7573
    %v7608 = vsub.f32 %v7200, %v7572
    %v7609 = vsub.f32 %v7202, %v7573
    %v7610 = vsub.f32 %v7206, %v7572
    %v7611 = vsub.f32 %v7208, %v7573
    %v7612 = vsub.f32 %v7210, %v7572
    %v7613 = vsub.f32 %v7212, %v7573
    %v7614 = vsub.f32 %v7216, %v7572
    %v7615 = vsub.f32 %v7218, %v7573
    %v7616 = vsub.f32 %v7220, %v7572
    %v7617 = vsub.f32 %v7222, %v7573
    %v7618 = vsub.f32 %v7226, %v7572
    %v7619 = vsub.f32 %v7228, %v7573
    %v7620 = vsub.f32 %v7230, %v7572
    %v7621 = vsub.f32 %v7232, %v7573
    %v7622 = vsub.f32 %v7236, %v7572
    %v7623 = vsub.f32 %v7238, %v7573
    %v7624 = vsub.f32 %v7240, %v7572
    %v7625 = vsub.f32 %v7242, %v7573
    %v7626 = vsub.f32 %v7246, %v7572
    %v7627 = vsub.f32 %v7248, %v7573
    %v7628 = vsub.f32 %v7250, %v7572
    %v7629 = vsub.f32 %v7252, %v7573
    %v7630 = vsub.f32 %v7256, %v7572
    %v7631 = vsub.f32 %v7258, %v7573
    %v7632 = vsub.f32 %v7260, %v7572
    %v7633 = vsub.f32 %v7262, %v7573
    %v7634 = vsub.f32 %v7266, %v7572
    %v7635 = vsub.f32 %v7268, %v7573
    %v7636 = vsub.f32 %v7270, %v7572
    %v7637 = vsub.f32 %v7272, %v7573
    %v7638 = vsub.f32 %v7276, %v7572
    %v7639 = vsub.f32 %v7278, %v7573
    %v7640 = vsub.f32 %v7280, %v7572
    %v7641 = vsub.f32 %v7282, %v7573
    %v7642 = vsub.f32 %v7286, %v7572
    %v7643 = vsub.f32 %v7288, %v7573
    %v7644 = vsub.f32 %v7290, %v7572
    %v7645 = vsub.f32 %v7292, %v7573
    %v7646 = vsub.f32 %v7296, %v7572
    %v7647 = vsub.f32 %v7298, %v7573
    %v7648 = vsub.f32 %v7300, %v7572
    %v7649 = vsub.f32 %v7302, %v7573
    %v7650 = vsub.f32 %v7306, %v7572
    %v7651 = vsub.f32 %v7308, %v7573
    %v7652 = vsub.f32 %v7310, %v7572
    %v7653 = vsub.f32 %v7312, %v7573
    %v7654 = vsub.f32 %v7316, %v7572
    %v7655 = vsub.f32 %v7318, %v7573
    %v7656 = vsub.f32 %v7320, %v7572
    %v7657 = vsub.f32 %v7322, %v7573
    %v7658 = vsub.f32 %v7326, %v7572
    %v7659 = vsub.f32 %v7328, %v7573
    %v7660 = vsub.f32 %v7330, %v7572
    %v7661 = vsub.f32 %v7332, %v7573
    %v7662 = vsub.f32 %v7336, %v7572
    %v7663 = vsub.f32 %v7338, %v7573
    %v7664 = vsub.f32 %v7340, %v7572
    %v7665 = vsub.f32 %v7342, %v7573
    %v7666 = vsub.f32 %v7346, %v7572
    %v7667 = vsub.f32 %v7348, %v7573
    %v7668 = vsub.f32 %v7350, %v7572
    %v7669 = vsub.f32 %v7352, %v7573
    %v7670 = vsub.f32 %v7356, %v7572
    %v7671 = vsub.f32 %v7358, %v7573
    %v7672 = vsub.f32 %v7360, %v7572
    %v7673 = vsub.f32 %v7362, %v7573
    %v7674 = vsub.f32 %v7366, %v7572
    %v7675 = vsub.f32 %v7368, %v7573
    %v7676 = vsub.f32 %v7370, %v7572
    %v7677 = vsub.f32 %v7372, %v7573
    %v7678 = vsub.f32 %v7376, %v7572
    %v7679 = vsub.f32 %v7378, %v7573
    %v7680 = vsub.f32 %v7380, %v7572
    %v7681 = vsub.f32 %v7382, %v7573
    %v7682 = vsub.f32 %v7386, %v7572
    %v7683 = vsub.f32 %v7388, %v7573
    %v7684 = vsub.f32 %v7390, %v7572
    %v7685 = vsub.f32 %v7392, %v7573
    %v7686 = vsub.f32 %v7396, %v7572
    %v7687 = vsub.f32 %v7398, %v7573
    %v7688 = vsub.f32 %v7400, %v7572
    %v7689 = vsub.f32 %v7402, %v7573
    %v7690 = vsub.f32 %v7406, %v7572
    %v7691 = vsub.f32 %v7408, %v7573
    %v7692 = vsub.f32 %v7410, %v7572
    %v7693 = vsub.f32 %v7412, %v7573
    %v7694 = vsub.f32 %v7416, %v7572
    %v7695 = vsub.f32 %v7418, %v7573
    %v7696 = vsub.f32 %v7420, %v7572
    %v7697 = vsub.f32 %v7422, %v7573
    %v7698 = vsub.f32 %v7426, %v7572
    %v7699 = vsub.f32 %v7428, %v7573
    %v7700 = vsub.f32 %v7430, %v7572
    %v7701 = vsub.f32 %v7432, %v7573
    %v7702 = vmul.f32 %v7574, %v7574
    %v7703 = vmul.f32 %v7575, %v7575
    %v7704 = vmul.f32 %v7576, %v7576
    %v7705 = vmul.f32 %v7577, %v7577
    %v7706 = vmul.f32 %v7578, %v7578
    %v7707 = vmul.f32 %v7579, %v7579
    %v7708 = vmul.f32 %v7580, %v7580
    %v7709 = vmul.f32 %v7581, %v7581
    %v7710 = vmul.f32 %v7582, %v7582
    %v7711 = vmul.f32 %v7583, %v7583
    %v7712 = vmul.f32 %v7584, %v7584
    %v7713 = vmul.f32 %v7585, %v7585
    %v7714 = vmul.f32 %v7586, %v7586
    %v7715 = vmul.f32 %v7587, %v7587
    %v7716 = vmul.f32 %v7588, %v7588
    %v7717 = vmul.f32 %v7589, %v7589
    %v7718 = vmul.f32 %v7590, %v7590
    %v7719 = vmul.f32 %v7591, %v7591
    %v7720 = vmul.f32 %v7592, %v7592
    %v7721 = vmul.f32 %v7593, %v7593
    %v7722 = vmul.f32 %v7594, %v7594
    %v7723 = vmul.f32 %v7595, %v7595
    %v7724 = vmul.f32 %v7596, %v7596
    %v7725 = vmul.f32 %v7597, %v7597
    %v7726 = vmul.f32 %v7598, %v7598
    %v7727 = vmul.f32 %v7599, %v7599
    %v7728 = vmul.f32 %v7600, %v7600
    %v7729 = vmul.f32 %v7601, %v7601
    %v7730 = vmul.f32 %v7602, %v7602
    %v7731 = vmul.f32 %v7603, %v7603
    %v7732 = vmul.f32 %v7604, %v7604
    %v7733 = vmul.f32 %v7605, %v7605
    %v7734 = vmul.f32 %v7606, %v7606
    %v7735 = vmul.f32 %v7607, %v7607
    %v7736 = vmul.f32 %v7608, %v7608
    %v7737 = vmul.f32 %v7609, %v7609
    %v7738 = vmul.f32 %v7610, %v7610
    %v7739 = vmul.f32 %v7611, %v7611
    %v7740 = vmul.f32 %v7612, %v7612
    %v7741 = vmul.f32 %v7613, %v7613
    %v7742 = vmul.f32 %v7614, %v7614
    %v7743 = vmul.f32 %v7615, %v7615
    %v7744 = vmul.f32 %v7616, %v7616
    %v7745 = vmul.f32 %v7617, %v7617
    %v7746 = vmul.f32 %v7618, %v7618
    %v7747 = vmul.f32 %v7619, %v7619
    %v7748 = vmul.f32 %v7620, %v7620
    %v7749 = vmul.f32 %v7621, %v7621
    %v7750 = vmul.f32 %v7622, %v7622
    %v7751 = vmul.f32 %v7623, %v7623
    %v7752 = vmul.f32 %v7624, %v7624
    %v7753 = vmul.f32 %v7625, %v7625
    %v7754 = vmul.f32 %v7626, %v7626
    %v7755 = vmul.f32 %v7627, %v7627
    %v7756 = vmul.f32 %v7628, %v7628
    %v7757 = vmul.f32 %v7629, %v7629
    %v7758 = vmul.f32 %v7630, %v7630
    %v7759 = vmul.f32 %v7631, %v7631
    %v7760 = vmul.f32 %v7632, %v7632
    %v7761 = vmul.f32 %v7633, %v7633
    %v7762 = vmul.f32 %v7634, %v7634
    %v7763 = vmul.f32 %v7635, %v7635
    %v7764 = vmul.f32 %v7636, %v7636
    %v7765 = vmul.f32 %v7637, %v7637
    %v7766 = vmul.f32 %v7638, %v7638
    %v7767 = vmul.f32 %v7639, %v7639
    %v7768 = vmul.f32 %v7640, %v7640
    %v7769 = vmul.f32 %v7641, %v7641
    %v7770 = vmul.f32 %v7642, %v7642
    %v7771 = vmul.f32 %v7643, %v7643
    %v7772 = vmul.f32 %v7644, %v7644
    %v7773 = vmul.f32 %v7645, %v7645
    %v7774 = vmul.f32 %v7646, %v7646
    %v7775 = vmul.f32 %v7647, %v7647
    %v7776 = vmul.f32 %v7648, %v7648
    %v7777 = vmul.f32 %v7649, %v7649
    %v7778 = vmul.f32 %v7650, %v7650
    %v7779 = vmul.f32 %v7651, %v7651
    %v7780 = vmul.f32 %v7652, %v7652
    %v7781 = vmul.f32 %v7653, %v7653
    %v7782 = vmul.f32 %v7654, %v7654
    %v7783 = vmul.f32 %v7655, %v7655
    %v7784 = vmul.f32 %v7656, %v7656
    %v7785 = vmul.f32 %v7657, %v7657
    %v7786 = vmul.f32 %v7658, %v7658
    %v7787 = vmul.f32 %v7659, %v7659
    %v7788 = vmul.f32 %v7660, %v7660
    %v7789 = vmul.f32 %v7661, %v7661
    %v7790 = vmul.f32 %v7662, %v7662
    %v7791 = vmul.f32 %v7663, %v7663
    %v7792 = vmul.f32 %v7664, %v7664
    %v7793 = vmul.f32 %v7665, %v7665
    %v7794 = vmul.f32 %v7666, %v7666
    %v7795 = vmul.f32 %v7667, %v7667
    %v7796 = vmul.f32 %v7668, %v7668
    %v7797 = vmul.f32 %v7669, %v7669
    %v7798 = vmul.f32 %v7670, %v7670
    %v7799 = vmul.f32 %v7671, %v7671
    %v7800 = vmul.f32 %v7672, %v7672
    %v7801 = vmul.f32 %v7673, %v7673
    %v7802 = vmul.f32 %v7674, %v7674
    %v7803 = vmul.f32 %v7675, %v7675
    %v7804 = vmul.f32 %v7676, %v7676
    %v7805 = vmul.f32 %v7677, %v7677
    %v7806 = vmul.f32 %v7678, %v7678
    %v7807 = vmul.f32 %v7679, %v7679
    %v7808 = vmul.f32 %v7680, %v7680
    %v7809 = vmul.f32 %v7681, %v7681
    %v7810 = vmul.f32 %v7682, %v7682
    %v7811 = vmul.f32 %v7683, %v7683
    %v7812 = vmul.f32 %v7684, %v7684
    %v7813 = vmul.f32 %v7685, %v7685
    %v7814 = vmul.f32 %v7686, %v7686
    %v7815 = vmul.f32 %v7687, %v7687
    %v7816 = vmul.f32 %v7688, %v7688
    %v7817 = vmul.f32 %v7689, %v7689
    %v7818 = vmul.f32 %v7690, %v7690
    %v7819 = vmul.f32 %v7691, %v7691
    %v7820 = vmul.f32 %v7692, %v7692
    %v7821 = vmul.f32 %v7693, %v7693
    %v7822 = vmul.f32 %v7694, %v7694
    %v7823 = vmul.f32 %v7695, %v7695
    %v7824 = vmul.f32 %v7696, %v7696
    %v7825 = vmul.f32 %v7697, %v7697
    %v7826 = vmul.f32 %v7698, %v7698
    %v7827 = vmul.f32 %v7699, %v7699
    %v7828 = vmul.f32 %v7700, %v7700
    %v7829 = vmul.f32 %v7701, %v7701
    %v7830 = vadd.f32 %v7702, %v7704
    %v7831 = vadd.f32 %v7830, %v7706
    %v7832 = vadd.f32 %v7831, %v7708
    %v7833 = vadd.f32 %v7832, %v7710
    %v7834 = vadd.f32 %v7833, %v7712
    %v7835 = vadd.f32 %v7834, %v7714
    %v7836 = vadd.f32 %v7835, %v7716
    %v7837 = vadd.f32 %v7836, %v7718
    %v7838 = vadd.f32 %v7837, %v7720
    %v7839 = vadd.f32 %v7838, %v7722
    %v7840 = vadd.f32 %v7839, %v7724
    %v7841 = vadd.f32 %v7840, %v7726
    %v7842 = vadd.f32 %v7841, %v7728
    %v7843 = vadd.f32 %v7842, %v7730
    %v7844 = vadd.f32 %v7843, %v7732
    %v7845 = vadd.f32 %v7844, %v7734
    %v7846 = vadd.f32 %v7845, %v7736
    %v7847 = vadd.f32 %v7846, %v7738
    %v7848 = vadd.f32 %v7847, %v7740
    %v7849 = vadd.f32 %v7848, %v7742
    %v7850 = vadd.f32 %v7849, %v7744
    %v7851 = vadd.f32 %v7850, %v7746
    %v7852 = vadd.f32 %v7851, %v7748
    %v7853 = vadd.f32 %v7852, %v7750
    %v7854 = vadd.f32 %v7853, %v7752
    %v7855 = vadd.f32 %v7854, %v7754
    %v7856 = vadd.f32 %v7855, %v7756
    %v7857 = vadd.f32 %v7856, %v7758
    %v7858 = vadd.f32 %v7857, %v7760
    %v7859 = vadd.f32 %v7858, %v7762
    %v7860 = vadd.f32 %v7859, %v7764
    %v7861 = vadd.f32 %v7860, %v7766
    %v7862 = vadd.f32 %v7861, %v7768
    %v7863 = vadd.f32 %v7862, %v7770
    %v7864 = vadd.f32 %v7863, %v7772
    %v7865 = vadd.f32 %v7864, %v7774
    %v7866 = vadd.f32 %v7865, %v7776
    %v7867 = vadd.f32 %v7866, %v7778
    %v7868 = vadd.f32 %v7867, %v7780
    %v7869 = vadd.f32 %v7868, %v7782
    %v7870 = vadd.f32 %v7869, %v7784
    %v7871 = vadd.f32 %v7870, %v7786
    %v7872 = vadd.f32 %v7871, %v7788
    %v7873 = vadd.f32 %v7872, %v7790
    %v7874 = vadd.f32 %v7873, %v7792
    %v7875 = vadd.f32 %v7874, %v7794
    %v7876 = vadd.f32 %v7875, %v7796
    %v7877 = vadd.f32 %v7876, %v7798
    %v7878 = vadd.f32 %v7877, %v7800
    %v7879 = vadd.f32 %v7878, %v7802
    %v7880 = vadd.f32 %v7879, %v7804
    %v7881 = vadd.f32 %v7880, %v7806
    %v7882 = vadd.f32 %v7881, %v7808
    %v7883 = vadd.f32 %v7882, %v7810
    %v7884 = vadd.f32 %v7883, %v7812
    %v7885 = vadd.f32 %v7884, %v7814
    %v7886 = vadd.f32 %v7885, %v7816
    %v7887 = vadd.f32 %v7886, %v7818
    %v7888 = vadd.f32 %v7887, %v7820
    %v7889 = vadd.f32 %v7888, %v7822
    %v7890 = vadd.f32 %v7889, %v7824
    %v7891 = vadd.f32 %v7890, %v7826
    %v7892 = vadd.f32 %v7891, %v7828
    %v7893 = vrot.slane %v7892, 4
    %v7894 = vadd.f32 %v7892, %v7893
    %v7895 = vrot.slane %v7894, 2
    %v7896 = vadd.f32 %v7894, %v7895
    %v7897 = vrot.slane %v7896, 1
    %v7898 = vadd.f32 %v7896, %v7897
    %v7899 = vadd.f32 %v7703, %v7705
    %v7900 = vadd.f32 %v7899, %v7707
    %v7901 = vadd.f32 %v7900, %v7709
    %v7902 = vadd.f32 %v7901, %v7711
    %v7903 = vadd.f32 %v7902, %v7713
    %v7904 = vadd.f32 %v7903, %v7715
    %v7905 = vadd.f32 %v7904, %v7717
    %v7906 = vadd.f32 %v7905, %v7719
    %v7907 = vadd.f32 %v7906, %v7721
    %v7908 = vadd.f32 %v7907, %v7723
    %v7909 = vadd.f32 %v7908, %v7725
    %v7910 = vadd.f32 %v7909, %v7727
    %v7911 = vadd.f32 %v7910, %v7729
    %v7912 = vadd.f32 %v7911, %v7731
    %v7913 = vadd.f32 %v7912, %v7733
    %v7914 = vadd.f32 %v7913, %v7735
    %v7915 = vadd.f32 %v7914, %v7737
    %v7916 = vadd.f32 %v7915, %v7739
    %v7917 = vadd.f32 %v7916, %v7741
    %v7918 = vadd.f32 %v7917, %v7743
    %v7919 = vadd.f32 %v7918, %v7745
    %v7920 = vadd.f32 %v7919, %v7747
    %v7921 = vadd.f32 %v7920, %v7749
    %v7922 = vadd.f32 %v7921, %v7751
    %v7923 = vadd.f32 %v7922, %v7753
    %v7924 = vadd.f32 %v7923, %v7755
    %v7925 = vadd.f32 %v7924, %v7757
    %v7926 = vadd.f32 %v7925, %v7759
    %v7927 = vadd.f32 %v7926, %v7761
    %v7928 = vadd.f32 %v7927, %v7763
    %v7929 = vadd.f32 %v7928, %v7765
    %v7930 = vadd.f32 %v7929, %v7767
    %v7931 = vadd.f32 %v7930, %v7769
    %v7932 = vadd.f32 %v7931, %v7771
    %v7933 = vadd.f32 %v7932, %v7773
    %v7934 = vadd.f32 %v7933, %v7775
    %v7935 = vadd.f32 %v7934, %v7777
    %v7936 = vadd.f32 %v7935, %v7779
    %v7937 = vadd.f32 %v7936, %v7781
    %v7938 = vadd.f32 %v7937, %v7783
    %v7939 = vadd.f32 %v7938, %v7785
    %v7940 = vadd.f32 %v7939, %v7787
    %v7941 = vadd.f32 %v7940, %v7789
    %v7942 = vadd.f32 %v7941, %v7791
    %v7943 = vadd.f32 %v7942, %v7793
    %v7944 = vadd.f32 %v7943, %v7795
    %v7945 = vadd.f32 %v7944, %v7797
    %v7946 = vadd.f32 %v7945, %v7799
    %v7947 = vadd.f32 %v7946, %v7801
    %v7948 = vadd.f32 %v7947, %v7803
    %v7949 = vadd.f32 %v7948, %v7805
    %v7950 = vadd.f32 %v7949, %v7807
    %v7951 = vadd.f32 %v7950, %v7809
    %v7952 = vadd.f32 %v7951, %v7811
    %v7953 = vadd.f32 %v7952, %v7813
    %v7954 = vadd.f32 %v7953, %v7815
    %v7955 = vadd.f32 %v7954, %v7817
    %v7956 = vadd.f32 %v7955, %v7819
    %v7957 = vadd.f32 %v7956, %v7821
    %v7958 = vadd.f32 %v7957, %v7823
    %v7959 = vadd.f32 %v7958, %v7825
    %v7960 = vadd.f32 %v7959, %v7827
    %v7961 = vadd.f32 %v7960, %v7829
    %v7962 = vrot.slane %v7961, 4
    %v7963 = vadd.f32 %v7961, %v7962
    %v7964 = vrot.slane %v7963, 2
    %v7965 = vadd.f32 %v7963, %v7964
    %v7966 = vrot.slane %v7965, 1
    %v7967 = vadd.f32 %v7965, %v7966
    %v7968 = vmul.f32 %v7898, %v737
    %v7969 = vmul.f32 %v7967, %v737
    %v7970 = vadd.f32 %v7968, 1e-05
    %v7971 = vadd.f32 %v7969, 1e-05
    %v7972 = vrsqrt.pop %v7970
    %v7973 = vrsqrt.pop %v7971
    %v7974 = vmul.f32 %v7574, %v7972
    %v7975 = vmul.f32 %v7575, %v7973
    %v7976 = vmul.f32 %v7576, %v7972
    %v7977 = vmul.f32 %v7577, %v7973
    %v7978 = vmul.f32 %v7578, %v7972
    %v7979 = vmul.f32 %v7579, %v7973
    %v7980 = vmul.f32 %v7580, %v7972
    %v7981 = vmul.f32 %v7581, %v7973
    %v7982 = vmul.f32 %v7582, %v7972
    %v7983 = vmul.f32 %v7583, %v7973
    %v7984 = vmul.f32 %v7584, %v7972
    %v7985 = vmul.f32 %v7585, %v7973
    %v7986 = vmul.f32 %v7586, %v7972
    %v7987 = vmul.f32 %v7587, %v7973
    %v7988 = vmul.f32 %v7588, %v7972
    %v7989 = vmul.f32 %v7589, %v7973
    %v7990 = vmul.f32 %v7590, %v7972
    %v7991 = vmul.f32 %v7591, %v7973
    %v7992 = vmul.f32 %v7592, %v7972
    %v7993 = vmul.f32 %v7593, %v7973
    %v7994 = vmul.f32 %v7594, %v7972
    %v7995 = vmul.f32 %v7595, %v7973
    %v7996 = vmul.f32 %v7596, %v7972
    %v7997 = vmul.f32 %v7597, %v7973
    %v7998 = vmul.f32 %v7598, %v7972
    %v7999 = vmul.f32 %v7599, %v7973
    %v8000 = vmul.f32 %v7600, %v7972
    %v8001 = vmul.f32 %v7601, %v7973
    %v8002 = vmul.f32 %v7602, %v7972
    %v8003 = vmul.f32 %v7603, %v7973
    %v8004 = vmul.f32 %v7604, %v7972
    %v8005 = vmul.f32 %v7605, %v7973
    %v8006 = vmul.f32 %v7606, %v7972
    %v8007 = vmul.f32 %v7607, %v7973
    %v8008 = vmul.f32 %v7608, %v7972
    %v8009 = vmul.f32 %v7609, %v7973
    %v8010 = vmul.f32 %v7610, %v7972
    %v8011 = vmul.f32 %v7611, %v7973
    %v8012 = vmul.f32 %v7612, %v7972
    %v8013 = vmul.f32 %v7613, %v7973
    %v8014 = vmul.f32 %v7614, %v7972
    %v8015 = vmul.f32 %v7615, %v7973
    %v8016 = vmul.f32 %v7616, %v7972
    %v8017 = vmul.f32 %v7617, %v7973
    %v8018 = vmul.f32 %v7618, %v7972
    %v8019 = vmul.f32 %v7619, %v7973
    %v8020 = vmul.f32 %v7620, %v7972
    %v8021 = vmul.f32 %v7621, %v7973
    %v8022 = vmul.f32 %v7622, %v7972
    %v8023 = vmul.f32 %v7623, %v7973
    %v8024 = vmul.f32 %v7624, %v7972
    %v8025 = vmul.f32 %v7625, %v7973
    %v8026 = vmul.f32 %v7626, %v7972
    %v8027 = vmul.f32 %v7627, %v7973
    %v8028 = vmul.f32 %v7628, %v7972
    %v8029 = vmul.f32 %v7629, %v7973
    %v8030 = vmul.f32 %v7630, %v7972
    %v8031 = vmul.f32 %v7631, %v7973
    %v8032 = vmul.f32 %v7632, %v7972
    %v8033 = vmul.f32 %v7633, %v7973
    %v8034 = vmul.f32 %v7634, %v7972
    %v8035 = vmul.f32 %v7635, %v7973
    %v8036 = vmul.f32 %v7636, %v7972
    %v8037 = vmul.f32 %v7637, %v7973
    %v8038 = vmul.f32 %v7638, %v7972
    %v8039 = vmul.f32 %v7639, %v7973
    %v8040 = vmul.f32 %v7640, %v7972
    %v8041 = vmul.f32 %v7641, %v7973
    %v8042 = vmul.f32 %v7642, %v7972
    %v8043 = vmul.f32 %v7643, %v7973
    %v8044 = vmul.f32 %v7644, %v7972
    %v8045 = vmul.f32 %v7645, %v7973
    %v8046 = vmul.f32 %v7646, %v7972
    %v8047 = vmul.f32 %v7647, %v7973
    %v8048 = vmul.f32 %v7648, %v7972
    %v8049 = vmul.f32 %v7649, %v7973
    %v8050 = vmul.f32 %v7650, %v7972
    %v8051 = vmul.f32 %v7651, %v7973
    %v8052 = vmul.f32 %v7652, %v7972
    %v8053 = vmul.f32 %v7653, %v7973
    %v8054 = vmul.f32 %v7654, %v7972
    %v8055 = vmul.f32 %v7655, %v7973
    %v8056 = vmul.f32 %v7656, %v7972
    %v8057 = vmul.f32 %v7657, %v7973
    %v8058 = vmul.f32 %v7658, %v7972
    %v8059 = vmul.f32 %v7659, %v7973
    %v8060 = vmul.f32 %v7660, %v7972
    %v8061 = vmul.f32 %v7661, %v7973
    %v8062 = vmul.f32 %v7662, %v7972
    %v8063 = vmul.f32 %v7663, %v7973
    %v8064 = vmul.f32 %v7664, %v7972
    %v8065 = vmul.f32 %v7665, %v7973
    %v8066 = vmul.f32 %v7666, %v7972
    %v8067 = vmul.f32 %v7667, %v7973
    %v8068 = vmul.f32 %v7668, %v7972
    %v8069 = vmul.f32 %v7669, %v7973
    %v8070 = vmul.f32 %v7670, %v7972
    %v8071 = vmul.f32 %v7671, %v7973
    %v8072 = vmul.f32 %v7672, %v7972
    %v8073 = vmul.f32 %v7673, %v7973
    %v8074 = vmul.f32 %v7674, %v7972
    %v8075 = vmul.f32 %v7675, %v7973
    %v8076 = vmul.f32 %v7676, %v7972
    %v8077 = vmul.f32 %v7677, %v7973
    %v8078 = vmul.f32 %v7678, %v7972
    %v8079 = vmul.f32 %v7679, %v7973
    %v8080 = vmul.f32 %v7680, %v7972
    %v8081 = vmul.f32 %v7681, %v7973
    %v8082 = vmul.f32 %v7682, %v7972
    %v8083 = vmul.f32 %v7683, %v7973
    %v8084 = vmul.f32 %v7684, %v7972
    %v8085 = vmul.f32 %v7685, %v7973
    %v8086 = vmul.f32 %v7686, %v7972
    %v8087 = vmul.f32 %v7687, %v7973
    %v8088 = vmul.f32 %v7688, %v7972
    %v8089 = vmul.f32 %v7689, %v7973
    %v8090 = vmul.f32 %v7690, %v7972
    %v8091 = vmul.f32 %v7691, %v7973
    %v8092 = vmul.f32 %v7692, %v7972
    %v8093 = vmul.f32 %v7693, %v7973
    %v8094 = vmul.f32 %v7694, %v7972
    %v8095 = vmul.f32 %v7695, %v7973
    %v8096 = vmul.f32 %v7696, %v7972
    %v8097 = vmul.f32 %v7697, %v7973
    %v8098 = vmul.f32 %v7698, %v7972
    %v8099 = vmul.f32 %v7699, %v7973
    %v8100 = vmul.f32 %v7700, %v7972
    %v8101 = vmul.f32 %v7701, %v7973
    %v8102 = vld [vmem:[#allocation11] sm:$0xff]
    %v8103 = vld [vmem:[#allocation11 + $0x8] sm:$0xff]
    %v8104 = vld [vmem:[#allocation11 + $0x10] sm:$0xff]
    %v8105 = vld [vmem:[#allocation11 + $0x18] sm:$0xff]
    %v8106 = vld [vmem:[#allocation11 + $0x20] sm:$0xff]
    %v8107 = vld [vmem:[#allocation11 + $0x28] sm:$0xff]
    %v8108 = vld [vmem:[#allocation11 + $0x30] sm:$0xff]
    %v8109 = vld [vmem:[#allocation11 + $0x38] sm:$0xff]
    %v8118 = vunpack.c.l.b16 %v8102
    %v8119 = vunpack.c.h.b16 %v8102
    %v8120 = vunpack.c.l.b16 %v8103
    %v8121 = vunpack.c.h.b16 %v8103
    %v8122 = vunpack.c.l.b16 %v8104
    %v8123 = vunpack.c.h.b16 %v8104
    %v8124 = vunpack.c.l.b16 %v8105
    %v8125 = vunpack.c.h.b16 %v8105
    %v8126 = vunpack.c.l.b16 %v8106
    %v8127 = vunpack.c.h.b16 %v8106
    %v8128 = vunpack.c.l.b16 %v8107
    %v8129 = vunpack.c.h.b16 %v8107
    %v8130 = vunpack.c.l.b16 %v8108
    %v8131 = vunpack.c.h.b16 %v8108
    %v8132 = vunpack.c.l.b16 %v8109
    %v8133 = vunpack.c.h.b16 %v8109
    %v8134 = vpack.c.b16 %v8120, %v8118
    %v8135 = vpack.c.b16 %v8121, %v8119
    %v8136 = vpack.c.b16 %v8124, %v8122
    %v8137 = vpack.c.b16 %v8125, %v8123
    %v8138 = vpack.c.b16 %v8128, %v8126
    %v8139 = vpack.c.b16 %v8129, %v8127
    %v8140 = vpack.c.b16 %v8132, %v8130
    %v8141 = vpack.c.b16 %v8133, %v8131
    %8150 = vmatprep.subr.bf16.mxu0 %v8135
    %8151 = vmatpush1.bf16.msra.mxu0 %v8134
    %8152 = vmatprep.subr.bf16.mxu0 %v8137
    %8153 = vmatpush1.bf16.msra.mxu0 %v8136
    %8154 = vmatprep.subr.bf16.mxu0 %v8139
    %8155 = vmatpush1.bf16.msra.mxu0 %v8138
    %8156 = vmatprep.subr.bf16.mxu0 %v8141
    %8157 = vmatpush1.bf16.msra.mxu0 %v8140
    %8158 = vmatprep.subr.bf16.mxu0 0
    %8159 = vmatpush1.bf16.msra.mxu0 0
    %8160 = vmatprep.subr.bf16.mxu0 0
    %8161 = vmatpush1.bf16.msra.mxu0 0
    %8162 = vmatprep.subr.bf16.mxu0 0
    %8163 = vmatpush1.bf16.msra.mxu0 0
    %8164 = vmatprep.subr.bf16.mxu0 0
    %8165 = vmatpush1.bf16.msra.mxu0 0
    %8166 = vmatprep.subr.bf16.mxu0 0
    %8167 = vmatpush1.bf16.msra.mxu0 0
    %8168 = vmatprep.subr.bf16.mxu0 0
    %8169 = vmatpush1.bf16.msra.mxu0 0
    %8170 = vmatprep.subr.bf16.mxu0 0
    %8171 = vmatpush1.bf16.msra.mxu0 0
    %8172 = vmatprep.subr.bf16.mxu0 0
    %8173 = vmatpush1.bf16.msra.mxu0 0
    %8174 = vmatprep.subr.bf16.mxu0 0
    %8175 = vmatpush1.bf16.msra.mxu0 0
    %8176 = vmatprep.subr.bf16.mxu0 0
    %8177 = vmatpush1.bf16.msra.mxu0 0
    %8178 = vmatprep.subr.bf16.mxu0 0
    %8179 = vmatpush1.bf16.msra.mxu0 0
    %8180 = vmatprep.subr.bf16.mxu0 0
    %8181 = vmatpush1.bf16.msra.mxu0 0
    %8182 = vmatprep.mubr.bf16.mxu0 0
    %8183 = vmatmul.mubr.bf16.gmra.mrb[0].mxu0 %v220
    %v8184 = vpop.f32.mrb[0].mxu0
    %v8185 = vadd.f32 0.0, %v8184
    %v8186 = vpop.f32.mrb[0].mxu0
    %v8187 = vadd.f32 0.0, %v8186
    %v8188 = vpop.f32.mrb[0].mxu0
    %v8189 = vadd.f32 0.0, %v8188
    %v8190 = vpop.f32.mrb[0].mxu0
    %v8191 = vadd.f32 0.0, %v8190
    %8192 = vmatprep.mubr.bf16.mxu0 0
    %8193 = vmatmul.mubr.bf16.gmra.mrb[0].mxu0 %v223
    %v8194 = vpop.f32.mrb[0].mxu0
    %v8195 = vadd.f32 0.0, %v8194
    %v8196 = vpop.f32.mrb[0].mxu0
    %v8197 = vadd.f32 0.0, %v8196
    %v8198 = vpop.f32.mrb[0].mxu0
    %v8199 = vadd.f32 0.0, %v8198
    %v8200 = vpop.f32.mrb[0].mxu0
    %v8201 = vadd.f32 0.0, %v8200
    %8202 = vmatprep.mubr.bf16.mxu0 0
    %8203 = vmatmul.mubr.bf16.gmra.mrb[0].mxu0 %v226
    %v8204 = vpop.f32.mrb[0].mxu0
    %v8205 = vadd.f32 0.0, %v8204
    %v8206 = vpop.f32.mrb[0].mxu0
    %v8207 = vadd.f32 0.0, %v8206
    %v8208 = vpop.f32.mrb[0].mxu0
    %v8209 = vadd.f32 0.0, %v8208
    %v8210 = vpop.f32.mrb[0].mxu0
    %v8211 = vadd.f32 0.0, %v8210
    %8212 = vmatprep.mubr.bf16.mxu0 0
    %8213 = vmatmul.mubr.bf16.gmra.mrb[0].mxu0 %v229
    %v8214 = vpop.f32.mrb[0].mxu0
    %v8215 = vadd.f32 0.0, %v8214
    %v8216 = vpop.f32.mrb[0].mxu0
    %v8217 = vadd.f32 0.0, %v8216
    %v8218 = vpop.f32.mrb[0].mxu0
    %v8219 = vadd.f32 0.0, %v8218
    %v8220 = vpop.f32.mrb[0].mxu0
    %v8221 = vadd.f32 0.0, %v8220
    %8222 = vmatprep.mubr.bf16.mxu0 0
    %8223 = vmatmul.mubr.bf16.gmra.mrb[0].mxu0 %v232
    %v8224 = vpop.f32.mrb[0].mxu0
    %v8225 = vadd.f32 0.0, %v8224
    %v8226 = vpop.f32.mrb[0].mxu0
    %v8227 = vadd.f32 0.0, %v8226
    %v8228 = vpop.f32.mrb[0].mxu0
    %v8229 = vadd.f32 0.0, %v8228
    %v8230 = vpop.f32.mrb[0].mxu0
    %v8231 = vadd.f32 0.0, %v8230
    %8232 = vmatprep.mubr.bf16.mxu0 0
    %8233 = vmatmul.mubr.bf16.gmra.mrb[0].mxu0 %v235
    %v8234 = vpop.f32.mrb[0].mxu0
    %v8235 = vadd.f32 0.0, %v8234
    %v8236 = vpop.f32.mrb[0].mxu0
    %v8237 = vadd.f32 0.0, %v8236
    %v8238 = vpop.f32.mrb[0].mxu0
    %v8239 = vadd.f32 0.0, %v8238
    %v8240 = vpop.f32.mrb[0].mxu0
    %v8241 = vadd.f32 0.0, %v8240
    %8242 = vmatprep.mubr.bf16.mxu0 0
    %8243 = vmatmul.mubr.bf16.gmra.mrb[0].mxu0 %v238
    %v8244 = vpop.f32.mrb[0].mxu0
    %v8245 = vadd.f32 0.0, %v8244
    %v8246 = vpop.f32.mrb[0].mxu0
    %v8247 = vadd.f32 0.0, %v8246
    %v8248 = vpop.f32.mrb[0].mxu0
    %v8249 = vadd.f32 0.0, %v8248
    %v8250 = vpop.f32.mrb[0].mxu0
    %v8251 = vadd.f32 0.0, %v8250
    %8252 = vmatprep.mubr.bf16.mxu0 0
    %8253 = vmatmul.mubr.bf16.gmra.mrb[0].mxu0 %v241
    %v8254 = vpop.f32.mrb[0].mxu0
    %v8255 = vadd.f32 0.0, %v8254
    %v8256 = vpop.f32.mrb[0].mxu0
    %v8257 = vadd.f32 0.0, %v8256
    %v8258 = vpop.f32.mrb[0].mxu0
    %v8259 = vadd.f32 0.0, %v8258
    %v8260 = vpop.f32.mrb[0].mxu0
    %v8261 = vadd.f32 0.0, %v8260
    %8262 = vmatprep.mubr.bf16.mxu0 0
    %8263 = vmatmul.mubr.bf16.gmra.mrb[0].mxu0 %v244
    %v8264 = vpop.f32.mrb[0].mxu0
    %v8265 = vadd.f32 0.0, %v8264
    %v8266 = vpop.f32.mrb[0].mxu0
    %v8267 = vadd.f32 0.0, %v8266
    %v8268 = vpop.f32.mrb[0].mxu0
    %v8269 = vadd.f32 0.0, %v8268
    %v8270 = vpop.f32.mrb[0].mxu0
    %v8271 = vadd.f32 0.0, %v8270
    %8272 = vmatprep.mubr.bf16.mxu0 0
    %8273 = vmatmul.mubr.bf16.gmra.mrb[0].mxu0 %v247
    %v8274 = vpop.f32.mrb[0].mxu0
    %v8275 = vadd.f32 0.0, %v8274
    %v8276 = vpop.f32.mrb[0].mxu0
    %v8277 = vadd.f32 0.0, %v8276
    %v8278 = vpop.f32.mrb[0].mxu0
    %v8279 = vadd.f32 0.0, %v8278
    %v8280 = vpop.f32.mrb[0].mxu0
    %v8281 = vadd.f32 0.0, %v8280
    %8282 = vmatprep.mubr.bf16.mxu0 0
    %8283 = vmatmul.mubr.bf16.gmra.mrb[0].mxu0 %v250
    %v8284 = vpop.f32.mrb[0].mxu0
    %v8285 = vadd.f32 0.0, %v8284
    %v8286 = vpop.f32.mrb[0].mxu0
    %v8287 = vadd.f32 0.0, %v8286
    %v8288 = vpop.f32.mrb[0].mxu0
    %v8289 = vadd.f32 0.0, %v8288
    %v8290 = vpop.f32.mrb[0].mxu0
    %v8291 = vadd.f32 0.0, %v8290
    %8292 = vmatprep.mubr.bf16.mxu0 0
    %8293 = vmatmul.mubr.bf16.gmra.mrb[0].mxu0 %v253
    %v8294 = vpop.f32.mrb[0].mxu0
    %v8295 = vadd.f32 0.0, %v8294
    %v8296 = vpop.f32.mrb[0].mxu0
    %v8297 = vadd.f32 0.0, %v8296
    %v8298 = vpop.f32.mrb[0].mxu0
    %v8299 = vadd.f32 0.0, %v8298
    %v8300 = vpop.f32.mrb[0].mxu0
    %v8301 = vadd.f32 0.0, %v8300
    %8302 = vmatprep.mubr.bf16.mxu0 0
    %8303 = vmatmul.mubr.bf16.gmra.mrb[0].mxu0 %v256
    %v8304 = vpop.f32.mrb[0].mxu0
    %v8305 = vadd.f32 0.0, %v8304
    %v8306 = vpop.f32.mrb[0].mxu0
    %v8307 = vadd.f32 0.0, %v8306
    %v8308 = vpop.f32.mrb[0].mxu0
    %v8309 = vadd.f32 0.0, %v8308
    %v8310 = vpop.f32.mrb[0].mxu0
    %v8311 = vadd.f32 0.0, %v8310
    %8312 = vmatprep.mubr.bf16.mxu0 0
    %8313 = vmatmul.mubr.bf16.gmra.mrb[0].mxu0 %v259
    %v8314 = vpop.f32.mrb[0].mxu0
    %v8315 = vadd.f32 0.0, %v8314
    %v8316 = vpop.f32.mrb[0].mxu0
    %v8317 = vadd.f32 0.0, %v8316
    %v8318 = vpop.f32.mrb[0].mxu0
    %v8319 = vadd.f32 0.0, %v8318
    %v8320 = vpop.f32.mrb[0].mxu0
    %v8321 = vadd.f32 0.0, %v8320
    %8322 = vmatprep.mubr.bf16.mxu0 0
    %8323 = vmatmul.mubr.bf16.gmra.mrb[0].mxu0 %v262
    %v8324 = vpop.f32.mrb[0].mxu0
    %v8325 = vadd.f32 0.0, %v8324
    %v8326 = vpop.f32.mrb[0].mxu0
    %v8327 = vadd.f32 0.0, %v8326
    %v8328 = vpop.f32.mrb[0].mxu0
    %v8329 = vadd.f32 0.0, %v8328
    %v8330 = vpop.f32.mrb[0].mxu0
    %v8331 = vadd.f32 0.0, %v8330
    %8332 = vmatprep.mubr.bf16.mxu0 0
    %8333 = vmatmul.mubr.bf16.gmra.mrb[0].mxu0 %v265
    %v8334 = vpop.f32.mrb[0].mxu0
    %v8335 = vadd.f32 0.0, %v8334
    %v8336 = vpop.f32.mrb[0].mxu0
    %v8337 = vadd.f32 0.0, %v8336
    %v8338 = vpop.f32.mrb[0].mxu0
    %v8339 = vadd.f32 0.0, %v8338
    %v8340 = vpop.f32.mrb[0].mxu0
    %v8341 = vadd.f32 0.0, %v8340
    %8342 = vmatprep.mubr.bf16.mxu0 0
    %8343 = vmatmul.mubr.bf16.gmra.mrb[0].mxu0 %v268
    %v8344 = vpop.f32.mrb[0].mxu0
    %v8345 = vadd.f32 0.0, %v8344
    %v8346 = vpop.f32.mrb[0].mxu0
    %v8347 = vadd.f32 0.0, %v8346
    %v8348 = vpop.f32.mrb[0].mxu0
    %v8349 = vadd.f32 0.0, %v8348
    %v8350 = vpop.f32.mrb[0].mxu0
    %v8351 = vadd.f32 0.0, %v8350
    %8352 = vmatprep.mubr.bf16.mxu0 0
    %8353 = vmatmul.mubr.bf16.gmra.mrb[0].mxu0 %v271
    %v8354 = vpop.f32.mrb[0].mxu0
    %v8355 = vadd.f32 0.0, %v8354
    %v8356 = vpop.f32.mrb[0].mxu0
    %v8357 = vadd.f32 0.0, %v8356
    %v8358 = vpop.f32.mrb[0].mxu0
    %v8359 = vadd.f32 0.0, %v8358
    %v8360 = vpop.f32.mrb[0].mxu0
    %v8361 = vadd.f32 0.0, %v8360
    %8362 = vmatprep.mubr.bf16.mxu0 0
    %8363 = vmatmul.mubr.bf16.gmra.mrb[0].mxu0 %v274
    %v8364 = vpop.f32.mrb[0].mxu0
    %v8365 = vadd.f32 0.0, %v8364
    %v8366 = vpop.f32.mrb[0].mxu0
    %v8367 = vadd.f32 0.0, %v8366
    %v8368 = vpop.f32.mrb[0].mxu0
    %v8369 = vadd.f32 0.0, %v8368
    %v8370 = vpop.f32.mrb[0].mxu0
    %v8371 = vadd.f32 0.0, %v8370
    %8372 = vmatprep.mubr.bf16.mxu0 0
    %8373 = vmatmul.mubr.bf16.gmra.mrb[0].mxu0 %v277
    %v8374 = vpop.f32.mrb[0].mxu0
    %v8375 = vadd.f32 0.0, %v8374
    %v8376 = vpop.f32.mrb[0].mxu0
    %v8377 = vadd.f32 0.0, %v8376
    %v8378 = vpop.f32.mrb[0].mxu0
    %v8379 = vadd.f32 0.0, %v8378
    %v8380 = vpop.f32.mrb[0].mxu0
    %v8381 = vadd.f32 0.0, %v8380
    %8382 = vmatprep.mubr.bf16.mxu0 0
    %8383 = vmatmul.mubr.bf16.gmra.mrb[0].mxu0 %v280
    %v8384 = vpop.f32.mrb[0].mxu0
    %v8385 = vadd.f32 0.0, %v8384
    %v8386 = vpop.f32.mrb[0].mxu0
    %v8387 = vadd.f32 0.0, %v8386
    %v8388 = vpop.f32.mrb[0].mxu0
    %v8389 = vadd.f32 0.0, %v8388
    %v8390 = vpop.f32.mrb[0].mxu0
    %v8391 = vadd.f32 0.0, %v8390
    %8392 = vmatprep.mubr.bf16.mxu0 0
    %8393 = vmatmul.mubr.bf16.gmra.mrb[0].mxu0 %v283
    %v8394 = vpop.f32.mrb[0].mxu0
    %v8395 = vadd.f32 0.0, %v8394
    %v8396 = vpop.f32.mrb[0].mxu0
    %v8397 = vadd.f32 0.0, %v8396
    %v8398 = vpop.f32.mrb[0].mxu0
    %v8399 = vadd.f32 0.0, %v8398
    %v8400 = vpop.f32.mrb[0].mxu0
    %v8401 = vadd.f32 0.0, %v8400
    %8402 = vmatprep.mubr.bf16.mxu0 0
    %8403 = vmatmul.mubr.bf16.gmra.mrb[0].mxu0 %v286
    %v8404 = vpop.f32.mrb[0].mxu0
    %v8405 = vadd.f32 0.0, %v8404
    %v8406 = vpop.f32.mrb[0].mxu0
    %v8407 = vadd.f32 0.0, %v8406
    %v8408 = vpop.f32.mrb[0].mxu0
    %v8409 = vadd.f32 0.0, %v8408
    %v8410 = vpop.f32.mrb[0].mxu0
    %v8411 = vadd.f32 0.0, %v8410
    %8412 = vmatprep.mubr.bf16.mxu0 0
    %8413 = vmatmul.mubr.bf16.gmra.mrb[0].mxu0 %v289
    %v8414 = vpop.f32.mrb[0].mxu0
    %v8415 = vadd.f32 0.0, %v8414
    %v8416 = vpop.f32.mrb[0].mxu0
    %v8417 = vadd.f32 0.0, %v8416
    %v8418 = vpop.f32.mrb[0].mxu0
    %v8419 = vadd.f32 0.0, %v8418
    %v8420 = vpop.f32.mrb[0].mxu0
    %v8421 = vadd.f32 0.0, %v8420
    %8422 = vmatprep.mubr.bf16.mxu0 0
    %8423 = vmatmul.mubr.bf16.gmra.mrb[0].mxu0 %v292
    %v8424 = vpop.f32.mrb[0].mxu0
    %v8425 = vadd.f32 0.0, %v8424
    %v8426 = vpop.f32.mrb[0].mxu0
    %v8427 = vadd.f32 0.0, %v8426
    %v8428 = vpop.f32.mrb[0].mxu0
    %v8429 = vadd.f32 0.0, %v8428
    %v8430 = vpop.f32.mrb[0].mxu0
    %v8431 = vadd.f32 0.0, %v8430
    %8432 = vmatprep.mubr.bf16.mxu0 0
    %8433 = vmatmul.mubr.bf16.gmra.mrb[0].mxu0 %v295
    %v8434 = vpop.f32.mrb[0].mxu0
    %v8435 = vadd.f32 0.0, %v8434
    %v8436 = vpop.f32.mrb[0].mxu0
    %v8437 = vadd.f32 0.0, %v8436
    %v8438 = vpop.f32.mrb[0].mxu0
    %v8439 = vadd.f32 0.0, %v8438
    %v8440 = vpop.f32.mrb[0].mxu0
    %v8441 = vadd.f32 0.0, %v8440
    %8442 = vmatprep.mubr.bf16.mxu0 0
    %8443 = vmatmul.mubr.bf16.gmra.mrb[0].mxu0 %v298
    %v8444 = vpop.f32.mrb[0].mxu0
    %v8445 = vadd.f32 0.0, %v8444
    %v8446 = vpop.f32.mrb[0].mxu0
    %v8447 = vadd.f32 0.0, %v8446
    %v8448 = vpop.f32.mrb[0].mxu0
    %v8449 = vadd.f32 0.0, %v8448
    %v8450 = vpop.f32.mrb[0].mxu0
    %v8451 = vadd.f32 0.0, %v8450
    %8452 = vmatprep.mubr.bf16.mxu0 0
    %8453 = vmatmul.mubr.bf16.gmra.mrb[0].mxu0 %v301
    %v8454 = vpop.f32.mrb[0].mxu0
    %v8455 = vadd.f32 0.0, %v8454
    %v8456 = vpop.f32.mrb[0].mxu0
    %v8457 = vadd.f32 0.0, %v8456
    %v8458 = vpop.f32.mrb[0].mxu0
    %v8459 = vadd.f32 0.0, %v8458
    %v8460 = vpop.f32.mrb[0].mxu0
    %v8461 = vadd.f32 0.0, %v8460
    %8462 = vmatprep.mubr.bf16.mxu0 0
    %8463 = vmatmul.mubr.bf16.gmra.mrb[0].mxu0 %v304
    %v8464 = vpop.f32.mrb[0].mxu0
    %v8465 = vadd.f32 0.0, %v8464
    %v8466 = vpop.f32.mrb[0].mxu0
    %v8467 = vadd.f32 0.0, %v8466
    %v8468 = vpop.f32.mrb[0].mxu0
    %v8469 = vadd.f32 0.0, %v8468
    %v8470 = vpop.f32.mrb[0].mxu0
    %v8471 = vadd.f32 0.0, %v8470
    %8472 = vmatprep.mubr.bf16.mxu0 0
    %8473 = vmatmul.mubr.bf16.gmra.mrb[0].mxu0 %v307
    %v8474 = vpop.f32.mrb[0].mxu0
    %v8475 = vadd.f32 0.0, %v8474
    %v8476 = vpop.f32.mrb[0].mxu0
    %v8477 = vadd.f32 0.0, %v8476
    %v8478 = vpop.f32.mrb[0].mxu0
    %v8479 = vadd.f32 0.0, %v8478
    %v8480 = vpop.f32.mrb[0].mxu0
    %v8481 = vadd.f32 0.0, %v8480
    %8482 = vmatprep.mubr.bf16.mxu0 0
    %8483 = vmatmul.mubr.bf16.gmra.mrb[0].mxu0 %v310
    %v8484 = vpop.f32.mrb[0].mxu0
    %v8485 = vadd.f32 0.0, %v8484
    %v8486 = vpop.f32.mrb[0].mxu0
    %v8487 = vadd.f32 0.0, %v8486
    %v8488 = vpop.f32.mrb[0].mxu0
    %v8489 = vadd.f32 0.0, %v8488
    %v8490 = vpop.f32.mrb[0].mxu0
    %v8491 = vadd.f32 0.0, %v8490
    %8492 = vmatprep.mubr.bf16.mxu0 0
    %8493 = vmatmul.mubr.bf16.gmra.mrb[0].mxu0 %v313
    %v8494 = vpop.f32.mrb[0].mxu0
    %v8495 = vadd.f32 0.0, %v8494
    %v8496 = vpop.f32.mrb[0].mxu0
    %v8497 = vadd.f32 0.0, %v8496
    %v8498 = vpop.f32.mrb[0].mxu0
    %v8499 = vadd.f32 0.0, %v8498
    %v8500 = vpop.f32.mrb[0].mxu0
    %v8501 = vadd.f32 0.0, %v8500
    %8502 = vdwg.mxu0
    %v8503 = vadd.f32 %v8185, %v8189
    %v8504 = vadd.f32 %v8503, %v8195
    %v8505 = vadd.f32 %v8504, %v8199
    %v8506 = vadd.f32 %v8505, %v8205
    %v8507 = vadd.f32 %v8506, %v8209
    %v8508 = vadd.f32 %v8507, %v8215
    %v8509 = vadd.f32 %v8508, %v8219
    %v8510 = vadd.f32 %v8509, %v8225
    %v8511 = vadd.f32 %v8510, %v8229
    %v8512 = vadd.f32 %v8511, %v8235
    %v8513 = vadd.f32 %v8512, %v8239
    %v8514 = vadd.f32 %v8513, %v8245
    %v8515 = vadd.f32 %v8514, %v8249
    %v8516 = vadd.f32 %v8515, %v8255
    %v8517 = vadd.f32 %v8516, %v8259
    %v8518 = vadd.f32 %v8517, %v8265
    %v8519 = vadd.f32 %v8518, %v8269
    %v8520 = vadd.f32 %v8519, %v8275
    %v8521 = vadd.f32 %v8520, %v8279
    %v8522 = vadd.f32 %v8521, %v8285
    %v8523 = vadd.f32 %v8522, %v8289
    %v8524 = vadd.f32 %v8523, %v8295
    %v8525 = vadd.f32 %v8524, %v8299
    %v8526 = vadd.f32 %v8525, %v8305
    %v8527 = vadd.f32 %v8526, %v8309
    %v8528 = vadd.f32 %v8527, %v8315
    %v8529 = vadd.f32 %v8528, %v8319
    %v8530 = vadd.f32 %v8529, %v8325
    %v8531 = vadd.f32 %v8530, %v8329
    %v8532 = vadd.f32 %v8531, %v8335
    %v8533 = vadd.f32 %v8532, %v8339
    %v8534 = vadd.f32 %v8533, %v8345
    %v8535 = vadd.f32 %v8534, %v8349
    %v8536 = vadd.f32 %v8535, %v8355
    %v8537 = vadd.f32 %v8536, %v8359
    %v8538 = vadd.f32 %v8537, %v8365
    %v8539 = vadd.f32 %v8538, %v8369
    %v8540 = vadd.f32 %v8539, %v8375
    %v8541 = vadd.f32 %v8540, %v8379
    %v8542 = vadd.f32 %v8541, %v8385
    %v8543 = vadd.f32 %v8542, %v8389
    %v8544 = vadd.f32 %v8543, %v8395
    %v8545 = vadd.f32 %v8544, %v8399
    %v8546 = vadd.f32 %v8545, %v8405
    %v8547 = vadd.f32 %v8546, %v8409
    %v8548 = vadd.f32 %v8547, %v8415
    %v8549 = vadd.f32 %v8548, %v8419
    %v8550 = vadd.f32 %v8549, %v8425
    %v8551 = vadd.f32 %v8550, %v8429
    %v8552 = vadd.f32 %v8551, %v8435
    %v8553 = vadd.f32 %v8552, %v8439
    %v8554 = vadd.f32 %v8553, %v8445
    %v8555 = vadd.f32 %v8554, %v8449
    %v8556 = vadd.f32 %v8555, %v8455
    %v8557 = vadd.f32 %v8556, %v8459
    %v8558 = vadd.f32 %v8557, %v8465
    %v8559 = vadd.f32 %v8558, %v8469
    %v8560 = vadd.f32 %v8559, %v8475
    %v8561 = vadd.f32 %v8560, %v8479
    %v8562 = vadd.f32 %v8561, %v8485
    %v8563 = vadd.f32 %v8562, %v8489
    %v8564 = vadd.f32 %v8563, %v8495
    %v8565 = vadd.f32 %v8564, %v8499
    %v8566 = vrot.slane %v8565, 4
    %v8567 = vadd.f32 %v8565, %v8566
    %v8568 = vrot.slane %v8567, 2
    %v8569 = vadd.f32 %v8567, %v8568
    %v8570 = vrot.slane %v8569, 1
    %v8571 = vadd.f32 %v8569, %v8570
    %v8572 = vadd.f32 %v8187, %v8191
    %v8573 = vadd.f32 %v8572, %v8197
    %v8574 = vadd.f32 %v8573, %v8201
    %v8575 = vadd.f32 %v8574, %v8207
    %v8576 = vadd.f32 %v8575, %v8211
    %v8577 = vadd.f32 %v8576, %v8217
    %v8578 = vadd.f32 %v8577, %v8221
    %v8579 = vadd.f32 %v8578, %v8227
    %v8580 = vadd.f32 %v8579, %v8231
    %v8581 = vadd.f32 %v8580, %v8237
    %v8582 = vadd.f32 %v8581, %v8241
    %v8583 = vadd.f32 %v8582, %v8247
    %v8584 = vadd.f32 %v8583, %v8251
    %v8585 = vadd.f32 %v8584, %v8257
    %v8586 = vadd.f32 %v8585, %v8261
    %v8587 = vadd.f32 %v8586, %v8267
    %v8588 = vadd.f32 %v8587, %v8271
    %v8589 = vadd.f32 %v8588, %v8277
    %v8590 = vadd.f32 %v8589, %v8281
    %v8591 = vadd.f32 %v8590, %v8287
    %v8592 = vadd.f32 %v8591, %v8291
    %v8593 = vadd.f32 %v8592, %v8297
    %v8594 = vadd.f32 %v8593, %v8301
    %v8595 = vadd.f32 %v8594, %v8307
    %v8596 = vadd.f32 %v8595, %v8311
    %v8597 = vadd.f32 %v8596, %v8317
    %v8598 = vadd.f32 %v8597, %v8321
    %v8599 = vadd.f32 %v8598, %v8327
    %v8600 = vadd.f32 %v8599, %v8331
    %v8601 = vadd.f32 %v8600, %v8337
    %v8602 = vadd.f32 %v8601, %v8341
    %v8603 = vadd.f32 %v8602, %v8347
    %v8604 = vadd.f32 %v8603, %v8351
    %v8605 = vadd.f32 %v8604, %v8357
    %v8606 = vadd.f32 %v8605, %v8361
    %v8607 = vadd.f32 %v8606, %v8367
    %v8608 = vadd.f32 %v8607, %v8371
    %v8609 = vadd.f32 %v8608, %v8377
    %v8610 = vadd.f32 %v8609, %v8381
    %v8611 = vadd.f32 %v8610, %v8387
    %v8612 = vadd.f32 %v8611, %v8391
    %v8613 = vadd.f32 %v8612, %v8397
    %v8614 = vadd.f32 %v8613, %v8401
    %v8615 = vadd.f32 %v8614, %v8407
    %v8616 = vadd.f32 %v8615, %v8411
    %v8617 = vadd.f32 %v8616, %v8417
    %v8618 = vadd.f32 %v8617, %v8421
    %v8619 = vadd.f32 %v8618, %v8427
    %v8620 = vadd.f32 %v8619, %v8431
    %v8621 = vadd.f32 %v8620, %v8437
    %v8622 = vadd.f32 %v8621, %v8441
    %v8623 = vadd.f32 %v8622, %v8447
    %v8624 = vadd.f32 %v8623, %v8451
    %v8625 = vadd.f32 %v8624, %v8457
    %v8626 = vadd.f32 %v8625, %v8461
    %v8627 = vadd.f32 %v8626, %v8467
    %v8628 = vadd.f32 %v8627, %v8471
    %v8629 = vadd.f32 %v8628, %v8477
    %v8630 = vadd.f32 %v8629, %v8481
    %v8631 = vadd.f32 %v8630, %v8487
    %v8632 = vadd.f32 %v8631, %v8491
    %v8633 = vadd.f32 %v8632, %v8497
    %v8634 = vadd.f32 %v8633, %v8501
    %v8635 = vrot.slane %v8634, 4
    %v8636 = vadd.f32 %v8634, %v8635
    %v8637 = vrot.slane %v8636, 2
    %v8638 = vadd.f32 %v8636, %v8637
    %v8639 = vrot.slane %v8638, 1
    %v8640 = vadd.f32 %v8638, %v8639
    %v8641 = vmul.f32 %v8571, %v737
    %v8642 = vmul.f32 %v8640, %v737
    %v8643 = vsub.f32 %v8185, %v8641
    %v8644 = vsub.f32 %v8187, %v8642
    %v8645 = vsub.f32 %v8189, %v8641
    %v8646 = vsub.f32 %v8191, %v8642
    %v8647 = vsub.f32 %v8195, %v8641
    %v8648 = vsub.f32 %v8197, %v8642
    %v8649 = vsub.f32 %v8199, %v8641
    %v8650 = vsub.f32 %v8201, %v8642
    %v8651 = vsub.f32 %v8205, %v8641
    %v8652 = vsub.f32 %v8207, %v8642
    %v8653 = vsub.f32 %v8209, %v8641
    %v8654 = vsub.f32 %v8211, %v8642
    %v8655 = vsub.f32 %v8215, %v8641
    %v8656 = vsub.f32 %v8217, %v8642
    %v8657 = vsub.f32 %v8219, %v8641
    %v8658 = vsub.f32 %v8221, %v8642
    %v8659 = vsub.f32 %v8225, %v8641
    %v8660 = vsub.f32 %v8227, %v8642
    %v8661 = vsub.f32 %v8229, %v8641
    %v8662 = vsub.f32 %v8231, %v8642
    %v8663 = vsub.f32 %v8235, %v8641
    %v8664 = vsub.f32 %v8237, %v8642
    %v8665 = vsub.f32 %v8239, %v8641
    %v8666 = vsub.f32 %v8241, %v8642
    %v8667 = vsub.f32 %v8245, %v8641
    %v8668 = vsub.f32 %v8247, %v8642
    %v8669 = vsub.f32 %v8249, %v8641
    %v8670 = vsub.f32 %v8251, %v8642
    %v8671 = vsub.f32 %v8255, %v8641
    %v8672 = vsub.f32 %v8257, %v8642
    %v8673 = vsub.f32 %v8259, %v8641
    %v8674 = vsub.f32 %v8261, %v8642
    %v8675 = vsub.f32 %v8265, %v8641
    %v8676 = vsub.f32 %v8267, %v8642
    %v8677 = vsub.f32 %v8269, %v8641
    %v8678 = vsub.f32 %v8271, %v8642
    %v8679 = vsub.f32 %v8275, %v8641
    %v8680 = vsub.f32 %v8277, %v8642
    %v8681 = vsub.f32 %v8279, %v8641
    %v8682 = vsub.f32 %v8281, %v8642
    %v8683 = vsub.f32 %v8285, %v8641
    %v8684 = vsub.f32 %v8287, %v8642
    %v8685 = vsub.f32 %v8289, %v8641
    %v8686 = vsub.f32 %v8291, %v8642
    %v8687 = vsub.f32 %v8295, %v8641
    %v8688 = vsub.f32 %v8297, %v8642
    %v8689 = vsub.f32 %v8299, %v8641
    %v8690 = vsub.f32 %v8301, %v8642
    %v8691 = vsub.f32 %v8305, %v8641
    %v8692 = vsub.f32 %v8307, %v8642
    %v8693 = vsub.f32 %v8309, %v8641
    %v8694 = vsub.f32 %v8311, %v8642
    %v8695 = vsub.f32 %v8315, %v8641
    %v8696 = vsub.f32 %v8317, %v8642
    %v8697 = vsub.f32 %v8319, %v8641
    %v8698 = vsub.f32 %v8321, %v8642
    %v8699 = vsub.f32 %v8325, %v8641
    %v8700 = vsub.f32 %v8327, %v8642
    %v8701 = vsub.f32 %v8329, %v8641
    %v8702 = vsub.f32 %v8331, %v8642
    %v8703 = vsub.f32 %v8335, %v8641
    %v8704 = vsub.f32 %v8337, %v8642
    %v8705 = vsub.f32 %v8339, %v8641
    %v8706 = vsub.f32 %v8341, %v8642
    %v8707 = vsub.f32 %v8345, %v8641
    %v8708 = vsub.f32 %v8347, %v8642
    %v8709 = vsub.f32 %v8349, %v8641
    %v8710 = vsub.f32 %v8351, %v8642
    %v8711 = vsub.f32 %v8355, %v8641
    %v8712 = vsub.f32 %v8357, %v8642
    %v8713 = vsub.f32 %v8359, %v8641
    %v8714 = vsub.f32 %v8361, %v8642
    %v8715 = vsub.f32 %v8365, %v8641
    %v8716 = vsub.f32 %v8367, %v8642
    %v8717 = vsub.f32 %v8369, %v8641
    %v8718 = vsub.f32 %v8371, %v8642
    %v8719 = vsub.f32 %v8375, %v8641
    %v8720 = vsub.f32 %v8377, %v8642
    %v8721 = vsub.f32 %v8379, %v8641
    %v8722 = vsub.f32 %v8381, %v8642
    %v8723 = vsub.f32 %v8385, %v8641
    %v8724 = vsub.f32 %v8387, %v8642
    %v8725 = vsub.f32 %v8389, %v8641
    %v8726 = vsub.f32 %v8391, %v8642
    %v8727 = vsub.f32 %v8395, %v8641
    %v8728 = vsub.f32 %v8397, %v8642
    %v8729 = vsub.f32 %v8399, %v8641
    %v8730 = vsub.f32 %v8401, %v8642
    %v8731 = vsub.f32 %v8405, %v8641
    %v8732 = vsub.f32 %v8407, %v8642
    %v8733 = vsub.f32 %v8409, %v8641
    %v8734 = vsub.f32 %v8411, %v8642
    %v8735 = vsub.f32 %v8415, %v8641
    %v8736 = vsub.f32 %v8417, %v8642
    %v8737 = vsub.f32 %v8419, %v8641
    %v8738 = vsub.f32 %v8421, %v8642
    %v8739 = vsub.f32 %v8425, %v8641
    %v8740 = vsub.f32 %v8427, %v8642
    %v8741 = vsub.f32 %v8429, %v8641
    %v8742 = vsub.f32 %v8431, %v8642
    %v8743 = vsub.f32 %v8435, %v8641
    %v8744 = vsub.f32 %v8437, %v8642
    %v8745 = vsub.f32 %v8439, %v8641
    %v8746 = vsub.f32 %v8441, %v8642
    %v8747 = vsub.f32 %v8445, %v8641
    %v8748 = vsub.f32 %v8447, %v8642
    %v8749 = vsub.f32 %v8449, %v8641
    %v8750 = vsub.f32 %v8451, %v8642
    %v8751 = vsub.f32 %v8455, %v8641
    %v8752 = vsub.f32 %v8457, %v8642
    %v8753 = vsub.f32 %v8459, %v8641
    %v8754 = vsub.f32 %v8461, %v8642
    %v8755 = vsub.f32 %v8465, %v8641
    %v8756 = vsub.f32 %v8467, %v8642
    %v8757 = vsub.f32 %v8469, %v8641
    %v8758 = vsub.f32 %v8471, %v8642
    %v8759 = vsub.f32 %v8475, %v8641
    %v8760 = vsub.f32 %v8477, %v8642
    %v8761 = vsub.f32 %v8479, %v8641
    %v8762 = vsub.f32 %v8481, %v8642
    %v8763 = vsub.f32 %v8485, %v8641
    %v8764 = vsub.f32 %v8487, %v8642
    %v8765 = vsub.f32 %v8489, %v8641
    %v8766 = vsub.f32 %v8491, %v8642
    %v8767 = vsub.f32 %v8495, %v8641
    %v8768 = vsub.f32 %v8497, %v8642
    %v8769 = vsub.f32 %v8499, %v8641
    %v8770 = vsub.f32 %v8501, %v8642
    %v8771 = vmul.f32 %v8643, %v8643
    %v8772 = vmul.f32 %v8644, %v8644
    %v8773 = vmul.f32 %v8645, %v8645
    %v8774 = vmul.f32 %v8646, %v8646
    %v8775 = vmul.f32 %v8647, %v8647
    %v8776 = vmul.f32 %v8648, %v8648
    %v8777 = vmul.f32 %v8649, %v8649
    %v8778 = vmul.f32 %v8650, %v8650
    %v8779 = vmul.f32 %v8651, %v8651
    %v8780 = vmul.f32 %v8652, %v8652
    %v8781 = vmul.f32 %v8653, %v8653
    %v8782 = vmul.f32 %v8654, %v8654
    %v8783 = vmul.f32 %v8655, %v8655
    %v8784 = vmul.f32 %v8656, %v8656
    %v8785 = vmul.f32 %v8657, %v8657
    %v8786 = vmul.f32 %v8658, %v8658
    %v8787 = vmul.f32 %v8659, %v8659
    %v8788 = vmul.f32 %v8660, %v8660
    %v8789 = vmul.f32 %v8661, %v8661
    %v8790 = vmul.f32 %v8662, %v8662
    %v8791 = vmul.f32 %v8663, %v8663
    %v8792 = vmul.f32 %v8664, %v8664
    %v8793 = vmul.f32 %v8665, %v8665
    %v8794 = vmul.f32 %v8666, %v8666
    %v8795 = vmul.f32 %v8667, %v8667
    %v8796 = vmul.f32 %v8668, %v8668
    %v8797 = vmul.f32 %v8669, %v8669
    %v8798 = vmul.f32 %v8670, %v8670
    %v8799 = vmul.f32 %v8671, %v8671
    %v8800 = vmul.f32 %v8672, %v8672
    %v8801 = vmul.f32 %v8673, %v8673
    %v8802 = vmul.f32 %v8674, %v8674
    %v8803 = vmul.f32 %v8675, %v8675
    %v8804 = vmul.f32 %v8676, %v8676
    %v8805 = vmul.f32 %v8677, %v8677
    %v8806 = vmul.f32 %v8678, %v8678
    %v8807 = vmul.f32 %v8679, %v8679
    %v8808 = vmul.f32 %v8680, %v8680
    %v8809 = vmul.f32 %v8681, %v8681
    %v8810 = vmul.f32 %v8682, %v8682
    %v8811 = vmul.f32 %v8683, %v8683
    %v8812 = vmul.f32 %v8684, %v8684
    %v8813 = vmul.f32 %v8685, %v8685
    %v8814 = vmul.f32 %v8686, %v8686
    %v8815 = vmul.f32 %v8687, %v8687
    %v8816 = vmul.f32 %v8688, %v8688
    %v8817 = vmul.f32 %v8689, %v8689
    %v8818 = vmul.f32 %v8690, %v8690
    %v8819 = vmul.f32 %v8691, %v8691
    %v8820 = vmul.f32 %v8692, %v8692
    %v8821 = vmul.f32 %v8693, %v8693
    %v8822 = vmul.f32 %v8694, %v8694
    %v8823 = vmul.f32 %v8695, %v8695
    %v8824 = vmul.f32 %v8696, %v8696
    %v8825 = vmul.f32 %v8697, %v8697
    %v8826 = vmul.f32 %v8698, %v8698
    %v8827 = vmul.f32 %v8699, %v8699
    %v8828 = vmul.f32 %v8700, %v8700
    %v8829 = vmul.f32 %v8701, %v8701
    %v8830 = vmul.f32 %v8702, %v8702
    %v8831 = vmul.f32 %v8703, %v8703
    %v8832 = vmul.f32 %v8704, %v8704
    %v8833 = vmul.f32 %v8705, %v8705
    %v8834 = vmul.f32 %v8706, %v8706
    %v8835 = vmul.f32 %v8707, %v8707
    %v8836 = vmul.f32 %v8708, %v8708
    %v8837 = vmul.f32 %v8709, %v8709
    %v8838 = vmul.f32 %v8710, %v8710
    %v8839 = vmul.f32 %v8711, %v8711
    %v8840 = vmul.f32 %v8712, %v8712
    %v8841 = vmul.f32 %v8713, %v8713
    %v8842 = vmul.f32 %v8714, %v8714
    %v8843 = vmul.f32 %v8715, %v8715
    %v8844 = vmul.f32 %v8716, %v8716
    %v8845 = vmul.f32 %v8717, %v8717
    %v8846 = vmul.f32 %v8718, %v8718
    %v8847 = vmul.f32 %v8719, %v8719
    %v8848 = vmul.f32 %v8720, %v8720
    %v8849 = vmul.f32 %v8721, %v8721
    %v8850 = vmul.f32 %v8722, %v8722
    %v8851 = vmul.f32 %v8723, %v8723
    %v8852 = vmul.f32 %v8724, %v8724
    %v8853 = vmul.f32 %v8725, %v8725
    %v8854 = vmul.f32 %v8726, %v8726
    %v8855 = vmul.f32 %v8727, %v8727
    %v8856 = vmul.f32 %v8728, %v8728
    %v8857 = vmul.f32 %v8729, %v8729
    %v8858 = vmul.f32 %v8730, %v8730
    %v8859 = vmul.f32 %v8731, %v8731
    %v8860 = vmul.f32 %v8732, %v8732
    %v8861 = vmul.f32 %v8733, %v8733
    %v8862 = vmul.f32 %v8734, %v8734
    %v8863 = vmul.f32 %v8735, %v8735
    %v8864 = vmul.f32 %v8736, %v8736
    %v8865 = vmul.f32 %v8737, %v8737
    %v8866 = vmul.f32 %v8738, %v8738
    %v8867 = vmul.f32 %v8739, %v8739
    %v8868 = vmul.f32 %v8740, %v8740
    %v8869 = vmul.f32 %v8741, %v8741
    %v8870 = vmul.f32 %v8742, %v8742
    %v8871 = vmul.f32 %v8743, %v8743
    %v8872 = vmul.f32 %v8744, %v8744
    %v8873 = vmul.f32 %v8745, %v8745
    %v8874 = vmul.f32 %v8746, %v8746
    %v8875 = vmul.f32 %v8747, %v8747
    %v8876 = vmul.f32 %v8748, %v8748
    %v8877 = vmul.f32 %v8749, %v8749
    %v8878 = vmul.f32 %v8750, %v8750
    %v8879 = vmul.f32 %v8751, %v8751
    %v8880 = vmul.f32 %v8752, %v8752
    %v8881 = vmul.f32 %v8753, %v8753
    %v8882 = vmul.f32 %v8754, %v8754
    %v8883 = vmul.f32 %v8755, %v8755
    %v8884 = vmul.f32 %v8756, %v8756
    %v8885 = vmul.f32 %v8757, %v8757
    %v8886 = vmul.f32 %v8758, %v8758
    %v8887 = vmul.f32 %v8759, %v8759
    %v8888 = vmul.f32 %v8760, %v8760
    %v8889 = vmul.f32 %v8761, %v8761
    %v8890 = vmul.f32 %v8762, %v8762
    %v8891 = vmul.f32 %v8763, %v8763
    %v8892 = vmul.f32 %v8764, %v8764
    %v8893 = vmul.f32 %v8765, %v8765
    %v8894 = vmul.f32 %v8766, %v8766
    %v8895 = vmul.f32 %v8767, %v8767
    %v8896 = vmul.f32 %v8768, %v8768
    %v8897 = vmul.f32 %v8769, %v8769
    %v8898 = vmul.f32 %v8770, %v8770
    %v8899 = vadd.f32 %v8771, %v8773
    %v8900 = vadd.f32 %v8899, %v8775
    %v8901 = vadd.f32 %v8900, %v8777
    %v8902 = vadd.f32 %v8901, %v8779
    %v8903 = vadd.f32 %v8902, %v8781
    %v8904 = vadd.f32 %v8903, %v8783
    %v8905 = vadd.f32 %v8904, %v8785
    %v8906 = vadd.f32 %v8905, %v8787
    %v8907 = vadd.f32 %v8906, %v8789
    %v8908 = vadd.f32 %v8907, %v8791
    %v8909 = vadd.f32 %v8908, %v8793
    %v8910 = vadd.f32 %v8909, %v8795
    %v8911 = vadd.f32 %v8910, %v8797
    %v8912 = vadd.f32 %v8911, %v8799
    %v8913 = vadd.f32 %v8912, %v8801
    %v8914 = vadd.f32 %v8913, %v8803
    %v8915 = vadd.f32 %v8914, %v8805
    %v8916 = vadd.f32 %v8915, %v8807
    %v8917 = vadd.f32 %v8916, %v8809
    %v8918 = vadd.f32 %v8917, %v8811
    %v8919 = vadd.f32 %v8918, %v8813
    %v8920 = vadd.f32 %v8919, %v8815
    %v8921 = vadd.f32 %v8920, %v8817
    %v8922 = vadd.f32 %v8921, %v8819
    %v8923 = vadd.f32 %v8922, %v8821
    %v8924 = vadd.f32 %v8923, %v8823
    %v8925 = vadd.f32 %v8924, %v8825
    %v8926 = vadd.f32 %v8925, %v8827
    %v8927 = vadd.f32 %v8926, %v8829
    %v8928 = vadd.f32 %v8927, %v8831
    %v8929 = vadd.f32 %v8928, %v8833
    %v8930 = vadd.f32 %v8929, %v8835
    %v8931 = vadd.f32 %v8930, %v8837
    %v8932 = vadd.f32 %v8931, %v8839
    %v8933 = vadd.f32 %v8932, %v8841
    %v8934 = vadd.f32 %v8933, %v8843
    %v8935 = vadd.f32 %v8934, %v8845
    %v8936 = vadd.f32 %v8935, %v8847
    %v8937 = vadd.f32 %v8936, %v8849
    %v8938 = vadd.f32 %v8937, %v8851
    %v8939 = vadd.f32 %v8938, %v8853
    %v8940 = vadd.f32 %v8939, %v8855
    %v8941 = vadd.f32 %v8940, %v8857
    %v8942 = vadd.f32 %v8941, %v8859
    %v8943 = vadd.f32 %v8942, %v8861
    %v8944 = vadd.f32 %v8943, %v8863
    %v8945 = vadd.f32 %v8944, %v8865
    %v8946 = vadd.f32 %v8945, %v8867
    %v8947 = vadd.f32 %v8946, %v8869
    %v8948 = vadd.f32 %v8947, %v8871
    %v8949 = vadd.f32 %v8948, %v8873
    %v8950 = vadd.f32 %v8949, %v8875
    %v8951 = vadd.f32 %v8950, %v8877
    %v8952 = vadd.f32 %v8951, %v8879
    %v8953 = vadd.f32 %v8952, %v8881
    %v8954 = vadd.f32 %v8953, %v8883
    %v8955 = vadd.f32 %v8954, %v8885
    %v8956 = vadd.f32 %v8955, %v8887
    %v8957 = vadd.f32 %v8956, %v8889
    %v8958 = vadd.f32 %v8957, %v8891
    %v8959 = vadd.f32 %v8958, %v8893
    %v8960 = vadd.f32 %v8959, %v8895
    %v8961 = vadd.f32 %v8960, %v8897
    %v8962 = vrot.slane %v8961, 4
    %v8963 = vadd.f32 %v8961, %v8962
    %v8964 = vrot.slane %v8963, 2
    %v8965 = vadd.f32 %v8963, %v8964
    %v8966 = vrot.slane %v8965, 1
    %v8967 = vadd.f32 %v8965, %v8966
    %v8968 = vadd.f32 %v8772, %v8774
    %v8969 = vadd.f32 %v8968, %v8776
    %v8970 = vadd.f32 %v8969, %v8778
    %v8971 = vadd.f32 %v8970, %v8780
    %v8972 = vadd.f32 %v8971, %v8782
    %v8973 = vadd.f32 %v8972, %v8784
    %v8974 = vadd.f32 %v8973, %v8786
    %v8975 = vadd.f32 %v8974, %v8788
    %v8976 = vadd.f32 %v8975, %v8790
    %v8977 = vadd.f32 %v8976, %v8792
    %v8978 = vadd.f32 %v8977, %v8794
    %v8979 = vadd.f32 %v8978, %v8796
    %v8980 = vadd.f32 %v8979, %v8798
    %v8981 = vadd.f32 %v8980, %v8800
    %v8982 = vadd.f32 %v8981, %v8802
    %v8983 = vadd.f32 %v8982, %v8804
    %v8984 = vadd.f32 %v8983, %v8806
    %v8985 = vadd.f32 %v8984, %v8808
    %v8986 = vadd.f32 %v8985, %v8810
    %v8987 = vadd.f32 %v8986, %v8812
    %v8988 = vadd.f32 %v8987, %v8814
    %v8989 = vadd.f32 %v8988, %v8816
    %v8990 = vadd.f32 %v8989, %v8818
    %v8991 = vadd.f32 %v8990, %v8820
    %v8992 = vadd.f32 %v8991, %v8822
    %v8993 = vadd.f32 %v8992, %v8824
    %v8994 = vadd.f32 %v8993, %v8826
    %v8995 = vadd.f32 %v8994, %v8828
    %v8996 = vadd.f32 %v8995, %v8830
    %v8997 = vadd.f32 %v8996, %v8832
    %v8998 = vadd.f32 %v8997, %v8834
    %v8999 = vadd.f32 %v8998, %v8836
    %v9000 = vadd.f32 %v8999, %v8838
    %v9001 = vadd.f32 %v9000, %v8840
    %v9002 = vadd.f32 %v9001, %v8842
    %v9003 = vadd.f32 %v9002, %v8844
    %v9004 = vadd.f32 %v9003, %v8846
    %v9005 = vadd.f32 %v9004, %v8848
    %v9006 = vadd.f32 %v9005, %v8850
    %v9007 = vadd.f32 %v9006, %v8852
    %v9008 = vadd.f32 %v9007, %v8854
    %v9009 = vadd.f32 %v9008, %v8856
    %v9010 = vadd.f32 %v9009, %v8858
    %v9011 = vadd.f32 %v9010, %v8860
    %v9012 = vadd.f32 %v9011, %v8862
    %v9013 = vadd.f32 %v9012, %v8864
    %v9014 = vadd.f32 %v9013, %v8866
    %v9015 = vadd.f32 %v9014, %v8868
    %v9016 = vadd.f32 %v9015, %v8870
    %v9017 = vadd.f32 %v9016, %v8872
    %v9018 = vadd.f32 %v9017, %v8874
    %v9019 = vadd.f32 %v9018, %v8876
    %v9020 = vadd.f32 %v9019, %v8878
    %v9021 = vadd.f32 %v9020, %v8880
    %v9022 = vadd.f32 %v9021, %v8882
    %v9023 = vadd.f32 %v9022, %v8884
    %v9024 = vadd.f32 %v9023, %v8886
    %v9025 = vadd.f32 %v9024, %v8888
    %v9026 = vadd.f32 %v9025, %v8890
    %v9027 = vadd.f32 %v9026, %v8892
    %v9028 = vadd.f32 %v9027, %v8894
    %v9029 = vadd.f32 %v9028, %v8896
    %v9030 = vadd.f32 %v9029, %v8898
    %v9031 = vrot.slane %v9030, 4
    %v9032 = vadd.f32 %v9030, %v9031
    %v9033 = vrot.slane %v9032, 2
    %v9034 = vadd.f32 %v9032, %v9033
    %v9035 = vrot.slane %v9034, 1
    %v9036 = vadd.f32 %v9034, %v9035
    %v9037 = vmul.f32 %v8967, %v737
    %v9038 = vmul.f32 %v9036, %v737
    %v9039 = vadd.f32 %v9037, 1e-05
    %v9040 = vadd.f32 %v9038, 1e-05
    %v9041 = vrsqrt.pop %v9039
    %v9042 = vrsqrt.pop %v9040
    %v9043 = vmul.f32 %v8643, %v9041
    %v9044 = vmul.f32 %v8644, %v9042
    %v9045 = vmul.f32 %v8645, %v9041
    %v9046 = vmul.f32 %v8646, %v9042
    %v9047 = vmul.f32 %v8647, %v9041
    %v9048 = vmul.f32 %v8648, %v9042
    %v9049 = vmul.f32 %v8649, %v9041
    %v9050 = vmul.f32 %v8650, %v9042
    %v9051 = vmul.f32 %v8651, %v9041
    %v9052 = vmul.f32 %v8652, %v9042
    %v9053 = vmul.f32 %v8653, %v9041
    %v9054 = vmul.f32 %v8654, %v9042
    %v9055 = vmul.f32 %v8655, %v9041
    %v9056 = vmul.f32 %v8656, %v9042
    %v9057 = vmul.f32 %v8657, %v9041
    %v9058 = vmul.f32 %v8658, %v9042
    %v9059 = vmul.f32 %v8659, %v9041
    %v9060 = vmul.f32 %v8660, %v9042
    %v9061 = vmul.f32 %v8661, %v9041
    %v9062 = vmul.f32 %v8662, %v9042
    %v9063 = vmul.f32 %v8663, %v9041
    %v9064 = vmul.f32 %v8664, %v9042
    %v9065 = vmul.f32 %v8665, %v9041
    %v9066 = vmul.f32 %v8666, %v9042
    %v9067 = vmul.f32 %v8667, %v9041
    %v9068 = vmul.f32 %v8668, %v9042
    %v9069 = vmul.f32 %v8669, %v9041
    %v9070 = vmul.f32 %v8670, %v9042
    %v9071 = vmul.f32 %v8671, %v9041
    %v9072 = vmul.f32 %v8672, %v9042
    %v9073 = vmul.f32 %v8673, %v9041
    %v9074 = vmul.f32 %v8674, %v9042
    %v9075 = vmul.f32 %v8675, %v9041
    %v9076 = vmul.f32 %v8676, %v9042
    %v9077 = vmul.f32 %v8677, %v9041
    %v9078 = vmul.f32 %v8678, %v9042
    %v9079 = vmul.f32 %v8679, %v9041
    %v9080 = vmul.f32 %v8680, %v9042
    %v9081 = vmul.f32 %v8681, %v9041
    %v9082 = vmul.f32 %v8682, %v9042
    %v9083 = vmul.f32 %v8683, %v9041
    %v9084 = vmul.f32 %v8684, %v9042
    %v9085 = vmul.f32 %v8685, %v9041
    %v9086 = vmul.f32 %v8686, %v9042
    %v9087 = vmul.f32 %v8687, %v9041
    %v9088 = vmul.f32 %v8688, %v9042
    %v9089 = vmul.f32 %v8689, %v9041
    %v9090 = vmul.f32 %v8690, %v9042
    %v9091 = vmul.f32 %v8691, %v9041
    %v9092 = vmul.f32 %v8692, %v9042
    %v9093 = vmul.f32 %v8693, %v9041
    %v9094 = vmul.f32 %v8694, %v9042
    %v9095 = vmul.f32 %v8695, %v9041
    %v9096 = vmul.f32 %v8696, %v9042
    %v9097 = vmul.f32 %v8697, %v9041
    %v9098 = vmul.f32 %v8698, %v9042
    %v9099 = vmul.f32 %v8699, %v9041
    %v9100 = vmul.f32 %v8700, %v9042
    %v9101 = vmul.f32 %v8701, %v9041
    %v9102 = vmul.f32 %v8702, %v9042
    %v9103 = vmul.f32 %v8703, %v9041
    %v9104 = vmul.f32 %v8704, %v9042
    %v9105 = vmul.f32 %v8705, %v9041
    %v9106 = vmul.f32 %v8706, %v9042
    %v9107 = vmul.f32 %v8707, %v9041
    %v9108 = vmul.f32 %v8708, %v9042
    %v9109 = vmul.f32 %v8709, %v9041
    %v9110 = vmul.f32 %v8710, %v9042
    %v9111 = vmul.f32 %v8711, %v9041
    %v9112 = vmul.f32 %v8712, %v9042
    %v9113 = vmul.f32 %v8713, %v9041
    %v9114 = vmul.f32 %v8714, %v9042
    %v9115 = vmul.f32 %v8715, %v9041
    %v9116 = vmul.f32 %v8716, %v9042
    %v9117 = vmul.f32 %v8717, %v9041
    %v9118 = vmul.f32 %v8718, %v9042
    %v9119 = vmul.f32 %v8719, %v9041
    %v9120 = vmul.f32 %v8720, %v9042
    %v9121 = vmul.f32 %v8721, %v9041
    %v9122 = vmul.f32 %v8722, %v9042
    %v9123 = vmul.f32 %v8723, %v9041
    %v9124 = vmul.f32 %v8724, %v9042
    %v9125 = vmul.f32 %v8725, %v9041
    %v9126 = vmul.f32 %v8726, %v9042
    %v9127 = vmul.f32 %v8727, %v9041
    %v9128 = vmul.f32 %v8728, %v9042
    %v9129 = vmul.f32 %v8729, %v9041
    %v9130 = vmul.f32 %v8730, %v9042
    %v9131 = vmul.f32 %v8731, %v9041
    %v9132 = vmul.f32 %v8732, %v9042
    %v9133 = vmul.f32 %v8733, %v9041
    %v9134 = vmul.f32 %v8734, %v9042
    %v9135 = vmul.f32 %v8735, %v9041
    %v9136 = vmul.f32 %v8736, %v9042
    %v9137 = vmul.f32 %v8737, %v9041
    %v9138 = vmul.f32 %v8738, %v9042
    %v9139 = vmul.f32 %v8739, %v9041
    %v9140 = vmul.f32 %v8740, %v9042
    %v9141 = vmul.f32 %v8741, %v9041
    %v9142 = vmul.f32 %v8742, %v9042
    %v9143 = vmul.f32 %v8743, %v9041
    %v9144 = vmul.f32 %v8744, %v9042
    %v9145 = vmul.f32 %v8745, %v9041
    %v9146 = vmul.f32 %v8746, %v9042
    %v9147 = vmul.f32 %v8747, %v9041
    %v9148 = vmul.f32 %v8748, %v9042
    %v9149 = vmul.f32 %v8749, %v9041
    %v9150 = vmul.f32 %v8750, %v9042
    %v9151 = vmul.f32 %v8751, %v9041
    %v9152 = vmul.f32 %v8752, %v9042
    %v9153 = vmul.f32 %v8753, %v9041
    %v9154 = vmul.f32 %v8754, %v9042
    %v9155 = vmul.f32 %v8755, %v9041
    %v9156 = vmul.f32 %v8756, %v9042
    %v9157 = vmul.f32 %v8757, %v9041
    %v9158 = vmul.f32 %v8758, %v9042
    %v9159 = vmul.f32 %v8759, %v9041
    %v9160 = vmul.f32 %v8760, %v9042
    %v9161 = vmul.f32 %v8761, %v9041
    %v9162 = vmul.f32 %v8762, %v9042
    %v9163 = vmul.f32 %v8763, %v9041
    %v9164 = vmul.f32 %v8764, %v9042
    %v9165 = vmul.f32 %v8765, %v9041
    %v9166 = vmul.f32 %v8766, %v9042
    %v9167 = vmul.f32 %v8767, %v9041
    %v9168 = vmul.f32 %v8768, %v9042
    %v9169 = vmul.f32 %v8769, %v9041
    %v9170 = vmul.f32 %v8770, %v9042
    %v9171 = vadd.f32 %v7974, %v9043
    %v9172 = vadd.f32 %v7975, %v9044
    %v9173 = vadd.f32 %v7976, %v9045
    %v9174 = vadd.f32 %v7977, %v9046
    %v9175 = vadd.f32 %v7978, %v9047
    %v9176 = vadd.f32 %v7979, %v9048
    %v9177 = vadd.f32 %v7980, %v9049
    %v9178 = vadd.f32 %v7981, %v9050
    %v9179 = vadd.f32 %v7982, %v9051
    %v9180 = vadd.f32 %v7983, %v9052
    %v9181 = vadd.f32 %v7984, %v9053
    %v9182 = vadd.f32 %v7985, %v9054
    %v9183 = vadd.f32 %v7986, %v9055
    %v9184 = vadd.f32 %v7987, %v9056
    %v9185 = vadd.f32 %v7988, %v9057
    %v9186 = vadd.f32 %v7989, %v9058
    %v9187 = vadd.f32 %v7990, %v9059
    %v9188 = vadd.f32 %v7991, %v9060
    %v9189 = vadd.f32 %v7992, %v9061
    %v9190 = vadd.f32 %v7993, %v9062
    %v9191 = vadd.f32 %v7994, %v9063
    %v9192 = vadd.f32 %v7995, %v9064
    %v9193 = vadd.f32 %v7996, %v9065
    %v9194 = vadd.f32 %v7997, %v9066
    %v9195 = vadd.f32 %v7998, %v9067
    %v9196 = vadd.f32 %v7999, %v9068
    %v9197 = vadd.f32 %v8000, %v9069
    %v9198 = vadd.f32 %v8001, %v9070
    %v9199 = vadd.f32 %v8002, %v9071
    %v9200 = vadd.f32 %v8003, %v9072
    %v9201 = vadd.f32 %v8004, %v9073
    %v9202 = vadd.f32 %v8005, %v9074
    %v9203 = vadd.f32 %v8006, %v9075
    %v9204 = vadd.f32 %v8007, %v9076
    %v9205 = vadd.f32 %v8008, %v9077
    %v9206 = vadd.f32 %v8009, %v9078
    %v9207 = vadd.f32 %v8010, %v9079
    %v9208 = vadd.f32 %v8011, %v9080
    %v9209 = vadd.f32 %v8012, %v9081
    %v9210 = vadd.f32 %v8013, %v9082
    %v9211 = vadd.f32 %v8014, %v9083
    %v9212 = vadd.f32 %v8015, %v9084
    %v9213 = vadd.f32 %v8016, %v9085
    %v9214 = vadd.f32 %v8017, %v9086
    %v9215 = vadd.f32 %v8018, %v9087
    %v9216 = vadd.f32 %v8019, %v9088
    %v9217 = vadd.f32 %v8020, %v9089
    %v9218 = vadd.f32 %v8021, %v9090
    %v9219 = vadd.f32 %v8022, %v9091
    %v9220 = vadd.f32 %v8023, %v9092
    %v9221 = vadd.f32 %v8024, %v9093
    %v9222 = vadd.f32 %v8025, %v9094
    %v9223 = vadd.f32 %v8026, %v9095
    %v9224 = vadd.f32 %v8027, %v9096
    %v9225 = vadd.f32 %v8028, %v9097
    %v9226 = vadd.f32 %v8029, %v9098
    %v9227 = vadd.f32 %v8030, %v9099
    %v9228 = vadd.f32 %v8031, %v9100
    %v9229 = vadd.f32 %v8032, %v9101
    %v9230 = vadd.f32 %v8033, %v9102
    %v9231 = vadd.f32 %v8034, %v9103
    %v9232 = vadd.f32 %v8035, %v9104
    %v9233 = vadd.f32 %v8036, %v9105
    %v9234 = vadd.f32 %v8037, %v9106
    %v9235 = vadd.f32 %v8038, %v9107
    %v9236 = vadd.f32 %v8039, %v9108
    %v9237 = vadd.f32 %v8040, %v9109
    %v9238 = vadd.f32 %v8041, %v9110
    %v9239 = vadd.f32 %v8042, %v9111
    %v9240 = vadd.f32 %v8043, %v9112
    %v9241 = vadd.f32 %v8044, %v9113
    %v9242 = vadd.f32 %v8045, %v9114
    %v9243 = vadd.f32 %v8046, %v9115
    %v9244 = vadd.f32 %v8047, %v9116
    %v9245 = vadd.f32 %v8048, %v9117
    %v9246 = vadd.f32 %v8049, %v9118
    %v9247 = vadd.f32 %v8050, %v9119
    %v9248 = vadd.f32 %v8051, %v9120
    %v9249 = vadd.f32 %v8052, %v9121
    %v9250 = vadd.f32 %v8053, %v9122
    %v9251 = vadd.f32 %v8054, %v9123
    %v9252 = vadd.f32 %v8055, %v9124
    %v9253 = vadd.f32 %v8056, %v9125
    %v9254 = vadd.f32 %v8057, %v9126
    %v9255 = vadd.f32 %v8058, %v9127
    %v9256 = vadd.f32 %v8059, %v9128
    %v9257 = vadd.f32 %v8060, %v9129
    %v9258 = vadd.f32 %v8061, %v9130
    %v9259 = vadd.f32 %v8062, %v9131
    %v9260 = vadd.f32 %v8063, %v9132
    %v9261 = vadd.f32 %v8064, %v9133
    %v9262 = vadd.f32 %v8065, %v9134
    %v9263 = vadd.f32 %v8066, %v9135
    %v9264 = vadd.f32 %v8067, %v9136
    %v9265 = vadd.f32 %v8068, %v9137
    %v9266 = vadd.f32 %v8069, %v9138
    %v9267 = vadd.f32 %v8070, %v9139
    %v9268 = vadd.f32 %v8071, %v9140
    %v9269 = vadd.f32 %v8072, %v9141
    %v9270 = vadd.f32 %v8073, %v9142
    %v9271 = vadd.f32 %v8074, %v9143
    %v9272 = vadd.f32 %v8075, %v9144
    %v9273 = vadd.f32 %v8076, %v9145
    %v9274 = vadd.f32 %v8077, %v9146
    %v9275 = vadd.f32 %v8078, %v9147
    %v9276 = vadd.f32 %v8079, %v9148
    %v9277 = vadd.f32 %v8080, %v9149
    %v9278 = vadd.f32 %v8081, %v9150
    %v9279 = vadd.f32 %v8082, %v9151
    %v9280 = vadd.f32 %v8083, %v9152
    %v9281 = vadd.f32 %v8084, %v9153
    %v9282 = vadd.f32 %v8085, %v9154
    %v9283 = vadd.f32 %v8086, %v9155
    %v9284 = vadd.f32 %v8087, %v9156
    %v9285 = vadd.f32 %v8088, %v9157
    %v9286 = vadd.f32 %v8089, %v9158
    %v9287 = vadd.f32 %v8090, %v9159
    %v9288 = vadd.f32 %v8091, %v9160
    %v9289 = vadd.f32 %v8092, %v9161
    %v9290 = vadd.f32 %v8093, %v9162
    %v9291 = vadd.f32 %v8094, %v9163
    %v9292 = vadd.f32 %v8095, %v9164
    %v9293 = vadd.f32 %v8096, %v9165
    %v9294 = vadd.f32 %v8097, %v9166
    %v9295 = vadd.f32 %v8098, %v9167
    %v9296 = vadd.f32 %v8099, %v9168
    %v9297 = vadd.f32 %v8100, %v9169
    %v9298 = vadd.f32 %v8101, %v9170
    %v9299 = vmax.f32 %v9171, 0.0
    %v9300 = vmax.f32 %v9172, 0.0
    %v9301 = vmax.f32 %v9173, 0.0
    %v9302 = vmax.f32 %v9174, 0.0
    %v9303 = vmax.f32 %v9175, 0.0
    %v9304 = vmax.f32 %v9176, 0.0
    %v9305 = vmax.f32 %v9177, 0.0
    %v9306 = vmax.f32 %v9178, 0.0
    %v9307 = vmax.f32 %v9179, 0.0
    %v9308 = vmax.f32 %v9180, 0.0
    %v9309 = vmax.f32 %v9181, 0.0
    %v9310 = vmax.f32 %v9182, 0.0
    %v9311 = vmax.f32 %v9183, 0.0
    %v9312 = vmax.f32 %v9184, 0.0
    %v9313 = vmax.f32 %v9185, 0.0
    %v9314 = vmax.f32 %v9186, 0.0
    %v9315 = vmax.f32 %v9187, 0.0
    %v9316 = vmax.f32 %v9188, 0.0
    %v9317 = vmax.f32 %v9189, 0.0
    %v9318 = vmax.f32 %v9190, 0.0
    %v9319 = vmax.f32 %v9191, 0.0
    %v9320 = vmax.f32 %v9192, 0.0
    %v9321 = vmax.f32 %v9193, 0.0
    %v9322 = vmax.f32 %v9194, 0.0
    %v9323 = vmax.f32 %v9195, 0.0
    %v9324 = vmax.f32 %v9196, 0.0
    %v9325 = vmax.f32 %v9197, 0.0
    %v9326 = vmax.f32 %v9198, 0.0
    %v9327 = vmax.f32 %v9199, 0.0
    %v9328 = vmax.f32 %v9200, 0.0
    %v9329 = vmax.f32 %v9201, 0.0
    %v9330 = vmax.f32 %v9202, 0.0
    %v9331 = vmax.f32 %v9203, 0.0
    %v9332 = vmax.f32 %v9204, 0.0
    %v9333 = vmax.f32 %v9205, 0.0
    %v9334 = vmax.f32 %v9206, 0.0
    %v9335 = vmax.f32 %v9207, 0.0
    %v9336 = vmax.f32 %v9208, 0.0
    %v9337 = vmax.f32 %v9209, 0.0
    %v9338 = vmax.f32 %v9210, 0.0
    %v9339 = vmax.f32 %v9211, 0.0
    %v9340 = vmax.f32 %v9212, 0.0
    %v9341 = vmax.f32 %v9213, 0.0
    %v9342 = vmax.f32 %v9214, 0.0
    %v9343 = vmax.f32 %v9215, 0.0
    %v9344 = vmax.f32 %v9216, 0.0
    %v9345 = vmax.f32 %v9217, 0.0
    %v9346 = vmax.f32 %v9218, 0.0
    %v9347 = vmax.f32 %v9219, 0.0
    %v9348 = vmax.f32 %v9220, 0.0
    %v9349 = vmax.f32 %v9221, 0.0
    %v9350 = vmax.f32 %v9222, 0.0
    %v9351 = vmax.f32 %v9223, 0.0
    %v9352 = vmax.f32 %v9224, 0.0
    %v9353 = vmax.f32 %v9225, 0.0
    %v9354 = vmax.f32 %v9226, 0.0
    %v9355 = vmax.f32 %v9227, 0.0
    %v9356 = vmax.f32 %v9228, 0.0
    %v9357 = vmax.f32 %v9229, 0.0
    %v9358 = vmax.f32 %v9230, 0.0
    %v9359 = vmax.f32 %v9231, 0.0
    %v9360 = vmax.f32 %v9232, 0.0
    %v9361 = vmax.f32 %v9233, 0.0
    %v9362 = vmax.f32 %v9234, 0.0
    %v9363 = vmax.f32 %v9235, 0.0
    %v9364 = vmax.f32 %v9236, 0.0
    %v9365 = vmax.f32 %v9237, 0.0
    %v9366 = vmax.f32 %v9238, 0.0
    %v9367 = vmax.f32 %v9239, 0.0
    %v9368 = vmax.f32 %v9240, 0.0
    %v9369 = vmax.f32 %v9241, 0.0
    %v9370 = vmax.f32 %v9242, 0.0
    %v9371 = vmax.f32 %v9243, 0.0
    %v9372 = vmax.f32 %v9244, 0.0
    %v9373 = vmax.f32 %v9245, 0.0
    %v9374 = vmax.f32 %v9246, 0.0
    %v9375 = vmax.f32 %v9247, 0.0
    %v9376 = vmax.f32 %v9248, 0.0
    %v9377 = vmax.f32 %v9249, 0.0
    %v9378 = vmax.f32 %v9250, 0.0
    %v9379 = vmax.f32 %v9251, 0.0
    %v9380 = vmax.f32 %v9252, 0.0
    %v9381 = vmax.f32 %v9253, 0.0
    %v9382 = vmax.f32 %v9254, 0.0
    %v9383 = vmax.f32 %v9255, 0.0
    %v9384 = vmax.f32 %v9256, 0.0
    %v9385 = vmax.f32 %v9257, 0.0
    %v9386 = vmax.f32 %v9258, 0.0
    %v9387 = vmax.f32 %v9259, 0.0
    %v9388 = vmax.f32 %v9260, 0.0
    %v9389 = vmax.f32 %v9261, 0.0
    %v9390 = vmax.f32 %v9262, 0.0
    %v9391 = vmax.f32 %v9263, 0.0
    %v9392 = vmax.f32 %v9264, 0.0
    %v9393 = vmax.f32 %v9265, 0.0
    %v9394 = vmax.f32 %v9266, 0.0
    %v9395 = vmax.f32 %v9267, 0.0
    %v9396 = vmax.f32 %v9268, 0.0
    %v9397 = vmax.f32 %v9269, 0.0
    %v9398 = vmax.f32 %v9270, 0.0
    %v9399 = vmax.f32 %v9271, 0.0
    %v9400 = vmax.f32 %v9272, 0.0
    %v9401 = vmax.f32 %v9273, 0.0
    %v9402 = vmax.f32 %v9274, 0.0
    %v9403 = vmax.f32 %v9275, 0.0
    %v9404 = vmax.f32 %v9276, 0.0
    %v9405 = vmax.f32 %v9277, 0.0
    %v9406 = vmax.f32 %v9278, 0.0
    %v9407 = vmax.f32 %v9279, 0.0
    %v9408 = vmax.f32 %v9280, 0.0
    %v9409 = vmax.f32 %v9281, 0.0
    %v9410 = vmax.f32 %v9282, 0.0
    %v9411 = vmax.f32 %v9283, 0.0
    %v9412 = vmax.f32 %v9284, 0.0
    %v9413 = vmax.f32 %v9285, 0.0
    %v9414 = vmax.f32 %v9286, 0.0
    %v9415 = vmax.f32 %v9287, 0.0
    %v9416 = vmax.f32 %v9288, 0.0
    %v9417 = vmax.f32 %v9289, 0.0
    %v9418 = vmax.f32 %v9290, 0.0
    %v9419 = vmax.f32 %v9291, 0.0
    %v9420 = vmax.f32 %v9292, 0.0
    %v9421 = vmax.f32 %v9293, 0.0
    %v9422 = vmax.f32 %v9294, 0.0
    %v9423 = vmax.f32 %v9295, 0.0
    %v9424 = vmax.f32 %v9296, 0.0
    %v9425 = vmax.f32 %v9297, 0.0
    %v9426 = vmax.f32 %v9298, 0.0
    %9427 = vst [vmem:[#allocation12] sm:$0xff] %v9299
    %9428 = vst [vmem:[#allocation12 + $0x8] sm:$0xff] %v9300
    %9429 = vst [vmem:[#allocation12 + $0x10] sm:$0xff] %v9301
    %9430 = vst [vmem:[#allocation12 + $0x18] sm:$0xff] %v9302
    %9431 = vst [vmem:[#allocation12 + $0x20] sm:$0xff] %v9303
    %9432 = vst [vmem:[#allocation12 + $0x28] sm:$0xff] %v9304
    %9433 = vst [vmem:[#allocation12 + $0x30] sm:$0xff] %v9305
    %9434 = vst [vmem:[#allocation12 + $0x38] sm:$0xff] %v9306
    %9435 = vst [vmem:[#allocation12 + $0x40] sm:$0xff] %v9307
    %9436 = vst [vmem:[#allocation12 + $0x48] sm:$0xff] %v9308
    %9437 = vst [vmem:[#allocation12 + $0x50] sm:$0xff] %v9309
    %9438 = vst [vmem:[#allocation12 + $0x58] sm:$0xff] %v9310
    %9439 = vst [vmem:[#allocation12 + $0x60] sm:$0xff] %v9311
    %9440 = vst [vmem:[#allocation12 + $0x68] sm:$0xff] %v9312
    %9441 = vst [vmem:[#allocation12 + $0x70] sm:$0xff] %v9313
    %9442 = vst [vmem:[#allocation12 + $0x78] sm:$0xff] %v9314
    %9443 = vst [vmem:[#allocation12 + $0x80] sm:$0xff] %v9315
    %9444 = vst [vmem:[#allocation12 + $0x88] sm:$0xff] %v9316
    %9445 = vst [vmem:[#allocation12 + $0x90] sm:$0xff] %v9317
    %9446 = vst [vmem:[#allocation12 + $0x98] sm:$0xff] %v9318
    %9447 = vst [vmem:[#allocation12 + $0xa0] sm:$0xff] %v9319
    %9448 = vst [vmem:[#allocation12 + $0xa8] sm:$0xff] %v9320
    %9449 = vst [vmem:[#allocation12 + $0xb0] sm:$0xff] %v9321
    %9450 = vst [vmem:[#allocation12 + $0xb8] sm:$0xff] %v9322
    %9451 = vst [vmem:[#allocation12 + $0xc0] sm:$0xff] %v9323
    %9452 = vst [vmem:[#allocation12 + $0xc8] sm:$0xff] %v9324
    %9453 = vst [vmem:[#allocation12 + $0xd0] sm:$0xff] %v9325
    %9454 = vst [vmem:[#allocation12 + $0xd8] sm:$0xff] %v9326
    %9455 = vst [vmem:[#allocation12 + $0xe0] sm:$0xff] %v9327
    %9456 = vst [vmem:[#allocation12 + $0xe8] sm:$0xff] %v9328
    %9457 = vst [vmem:[#allocation12 + $0xf0] sm:$0xff] %v9329
    %9458 = vst [vmem:[#allocation12 + $0xf8] sm:$0xff] %v9330
    %9459 = vst [vmem:[#allocation12 + $0x100] sm:$0xff] %v9331
    %9460 = vst [vmem:[#allocation12 + $0x108] sm:$0xff] %v9332
    %9461 = vst [vmem:[#allocation12 + $0x110] sm:$0xff] %v9333
    %9462 = vst [vmem:[#allocation12 + $0x118] sm:$0xff] %v9334
    %9463 = vst [vmem:[#allocation12 + $0x120] sm:$0xff] %v9335
    %9464 = vst [vmem:[#allocation12 + $0x128] sm:$0xff] %v9336
    %9465 = vst [vmem:[#allocation12 + $0x130] sm:$0xff] %v9337
    %9466 = vst [vmem:[#allocation12 + $0x138] sm:$0xff] %v9338
    %9467 = vst [vmem:[#allocation12 + $0x140] sm:$0xff] %v9339
    %9468 = vst [vmem:[#allocation12 + $0x148] sm:$0xff] %v9340
    %9469 = vst [vmem:[#allocation12 + $0x150] sm:$0xff] %v9341
    %9470 = vst [vmem:[#allocation12 + $0x158] sm:$0xff] %v9342
    %9471 = vst [vmem:[#allocation12 + $0x160] sm:$0xff] %v9343
    %9472 = vst [vmem:[#allocation12 + $0x168] sm:$0xff] %v9344
    %9473 = vst [vmem:[#allocation12 + $0x170] sm:$0xff] %v9345
    %9474 = vst [vmem:[#allocation12 + $0x178] sm:$0xff] %v9346
    %9475 = vst [vmem:[#allocation12 + $0x180] sm:$0xff] %v9347
    %9476 = vst [vmem:[#allocation12 + $0x188] sm:$0xff] %v9348
    %9477 = vst [vmem:[#allocation12 + $0x190] sm:$0xff] %v9349
    %9478 = vst [vmem:[#allocation12 + $0x198] sm:$0xff] %v9350
    %9479 = vst [vmem:[#allocation12 + $0x1a0] sm:$0xff] %v9351
    %9480 = vst [vmem:[#allocation12 + $0x1a8] sm:$0xff] %v9352
    %9481 = vst [vmem:[#allocation12 + $0x1b0] sm:$0xff] %v9353
    %9482 = vst [vmem:[#allocation12 + $0x1b8] sm:$0xff] %v9354
    %9483 = vst [vmem:[#allocation12 + $0x1c0] sm:$0xff] %v9355
    %9484 = vst [vmem:[#allocation12 + $0x1c8] sm:$0xff] %v9356
    %9485 = vst [vmem:[#allocation12 + $0x1d0] sm:$0xff] %v9357
    %9486 = vst [vmem:[#allocation12 + $0x1d8] sm:$0xff] %v9358
    %9487 = vst [vmem:[#allocation12 + $0x1e0] sm:$0xff] %v9359
    %9488 = vst [vmem:[#allocation12 + $0x1e8] sm:$0xff] %v9360
    %9489 = vst [vmem:[#allocation12 + $0x1f0] sm:$0xff] %v9361
    %9490 = vst [vmem:[#allocation12 + $0x1f8] sm:$0xff] %v9362
    %9491 = vst [vmem:[#allocation12 + $0x200] sm:$0xff] %v9363
    %9492 = vst [vmem:[#allocation12 + $0x208] sm:$0xff] %v9364
    %9493 = vst [vmem:[#allocation12 + $0x210] sm:$0xff] %v9365
    %9494 = vst [vmem:[#allocation12 + $0x218] sm:$0xff] %v9366
    %9495 = vst [vmem:[#allocation12 + $0x220] sm:$0xff] %v9367
    %9496 = vst [vmem:[#allocation12 + $0x228] sm:$0xff] %v9368
    %9497 = vst [vmem:[#allocation12 + $0x230] sm:$0xff] %v9369
    %9498 = vst [vmem:[#allocation12 + $0x238] sm:$0xff] %v9370
    %9499 = vst [vmem:[#allocation12 + $0x240] sm:$0xff] %v9371
    %9500 = vst [vmem:[#allocation12 + $0x248] sm:$0xff] %v9372
    %9501 = vst [vmem:[#allocation12 + $0x250] sm:$0xff] %v9373
    %9502 = vst [vmem:[#allocation12 + $0x258] sm:$0xff] %v9374
    %9503 = vst [vmem:[#allocation12 + $0x260] sm:$0xff] %v9375
    %9504 = vst [vmem:[#allocation12 + $0x268] sm:$0xff] %v9376
    %9505 = vst [vmem:[#allocation12 + $0x270] sm:$0xff] %v9377
    %9506 = vst [vmem:[#allocation12 + $0x278] sm:$0xff] %v9378
    %9507 = vst [vmem:[#allocation12 + $0x280] sm:$0xff] %v9379
    %9508 = vst [vmem:[#allocation12 + $0x288] sm:$0xff] %v9380
    %9509 = vst [vmem:[#allocation12 + $0x290] sm:$0xff] %v9381
    %9510 = vst [vmem:[#allocation12 + $0x298] sm:$0xff] %v9382
    %9511 = vst [vmem:[#allocation12 + $0x2a0] sm:$0xff] %v9383
    %9512 = vst [vmem:[#allocation12 + $0x2a8] sm:$0xff] %v9384
    %9513 = vst [vmem:[#allocation12 + $0x2b0] sm:$0xff] %v9385
    %9514 = vst [vmem:[#allocation12 + $0x2b8] sm:$0xff] %v9386
    %9515 = vst [vmem:[#allocation12 + $0x2c0] sm:$0xff] %v9387
    %9516 = vst [vmem:[#allocation12 + $0x2c8] sm:$0xff] %v9388
    %9517 = vst [vmem:[#allocation12 + $0x2d0] sm:$0xff] %v9389
    %9518 = vst [vmem:[#allocation12 + $0x2d8] sm:$0xff] %v9390
    %9519 = vst [vmem:[#allocation12 + $0x2e0] sm:$0xff] %v9391
    %9520 = vst [vmem:[#allocation12 + $0x2e8] sm:$0xff] %v9392
    %9521 = vst [vmem:[#allocation12 + $0x2f0] sm:$0xff] %v9393
    %9522 = vst [vmem:[#allocation12 + $0x2f8] sm:$0xff] %v9394
    %9523 = vst [vmem:[#allocation12 + $0x300] sm:$0xff] %v9395
    %9524 = vst [vmem:[#allocation12 + $0x308] sm:$0xff] %v9396
    %9525 = vst [vmem:[#allocation12 + $0x310] sm:$0xff] %v9397
    %9526 = vst [vmem:[#allocation12 + $0x318] sm:$0xff] %v9398
    %9527 = vst [vmem:[#allocation12 + $0x320] sm:$0xff] %v9399
    %9528 = vst [vmem:[#allocation12 + $0x328] sm:$0xff] %v9400
    %9529 = vst [vmem:[#allocation12 + $0x330] sm:$0xff] %v9401
    %9530 = vst [vmem:[#allocation12 + $0x338] sm:$0xff] %v9402
    %9531 = vst [vmem:[#allocation12 + $0x340] sm:$0xff] %v9403
    %9532 = vst [vmem:[#allocation12 + $0x348] sm:$0xff] %v9404
    %9533 = vst [vmem:[#allocation12 + $0x350] sm:$0xff] %v9405
    %9534 = vst [vmem:[#allocation12 + $0x358] sm:$0xff] %v9406
    %9535 = vst [vmem:[#allocation12 + $0x360] sm:$0xff] %v9407
    %9536 = vst [vmem:[#allocation12 + $0x368] sm:$0xff] %v9408
    %9537 = vst [vmem:[#allocation12 + $0x370] sm:$0xff] %v9409
    %9538 = vst [vmem:[#allocation12 + $0x378] sm:$0xff] %v9410
    %9539 = vst [vmem:[#allocation12 + $0x380] sm:$0xff] %v9411
    %9540 = vst [vmem:[#allocation12 + $0x388] sm:$0xff] %v9412
    %9541 = vst [vmem:[#allocation12 + $0x390] sm:$0xff] %v9413
    %9542 = vst [vmem:[#allocation12 + $0x398] sm:$0xff] %v9414
    %9543 = vst [vmem:[#allocation12 + $0x3a0] sm:$0xff] %v9415
    %9544 = vst [vmem:[#allocation12 + $0x3a8] sm:$0xff] %v9416
    %9545 = vst [vmem:[#allocation12 + $0x3b0] sm:$0xff] %v9417
    %9546 = vst [vmem:[#allocation12 + $0x3b8] sm:$0xff] %v9418
    %9547 = vst [vmem:[#allocation12 + $0x3c0] sm:$0xff] %v9419
    %9548 = vst [vmem:[#allocation12 + $0x3c8] sm:$0xff] %v9420
    %9549 = vst [vmem:[#allocation12 + $0x3d0] sm:$0xff] %v9421
    %9550 = vst [vmem:[#allocation12 + $0x3d8] sm:$0xff] %v9422
    %9551 = vst [vmem:[#allocation12 + $0x3e0] sm:$0xff] %v9423
    %9552 = vst [vmem:[#allocation12 + $0x3e8] sm:$0xff] %v9424
    %9553 = vst [vmem:[#allocation12 + $0x3f0] sm:$0xff] %v9425
    %9554 = vst [vmem:[#allocation12 + $0x3f8] sm:$0xff] %v9426
    // Predicated region
    $region42: #{bottleneck2_forward.1} parent=1 // pred_check
      _
    $region43: #{bottleneck2_forward.1} parent=1 // pred_check_branch
      %9556 = sbr.rel (0) target = $region45
    $region44: #{bottleneck2_forward.1} parent=1 // pred_region
      %s9558 = ssub.s32 16384, 16384
      %9559 = vsyncadd [#allocation5], %s9558
      %s9560 = sshll.u32 [#allocation12], 4
      %s9561 = int_to_ptr.vmem [resolvable:$true] %s9560
      %9566 = dma.vmem_to_hbm [thread:$0]  %s9561, 16384, %s5, [#allocation5], 256, 256, 16
    $region45: #{bottleneck2_forward.1} parent=1 // pred_fallthru
      _
    // Predicated region
    $region46: #{bottleneck2_forward.1} parent=1 // pred_check
      _
    $region47: #{bottleneck2_forward.1} parent=1 // pred_check_branch
      %9568 = sbr.rel (0) target = $region49
    $region48: #{bottleneck2_forward.1} parent=1 // pred_region
      %9569 = dma.done [#allocation5], 16384
    $region49: #{bottleneck2_forward.1} parent=1 // pred_fallthru
      _
    %9570 = vsyncpa [#allocation4], 1
    %9571 = vsyncpa [#allocation7], 1
    %9572 = vsyncpa [#allocation10], 1
    %9573 = vsyncpa [#allocation5], 1

</llo_original>
